<compile_context>
chip_gen: v7x
topology: tpu7x:2x2x1
jax: 0.10.0
libtpu: 0.0.40
codegen_flags: <defaults>
</compile_context>

<pallas_src>
import jax
import jax.numpy as jnp
from jax.experimental import pallas as pl
from jax.experimental.pallas import tpu as pltpu

# ---- small ViT config (same structure as vit_base_patch16_224, tiny sizes) ----
IMG = 16                      # image spatial size
PATCH = 4                     # patch size
IN_CH = 3                     # input channels
EMBED = 32                    # embed dim (num_features)
DEPTH = 2                     # transformer blocks
HEADS = 4                     # attention heads
HEAD_DIM = EMBED // HEADS     # 8
MLP_RATIO = 4
HIDDEN = MLP_RATIO * EMBED    # 128
N_CLASSES = 8                 # projection-head output dim
LN_EPS = 1e-6                 # timm ViT LayerNorm eps

NPATCH = (IMG // PATCH) ** 2  # 16 patch tokens
PD = IN_CH * PATCH * PATCH    # 48 pixels per patch
S_REAL = NPATCH + 1           # 17 real tokens (patches + cls)
S_PAD = 24                    # sequence padded to a multiple of 8 sublanes
CLS_ROW = NPATCH              # cls token stored last so patch rows stay aligned
OUT_PAD = 128                 # lane-dense padded head-output width


# ----------------------------- fused Pallas kernel -----------------------------
def _fused_vit_kernel(
    patches_ref, base_ref, patch_w_ref, patch_b_ref,
    ln1_g_ref, ln1_b_ref,
    wq_ref, wk_ref, wv_ref, bq_ref, bk_ref, bv_ref,
    proj_w_ref, proj_b_ref,
    ln2_g_ref, ln2_b_ref,
    fc1_w_ref, fc1_b_ref, fc2_w_ref, fc2_b_ref,
    lnf_g_ref, lnf_b_ref,
    head1_w_ref, head1_b_ref, head2_w_ref, head2_b_ref,
    out_ref,
):
    f32 = jnp.float32

    def mm(a, b):
        return jnp.dot(a, b, preferred_element_type=f32)

    def mm_t(a, b):  # a @ b.T without materializing a transpose
        return jax.lax.dot_general(a, b, (((1,), (1,)), ((), ())),
                                   preferred_element_type=f32)

    def layernorm(v, g, b):
        mu = jnp.mean(v, axis=-1, keepdims=True)
        vc = v - mu
        var = jnp.mean(vc * vc, axis=-1, keepdims=True)
        return vc * jax.lax.rsqrt(var + LN_EPS) * g + b

    # ---- patch embed: Conv2d(C, D, P, stride=P) == patchify + matmul ----
    tok = mm(patches_ref[0], patch_w_ref[...]) + patch_b_ref[...]       # (NPATCH, D)
    # token matrix: rows [0, NPATCH) = patch tokens, row CLS_ROW = cls token,
    # rows [S_REAL, S_PAD) = zero padding (masked out of attention below).
    tok_pad = jnp.concatenate(
        [tok, jnp.zeros((S_PAD - NPATCH, EMBED), f32)], axis=0)
    x = base_ref[...] + tok_pad                                          # (S_PAD, D)

    # additive key-column mask for padded tokens (hoisted out of all loops)
    col = jax.lax.broadcasted_iota(jnp.int32, (1, S_PAD), 1)
    mask_add = jnp.where(col < S_REAL, jnp.float32(0.0), jnp.float32(-1e30))

    # ---- transformer blocks (pre-norm), static unroll over DEPTH ----
    for d in range(DEPTH):
        # MHSA — all heads in this same kernel invocation (static unroll)
        y = layernorm(x, ln1_g_ref[d], ln1_b_ref[d])
        attn = jnp.zeros((S_PAD, EMBED), f32)
        for h in range(HEADS):
            # wq / bq have the 1/sqrt(Dh) attention scale folded in at pack time
            q = mm(y, wq_ref[d, h]) + bq_ref[d, h]                       # (S_PAD, Dh)
            k = mm(y, wk_ref[d, h]) + bk_ref[d, h]
            v = mm(y, wv_ref[d, h]) + bv_ref[d, h]
            s = mm_t(q, k) + mask_add                                    # (S_PAD, S_PAD)
            s = s - jnp.max(s, axis=-1, keepdims=True)
            p = jnp.exp(s)
            o = mm(p, v)                                                 # (S_PAD, Dh)
            o = o * pl.reciprocal(jnp.sum(p, axis=-1, keepdims=True), approx=True)
            # concat(o_h) @ proj_w == sum_h o_h @ proj_w[h]  (avoids lane concat)
            attn = attn + mm(o, proj_w_ref[d, h])
        x = x + attn + proj_b_ref[d]

        # MLP
        y = layernorm(x, ln2_g_ref[d], ln2_b_ref[d])
        hdn = mm(y, fc1_w_ref[d]) + fc1_b_ref[d]                         # (S_PAD, HIDDEN)
        # exact erf-based GELU (matches torch.nn.GELU default used by timm ViT)
        hdn = 0.5 * hdn * (1.0 + jax.lax.erf(hdn * jnp.float32(0.7071067811865476)))
        x = x + mm(hdn, fc2_w_ref[d]) + fc2_b_ref[d]

    # ---- final norm + projection head, computed only on the 8-row sublane block
    #      that holds the cls token (LN and the head are row-wise ops) ----
    x_cls = x[CLS_ROW:CLS_ROW + 8, :]                                    # (8, D)
    xn = layernorm(x_cls, lnf_g_ref[...], lnf_b_ref[...])
    hh = jnp.maximum(mm(xn, head1_w_ref[...]) + head1_b_ref[...], 0.0)   # (8, D)
    # full dense (8, 128) store keeps the output lane/sublane-dense (unmasked vst);
    # row 0 of this tile is the cls-token output.
    out_ref[0] = mm(hh, head2_w_ref[...]) + head2_b_ref[...]             # (8, OUT_PAD)


def _rep_spec(shape):
    """Full-array block identical for every grid step (weights etc.)."""
    zeros = (0,) * len(shape)
    return pl.BlockSpec(shape, lambda b, _z=zeros: _z)


def _fused_call(p, patches):
    B = patches.shape[0]

    in_specs = [
        pl.BlockSpec((1, NPATCH, PD), lambda b: (b, 0, 0)),    # per-batch patches
        _rep_spec((S_PAD, EMBED)),                             # base tokens (cls+pos)
        _rep_spec((PD, EMBED)), _rep_spec((1, EMBED)),         # patch embed w, b
        _rep_spec((DEPTH, 1, EMBED)), _rep_spec((DEPTH, 1, EMBED)),      # ln1 g, b
        _rep_spec((DEPTH, HEADS, EMBED, HEAD_DIM)),            # wq (scale folded)
        _rep_spec((DEPTH, HEADS, EMBED, HEAD_DIM)),            # wk
        _rep_spec((DEPTH, HEADS, EMBED, HEAD_DIM)),            # wv
        _rep_spec((DEPTH, HEADS, 1, HEAD_DIM)),                # bq (scale folded)
        _rep_spec((DEPTH, HEADS, 1, HEAD_DIM)),                # bk
        _rep_spec((DEPTH, HEADS, 1, HEAD_DIM)),                # bv
        _rep_spec((DEPTH, HEADS, HEAD_DIM, EMBED)),            # proj w (per head)
        _rep_spec((DEPTH, 1, EMBED)),                          # proj b
        _rep_spec((DEPTH, 1, EMBED)), _rep_spec((DEPTH, 1, EMBED)),      # ln2 g, b
        _rep_spec((DEPTH, EMBED, HIDDEN)), _rep_spec((DEPTH, 1, HIDDEN)),  # fc1
        _rep_spec((DEPTH, HIDDEN, EMBED)), _rep_spec((DEPTH, 1, EMBED)),   # fc2
        _rep_spec((1, EMBED)), _rep_spec((1, EMBED)),          # final ln g, b
        _rep_spec((EMBED, EMBED)), _rep_spec((1, EMBED)),      # head1 w, b
        _rep_spec((EMBED, OUT_PAD)), _rep_spec((1, OUT_PAD)),  # head2 w, b (padded)
    ]

    out = pl.pallas_call(
        _fused_vit_kernel,
        grid=(B,),
        in_specs=in_specs,
        out_specs=pl.BlockSpec((1, 8, OUT_PAD), lambda b: (b, 0, 0)),
        out_shape=jax.ShapeDtypeStruct((B, 8, OUT_PAD), jnp.float32),
        compiler_params=pltpu.CompilerParams(
            dimension_semantics=("parallel",)),    # batch axis -> 2nd TC on v7x
    )(
        patches, p["base"], p["patch_w"], p["patch_b"],
        p["ln1_g"], p["ln1_b"],
        p["wq"], p["wk"], p["wv"], p["bq"], p["bk"], p["bv"],
        p["proj_w"], p["proj_b"],
        p["ln2_g"], p["ln2_b"],
        p["fc1_w"], p["fc1_b"], p["fc2_w"], p["fc2_b"],
        p["lnf_g"], p["lnf_b"],
        p["head1_w"], p["head1_b"], p["head2_w"], p["head2_b"],
    )
    return out


def supcon_vit_forward(packed, x):
    """x: (B, C, H, W) float32 NCHW.  Returns (B, N_CLASSES)."""
    B, C, H, W = x.shape
    ph, pw = H // PATCH, W // PATCH
    # patchify (one-time XLA glue): ordering (C, p_h, p_w) matches
    # Conv2d(C, D, P, stride=P).weight.reshape(D, -1).T.
    patches = x.reshape(B, C, ph, PATCH, pw, PATCH)
    patches = patches.transpose(0, 2, 4, 1, 3, 5).reshape(B, ph * pw, C * PATCH * PATCH)
    out = _fused_call(packed, patches)              # (B, 8, OUT_PAD)
    return out[:, 0, :N_CLASSES]


# ----------------------------- parameters -----------------------------
def init_params(key):
    def normal(k, shape, scale=0.02):
        return (scale * jax.random.normal(k, shape)).astype(jnp.float32)

    keys = iter(jax.random.split(key, 16))

    # qkv generated in the timm layout (D, 3D) with output = [q | k | v] and heads
    # contiguous inside each; re-packed per head so the kernel indexes w[d, h]
    # with ref loads (no in-kernel lane slicing).
    qkv_w = normal(next(keys), (DEPTH, EMBED, 3 * EMBED))
    qkv_w = qkv_w.reshape(DEPTH, EMBED, 3, HEADS, HEAD_DIM)
    wq = jnp.transpose(qkv_w[:, :, 0], (0, 2, 1, 3))   # (DEPTH, HEADS, D, Dh)
    wk = jnp.transpose(qkv_w[:, :, 1], (0, 2, 1, 3))
    wv = jnp.transpose(qkv_w[:, :, 2], (0, 2, 1, 3))
    # attn.proj: input dim partitioned per head -> (DEPTH, HEADS, Dh, D)
    proj_w = normal(next(keys), (DEPTH, EMBED, EMBED)).reshape(
        DEPTH, HEADS, HEAD_DIM, EMBED)

    params = {
        # patch embed == Conv2d(C, D, P, stride=P) weight (D,C,P,P).reshape(D,-1).T
        "patch_w": normal(next(keys), (PD, EMBED)),
        "patch_b": jnp.zeros((1, EMBED), jnp.float32),
        "cls_token": normal(next(keys), (1, EMBED)),
        "pos_embed": normal(next(keys), (S_REAL, EMBED)),
        "ln_f_g": jnp.ones((1, EMBED), jnp.float32),
        "ln_f_b": jnp.zeros((1, EMBED), jnp.float32),
        # 'mlp' projection head: Linear(D, D) -> ReLU -> Linear(D, n_classes)
        "head1_w": normal(next(keys), (EMBED, EMBED)),
        "head1_b": jnp.zeros((1, EMBED), jnp.float32),
        "head2_w": normal(next(keys), (EMBED, N_CLASSES)),
        "head2_b": jnp.zeros((1, N_CLASSES), jnp.float32),
        "blocks": {
            "ln1_g": jnp.ones((DEPTH, 1, EMBED), jnp.float32),
            "ln1_b": jnp.zeros((DEPTH, 1, EMBED), jnp.float32),
            "wq": wq, "wk": wk, "wv": wv,
            "bq": jnp.zeros((DEPTH, HEADS, 1, HEAD_DIM), jnp.float32),
            "bk": jnp.zeros((DEPTH, HEADS, 1, HEAD_DIM), jnp.float32),
            "bv": jnp.zeros((DEPTH, HEADS, 1, HEAD_DIM), jnp.float32),
            "proj_w": proj_w,
            "proj_b": jnp.zeros((DEPTH, 1, EMBED), jnp.float32),
            "ln2_g": jnp.ones((DEPTH, 1, EMBED), jnp.float32),
            "ln2_b": jnp.zeros((DEPTH, 1, EMBED), jnp.float32),
            "fc1_w": normal(next(keys), (DEPTH, EMBED, HIDDEN)),
            "fc1_b": jnp.zeros((DEPTH, 1, HIDDEN), jnp.float32),
            "fc2_w": normal(next(keys), (DEPTH, HIDDEN, EMBED)),
            "fc2_b": jnp.zeros((DEPTH, 1, EMBED), jnp.float32),
        },
    }
    return params


def pack_params(p):
    """One-time packing of torch-layout-like params into kernel-ready arrays."""
    blk = p["blocks"]
    scale = jnp.float32(HEAD_DIM ** -0.5)

    # token "base": positional embeddings (+ cls token), padded to S_PAD rows,
    # with the cls token stored at row CLS_ROW (attention is permutation-invariant).
    pos = p["pos_embed"]
    base = jnp.concatenate([
        pos[1:, :],                                            # rows 0..NPATCH-1
        p["cls_token"] + pos[0:1, :],                          # row CLS_ROW
        jnp.zeros((S_PAD - S_REAL, EMBED), jnp.float32),       # padding rows
    ], axis=0)

    # lane-pad the narrow head output (N_CLASSES=8 -> 128) so the store is dense
    h2_w = jnp.pad(p["head2_w"], ((0, 0), (0, OUT_PAD - N_CLASSES)))
    h2_b = jnp.pad(p["head2_b"], ((0, 0), (0, OUT_PAD - N_CLASSES)))

    return {
        "base": base,
        "patch_w": p["patch_w"], "patch_b": p["patch_b"],
        "ln1_g": blk["ln1_g"], "ln1_b": blk["ln1_b"],
        # fold the 1/sqrt(Dh) attention scale into the query weights/bias
        "wq": blk["wq"] * scale, "wk": blk["wk"], "wv": blk["wv"],
        "bq": blk["bq"] * scale, "bk": blk["bk"], "bv": blk["bv"],
        "proj_w": blk["proj_w"], "proj_b": blk["proj_b"],
        "ln2_g": blk["ln2_g"], "ln2_b": blk["ln2_b"],
        "fc1_w": blk["fc1_w"], "fc1_b": blk["fc1_b"],
        "fc2_w": blk["fc2_w"], "fc2_b": blk["fc2_b"],
        "lnf_g": p["ln_f_g"], "lnf_b": p["ln_f_b"],
        "head1_w": p["head1_w"], "head1_b": p["head1_b"],
        "head2_w": h2_w, "head2_b": h2_b,
    }


if __name__ == "__main__":
    key = jax.random.PRNGKey(0)
    pkey, xkey = jax.random.split(key)
    params = init_params(pkey)
    packed = pack_params(params)          # one-time weight packing, outside jit
    x = jax.random.normal(xkey, (2, IN_CH, IMG, IMG), dtype=jnp.float32)  # NCHW

    fwd = jax.jit(supcon_vit_forward)
    out = jax.block_until_ready(fwd(packed, x))
    assert out.shape == (2, N_CLASSES) and out.dtype == jnp.float32
    assert bool(jnp.all(jnp.isfinite(out)))
    print("KERNEL_OK")
</pallas_src>

<mosaic_0001>
module attributes {stable_mosaic.version = 11 : i64} {
  func.func @_fused_vit_kernel(%arg0: i32, %arg1: memref<1x16x48xf32, #tpu.memory_space<vmem>>, %arg2: memref<24x32xf32, #tpu.memory_space<vmem>>, %arg3: memref<48x32xf32, #tpu.memory_space<vmem>>, %arg4: memref<1x32xf32, #tpu.memory_space<vmem>>, %arg5: memref<2x1x32xf32, #tpu.memory_space<vmem>>, %arg6: memref<2x1x32xf32, #tpu.memory_space<vmem>>, %arg7: memref<2x4x32x8xf32, #tpu.memory_space<vmem>>, %arg8: memref<2x4x32x8xf32, #tpu.memory_space<vmem>>, %arg9: memref<2x4x32x8xf32, #tpu.memory_space<vmem>>, %arg10: memref<2x4x1x8xf32, #tpu.memory_space<vmem>>, %arg11: memref<2x4x1x8xf32, #tpu.memory_space<vmem>>, %arg12: memref<2x4x1x8xf32, #tpu.memory_space<vmem>>, %arg13: memref<2x4x8x32xf32, #tpu.memory_space<vmem>>, %arg14: memref<2x1x32xf32, #tpu.memory_space<vmem>>, %arg15: memref<2x1x32xf32, #tpu.memory_space<vmem>>, %arg16: memref<2x1x32xf32, #tpu.memory_space<vmem>>, %arg17: memref<2x32x128xf32, #tpu.memory_space<vmem>>, %arg18: memref<2x1x128xf32, #tpu.memory_space<vmem>>, %arg19: memref<2x128x32xf32, #tpu.memory_space<vmem>>, %arg20: memref<2x1x32xf32, #tpu.memory_space<vmem>>, %arg21: memref<1x32xf32, #tpu.memory_space<vmem>>, %arg22: memref<1x32xf32, #tpu.memory_space<vmem>>, %arg23: memref<32x32xf32, #tpu.memory_space<vmem>>, %arg24: memref<1x32xf32, #tpu.memory_space<vmem>>, %arg25: memref<32x128xf32, #tpu.memory_space<vmem>>, %arg26: memref<1x128xf32, #tpu.memory_space<vmem>>, %arg27: memref<1x8x128xf32, #tpu.memory_space<vmem>>) attributes {dimension_semantics = [#tpu.dimension_semantics<parallel>], iteration_bounds = array<i64: 2>, scalar_prefetch = 0 : i64, scratch_operands = 0 : i64, tpu.core_type = #tpu.core_type<tc>, window_params = [{transform_indices = @transform_0, window_bounds = array<i64: 1, 16, 48>}, {pipeline_mode = #tpu.pipeline_mode<synchronous>, transform_indices = @transform_1, window_bounds = array<i64: 24, 32>}, {pipeline_mode = #tpu.pipeline_mode<synchronous>, transform_indices = @transform_2, window_bounds = array<i64: 48, 32>}, {pipeline_mode = #tpu.pipeline_mode<synchronous>, transform_indices = @transform_3, window_bounds = array<i64: 1, 32>}, {pipeline_mode = #tpu.pipeline_mode<synchronous>, transform_indices = @transform_4, window_bounds = array<i64: 2, 1, 32>}, {pipeline_mode = #tpu.pipeline_mode<synchronous>, transform_indices = @transform_5, window_bounds = array<i64: 2, 1, 32>}, {pipeline_mode = #tpu.pipeline_mode<synchronous>, transform_indices = @transform_6, window_bounds = array<i64: 2, 4, 32, 8>}, {pipeline_mode = #tpu.pipeline_mode<synchronous>, transform_indices = @transform_7, window_bounds = array<i64: 2, 4, 32, 8>}, {pipeline_mode = #tpu.pipeline_mode<synchronous>, transform_indices = @transform_8, window_bounds = array<i64: 2, 4, 32, 8>}, {pipeline_mode = #tpu.pipeline_mode<synchronous>, transform_indices = @transform_9, window_bounds = array<i64: 2, 4, 1, 8>}, {pipeline_mode = #tpu.pipeline_mode<synchronous>, transform_indices = @transform_10, window_bounds = array<i64: 2, 4, 1, 8>}, {pipeline_mode = #tpu.pipeline_mode<synchronous>, transform_indices = @transform_11, window_bounds = array<i64: 2, 4, 1, 8>}, {pipeline_mode = #tpu.pipeline_mode<synchronous>, transform_indices = @transform_12, window_bounds = array<i64: 2, 4, 8, 32>}, {pipeline_mode = #tpu.pipeline_mode<synchronous>, transform_indices = @transform_13, window_bounds = array<i64: 2, 1, 32>}, {pipeline_mode = #tpu.pipeline_mode<synchronous>, transform_indices = @transform_14, window_bounds = array<i64: 2, 1, 32>}, {pipeline_mode = #tpu.pipeline_mode<synchronous>, transform_indices = @transform_15, window_bounds = array<i64: 2, 1, 32>}, {pipeline_mode = #tpu.pipeline_mode<synchronous>, transform_indices = @transform_16, window_bounds = array<i64: 2, 32, 128>}, {pipeline_mode = #tpu.pipeline_mode<synchronous>, transform_indices = @transform_17, window_bounds = array<i64: 2, 1, 128>}, {pipeline_mode = #tpu.pipeline_mode<synchronous>, transform_indices = @transform_18, window_bounds = array<i64: 2, 128, 32>}, {pipeline_mode = #tpu.pipeline_mode<synchronous>, transform_indices = @transform_19, window_bounds = array<i64: 2, 1, 32>}, {pipeline_mode = #tpu.pipeline_mode<synchronous>, transform_indices = @transform_20, window_bounds = array<i64: 1, 32>}, {pipeline_mode = #tpu.pipeline_mode<synchronous>, transform_indices = @transform_21, window_bounds = array<i64: 1, 32>}, {pipeline_mode = #tpu.pipeline_mode<synchronous>, transform_indices = @transform_22, window_bounds = array<i64: 32, 32>}, {pipeline_mode = #tpu.pipeline_mode<synchronous>, transform_indices = @transform_23, window_bounds = array<i64: 1, 32>}, {pipeline_mode = #tpu.pipeline_mode<synchronous>, transform_indices = @transform_24, window_bounds = array<i64: 32, 128>}, {pipeline_mode = #tpu.pipeline_mode<synchronous>, transform_indices = @transform_25, window_bounds = array<i64: 1, 128>}, {transform_indices = @transform_26, window_bounds = array<i64: 1, 8, 128>}]} {
    %c0 = arith.constant 0 : index
    %c0_0 = arith.constant 0 : index
    %c0_1 = arith.constant 0 : index
    %0 = vector.load %arg1[%c0, %c0_0, %c0_1] : memref<1x16x48xf32, #tpu.memory_space<vmem>>, vector<1x16x48xf32>
    %1 = vector.shape_cast %0 : vector<1x16x48xf32> to vector<16x48xf32>
    %c0_2 = arith.constant 0 : index
    %c0_3 = arith.constant 0 : index
    %2 = vector.load %arg3[%c0_2, %c0_3] : memref<48x32xf32, #tpu.memory_space<vmem>>, vector<48x32xf32>
    %cst = arith.constant dense<0.000000e+00> : vector<16x32xf32>
    %3 = tpu.matmul %1, %2, %cst {dimension_numbers = #tpu.dot_dimension_numbers<[1], [0], [0], [1], [0, 0, 1, 1], [], []>} : vector<16x48xf32>, vector<48x32xf32>, vector<16x32xf32> -> vector<16x32xf32>
    %c0_4 = arith.constant 0 : index
    %c0_5 = arith.constant 0 : index
    %4 = vector.load %arg4[%c0_4, %c0_5] : memref<1x32xf32, #tpu.memory_space<vmem>>, vector<1x32xf32>
    %5 = vector.broadcast %4 : vector<1x32xf32> to vector<16x32xf32>
    %6 = arith.addf %3, %5 : vector<16x32xf32>
    %cst_6 = arith.constant 0.000000e+00 : f32
    %7 = vector.broadcast %cst_6 : f32 to vector<8x32xf32>
    %8 = tpu.concatenate %6, %7 in 0 : vector<16x32xf32>, vector<8x32xf32> -> vector<24x32xf32>
    %c0_7 = arith.constant 0 : index
    %c0_8 = arith.constant 0 : index
    %9 = vector.load %arg2[%c0_7, %c0_8] : memref<24x32xf32, #tpu.memory_space<vmem>>, vector<24x32xf32>
    %10 = arith.addf %9, %8 : vector<24x32xf32>
    %11 = tpu.iota {dimensions = array<i32: 1>} : vector<1x24xi32>
    %c17_i32 = arith.constant 17 : i32
    %12 = vector.broadcast %c17_i32 : i32 to vector<1x24xi32>
    %13 = arith.cmpi slt, %11, %12 : vector<1x24xi32>
    %cst_9 = arith.constant 0.000000e+00 : f32
    %cst_10 = arith.constant -1.000000e+30 : f32
    %14 = vector.broadcast %cst_9 : f32 to vector<1x24xf32>
    %15 = vector.broadcast %cst_10 : f32 to vector<1x24xf32>
    %16 = arith.select %13, %14, %15 : vector<1x24xi1>, vector<1x24xf32>
    %c0_11 = arith.constant 0 : index
    %c0_12 = arith.constant 0 : index
    %c0_13 = arith.constant 0 : index
    %17 = vector.load %arg5[%c0_11, %c0_12, %c0_13] : memref<2x1x32xf32, #tpu.memory_space<vmem>>, vector<1x1x32xf32>
    %18 = vector.shape_cast %17 : vector<1x1x32xf32> to vector<1x32xf32>
    %c0_14 = arith.constant 0 : index
    %c0_15 = arith.constant 0 : index
    %c0_16 = arith.constant 0 : index
    %19 = vector.load %arg6[%c0_14, %c0_15, %c0_16] : memref<2x1x32xf32, #tpu.memory_space<vmem>>, vector<1x1x32xf32>
    %20 = vector.shape_cast %19 : vector<1x1x32xf32> to vector<1x32xf32>
    %cst_17 = arith.constant dense<0.000000e+00> : vector<24xf32>
    %21 = vector.multi_reduction <add>, %10, %cst_17 [1] : vector<24x32xf32> to vector<24xf32>
    %22 = vector.shape_cast %21 : vector<24xf32> to vector<24x1xf32>
    %cst_18 = arith.constant 3.200000e+01 : f32
    %23 = vector.broadcast %cst_18 : f32 to vector<24x1xf32>
    %24 = arith.divf %22, %23 : vector<24x1xf32>
    %25 = vector.broadcast %24 : vector<24x1xf32> to vector<24x32xf32>
    %26 = arith.subf %10, %25 : vector<24x32xf32>
    %27 = arith.mulf %26, %26 : vector<24x32xf32>
    %cst_19 = arith.constant dense<0.000000e+00> : vector<24xf32>
    %28 = vector.multi_reduction <add>, %27, %cst_19 [1] : vector<24x32xf32> to vector<24xf32>
    %29 = vector.shape_cast %28 : vector<24xf32> to vector<24x1xf32>
    %cst_20 = arith.constant 3.200000e+01 : f32
    %30 = vector.broadcast %cst_20 : f32 to vector<24x1xf32>
    %31 = arith.divf %29, %30 : vector<24x1xf32>
    %cst_21 = arith.constant 9.99999997E-7 : f32
    %32 = vector.broadcast %cst_21 : f32 to vector<24x1xf32>
    %33 = arith.addf %31, %32 : vector<24x1xf32>
    %34 = math.rsqrt %33 : vector<24x1xf32>
    %35 = vector.broadcast %34 : vector<24x1xf32> to vector<24x32xf32>
    %36 = arith.mulf %26, %35 : vector<24x32xf32>
    %37 = vector.broadcast %18 : vector<1x32xf32> to vector<24x32xf32>
    %38 = arith.mulf %36, %37 : vector<24x32xf32>
    %39 = vector.broadcast %20 : vector<1x32xf32> to vector<24x32xf32>
    %40 = arith.addf %38, %39 : vector<24x32xf32>
    %cst_22 = arith.constant 0.000000e+00 : f32
    %41 = vector.broadcast %cst_22 : f32 to vector<24x32xf32>
    %c0_23 = arith.constant 0 : index
    %c0_24 = arith.constant 0 : index
    %c0_25 = arith.constant 0 : index
    %c0_26 = arith.constant 0 : index
    %42 = vector.load %arg7[%c0_23, %c0_24, %c0_25, %c0_26] : memref<2x4x32x8xf32, #tpu.memory_space<vmem>>, vector<1x1x32x8xf32>
    %43 = vector.shape_cast %42 : vector<1x1x32x8xf32> to vector<32x8xf32>
    %cst_27 = arith.constant dense<0.000000e+00> : vector<24x8xf32>
    %44 = tpu.matmul %40, %43, %cst_27 {dimension_numbers = #tpu.dot_dimension_numbers<[1], [0], [0], [1], [0, 0, 1, 1], [], []>} : vector<24x32xf32>, vector<32x8xf32>, vector<24x8xf32> -> vector<24x8xf32>
    %c0_28 = arith.constant 0 : index
    %c0_29 = arith.constant 0 : index
    %c0_30 = arith.constant 0 : index
    %c0_31 = arith.constant 0 : index
    %45 = vector.load %arg10[%c0_28, %c0_29, %c0_30, %c0_31] : memref<2x4x1x8xf32, #tpu.memory_space<vmem>>, vector<1x1x1x8xf32>
    %46 = vector.shape_cast %45 : vector<1x1x1x8xf32> to vector<1x8xf32>
    %47 = vector.broadcast %46 : vector<1x8xf32> to vector<24x8xf32>
    %48 = arith.addf %44, %47 : vector<24x8xf32>
    %c0_32 = arith.constant 0 : index
    %c0_33 = arith.constant 0 : index
    %c0_34 = arith.constant 0 : index
    %c0_35 = arith.constant 0 : index
    %49 = vector.load %arg8[%c0_32, %c0_33, %c0_34, %c0_35] : memref<2x4x32x8xf32, #tpu.memory_space<vmem>>, vector<1x1x32x8xf32>
    %50 = vector.shape_cast %49 : vector<1x1x32x8xf32> to vector<32x8xf32>
    %cst_36 = arith.constant dense<0.000000e+00> : vector<24x8xf32>
    %51 = tpu.matmul %40, %50, %cst_36 {dimension_numbers = #tpu.dot_dimension_numbers<[1], [0], [0], [1], [0, 0, 1, 1], [], []>} : vector<24x32xf32>, vector<32x8xf32>, vector<24x8xf32> -> vector<24x8xf32>
    %c0_37 = arith.constant 0 : index
    %c0_38 = arith.constant 0 : index
    %c0_39 = arith.constant 0 : index
    %c0_40 = arith.constant 0 : index
    %52 = vector.load %arg11[%c0_37, %c0_38, %c0_39, %c0_40] : memref<2x4x1x8xf32, #tpu.memory_space<vmem>>, vector<1x1x1x8xf32>
    %53 = vector.shape_cast %52 : vector<1x1x1x8xf32> to vector<1x8xf32>
    %54 = vector.broadcast %53 : vector<1x8xf32> to vector<24x8xf32>
    %55 = arith.addf %51, %54 : vector<24x8xf32>
    %c0_41 = arith.constant 0 : index
    %c0_42 = arith.constant 0 : index
    %c0_43 = arith.constant 0 : index
    %c0_44 = arith.constant 0 : index
    %56 = vector.load %arg9[%c0_41, %c0_42, %c0_43, %c0_44] : memref<2x4x32x8xf32, #tpu.memory_space<vmem>>, vector<1x1x32x8xf32>
    %57 = vector.shape_cast %56 : vector<1x1x32x8xf32> to vector<32x8xf32>
    %cst_45 = arith.constant dense<0.000000e+00> : vector<24x8xf32>
    %58 = tpu.matmul %40, %57, %cst_45 {dimension_numbers = #tpu.dot_dimension_numbers<[1], [0], [0], [1], [0, 0, 1, 1], [], []>} : vector<24x32xf32>, vector<32x8xf32>, vector<24x8xf32> -> vector<24x8xf32>
    %c0_46 = arith.constant 0 : index
    %c0_47 = arith.constant 0 : index
    %c0_48 = arith.constant 0 : index
    %c0_49 = arith.constant 0 : index
    %59 = vector.load %arg12[%c0_46, %c0_47, %c0_48, %c0_49] : memref<2x4x1x8xf32, #tpu.memory_space<vmem>>, vector<1x1x1x8xf32>
    %60 = vector.shape_cast %59 : vector<1x1x1x8xf32> to vector<1x8xf32>
    %61 = vector.broadcast %60 : vector<1x8xf32> to vector<24x8xf32>
    %62 = arith.addf %58, %61 : vector<24x8xf32>
    %cst_50 = arith.constant dense<0.000000e+00> : vector<24x24xf32>
    %63 = tpu.matmul %48, %55, %cst_50 {dimension_numbers = #tpu.dot_dimension_numbers<[1], [1], [0], [0], [0, 0, 1, 0], [], []>} : vector<24x8xf32>, vector<24x8xf32>, vector<24x24xf32> -> vector<24x24xf32>
    %64 = vector.broadcast %16 : vector<1x24xf32> to vector<24x24xf32>
    %65 = arith.addf %63, %64 : vector<24x24xf32>
    %cst_51 = arith.constant dense<0xFF800000> : vector<24xf32>
    %66 = vector.multi_reduction <maximumf>, %65, %cst_51 [1] : vector<24x24xf32> to vector<24xf32>
    %67 = vector.shape_cast %66 : vector<24xf32> to vector<24x1xf32>
    %68 = vector.broadcast %67 : vector<24x1xf32> to vector<24x24xf32>
    %69 = arith.subf %65, %68 : vector<24x24xf32>
    %70 = math.exp %69 : vector<24x24xf32>
    %cst_52 = arith.constant dense<0.000000e+00> : vector<24x8xf32>
    %71 = tpu.matmul %70, %62, %cst_52 {dimension_numbers = #tpu.dot_dimension_numbers<[1], [0], [0], [1], [0, 0, 1, 1], [], []>} : vector<24x24xf32>, vector<24x8xf32>, vector<24x8xf32> -> vector<24x8xf32>
    %cst_53 = arith.constant dense<0.000000e+00> : vector<24xf32>
    %72 = vector.multi_reduction <add>, %70, %cst_53 [1] : vector<24x24xf32> to vector<24xf32>
    %73 = vector.shape_cast %72 : vector<24xf32> to vector<24x1xf32>
    %74 = tpu.reciprocal %73 {approx = true} : vector<24x1xf32> -> vector<24x1xf32>
    %75 = vector.broadcast %74 : vector<24x1xf32> to vector<24x8xf32>
    %76 = arith.mulf %71, %75 : vector<24x8xf32>
    %c0_54 = arith.constant 0 : index
    %c0_55 = arith.constant 0 : index
    %c0_56 = arith.constant 0 : index
    %c0_57 = arith.constant 0 : index
    %77 = vector.load %arg13[%c0_54, %c0_55, %c0_56, %c0_57] : memref<2x4x8x32xf32, #tpu.memory_space<vmem>>, vector<1x1x8x32xf32>
    %78 = vector.shape_cast %77 : vector<1x1x8x32xf32> to vector<8x32xf32>
    %cst_58 = arith.constant dense<0.000000e+00> : vector<24x32xf32>
    %79 = tpu.matmul %76, %78, %cst_58 {dimension_numbers = #tpu.dot_dimension_numbers<[1], [0], [0], [1], [0, 0, 1, 1], [], []>} : vector<24x8xf32>, vector<8x32xf32>, vector<24x32xf32> -> vector<24x32xf32>
    %80 = arith.addf %41, %79 : vector<24x32xf32>
    %c0_59 = arith.constant 0 : index
    %c1 = arith.constant 1 : index
    %c0_60 = arith.constant 0 : index
    %c0_61 = arith.constant 0 : index
    %81 = vector.load %arg7[%c0_59, %c1, %c0_60, %c0_61] : memref<2x4x32x8xf32, #tpu.memory_space<vmem>>, vector<1x1x32x8xf32>
    %82 = vector.shape_cast %81 : vector<1x1x32x8xf32> to vector<32x8xf32>
    %cst_62 = arith.constant dense<0.000000e+00> : vector<24x8xf32>
    %83 = tpu.matmul %40, %82, %cst_62 {dimension_numbers = #tpu.dot_dimension_numbers<[1], [0], [0], [1], [0, 0, 1, 1], [], []>} : vector<24x32xf32>, vector<32x8xf32>, vector<24x8xf32> -> vector<24x8xf32>
    %c0_63 = arith.constant 0 : index
    %c1_64 = arith.constant 1 : index
    %c0_65 = arith.constant 0 : index
    %c0_66 = arith.constant 0 : index
    %84 = vector.load %arg10[%c0_63, %c1_64, %c0_65, %c0_66] : memref<2x4x1x8xf32, #tpu.memory_space<vmem>>, vector<1x1x1x8xf32>
    %85 = vector.shape_cast %84 : vector<1x1x1x8xf32> to vector<1x8xf32>
    %86 = vector.broadcast %85 : vector<1x8xf32> to vector<24x8xf32>
    %87 = arith.addf %83, %86 : vector<24x8xf32>
    %c0_67 = arith.constant 0 : index
    %c1_68 = arith.constant 1 : index
    %c0_69 = arith.constant 0 : index
    %c0_70 = arith.constant 0 : index
    %88 = vector.load %arg8[%c0_67, %c1_68, %c0_69, %c0_70] : memref<2x4x32x8xf32, #tpu.memory_space<vmem>>, vector<1x1x32x8xf32>
    %89 = vector.shape_cast %88 : vector<1x1x32x8xf32> to vector<32x8xf32>
    %cst_71 = arith.constant dense<0.000000e+00> : vector<24x8xf32>
    %90 = tpu.matmul %40, %89, %cst_71 {dimension_numbers = #tpu.dot_dimension_numbers<[1], [0], [0], [1], [0, 0, 1, 1], [], []>} : vector<24x32xf32>, vector<32x8xf32>, vector<24x8xf32> -> vector<24x8xf32>
    %c0_72 = arith.constant 0 : index
    %c1_73 = arith.constant 1 : index
    %c0_74 = arith.constant 0 : index
    %c0_75 = arith.constant 0 : index
    %91 = vector.load %arg11[%c0_72, %c1_73, %c0_74, %c0_75] : memref<2x4x1x8xf32, #tpu.memory_space<vmem>>, vector<1x1x1x8xf32>
    %92 = vector.shape_cast %91 : vector<1x1x1x8xf32> to vector<1x8xf32>
    %93 = vector.broadcast %92 : vector<1x8xf32> to vector<24x8xf32>
    %94 = arith.addf %90, %93 : vector<24x8xf32>
    %c0_76 = arith.constant 0 : index
    %c1_77 = arith.constant 1 : index
    %c0_78 = arith.constant 0 : index
    %c0_79 = arith.constant 0 : index
    %95 = vector.load %arg9[%c0_76, %c1_77, %c0_78, %c0_79] : memref<2x4x32x8xf32, #tpu.memory_space<vmem>>, vector<1x1x32x8xf32>
    %96 = vector.shape_cast %95 : vector<1x1x32x8xf32> to vector<32x8xf32>
    %cst_80 = arith.constant dense<0.000000e+00> : vector<24x8xf32>
    %97 = tpu.matmul %40, %96, %cst_80 {dimension_numbers = #tpu.dot_dimension_numbers<[1], [0], [0], [1], [0, 0, 1, 1], [], []>} : vector<24x32xf32>, vector<32x8xf32>, vector<24x8xf32> -> vector<24x8xf32>
    %c0_81 = arith.constant 0 : index
    %c1_82 = arith.constant 1 : index
    %c0_83 = arith.constant 0 : index
    %c0_84 = arith.constant 0 : index
    %98 = vector.load %arg12[%c0_81, %c1_82, %c0_83, %c0_84] : memref<2x4x1x8xf32, #tpu.memory_space<vmem>>, vector<1x1x1x8xf32>
    %99 = vector.shape_cast %98 : vector<1x1x1x8xf32> to vector<1x8xf32>
    %100 = vector.broadcast %99 : vector<1x8xf32> to vector<24x8xf32>
    %101 = arith.addf %97, %100 : vector<24x8xf32>
    %cst_85 = arith.constant dense<0.000000e+00> : vector<24x24xf32>
    %102 = tpu.matmul %87, %94, %cst_85 {dimension_numbers = #tpu.dot_dimension_numbers<[1], [1], [0], [0], [0, 0, 1, 0], [], []>} : vector<24x8xf32>, vector<24x8xf32>, vector<24x24xf32> -> vector<24x24xf32>
    %103 = vector.broadcast %16 : vector<1x24xf32> to vector<24x24xf32>
    %104 = arith.addf %102, %103 : vector<24x24xf32>
    %cst_86 = arith.constant dense<0xFF800000> : vector<24xf32>
    %105 = vector.multi_reduction <maximumf>, %104, %cst_86 [1] : vector<24x24xf32> to vector<24xf32>
    %106 = vector.shape_cast %105 : vector<24xf32> to vector<24x1xf32>
    %107 = vector.broadcast %106 : vector<24x1xf32> to vector<24x24xf32>
    %108 = arith.subf %104, %107 : vector<24x24xf32>
    %109 = math.exp %108 : vector<24x24xf32>
    %cst_87 = arith.constant dense<0.000000e+00> : vector<24x8xf32>
    %110 = tpu.matmul %109, %101, %cst_87 {dimension_numbers = #tpu.dot_dimension_numbers<[1], [0], [0], [1], [0, 0, 1, 1], [], []>} : vector<24x24xf32>, vector<24x8xf32>, vector<24x8xf32> -> vector<24x8xf32>
    %cst_88 = arith.constant dense<0.000000e+00> : vector<24xf32>
    %111 = vector.multi_reduction <add>, %109, %cst_88 [1] : vector<24x24xf32> to vector<24xf32>
    %112 = vector.shape_cast %111 : vector<24xf32> to vector<24x1xf32>
    %113 = tpu.reciprocal %112 {approx = true} : vector<24x1xf32> -> vector<24x1xf32>
    %114 = vector.broadcast %113 : vector<24x1xf32> to vector<24x8xf32>
    %115 = arith.mulf %110, %114 : vector<24x8xf32>
    %c0_89 = arith.constant 0 : index
    %c1_90 = arith.constant 1 : index
    %c0_91 = arith.constant 0 : index
    %c0_92 = arith.constant 0 : index
    %116 = vector.load %arg13[%c0_89, %c1_90, %c0_91, %c0_92] : memref<2x4x8x32xf32, #tpu.memory_space<vmem>>, vector<1x1x8x32xf32>
    %117 = vector.shape_cast %116 : vector<1x1x8x32xf32> to vector<8x32xf32>
    %cst_93 = arith.constant dense<0.000000e+00> : vector<24x32xf32>
    %118 = tpu.matmul %115, %117, %cst_93 {dimension_numbers = #tpu.dot_dimension_numbers<[1], [0], [0], [1], [0, 0, 1, 1], [], []>} : vector<24x8xf32>, vector<8x32xf32>, vector<24x32xf32> -> vector<24x32xf32>
    %119 = arith.addf %80, %118 : vector<24x32xf32>
    %c0_94 = arith.constant 0 : index
    %c2 = arith.constant 2 : index
    %c0_95 = arith.constant 0 : index
    %c0_96 = arith.constant 0 : index
    %120 = vector.load %arg7[%c0_94, %c2, %c0_95, %c0_96] : memref<2x4x32x8xf32, #tpu.memory_space<vmem>>, vector<1x1x32x8xf32>
    %121 = vector.shape_cast %120 : vector<1x1x32x8xf32> to vector<32x8xf32>
    %cst_97 = arith.constant dense<0.000000e+00> : vector<24x8xf32>
    %122 = tpu.matmul %40, %121, %cst_97 {dimension_numbers = #tpu.dot_dimension_numbers<[1], [0], [0], [1], [0, 0, 1, 1], [], []>} : vector<24x32xf32>, vector<32x8xf32>, vector<24x8xf32> -> vector<24x8xf32>
    %c0_98 = arith.constant 0 : index
    %c2_99 = arith.constant 2 : index
    %c0_100 = arith.constant 0 : index
    %c0_101 = arith.constant 0 : index
    %123 = vector.load %arg10[%c0_98, %c2_99, %c0_100, %c0_101] : memref<2x4x1x8xf32, #tpu.memory_space<vmem>>, vector<1x1x1x8xf32>
    %124 = vector.shape_cast %123 : vector<1x1x1x8xf32> to vector<1x8xf32>
    %125 = vector.broadcast %124 : vector<1x8xf32> to vector<24x8xf32>
    %126 = arith.addf %122, %125 : vector<24x8xf32>
    %c0_102 = arith.constant 0 : index
    %c2_103 = arith.constant 2 : index
    %c0_104 = arith.constant 0 : index
    %c0_105 = arith.constant 0 : index
    %127 = vector.load %arg8[%c0_102, %c2_103, %c0_104, %c0_105] : memref<2x4x32x8xf32, #tpu.memory_space<vmem>>, vector<1x1x32x8xf32>
    %128 = vector.shape_cast %127 : vector<1x1x32x8xf32> to vector<32x8xf32>
    %cst_106 = arith.constant dense<0.000000e+00> : vector<24x8xf32>
    %129 = tpu.matmul %40, %128, %cst_106 {dimension_numbers = #tpu.dot_dimension_numbers<[1], [0], [0], [1], [0, 0, 1, 1], [], []>} : vector<24x32xf32>, vector<32x8xf32>, vector<24x8xf32> -> vector<24x8xf32>
    %c0_107 = arith.constant 0 : index
    %c2_108 = arith.constant 2 : index
    %c0_109 = arith.constant 0 : index
    %c0_110 = arith.constant 0 : index
    %130 = vector.load %arg11[%c0_107, %c2_108, %c0_109, %c0_110] : memref<2x4x1x8xf32, #tpu.memory_space<vmem>>, vector<1x1x1x8xf32>
    %131 = vector.shape_cast %130 : vector<1x1x1x8xf32> to vector<1x8xf32>
    %132 = vector.broadcast %131 : vector<1x8xf32> to vector<24x8xf32>
    %133 = arith.addf %129, %132 : vector<24x8xf32>
    %c0_111 = arith.constant 0 : index
    %c2_112 = arith.constant 2 : index
    %c0_113 = arith.constant 0 : index
    %c0_114 = arith.constant 0 : index
    %134 = vector.load %arg9[%c0_111, %c2_112, %c0_113, %c0_114] : memref<2x4x32x8xf32, #tpu.memory_space<vmem>>, vector<1x1x32x8xf32>
    %135 = vector.shape_cast %134 : vector<1x1x32x8xf32> to vector<32x8xf32>
    %cst_115 = arith.constant dense<0.000000e+00> : vector<24x8xf32>
    %136 = tpu.matmul %40, %135, %cst_115 {dimension_numbers = #tpu.dot_dimension_numbers<[1], [0], [0], [1], [0, 0, 1, 1], [], []>} : vector<24x32xf32>, vector<32x8xf32>, vector<24x8xf32> -> vector<24x8xf32>
    %c0_116 = arith.constant 0 : index
    %c2_117 = arith.constant 2 : index
    %c0_118 = arith.constant 0 : index
    %c0_119 = arith.constant 0 : index
    %137 = vector.load %arg12[%c0_116, %c2_117, %c0_118, %c0_119] : memref<2x4x1x8xf32, #tpu.memory_space<vmem>>, vector<1x1x1x8xf32>
    %138 = vector.shape_cast %137 : vector<1x1x1x8xf32> to vector<1x8xf32>
    %139 = vector.broadcast %138 : vector<1x8xf32> to vector<24x8xf32>
    %140 = arith.addf %136, %139 : vector<24x8xf32>
    %cst_120 = arith.constant dense<0.000000e+00> : vector<24x24xf32>
    %141 = tpu.matmul %126, %133, %cst_120 {dimension_numbers = #tpu.dot_dimension_numbers<[1], [1], [0], [0], [0, 0, 1, 0], [], []>} : vector<24x8xf32>, vector<24x8xf32>, vector<24x24xf32> -> vector<24x24xf32>
    %142 = vector.broadcast %16 : vector<1x24xf32> to vector<24x24xf32>
    %143 = arith.addf %141, %142 : vector<24x24xf32>
    %cst_121 = arith.constant dense<0xFF800000> : vector<24xf32>
    %144 = vector.multi_reduction <maximumf>, %143, %cst_121 [1] : vector<24x24xf32> to vector<24xf32>
    %145 = vector.shape_cast %144 : vector<24xf32> to vector<24x1xf32>
    %146 = vector.broadcast %145 : vector<24x1xf32> to vector<24x24xf32>
    %147 = arith.subf %143, %146 : vector<24x24xf32>
    %148 = math.exp %147 : vector<24x24xf32>
    %cst_122 = arith.constant dense<0.000000e+00> : vector<24x8xf32>
    %149 = tpu.matmul %148, %140, %cst_122 {dimension_numbers = #tpu.dot_dimension_numbers<[1], [0], [0], [1], [0, 0, 1, 1], [], []>} : vector<24x24xf32>, vector<24x8xf32>, vector<24x8xf32> -> vector<24x8xf32>
    %cst_123 = arith.constant dense<0.000000e+00> : vector<24xf32>
    %150 = vector.multi_reduction <add>, %148, %cst_123 [1] : vector<24x24xf32> to vector<24xf32>
    %151 = vector.shape_cast %150 : vector<24xf32> to vector<24x1xf32>
    %152 = tpu.reciprocal %151 {approx = true} : vector<24x1xf32> -> vector<24x1xf32>
    %153 = vector.broadcast %152 : vector<24x1xf32> to vector<24x8xf32>
    %154 = arith.mulf %149, %153 : vector<24x8xf32>
    %c0_124 = arith.constant 0 : index
    %c2_125 = arith.constant 2 : index
    %c0_126 = arith.constant 0 : index
    %c0_127 = arith.constant 0 : index
    %155 = vector.load %arg13[%c0_124, %c2_125, %c0_126, %c0_127] : memref<2x4x8x32xf32, #tpu.memory_space<vmem>>, vector<1x1x8x32xf32>
    %156 = vector.shape_cast %155 : vector<1x1x8x32xf32> to vector<8x32xf32>
    %cst_128 = arith.constant dense<0.000000e+00> : vector<24x32xf32>
    %157 = tpu.matmul %154, %156, %cst_128 {dimension_numbers = #tpu.dot_dimension_numbers<[1], [0], [0], [1], [0, 0, 1, 1], [], []>} : vector<24x8xf32>, vector<8x32xf32>, vector<24x32xf32> -> vector<24x32xf32>
    %158 = arith.addf %119, %157 : vector<24x32xf32>
    %c0_129 = arith.constant 0 : index
    %c3 = arith.constant 3 : index
    %c0_130 = arith.constant 0 : index
    %c0_131 = arith.constant 0 : index
    %159 = vector.load %arg7[%c0_129, %c3, %c0_130, %c0_131] : memref<2x4x32x8xf32, #tpu.memory_space<vmem>>, vector<1x1x32x8xf32>
    %160 = vector.shape_cast %159 : vector<1x1x32x8xf32> to vector<32x8xf32>
    %cst_132 = arith.constant dense<0.000000e+00> : vector<24x8xf32>
    %161 = tpu.matmul %40, %160, %cst_132 {dimension_numbers = #tpu.dot_dimension_numbers<[1], [0], [0], [1], [0, 0, 1, 1], [], []>} : vector<24x32xf32>, vector<32x8xf32>, vector<24x8xf32> -> vector<24x8xf32>
    %c0_133 = arith.constant 0 : index
    %c3_134 = arith.constant 3 : index
    %c0_135 = arith.constant 0 : index
    %c0_136 = arith.constant 0 : index
    %162 = vector.load %arg10[%c0_133, %c3_134, %c0_135, %c0_136] : memref<2x4x1x8xf32, #tpu.memory_space<vmem>>, vector<1x1x1x8xf32>
    %163 = vector.shape_cast %162 : vector<1x1x1x8xf32> to vector<1x8xf32>
    %164 = vector.broadcast %163 : vector<1x8xf32> to vector<24x8xf32>
    %165 = arith.addf %161, %164 : vector<24x8xf32>
    %c0_137 = arith.constant 0 : index
    %c3_138 = arith.constant 3 : index
    %c0_139 = arith.constant 0 : index
    %c0_140 = arith.constant 0 : index
    %166 = vector.load %arg8[%c0_137, %c3_138, %c0_139, %c0_140] : memref<2x4x32x8xf32, #tpu.memory_space<vmem>>, vector<1x1x32x8xf32>
    %167 = vector.shape_cast %166 : vector<1x1x32x8xf32> to vector<32x8xf32>
    %cst_141 = arith.constant dense<0.000000e+00> : vector<24x8xf32>
    %168 = tpu.matmul %40, %167, %cst_141 {dimension_numbers = #tpu.dot_dimension_numbers<[1], [0], [0], [1], [0, 0, 1, 1], [], []>} : vector<24x32xf32>, vector<32x8xf32>, vector<24x8xf32> -> vector<24x8xf32>
    %c0_142 = arith.constant 0 : index
    %c3_143 = arith.constant 3 : index
    %c0_144 = arith.constant 0 : index
    %c0_145 = arith.constant 0 : index
    %169 = vector.load %arg11[%c0_142, %c3_143, %c0_144, %c0_145] : memref<2x4x1x8xf32, #tpu.memory_space<vmem>>, vector<1x1x1x8xf32>
    %170 = vector.shape_cast %169 : vector<1x1x1x8xf32> to vector<1x8xf32>
    %171 = vector.broadcast %170 : vector<1x8xf32> to vector<24x8xf32>
    %172 = arith.addf %168, %171 : vector<24x8xf32>
    %c0_146 = arith.constant 0 : index
    %c3_147 = arith.constant 3 : index
    %c0_148 = arith.constant 0 : index
    %c0_149 = arith.constant 0 : index
    %173 = vector.load %arg9[%c0_146, %c3_147, %c0_148, %c0_149] : memref<2x4x32x8xf32, #tpu.memory_space<vmem>>, vector<1x1x32x8xf32>
    %174 = vector.shape_cast %173 : vector<1x1x32x8xf32> to vector<32x8xf32>
    %cst_150 = arith.constant dense<0.000000e+00> : vector<24x8xf32>
    %175 = tpu.matmul %40, %174, %cst_150 {dimension_numbers = #tpu.dot_dimension_numbers<[1], [0], [0], [1], [0, 0, 1, 1], [], []>} : vector<24x32xf32>, vector<32x8xf32>, vector<24x8xf32> -> vector<24x8xf32>
    %c0_151 = arith.constant 0 : index
    %c3_152 = arith.constant 3 : index
    %c0_153 = arith.constant 0 : index
    %c0_154 = arith.constant 0 : index
    %176 = vector.load %arg12[%c0_151, %c3_152, %c0_153, %c0_154] : memref<2x4x1x8xf32, #tpu.memory_space<vmem>>, vector<1x1x1x8xf32>
    %177 = vector.shape_cast %176 : vector<1x1x1x8xf32> to vector<1x8xf32>
    %178 = vector.broadcast %177 : vector<1x8xf32> to vector<24x8xf32>
    %179 = arith.addf %175, %178 : vector<24x8xf32>
    %cst_155 = arith.constant dense<0.000000e+00> : vector<24x24xf32>
    %180 = tpu.matmul %165, %172, %cst_155 {dimension_numbers = #tpu.dot_dimension_numbers<[1], [1], [0], [0], [0, 0, 1, 0], [], []>} : vector<24x8xf32>, vector<24x8xf32>, vector<24x24xf32> -> vector<24x24xf32>
    %181 = vector.broadcast %16 : vector<1x24xf32> to vector<24x24xf32>
    %182 = arith.addf %180, %181 : vector<24x24xf32>
    %cst_156 = arith.constant dense<0xFF800000> : vector<24xf32>
    %183 = vector.multi_reduction <maximumf>, %182, %cst_156 [1] : vector<24x24xf32> to vector<24xf32>
    %184 = vector.shape_cast %183 : vector<24xf32> to vector<24x1xf32>
    %185 = vector.broadcast %184 : vector<24x1xf32> to vector<24x24xf32>
    %186 = arith.subf %182, %185 : vector<24x24xf32>
    %187 = math.exp %186 : vector<24x24xf32>
    %cst_157 = arith.constant dense<0.000000e+00> : vector<24x8xf32>
    %188 = tpu.matmul %187, %179, %cst_157 {dimension_numbers = #tpu.dot_dimension_numbers<[1], [0], [0], [1], [0, 0, 1, 1], [], []>} : vector<24x24xf32>, vector<24x8xf32>, vector<24x8xf32> -> vector<24x8xf32>
    %cst_158 = arith.constant dense<0.000000e+00> : vector<24xf32>
    %189 = vector.multi_reduction <add>, %187, %cst_158 [1] : vector<24x24xf32> to vector<24xf32>
    %190 = vector.shape_cast %189 : vector<24xf32> to vector<24x1xf32>
    %191 = tpu.reciprocal %190 {approx = true} : vector<24x1xf32> -> vector<24x1xf32>
    %192 = vector.broadcast %191 : vector<24x1xf32> to vector<24x8xf32>
    %193 = arith.mulf %188, %192 : vector<24x8xf32>
    %c0_159 = arith.constant 0 : index
    %c3_160 = arith.constant 3 : index
    %c0_161 = arith.constant 0 : index
    %c0_162 = arith.constant 0 : index
    %194 = vector.load %arg13[%c0_159, %c3_160, %c0_161, %c0_162] : memref<2x4x8x32xf32, #tpu.memory_space<vmem>>, vector<1x1x8x32xf32>
    %195 = vector.shape_cast %194 : vector<1x1x8x32xf32> to vector<8x32xf32>
    %cst_163 = arith.constant dense<0.000000e+00> : vector<24x32xf32>
    %196 = tpu.matmul %193, %195, %cst_163 {dimension_numbers = #tpu.dot_dimension_numbers<[1], [0], [0], [1], [0, 0, 1, 1], [], []>} : vector<24x8xf32>, vector<8x32xf32>, vector<24x32xf32> -> vector<24x32xf32>
    %197 = arith.addf %158, %196 : vector<24x32xf32>
    %198 = arith.addf %10, %197 : vector<24x32xf32>
    %c0_164 = arith.constant 0 : index
    %c0_165 = arith.constant 0 : index
    %c0_166 = arith.constant 0 : index
    %199 = vector.load %arg14[%c0_164, %c0_165, %c0_166] : memref<2x1x32xf32, #tpu.memory_space<vmem>>, vector<1x1x32xf32>
    %200 = vector.shape_cast %199 : vector<1x1x32xf32> to vector<1x32xf32>
    %201 = vector.broadcast %200 : vector<1x32xf32> to vector<24x32xf32>
    %202 = arith.addf %198, %201 : vector<24x32xf32>
    %c0_167 = arith.constant 0 : index
    %c0_168 = arith.constant 0 : index
    %c0_169 = arith.constant 0 : index
    %203 = vector.load %arg15[%c0_167, %c0_168, %c0_169] : memref<2x1x32xf32, #tpu.memory_space<vmem>>, vector<1x1x32xf32>
    %204 = vector.shape_cast %203 : vector<1x1x32xf32> to vector<1x32xf32>
    %c0_170 = arith.constant 0 : index
    %c0_171 = arith.constant 0 : index
    %c0_172 = arith.constant 0 : index
    %205 = vector.load %arg16[%c0_170, %c0_171, %c0_172] : memref<2x1x32xf32, #tpu.memory_space<vmem>>, vector<1x1x32xf32>
    %206 = vector.shape_cast %205 : vector<1x1x32xf32> to vector<1x32xf32>
    %cst_173 = arith.constant dense<0.000000e+00> : vector<24xf32>
    %207 = vector.multi_reduction <add>, %202, %cst_173 [1] : vector<24x32xf32> to vector<24xf32>
    %208 = vector.shape_cast %207 : vector<24xf32> to vector<24x1xf32>
    %cst_174 = arith.constant 3.200000e+01 : f32
    %209 = vector.broadcast %cst_174 : f32 to vector<24x1xf32>
    %210 = arith.divf %208, %209 : vector<24x1xf32>
    %211 = vector.broadcast %210 : vector<24x1xf32> to vector<24x32xf32>
    %212 = arith.subf %202, %211 : vector<24x32xf32>
    %213 = arith.mulf %212, %212 : vector<24x32xf32>
    %cst_175 = arith.constant dense<0.000000e+00> : vector<24xf32>
    %214 = vector.multi_reduction <add>, %213, %cst_175 [1] : vector<24x32xf32> to vector<24xf32>
    %215 = vector.shape_cast %214 : vector<24xf32> to vector<24x1xf32>
    %cst_176 = arith.constant 3.200000e+01 : f32
    %216 = vector.broadcast %cst_176 : f32 to vector<24x1xf32>
    %217 = arith.divf %215, %216 : vector<24x1xf32>
    %cst_177 = arith.constant 9.99999997E-7 : f32
    %218 = vector.broadcast %cst_177 : f32 to vector<24x1xf32>
    %219 = arith.addf %217, %218 : vector<24x1xf32>
    %220 = math.rsqrt %219 : vector<24x1xf32>
    %221 = vector.broadcast %220 : vector<24x1xf32> to vector<24x32xf32>
    %222 = arith.mulf %212, %221 : vector<24x32xf32>
    %223 = vector.broadcast %204 : vector<1x32xf32> to vector<24x32xf32>
    %224 = arith.mulf %222, %223 : vector<24x32xf32>
    %225 = vector.broadcast %206 : vector<1x32xf32> to vector<24x32xf32>
    %226 = arith.addf %224, %225 : vector<24x32xf32>
    %c0_178 = arith.constant 0 : index
    %c0_179 = arith.constant 0 : index
    %c0_180 = arith.constant 0 : index
    %227 = vector.load %arg17[%c0_178, %c0_179, %c0_180] : memref<2x32x128xf32, #tpu.memory_space<vmem>>, vector<1x32x128xf32>
    %228 = vector.shape_cast %227 : vector<1x32x128xf32> to vector<32x128xf32>
    %cst_181 = arith.constant dense<0.000000e+00> : vector<24x128xf32>
    %229 = tpu.matmul %226, %228, %cst_181 {dimension_numbers = #tpu.dot_dimension_numbers<[1], [0], [0], [1], [0, 0, 1, 1], [], []>} : vector<24x32xf32>, vector<32x128xf32>, vector<24x128xf32> -> vector<24x128xf32>
    %c0_182 = arith.constant 0 : index
    %c0_183 = arith.constant 0 : index
    %c0_184 = arith.constant 0 : index
    %230 = vector.load %arg18[%c0_182, %c0_183, %c0_184] : memref<2x1x128xf32, #tpu.memory_space<vmem>>, vector<1x1x128xf32>
    %231 = vector.shape_cast %230 : vector<1x1x128xf32> to vector<1x128xf32>
    %232 = vector.broadcast %231 : vector<1x128xf32> to vector<24x128xf32>
    %233 = arith.addf %229, %232 : vector<24x128xf32>
    %cst_185 = arith.constant 5.000000e-01 : f32
    %234 = vector.broadcast %cst_185 : f32 to vector<24x128xf32>
    %235 = arith.mulf %234, %233 : vector<24x128xf32>
    %cst_186 = arith.constant 0.707106769 : f32
    %236 = vector.broadcast %cst_186 : f32 to vector<24x128xf32>
    %237 = arith.mulf %233, %236 : vector<24x128xf32>
    %238 = math.erf %237 : vector<24x128xf32>
    %cst_187 = arith.constant 1.000000e+00 : f32
    %239 = vector.broadcast %cst_187 : f32 to vector<24x128xf32>
    %240 = arith.addf %239, %238 : vector<24x128xf32>
    %241 = arith.mulf %235, %240 : vector<24x128xf32>
    %c0_188 = arith.constant 0 : index
    %c0_189 = arith.constant 0 : index
    %c0_190 = arith.constant 0 : index
    %242 = vector.load %arg19[%c0_188, %c0_189, %c0_190] : memref<2x128x32xf32, #tpu.memory_space<vmem>>, vector<1x128x32xf32>
    %243 = vector.shape_cast %242 : vector<1x128x32xf32> to vector<128x32xf32>
    %cst_191 = arith.constant dense<0.000000e+00> : vector<24x32xf32>
    %244 = tpu.matmul %241, %243, %cst_191 {dimension_numbers = #tpu.dot_dimension_numbers<[1], [0], [0], [1], [0, 0, 1, 1], [], []>} : vector<24x128xf32>, vector<128x32xf32>, vector<24x32xf32> -> vector<24x32xf32>
    %245 = arith.addf %202, %244 : vector<24x32xf32>
    %c0_192 = arith.constant 0 : index
    %c0_193 = arith.constant 0 : index
    %c0_194 = arith.constant 0 : index
    %246 = vector.load %arg20[%c0_192, %c0_193, %c0_194] : memref<2x1x32xf32, #tpu.memory_space<vmem>>, vector<1x1x32xf32>
    %247 = vector.shape_cast %246 : vector<1x1x32xf32> to vector<1x32xf32>
    %248 = vector.broadcast %247 : vector<1x32xf32> to vector<24x32xf32>
    %249 = arith.addf %245, %248 : vector<24x32xf32>
    %c1_195 = arith.constant 1 : index
    %c0_196 = arith.constant 0 : index
    %c0_197 = arith.constant 0 : index
    %250 = vector.load %arg5[%c1_195, %c0_196, %c0_197] : memref<2x1x32xf32, #tpu.memory_space<vmem>>, vector<1x1x32xf32>
    %251 = vector.shape_cast %250 : vector<1x1x32xf32> to vector<1x32xf32>
    %c1_198 = arith.constant 1 : index
    %c0_199 = arith.constant 0 : index
    %c0_200 = arith.constant 0 : index
    %252 = vector.load %arg6[%c1_198, %c0_199, %c0_200] : memref<2x1x32xf32, #tpu.memory_space<vmem>>, vector<1x1x32xf32>
    %253 = vector.shape_cast %252 : vector<1x1x32xf32> to vector<1x32xf32>
    %cst_201 = arith.constant dense<0.000000e+00> : vector<24xf32>
    %254 = vector.multi_reduction <add>, %249, %cst_201 [1] : vector<24x32xf32> to vector<24xf32>
    %255 = vector.shape_cast %254 : vector<24xf32> to vector<24x1xf32>
    %cst_202 = arith.constant 3.200000e+01 : f32
    %256 = vector.broadcast %cst_202 : f32 to vector<24x1xf32>
    %257 = arith.divf %255, %256 : vector<24x1xf32>
    %258 = vector.broadcast %257 : vector<24x1xf32> to vector<24x32xf32>
    %259 = arith.subf %249, %258 : vector<24x32xf32>
    %260 = arith.mulf %259, %259 : vector<24x32xf32>
    %cst_203 = arith.constant dense<0.000000e+00> : vector<24xf32>
    %261 = vector.multi_reduction <add>, %260, %cst_203 [1] : vector<24x32xf32> to vector<24xf32>
    %262 = vector.shape_cast %261 : vector<24xf32> to vector<24x1xf32>
    %cst_204 = arith.constant 3.200000e+01 : f32
    %263 = vector.broadcast %cst_204 : f32 to vector<24x1xf32>
    %264 = arith.divf %262, %263 : vector<24x1xf32>
    %cst_205 = arith.constant 9.99999997E-7 : f32
    %265 = vector.broadcast %cst_205 : f32 to vector<24x1xf32>
    %266 = arith.addf %264, %265 : vector<24x1xf32>
    %267 = math.rsqrt %266 : vector<24x1xf32>
    %268 = vector.broadcast %267 : vector<24x1xf32> to vector<24x32xf32>
    %269 = arith.mulf %259, %268 : vector<24x32xf32>
    %270 = vector.broadcast %251 : vector<1x32xf32> to vector<24x32xf32>
    %271 = arith.mulf %269, %270 : vector<24x32xf32>
    %272 = vector.broadcast %253 : vector<1x32xf32> to vector<24x32xf32>
    %273 = arith.addf %271, %272 : vector<24x32xf32>
    %cst_206 = arith.constant 0.000000e+00 : f32
    %274 = vector.broadcast %cst_206 : f32 to vector<24x32xf32>
    %c1_207 = arith.constant 1 : index
    %c0_208 = arith.constant 0 : index
    %c0_209 = arith.constant 0 : index
    %c0_210 = arith.constant 0 : index
    %275 = vector.load %arg7[%c1_207, %c0_208, %c0_209, %c0_210] : memref<2x4x32x8xf32, #tpu.memory_space<vmem>>, vector<1x1x32x8xf32>
    %276 = vector.shape_cast %275 : vector<1x1x32x8xf32> to vector<32x8xf32>
    %cst_211 = arith.constant dense<0.000000e+00> : vector<24x8xf32>
    %277 = tpu.matmul %273, %276, %cst_211 {dimension_numbers = #tpu.dot_dimension_numbers<[1], [0], [0], [1], [0, 0, 1, 1], [], []>} : vector<24x32xf32>, vector<32x8xf32>, vector<24x8xf32> -> vector<24x8xf32>
    %c1_212 = arith.constant 1 : index
    %c0_213 = arith.constant 0 : index
    %c0_214 = arith.constant 0 : index
    %c0_215 = arith.constant 0 : index
    %278 = vector.load %arg10[%c1_212, %c0_213, %c0_214, %c0_215] : memref<2x4x1x8xf32, #tpu.memory_space<vmem>>, vector<1x1x1x8xf32>
    %279 = vector.shape_cast %278 : vector<1x1x1x8xf32> to vector<1x8xf32>
    %280 = vector.broadcast %279 : vector<1x8xf32> to vector<24x8xf32>
    %281 = arith.addf %277, %280 : vector<24x8xf32>
    %c1_216 = arith.constant 1 : index
    %c0_217 = arith.constant 0 : index
    %c0_218 = arith.constant 0 : index
    %c0_219 = arith.constant 0 : index
    %282 = vector.load %arg8[%c1_216, %c0_217, %c0_218, %c0_219] : memref<2x4x32x8xf32, #tpu.memory_space<vmem>>, vector<1x1x32x8xf32>
    %283 = vector.shape_cast %282 : vector<1x1x32x8xf32> to vector<32x8xf32>
    %cst_220 = arith.constant dense<0.000000e+00> : vector<24x8xf32>
    %284 = tpu.matmul %273, %283, %cst_220 {dimension_numbers = #tpu.dot_dimension_numbers<[1], [0], [0], [1], [0, 0, 1, 1], [], []>} : vector<24x32xf32>, vector<32x8xf32>, vector<24x8xf32> -> vector<24x8xf32>
    %c1_221 = arith.constant 1 : index
    %c0_222 = arith.constant 0 : index
    %c0_223 = arith.constant 0 : index
    %c0_224 = arith.constant 0 : index
    %285 = vector.load %arg11[%c1_221, %c0_222, %c0_223, %c0_224] : memref<2x4x1x8xf32, #tpu.memory_space<vmem>>, vector<1x1x1x8xf32>
    %286 = vector.shape_cast %285 : vector<1x1x1x8xf32> to vector<1x8xf32>
    %287 = vector.broadcast %286 : vector<1x8xf32> to vector<24x8xf32>
    %288 = arith.addf %284, %287 : vector<24x8xf32>
    %c1_225 = arith.constant 1 : index
    %c0_226 = arith.constant 0 : index
    %c0_227 = arith.constant 0 : index
    %c0_228 = arith.constant 0 : index
    %289 = vector.load %arg9[%c1_225, %c0_226, %c0_227, %c0_228] : memref<2x4x32x8xf32, #tpu.memory_space<vmem>>, vector<1x1x32x8xf32>
    %290 = vector.shape_cast %289 : vector<1x1x32x8xf32> to vector<32x8xf32>
    %cst_229 = arith.constant dense<0.000000e+00> : vector<24x8xf32>
    %291 = tpu.matmul %273, %290, %cst_229 {dimension_numbers = #tpu.dot_dimension_numbers<[1], [0], [0], [1], [0, 0, 1, 1], [], []>} : vector<24x32xf32>, vector<32x8xf32>, vector<24x8xf32> -> vector<24x8xf32>
    %c1_230 = arith.constant 1 : index
    %c0_231 = arith.constant 0 : index
    %c0_232 = arith.constant 0 : index
    %c0_233 = arith.constant 0 : index
    %292 = vector.load %arg12[%c1_230, %c0_231, %c0_232, %c0_233] : memref<2x4x1x8xf32, #tpu.memory_space<vmem>>, vector<1x1x1x8xf32>
    %293 = vector.shape_cast %292 : vector<1x1x1x8xf32> to vector<1x8xf32>
    %294 = vector.broadcast %293 : vector<1x8xf32> to vector<24x8xf32>
    %295 = arith.addf %291, %294 : vector<24x8xf32>
    %cst_234 = arith.constant dense<0.000000e+00> : vector<24x24xf32>
    %296 = tpu.matmul %281, %288, %cst_234 {dimension_numbers = #tpu.dot_dimension_numbers<[1], [1], [0], [0], [0, 0, 1, 0], [], []>} : vector<24x8xf32>, vector<24x8xf32>, vector<24x24xf32> -> vector<24x24xf32>
    %297 = vector.broadcast %16 : vector<1x24xf32> to vector<24x24xf32>
    %298 = arith.addf %296, %297 : vector<24x24xf32>
    %cst_235 = arith.constant dense<0xFF800000> : vector<24xf32>
    %299 = vector.multi_reduction <maximumf>, %298, %cst_235 [1] : vector<24x24xf32> to vector<24xf32>
    %300 = vector.shape_cast %299 : vector<24xf32> to vector<24x1xf32>
    %301 = vector.broadcast %300 : vector<24x1xf32> to vector<24x24xf32>
    %302 = arith.subf %298, %301 : vector<24x24xf32>
    %303 = math.exp %302 : vector<24x24xf32>
    %cst_236 = arith.constant dense<0.000000e+00> : vector<24x8xf32>
    %304 = tpu.matmul %303, %295, %cst_236 {dimension_numbers = #tpu.dot_dimension_numbers<[1], [0], [0], [1], [0, 0, 1, 1], [], []>} : vector<24x24xf32>, vector<24x8xf32>, vector<24x8xf32> -> vector<24x8xf32>
    %cst_237 = arith.constant dense<0.000000e+00> : vector<24xf32>
    %305 = vector.multi_reduction <add>, %303, %cst_237 [1] : vector<24x24xf32> to vector<24xf32>
    %306 = vector.shape_cast %305 : vector<24xf32> to vector<24x1xf32>
    %307 = tpu.reciprocal %306 {approx = true} : vector<24x1xf32> -> vector<24x1xf32>
    %308 = vector.broadcast %307 : vector<24x1xf32> to vector<24x8xf32>
    %309 = arith.mulf %304, %308 : vector<24x8xf32>
    %c1_238 = arith.constant 1 : index
    %c0_239 = arith.constant 0 : index
    %c0_240 = arith.constant 0 : index
    %c0_241 = arith.constant 0 : index
    %310 = vector.load %arg13[%c1_238, %c0_239, %c0_240, %c0_241] : memref<2x4x8x32xf32, #tpu.memory_space<vmem>>, vector<1x1x8x32xf32>
    %311 = vector.shape_cast %310 : vector<1x1x8x32xf32> to vector<8x32xf32>
    %cst_242 = arith.constant dense<0.000000e+00> : vector<24x32xf32>
    %312 = tpu.matmul %309, %311, %cst_242 {dimension_numbers = #tpu.dot_dimension_numbers<[1], [0], [0], [1], [0, 0, 1, 1], [], []>} : vector<24x8xf32>, vector<8x32xf32>, vector<24x32xf32> -> vector<24x32xf32>
    %313 = arith.addf %274, %312 : vector<24x32xf32>
    %c1_243 = arith.constant 1 : index
    %c1_244 = arith.constant 1 : index
    %c0_245 = arith.constant 0 : index
    %c0_246 = arith.constant 0 : index
    %314 = vector.load %arg7[%c1_243, %c1_244, %c0_245, %c0_246] : memref<2x4x32x8xf32, #tpu.memory_space<vmem>>, vector<1x1x32x8xf32>
    %315 = vector.shape_cast %314 : vector<1x1x32x8xf32> to vector<32x8xf32>
    %cst_247 = arith.constant dense<0.000000e+00> : vector<24x8xf32>
    %316 = tpu.matmul %273, %315, %cst_247 {dimension_numbers = #tpu.dot_dimension_numbers<[1], [0], [0], [1], [0, 0, 1, 1], [], []>} : vector<24x32xf32>, vector<32x8xf32>, vector<24x8xf32> -> vector<24x8xf32>
    %c1_248 = arith.constant 1 : index
    %c1_249 = arith.constant 1 : index
    %c0_250 = arith.constant 0 : index
    %c0_251 = arith.constant 0 : index
    %317 = vector.load %arg10[%c1_248, %c1_249, %c0_250, %c0_251] : memref<2x4x1x8xf32, #tpu.memory_space<vmem>>, vector<1x1x1x8xf32>
    %318 = vector.shape_cast %317 : vector<1x1x1x8xf32> to vector<1x8xf32>
    %319 = vector.broadcast %318 : vector<1x8xf32> to vector<24x8xf32>
    %320 = arith.addf %316, %319 : vector<24x8xf32>
    %c1_252 = arith.constant 1 : index
    %c1_253 = arith.constant 1 : index
    %c0_254 = arith.constant 0 : index
    %c0_255 = arith.constant 0 : index
    %321 = vector.load %arg8[%c1_252, %c1_253, %c0_254, %c0_255] : memref<2x4x32x8xf32, #tpu.memory_space<vmem>>, vector<1x1x32x8xf32>
    %322 = vector.shape_cast %321 : vector<1x1x32x8xf32> to vector<32x8xf32>
    %cst_256 = arith.constant dense<0.000000e+00> : vector<24x8xf32>
    %323 = tpu.matmul %273, %322, %cst_256 {dimension_numbers = #tpu.dot_dimension_numbers<[1], [0], [0], [1], [0, 0, 1, 1], [], []>} : vector<24x32xf32>, vector<32x8xf32>, vector<24x8xf32> -> vector<24x8xf32>
    %c1_257 = arith.constant 1 : index
    %c1_258 = arith.constant 1 : index
    %c0_259 = arith.constant 0 : index
    %c0_260 = arith.constant 0 : index
    %324 = vector.load %arg11[%c1_257, %c1_258, %c0_259, %c0_260] : memref<2x4x1x8xf32, #tpu.memory_space<vmem>>, vector<1x1x1x8xf32>
    %325 = vector.shape_cast %324 : vector<1x1x1x8xf32> to vector<1x8xf32>
    %326 = vector.broadcast %325 : vector<1x8xf32> to vector<24x8xf32>
    %327 = arith.addf %323, %326 : vector<24x8xf32>
    %c1_261 = arith.constant 1 : index
    %c1_262 = arith.constant 1 : index
    %c0_263 = arith.constant 0 : index
    %c0_264 = arith.constant 0 : index
    %328 = vector.load %arg9[%c1_261, %c1_262, %c0_263, %c0_264] : memref<2x4x32x8xf32, #tpu.memory_space<vmem>>, vector<1x1x32x8xf32>
    %329 = vector.shape_cast %328 : vector<1x1x32x8xf32> to vector<32x8xf32>
    %cst_265 = arith.constant dense<0.000000e+00> : vector<24x8xf32>
    %330 = tpu.matmul %273, %329, %cst_265 {dimension_numbers = #tpu.dot_dimension_numbers<[1], [0], [0], [1], [0, 0, 1, 1], [], []>} : vector<24x32xf32>, vector<32x8xf32>, vector<24x8xf32> -> vector<24x8xf32>
    %c1_266 = arith.constant 1 : index
    %c1_267 = arith.constant 1 : index
    %c0_268 = arith.constant 0 : index
    %c0_269 = arith.constant 0 : index
    %331 = vector.load %arg12[%c1_266, %c1_267, %c0_268, %c0_269] : memref<2x4x1x8xf32, #tpu.memory_space<vmem>>, vector<1x1x1x8xf32>
    %332 = vector.shape_cast %331 : vector<1x1x1x8xf32> to vector<1x8xf32>
    %333 = vector.broadcast %332 : vector<1x8xf32> to vector<24x8xf32>
    %334 = arith.addf %330, %333 : vector<24x8xf32>
    %cst_270 = arith.constant dense<0.000000e+00> : vector<24x24xf32>
    %335 = tpu.matmul %320, %327, %cst_270 {dimension_numbers = #tpu.dot_dimension_numbers<[1], [1], [0], [0], [0, 0, 1, 0], [], []>} : vector<24x8xf32>, vector<24x8xf32>, vector<24x24xf32> -> vector<24x24xf32>
    %336 = vector.broadcast %16 : vector<1x24xf32> to vector<24x24xf32>
    %337 = arith.addf %335, %336 : vector<24x24xf32>
    %cst_271 = arith.constant dense<0xFF800000> : vector<24xf32>
    %338 = vector.multi_reduction <maximumf>, %337, %cst_271 [1] : vector<24x24xf32> to vector<24xf32>
    %339 = vector.shape_cast %338 : vector<24xf32> to vector<24x1xf32>
    %340 = vector.broadcast %339 : vector<24x1xf32> to vector<24x24xf32>
    %341 = arith.subf %337, %340 : vector<24x24xf32>
    %342 = math.exp %341 : vector<24x24xf32>
    %cst_272 = arith.constant dense<0.000000e+00> : vector<24x8xf32>
    %343 = tpu.matmul %342, %334, %cst_272 {dimension_numbers = #tpu.dot_dimension_numbers<[1], [0], [0], [1], [0, 0, 1, 1], [], []>} : vector<24x24xf32>, vector<24x8xf32>, vector<24x8xf32> -> vector<24x8xf32>
    %cst_273 = arith.constant dense<0.000000e+00> : vector<24xf32>
    %344 = vector.multi_reduction <add>, %342, %cst_273 [1] : vector<24x24xf32> to vector<24xf32>
    %345 = vector.shape_cast %344 : vector<24xf32> to vector<24x1xf32>
    %346 = tpu.reciprocal %345 {approx = true} : vector<24x1xf32> -> vector<24x1xf32>
    %347 = vector.broadcast %346 : vector<24x1xf32> to vector<24x8xf32>
    %348 = arith.mulf %343, %347 : vector<24x8xf32>
    %c1_274 = arith.constant 1 : index
    %c1_275 = arith.constant 1 : index
    %c0_276 = arith.constant 0 : index
    %c0_277 = arith.constant 0 : index
    %349 = vector.load %arg13[%c1_274, %c1_275, %c0_276, %c0_277] : memref<2x4x8x32xf32, #tpu.memory_space<vmem>>, vector<1x1x8x32xf32>
    %350 = vector.shape_cast %349 : vector<1x1x8x32xf32> to vector<8x32xf32>
    %cst_278 = arith.constant dense<0.000000e+00> : vector<24x32xf32>
    %351 = tpu.matmul %348, %350, %cst_278 {dimension_numbers = #tpu.dot_dimension_numbers<[1], [0], [0], [1], [0, 0, 1, 1], [], []>} : vector<24x8xf32>, vector<8x32xf32>, vector<24x32xf32> -> vector<24x32xf32>
    %352 = arith.addf %313, %351 : vector<24x32xf32>
    %c1_279 = arith.constant 1 : index
    %c2_280 = arith.constant 2 : index
    %c0_281 = arith.constant 0 : index
    %c0_282 = arith.constant 0 : index
    %353 = vector.load %arg7[%c1_279, %c2_280, %c0_281, %c0_282] : memref<2x4x32x8xf32, #tpu.memory_space<vmem>>, vector<1x1x32x8xf32>
    %354 = vector.shape_cast %353 : vector<1x1x32x8xf32> to vector<32x8xf32>
    %cst_283 = arith.constant dense<0.000000e+00> : vector<24x8xf32>
    %355 = tpu.matmul %273, %354, %cst_283 {dimension_numbers = #tpu.dot_dimension_numbers<[1], [0], [0], [1], [0, 0, 1, 1], [], []>} : vector<24x32xf32>, vector<32x8xf32>, vector<24x8xf32> -> vector<24x8xf32>
    %c1_284 = arith.constant 1 : index
    %c2_285 = arith.constant 2 : index
    %c0_286 = arith.constant 0 : index
    %c0_287 = arith.constant 0 : index
    %356 = vector.load %arg10[%c1_284, %c2_285, %c0_286, %c0_287] : memref<2x4x1x8xf32, #tpu.memory_space<vmem>>, vector<1x1x1x8xf32>
    %357 = vector.shape_cast %356 : vector<1x1x1x8xf32> to vector<1x8xf32>
    %358 = vector.broadcast %357 : vector<1x8xf32> to vector<24x8xf32>
    %359 = arith.addf %355, %358 : vector<24x8xf32>
    %c1_288 = arith.constant 1 : index
    %c2_289 = arith.constant 2 : index
    %c0_290 = arith.constant 0 : index
    %c0_291 = arith.constant 0 : index
    %360 = vector.load %arg8[%c1_288, %c2_289, %c0_290, %c0_291] : memref<2x4x32x8xf32, #tpu.memory_space<vmem>>, vector<1x1x32x8xf32>
    %361 = vector.shape_cast %360 : vector<1x1x32x8xf32> to vector<32x8xf32>
    %cst_292 = arith.constant dense<0.000000e+00> : vector<24x8xf32>
    %362 = tpu.matmul %273, %361, %cst_292 {dimension_numbers = #tpu.dot_dimension_numbers<[1], [0], [0], [1], [0, 0, 1, 1], [], []>} : vector<24x32xf32>, vector<32x8xf32>, vector<24x8xf32> -> vector<24x8xf32>
    %c1_293 = arith.constant 1 : index
    %c2_294 = arith.constant 2 : index
    %c0_295 = arith.constant 0 : index
    %c0_296 = arith.constant 0 : index
    %363 = vector.load %arg11[%c1_293, %c2_294, %c0_295, %c0_296] : memref<2x4x1x8xf32, #tpu.memory_space<vmem>>, vector<1x1x1x8xf32>
    %364 = vector.shape_cast %363 : vector<1x1x1x8xf32> to vector<1x8xf32>
    %365 = vector.broadcast %364 : vector<1x8xf32> to vector<24x8xf32>
    %366 = arith.addf %362, %365 : vector<24x8xf32>
    %c1_297 = arith.constant 1 : index
    %c2_298 = arith.constant 2 : index
    %c0_299 = arith.constant 0 : index
    %c0_300 = arith.constant 0 : index
    %367 = vector.load %arg9[%c1_297, %c2_298, %c0_299, %c0_300] : memref<2x4x32x8xf32, #tpu.memory_space<vmem>>, vector<1x1x32x8xf32>
    %368 = vector.shape_cast %367 : vector<1x1x32x8xf32> to vector<32x8xf32>
    %cst_301 = arith.constant dense<0.000000e+00> : vector<24x8xf32>
    %369 = tpu.matmul %273, %368, %cst_301 {dimension_numbers = #tpu.dot_dimension_numbers<[1], [0], [0], [1], [0, 0, 1, 1], [], []>} : vector<24x32xf32>, vector<32x8xf32>, vector<24x8xf32> -> vector<24x8xf32>
    %c1_302 = arith.constant 1 : index
    %c2_303 = arith.constant 2 : index
    %c0_304 = arith.constant 0 : index
    %c0_305 = arith.constant 0 : index
    %370 = vector.load %arg12[%c1_302, %c2_303, %c0_304, %c0_305] : memref<2x4x1x8xf32, #tpu.memory_space<vmem>>, vector<1x1x1x8xf32>
    %371 = vector.shape_cast %370 : vector<1x1x1x8xf32> to vector<1x8xf32>
    %372 = vector.broadcast %371 : vector<1x8xf32> to vector<24x8xf32>
    %373 = arith.addf %369, %372 : vector<24x8xf32>
    %cst_306 = arith.constant dense<0.000000e+00> : vector<24x24xf32>
    %374 = tpu.matmul %359, %366, %cst_306 {dimension_numbers = #tpu.dot_dimension_numbers<[1], [1], [0], [0], [0, 0, 1, 0], [], []>} : vector<24x8xf32>, vector<24x8xf32>, vector<24x24xf32> -> vector<24x24xf32>
    %375 = vector.broadcast %16 : vector<1x24xf32> to vector<24x24xf32>
    %376 = arith.addf %374, %375 : vector<24x24xf32>
    %cst_307 = arith.constant dense<0xFF800000> : vector<24xf32>
    %377 = vector.multi_reduction <maximumf>, %376, %cst_307 [1] : vector<24x24xf32> to vector<24xf32>
    %378 = vector.shape_cast %377 : vector<24xf32> to vector<24x1xf32>
    %379 = vector.broadcast %378 : vector<24x1xf32> to vector<24x24xf32>
    %380 = arith.subf %376, %379 : vector<24x24xf32>
    %381 = math.exp %380 : vector<24x24xf32>
    %cst_308 = arith.constant dense<0.000000e+00> : vector<24x8xf32>
    %382 = tpu.matmul %381, %373, %cst_308 {dimension_numbers = #tpu.dot_dimension_numbers<[1], [0], [0], [1], [0, 0, 1, 1], [], []>} : vector<24x24xf32>, vector<24x8xf32>, vector<24x8xf32> -> vector<24x8xf32>
    %cst_309 = arith.constant dense<0.000000e+00> : vector<24xf32>
    %383 = vector.multi_reduction <add>, %381, %cst_309 [1] : vector<24x24xf32> to vector<24xf32>
    %384 = vector.shape_cast %383 : vector<24xf32> to vector<24x1xf32>
    %385 = tpu.reciprocal %384 {approx = true} : vector<24x1xf32> -> vector<24x1xf32>
    %386 = vector.broadcast %385 : vector<24x1xf32> to vector<24x8xf32>
    %387 = arith.mulf %382, %386 : vector<24x8xf32>
    %c1_310 = arith.constant 1 : index
    %c2_311 = arith.constant 2 : index
    %c0_312 = arith.constant 0 : index
    %c0_313 = arith.constant 0 : index
    %388 = vector.load %arg13[%c1_310, %c2_311, %c0_312, %c0_313] : memref<2x4x8x32xf32, #tpu.memory_space<vmem>>, vector<1x1x8x32xf32>
    %389 = vector.shape_cast %388 : vector<1x1x8x32xf32> to vector<8x32xf32>
    %cst_314 = arith.constant dense<0.000000e+00> : vector<24x32xf32>
    %390 = tpu.matmul %387, %389, %cst_314 {dimension_numbers = #tpu.dot_dimension_numbers<[1], [0], [0], [1], [0, 0, 1, 1], [], []>} : vector<24x8xf32>, vector<8x32xf32>, vector<24x32xf32> -> vector<24x32xf32>
    %391 = arith.addf %352, %390 : vector<24x32xf32>
    %c1_315 = arith.constant 1 : index
    %c3_316 = arith.constant 3 : index
    %c0_317 = arith.constant 0 : index
    %c0_318 = arith.constant 0 : index
    %392 = vector.load %arg7[%c1_315, %c3_316, %c0_317, %c0_318] : memref<2x4x32x8xf32, #tpu.memory_space<vmem>>, vector<1x1x32x8xf32>
    %393 = vector.shape_cast %392 : vector<1x1x32x8xf32> to vector<32x8xf32>
    %cst_319 = arith.constant dense<0.000000e+00> : vector<24x8xf32>
    %394 = tpu.matmul %273, %393, %cst_319 {dimension_numbers = #tpu.dot_dimension_numbers<[1], [0], [0], [1], [0, 0, 1, 1], [], []>} : vector<24x32xf32>, vector<32x8xf32>, vector<24x8xf32> -> vector<24x8xf32>
    %c1_320 = arith.constant 1 : index
    %c3_321 = arith.constant 3 : index
    %c0_322 = arith.constant 0 : index
    %c0_323 = arith.constant 0 : index
    %395 = vector.load %arg10[%c1_320, %c3_321, %c0_322, %c0_323] : memref<2x4x1x8xf32, #tpu.memory_space<vmem>>, vector<1x1x1x8xf32>
    %396 = vector.shape_cast %395 : vector<1x1x1x8xf32> to vector<1x8xf32>
    %397 = vector.broadcast %396 : vector<1x8xf32> to vector<24x8xf32>
    %398 = arith.addf %394, %397 : vector<24x8xf32>
    %c1_324 = arith.constant 1 : index
    %c3_325 = arith.constant 3 : index
    %c0_326 = arith.constant 0 : index
    %c0_327 = arith.constant 0 : index
    %399 = vector.load %arg8[%c1_324, %c3_325, %c0_326, %c0_327] : memref<2x4x32x8xf32, #tpu.memory_space<vmem>>, vector<1x1x32x8xf32>
    %400 = vector.shape_cast %399 : vector<1x1x32x8xf32> to vector<32x8xf32>
    %cst_328 = arith.constant dense<0.000000e+00> : vector<24x8xf32>
    %401 = tpu.matmul %273, %400, %cst_328 {dimension_numbers = #tpu.dot_dimension_numbers<[1], [0], [0], [1], [0, 0, 1, 1], [], []>} : vector<24x32xf32>, vector<32x8xf32>, vector<24x8xf32> -> vector<24x8xf32>
    %c1_329 = arith.constant 1 : index
    %c3_330 = arith.constant 3 : index
    %c0_331 = arith.constant 0 : index
    %c0_332 = arith.constant 0 : index
    %402 = vector.load %arg11[%c1_329, %c3_330, %c0_331, %c0_332] : memref<2x4x1x8xf32, #tpu.memory_space<vmem>>, vector<1x1x1x8xf32>
    %403 = vector.shape_cast %402 : vector<1x1x1x8xf32> to vector<1x8xf32>
    %404 = vector.broadcast %403 : vector<1x8xf32> to vector<24x8xf32>
    %405 = arith.addf %401, %404 : vector<24x8xf32>
    %c1_333 = arith.constant 1 : index
    %c3_334 = arith.constant 3 : index
    %c0_335 = arith.constant 0 : index
    %c0_336 = arith.constant 0 : index
    %406 = vector.load %arg9[%c1_333, %c3_334, %c0_335, %c0_336] : memref<2x4x32x8xf32, #tpu.memory_space<vmem>>, vector<1x1x32x8xf32>
    %407 = vector.shape_cast %406 : vector<1x1x32x8xf32> to vector<32x8xf32>
    %cst_337 = arith.constant dense<0.000000e+00> : vector<24x8xf32>
    %408 = tpu.matmul %273, %407, %cst_337 {dimension_numbers = #tpu.dot_dimension_numbers<[1], [0], [0], [1], [0, 0, 1, 1], [], []>} : vector<24x32xf32>, vector<32x8xf32>, vector<24x8xf32> -> vector<24x8xf32>
    %c1_338 = arith.constant 1 : index
    %c3_339 = arith.constant 3 : index
    %c0_340 = arith.constant 0 : index
    %c0_341 = arith.constant 0 : index
    %409 = vector.load %arg12[%c1_338, %c3_339, %c0_340, %c0_341] : memref<2x4x1x8xf32, #tpu.memory_space<vmem>>, vector<1x1x1x8xf32>
    %410 = vector.shape_cast %409 : vector<1x1x1x8xf32> to vector<1x8xf32>
    %411 = vector.broadcast %410 : vector<1x8xf32> to vector<24x8xf32>
    %412 = arith.addf %408, %411 : vector<24x8xf32>
    %cst_342 = arith.constant dense<0.000000e+00> : vector<24x24xf32>
    %413 = tpu.matmul %398, %405, %cst_342 {dimension_numbers = #tpu.dot_dimension_numbers<[1], [1], [0], [0], [0, 0, 1, 0], [], []>} : vector<24x8xf32>, vector<24x8xf32>, vector<24x24xf32> -> vector<24x24xf32>
    %414 = vector.broadcast %16 : vector<1x24xf32> to vector<24x24xf32>
    %415 = arith.addf %413, %414 : vector<24x24xf32>
    %cst_343 = arith.constant dense<0xFF800000> : vector<24xf32>
    %416 = vector.multi_reduction <maximumf>, %415, %cst_343 [1] : vector<24x24xf32> to vector<24xf32>
    %417 = vector.shape_cast %416 : vector<24xf32> to vector<24x1xf32>
    %418 = vector.broadcast %417 : vector<24x1xf32> to vector<24x24xf32>
    %419 = arith.subf %415, %418 : vector<24x24xf32>
    %420 = math.exp %419 : vector<24x24xf32>
    %cst_344 = arith.constant dense<0.000000e+00> : vector<24x8xf32>
    %421 = tpu.matmul %420, %412, %cst_344 {dimension_numbers = #tpu.dot_dimension_numbers<[1], [0], [0], [1], [0, 0, 1, 1], [], []>} : vector<24x24xf32>, vector<24x8xf32>, vector<24x8xf32> -> vector<24x8xf32>
    %cst_345 = arith.constant dense<0.000000e+00> : vector<24xf32>
    %422 = vector.multi_reduction <add>, %420, %cst_345 [1] : vector<24x24xf32> to vector<24xf32>
    %423 = vector.shape_cast %422 : vector<24xf32> to vector<24x1xf32>
    %424 = tpu.reciprocal %423 {approx = true} : vector<24x1xf32> -> vector<24x1xf32>
    %425 = vector.broadcast %424 : vector<24x1xf32> to vector<24x8xf32>
    %426 = arith.mulf %421, %425 : vector<24x8xf32>
    %c1_346 = arith.constant 1 : index
    %c3_347 = arith.constant 3 : index
    %c0_348 = arith.constant 0 : index
    %c0_349 = arith.constant 0 : index
    %427 = vector.load %arg13[%c1_346, %c3_347, %c0_348, %c0_349] : memref<2x4x8x32xf32, #tpu.memory_space<vmem>>, vector<1x1x8x32xf32>
    %428 = vector.shape_cast %427 : vector<1x1x8x32xf32> to vector<8x32xf32>
    %cst_350 = arith.constant dense<0.000000e+00> : vector<24x32xf32>
    %429 = tpu.matmul %426, %428, %cst_350 {dimension_numbers = #tpu.dot_dimension_numbers<[1], [0], [0], [1], [0, 0, 1, 1], [], []>} : vector<24x8xf32>, vector<8x32xf32>, vector<24x32xf32> -> vector<24x32xf32>
    %430 = arith.addf %391, %429 : vector<24x32xf32>
    %431 = arith.addf %249, %430 : vector<24x32xf32>
    %c1_351 = arith.constant 1 : index
    %c0_352 = arith.constant 0 : index
    %c0_353 = arith.constant 0 : index
    %432 = vector.load %arg14[%c1_351, %c0_352, %c0_353] : memref<2x1x32xf32, #tpu.memory_space<vmem>>, vector<1x1x32xf32>
    %433 = vector.shape_cast %432 : vector<1x1x32xf32> to vector<1x32xf32>
    %434 = vector.broadcast %433 : vector<1x32xf32> to vector<24x32xf32>
    %435 = arith.addf %431, %434 : vector<24x32xf32>
    %c1_354 = arith.constant 1 : index
    %c0_355 = arith.constant 0 : index
    %c0_356 = arith.constant 0 : index
    %436 = vector.load %arg15[%c1_354, %c0_355, %c0_356] : memref<2x1x32xf32, #tpu.memory_space<vmem>>, vector<1x1x32xf32>
    %437 = vector.shape_cast %436 : vector<1x1x32xf32> to vector<1x32xf32>
    %c1_357 = arith.constant 1 : index
    %c0_358 = arith.constant 0 : index
    %c0_359 = arith.constant 0 : index
    %438 = vector.load %arg16[%c1_357, %c0_358, %c0_359] : memref<2x1x32xf32, #tpu.memory_space<vmem>>, vector<1x1x32xf32>
    %439 = vector.shape_cast %438 : vector<1x1x32xf32> to vector<1x32xf32>
    %cst_360 = arith.constant dense<0.000000e+00> : vector<24xf32>
    %440 = vector.multi_reduction <add>, %435, %cst_360 [1] : vector<24x32xf32> to vector<24xf32>
    %441 = vector.shape_cast %440 : vector<24xf32> to vector<24x1xf32>
    %cst_361 = arith.constant 3.200000e+01 : f32
    %442 = vector.broadcast %cst_361 : f32 to vector<24x1xf32>
    %443 = arith.divf %441, %442 : vector<24x1xf32>
    %444 = vector.broadcast %443 : vector<24x1xf32> to vector<24x32xf32>
    %445 = arith.subf %435, %444 : vector<24x32xf32>
    %446 = arith.mulf %445, %445 : vector<24x32xf32>
    %cst_362 = arith.constant dense<0.000000e+00> : vector<24xf32>
    %447 = vector.multi_reduction <add>, %446, %cst_362 [1] : vector<24x32xf32> to vector<24xf32>
    %448 = vector.shape_cast %447 : vector<24xf32> to vector<24x1xf32>
    %cst_363 = arith.constant 3.200000e+01 : f32
    %449 = vector.broadcast %cst_363 : f32 to vector<24x1xf32>
    %450 = arith.divf %448, %449 : vector<24x1xf32>
    %cst_364 = arith.constant 9.99999997E-7 : f32
    %451 = vector.broadcast %cst_364 : f32 to vector<24x1xf32>
    %452 = arith.addf %450, %451 : vector<24x1xf32>
    %453 = math.rsqrt %452 : vector<24x1xf32>
    %454 = vector.broadcast %453 : vector<24x1xf32> to vector<24x32xf32>
    %455 = arith.mulf %445, %454 : vector<24x32xf32>
    %456 = vector.broadcast %437 : vector<1x32xf32> to vector<24x32xf32>
    %457 = arith.mulf %455, %456 : vector<24x32xf32>
    %458 = vector.broadcast %439 : vector<1x32xf32> to vector<24x32xf32>
    %459 = arith.addf %457, %458 : vector<24x32xf32>
    %c1_365 = arith.constant 1 : index
    %c0_366 = arith.constant 0 : index
    %c0_367 = arith.constant 0 : index
    %460 = vector.load %arg17[%c1_365, %c0_366, %c0_367] : memref<2x32x128xf32, #tpu.memory_space<vmem>>, vector<1x32x128xf32>
    %461 = vector.shape_cast %460 : vector<1x32x128xf32> to vector<32x128xf32>
    %cst_368 = arith.constant dense<0.000000e+00> : vector<24x128xf32>
    %462 = tpu.matmul %459, %461, %cst_368 {dimension_numbers = #tpu.dot_dimension_numbers<[1], [0], [0], [1], [0, 0, 1, 1], [], []>} : vector<24x32xf32>, vector<32x128xf32>, vector<24x128xf32> -> vector<24x128xf32>
    %c1_369 = arith.constant 1 : index
    %c0_370 = arith.constant 0 : index
    %c0_371 = arith.constant 0 : index
    %463 = vector.load %arg18[%c1_369, %c0_370, %c0_371] : memref<2x1x128xf32, #tpu.memory_space<vmem>>, vector<1x1x128xf32>
    %464 = vector.shape_cast %463 : vector<1x1x128xf32> to vector<1x128xf32>
    %465 = vector.broadcast %464 : vector<1x128xf32> to vector<24x128xf32>
    %466 = arith.addf %462, %465 : vector<24x128xf32>
    %cst_372 = arith.constant 5.000000e-01 : f32
    %467 = vector.broadcast %cst_372 : f32 to vector<24x128xf32>
    %468 = arith.mulf %467, %466 : vector<24x128xf32>
    %cst_373 = arith.constant 0.707106769 : f32
    %469 = vector.broadcast %cst_373 : f32 to vector<24x128xf32>
    %470 = arith.mulf %466, %469 : vector<24x128xf32>
    %471 = math.erf %470 : vector<24x128xf32>
    %cst_374 = arith.constant 1.000000e+00 : f32
    %472 = vector.broadcast %cst_374 : f32 to vector<24x128xf32>
    %473 = arith.addf %472, %471 : vector<24x128xf32>
    %474 = arith.mulf %468, %473 : vector<24x128xf32>
    %c1_375 = arith.constant 1 : index
    %c0_376 = arith.constant 0 : index
    %c0_377 = arith.constant 0 : index
    %475 = vector.load %arg19[%c1_375, %c0_376, %c0_377] : memref<2x128x32xf32, #tpu.memory_space<vmem>>, vector<1x128x32xf32>
    %476 = vector.shape_cast %475 : vector<1x128x32xf32> to vector<128x32xf32>
    %cst_378 = arith.constant dense<0.000000e+00> : vector<24x32xf32>
    %477 = tpu.matmul %474, %476, %cst_378 {dimension_numbers = #tpu.dot_dimension_numbers<[1], [0], [0], [1], [0, 0, 1, 1], [], []>} : vector<24x128xf32>, vector<128x32xf32>, vector<24x32xf32> -> vector<24x32xf32>
    %478 = arith.addf %435, %477 : vector<24x32xf32>
    %c1_379 = arith.constant 1 : index
    %c0_380 = arith.constant 0 : index
    %c0_381 = arith.constant 0 : index
    %479 = vector.load %arg20[%c1_379, %c0_380, %c0_381] : memref<2x1x32xf32, #tpu.memory_space<vmem>>, vector<1x1x32xf32>
    %480 = vector.shape_cast %479 : vector<1x1x32xf32> to vector<1x32xf32>
    %481 = vector.broadcast %480 : vector<1x32xf32> to vector<24x32xf32>
    %482 = arith.addf %478, %481 : vector<24x32xf32>
    %483 = vector.extract_strided_slice %482 {offsets = [16, 0], sizes = [8, 32], strides = [1, 1]} : vector<24x32xf32> to vector<8x32xf32>
    %c0_382 = arith.constant 0 : index
    %c0_383 = arith.constant 0 : index
    %484 = vector.load %arg21[%c0_382, %c0_383] : memref<1x32xf32, #tpu.memory_space<vmem>>, vector<1x32xf32>
    %c0_384 = arith.constant 0 : index
    %c0_385 = arith.constant 0 : index
    %485 = vector.load %arg22[%c0_384, %c0_385] : memref<1x32xf32, #tpu.memory_space<vmem>>, vector<1x32xf32>
    %cst_386 = arith.constant dense<0.000000e+00> : vector<8xf32>
    %486 = vector.multi_reduction <add>, %483, %cst_386 [1] : vector<8x32xf32> to vector<8xf32>
    %487 = vector.shape_cast %486 : vector<8xf32> to vector<8x1xf32>
    %cst_387 = arith.constant 3.200000e+01 : f32
    %488 = vector.broadcast %cst_387 : f32 to vector<8x1xf32>
    %489 = arith.divf %487, %488 : vector<8x1xf32>
    %490 = vector.broadcast %489 : vector<8x1xf32> to vector<8x32xf32>
    %491 = arith.subf %483, %490 : vector<8x32xf32>
    %492 = arith.mulf %491, %491 : vector<8x32xf32>
    %cst_388 = arith.constant dense<0.000000e+00> : vector<8xf32>
    %493 = vector.multi_reduction <add>, %492, %cst_388 [1] : vector<8x32xf32> to vector<8xf32>
    %494 = vector.shape_cast %493 : vector<8xf32> to vector<8x1xf32>
    %cst_389 = arith.constant 3.200000e+01 : f32
    %495 = vector.broadcast %cst_389 : f32 to vector<8x1xf32>
    %496 = arith.divf %494, %495 : vector<8x1xf32>
    %cst_390 = arith.constant 9.99999997E-7 : f32
    %497 = vector.broadcast %cst_390 : f32 to vector<8x1xf32>
    %498 = arith.addf %496, %497 : vector<8x1xf32>
    %499 = math.rsqrt %498 : vector<8x1xf32>
    %500 = vector.broadcast %499 : vector<8x1xf32> to vector<8x32xf32>
    %501 = arith.mulf %491, %500 : vector<8x32xf32>
    %502 = vector.broadcast %484 : vector<1x32xf32> to vector<8x32xf32>
    %503 = arith.mulf %501, %502 : vector<8x32xf32>
    %504 = vector.broadcast %485 : vector<1x32xf32> to vector<8x32xf32>
    %505 = arith.addf %503, %504 : vector<8x32xf32>
    %c0_391 = arith.constant 0 : index
    %c0_392 = arith.constant 0 : index
    %506 = vector.load %arg23[%c0_391, %c0_392] : memref<32x32xf32, #tpu.memory_space<vmem>>, vector<32x32xf32>
    %cst_393 = arith.constant dense<0.000000e+00> : vector<8x32xf32>
    %507 = tpu.matmul %505, %506, %cst_393 {dimension_numbers = #tpu.dot_dimension_numbers<[1], [0], [0], [1], [0, 0, 1, 1], [], []>} : vector<8x32xf32>, vector<32x32xf32>, vector<8x32xf32> -> vector<8x32xf32>
    %c0_394 = arith.constant 0 : index
    %c0_395 = arith.constant 0 : index
    %508 = vector.load %arg24[%c0_394, %c0_395] : memref<1x32xf32, #tpu.memory_space<vmem>>, vector<1x32xf32>
    %509 = vector.broadcast %508 : vector<1x32xf32> to vector<8x32xf32>
    %510 = arith.addf %507, %509 : vector<8x32xf32>
    %cst_396 = arith.constant 0.000000e+00 : f32
    %511 = vector.broadcast %cst_396 : f32 to vector<8x32xf32>
    %512 = arith.maximumf %510, %511 : vector<8x32xf32>
    %c0_397 = arith.constant 0 : index
    %c0_398 = arith.constant 0 : index
    %513 = vector.load %arg25[%c0_397, %c0_398] : memref<32x128xf32, #tpu.memory_space<vmem>>, vector<32x128xf32>
    %cst_399 = arith.constant dense<0.000000e+00> : vector<8x128xf32>
    %514 = tpu.matmul %512, %513, %cst_399 {dimension_numbers = #tpu.dot_dimension_numbers<[1], [0], [0], [1], [0, 0, 1, 1], [], []>} : vector<8x32xf32>, vector<32x128xf32>, vector<8x128xf32> -> vector<8x128xf32>
    %c0_400 = arith.constant 0 : index
    %c0_401 = arith.constant 0 : index
    %515 = vector.load %arg26[%c0_400, %c0_401] : memref<1x128xf32, #tpu.memory_space<vmem>>, vector<1x128xf32>
    %516 = vector.broadcast %515 : vector<1x128xf32> to vector<8x128xf32>
    %517 = arith.addf %514, %516 : vector<8x128xf32>
    %c0_402 = arith.constant 0 : index
    %c0_403 = arith.constant 0 : index
    %c0_404 = arith.constant 0 : index
    %518 = vector.load %arg27[%c0_402, %c0_403, %c0_404] : memref<1x8x128xf32, #tpu.memory_space<vmem>>, vector<1x8x128xf32>
    %519 = vector.shape_cast %518 : vector<1x8x128xf32> to vector<8x128xf32>
    %520 = vector.shape_cast %517 : vector<8x128xf32> to vector<1x8x128xf32>
    tpu.vector_store %arg27[%c0_402, %c0_403, %c0_404], %520 {strides = array<i32>} : memref<1x8x128xf32, #tpu.memory_space<vmem>>, vector<1x8x128xf32>,
    return
  }
  func.func @transform_0(%arg0: i32) -> (i32, i32, i32) {
    %c0_i32 = arith.constant 0 : i32
    %c0_i32_0 = arith.constant 0 : i32
    %c0_i32_1 = arith.constant 0 : i32
    return %arg0, %c0_i32, %c0_i32_0 : i32, i32, i32
  }
  func.func @transform_1(%arg0: i32) -> (i32, i32) {
    %c0_i32 = arith.constant 0 : i32
    %c0_i32_0 = arith.constant 0 : i32
    %c0_i32_1 = arith.constant 0 : i32
    return %c0_i32, %c0_i32_0 : i32, i32
  }
  func.func @transform_2(%arg0: i32) -> (i32, i32) {
    %c0_i32 = arith.constant 0 : i32
    %c0_i32_0 = arith.constant 0 : i32
    %c0_i32_1 = arith.constant 0 : i32
    return %c0_i32, %c0_i32_0 : i32, i32
  }
  func.func @transform_3(%arg0: i32) -> (i32, i32) {
    %c0_i32 = arith.constant 0 : i32
    %c0_i32_0 = arith.constant 0 : i32
    %c0_i32_1 = arith.constant 0 : i32
    return %c0_i32, %c0_i32_0 : i32, i32
  }
  func.func @transform_4(%arg0: i32) -> (i32, i32, i32) {
    %c0_i32 = arith.constant 0 : i32
    %c0_i32_0 = arith.constant 0 : i32
    %c0_i32_1 = arith.constant 0 : i32
    %c0_i32_2 = arith.constant 0 : i32
    return %c0_i32, %c0_i32_0, %c0_i32_1 : i32, i32, i32
  }
  func.func @transform_5(%arg0: i32) -> (i32, i32, i32) {
    %c0_i32 = arith.constant 0 : i32
    %c0_i32_0 = arith.constant 0 : i32
    %c0_i32_1 = arith.constant 0 : i32
    %c0_i32_2 = arith.constant 0 : i32
    return %c0_i32, %c0_i32_0, %c0_i32_1 : i32, i32, i32
  }
  func.func @transform_6(%arg0: i32) -> (i32, i32, i32, i32) {
    %c0_i32 = arith.constant 0 : i32
    %c0_i32_0 = arith.constant 0 : i32
    %c0_i32_1 = arith.constant 0 : i32
    %c0_i32_2 = arith.constant 0 : i32
    %c0_i32_3 = arith.constant 0 : i32
    return %c0_i32, %c0_i32_0, %c0_i32_1, %c0_i32_2 : i32, i32, i32, i32
  }
  func.func @transform_7(%arg0: i32) -> (i32, i32, i32, i32) {
    %c0_i32 = arith.constant 0 : i32
    %c0_i32_0 = arith.constant 0 : i32
    %c0_i32_1 = arith.constant 0 : i32
    %c0_i32_2 = arith.constant 0 : i32
    %c0_i32_3 = arith.constant 0 : i32
    return %c0_i32, %c0_i32_0, %c0_i32_1, %c0_i32_2 : i32, i32, i32, i32
  }
  func.func @transform_8(%arg0: i32) -> (i32, i32, i32, i32) {
    %c0_i32 = arith.constant 0 : i32
    %c0_i32_0 = arith.constant 0 : i32
    %c0_i32_1 = arith.constant 0 : i32
    %c0_i32_2 = arith.constant 0 : i32
    %c0_i32_3 = arith.constant 0 : i32
    return %c0_i32, %c0_i32_0, %c0_i32_1, %c0_i32_2 : i32, i32, i32, i32
  }
  func.func @transform_9(%arg0: i32) -> (i32, i32, i32, i32) {
    %c0_i32 = arith.constant 0 : i32
    %c0_i32_0 = arith.constant 0 : i32
    %c0_i32_1 = arith.constant 0 : i32
    %c0_i32_2 = arith.constant 0 : i32
    %c0_i32_3 = arith.constant 0 : i32
    return %c0_i32, %c0_i32_0, %c0_i32_1, %c0_i32_2 : i32, i32, i32, i32
  }
  func.func @transform_10(%arg0: i32) -> (i32, i32, i32, i32) {
    %c0_i32 = arith.constant 0 : i32
    %c0_i32_0 = arith.constant 0 : i32
    %c0_i32_1 = arith.constant 0 : i32
    %c0_i32_2 = arith.constant 0 : i32
    %c0_i32_3 = arith.constant 0 : i32
    return %c0_i32, %c0_i32_0, %c0_i32_1, %c0_i32_2 : i32, i32, i32, i32
  }
  func.func @transform_11(%arg0: i32) -> (i32, i32, i32, i32) {
    %c0_i32 = arith.constant 0 : i32
    %c0_i32_0 = arith.constant 0 : i32
    %c0_i32_1 = arith.constant 0 : i32
    %c0_i32_2 = arith.constant 0 : i32
    %c0_i32_3 = arith.constant 0 : i32
    return %c0_i32, %c0_i32_0, %c0_i32_1, %c0_i32_2 : i32, i32, i32, i32
  }
  func.func @transform_12(%arg0: i32) -> (i32, i32, i32, i32) {
    %c0_i32 = arith.constant 0 : i32
    %c0_i32_0 = arith.constant 0 : i32
    %c0_i32_1 = arith.constant 0 : i32
    %c0_i32_2 = arith.constant 0 : i32
    %c0_i32_3 = arith.constant 0 : i32
    return %c0_i32, %c0_i32_0, %c0_i32_1, %c0_i32_2 : i32, i32, i32, i32
  }
  func.func @transform_13(%arg0: i32) -> (i32, i32, i32) {
    %c0_i32 = arith.constant 0 : i32
    %c0_i32_0 = arith.constant 0 : i32
    %c0_i32_1 = arith.constant 0 : i32
    %c0_i32_2 = arith.constant 0 : i32
    return %c0_i32, %c0_i32_0, %c0_i32_1 : i32, i32, i32
  }
  func.func @transform_14(%arg0: i32) -> (i32, i32, i32) {
    %c0_i32 = arith.constant 0 : i32
    %c0_i32_0 = arith.constant 0 : i32
    %c0_i32_1 = arith.constant 0 : i32
    %c0_i32_2 = arith.constant 0 : i32
    return %c0_i32, %c0_i32_0, %c0_i32_1 : i32, i32, i32
  }
  func.func @transform_15(%arg0: i32) -> (i32, i32, i32) {
    %c0_i32 = arith.constant 0 : i32
    %c0_i32_0 = arith.constant 0 : i32
    %c0_i32_1 = arith.constant 0 : i32
    %c0_i32_2 = arith.constant 0 : i32
    return %c0_i32, %c0_i32_0, %c0_i32_1 : i32, i32, i32
  }
  func.func @transform_16(%arg0: i32) -> (i32, i32, i32) {
    %c0_i32 = arith.constant 0 : i32
    %c0_i32_0 = arith.constant 0 : i32
    %c0_i32_1 = arith.constant 0 : i32
    %c0_i32_2 = arith.constant 0 : i32
    return %c0_i32, %c0_i32_0, %c0_i32_1 : i32, i32, i32
  }
  func.func @transform_17(%arg0: i32) -> (i32, i32, i32) {
    %c0_i32 = arith.constant 0 : i32
    %c0_i32_0 = arith.constant 0 : i32
    %c0_i32_1 = arith.constant 0 : i32
    %c0_i32_2 = arith.constant 0 : i32
    return %c0_i32, %c0_i32_0, %c0_i32_1 : i32, i32, i32
  }
  func.func @transform_18(%arg0: i32) -> (i32, i32, i32) {
    %c0_i32 = arith.constant 0 : i32
    %c0_i32_0 = arith.constant 0 : i32
    %c0_i32_1 = arith.constant 0 : i32
    %c0_i32_2 = arith.constant 0 : i32
    return %c0_i32, %c0_i32_0, %c0_i32_1 : i32, i32, i32
  }
  func.func @transform_19(%arg0: i32) -> (i32, i32, i32) {
    %c0_i32 = arith.constant 0 : i32
    %c0_i32_0 = arith.constant 0 : i32
    %c0_i32_1 = arith.constant 0 : i32
    %c0_i32_2 = arith.constant 0 : i32
    return %c0_i32, %c0_i32_0, %c0_i32_1 : i32, i32, i32
  }
  func.func @transform_20(%arg0: i32) -> (i32, i32) {
    %c0_i32 = arith.constant 0 : i32
    %c0_i32_0 = arith.constant 0 : i32
    %c0_i32_1 = arith.constant 0 : i32
    return %c0_i32, %c0_i32_0 : i32, i32
  }
  func.func @transform_21(%arg0: i32) -> (i32, i32) {
    %c0_i32 = arith.constant 0 : i32
    %c0_i32_0 = arith.constant 0 : i32
    %c0_i32_1 = arith.constant 0 : i32
    return %c0_i32, %c0_i32_0 : i32, i32
  }
  func.func @transform_22(%arg0: i32) -> (i32, i32) {
    %c0_i32 = arith.constant 0 : i32
    %c0_i32_0 = arith.constant 0 : i32
    %c0_i32_1 = arith.constant 0 : i32
    return %c0_i32, %c0_i32_0 : i32, i32
  }
  func.func @transform_23(%arg0: i32) -> (i32, i32) {
    %c0_i32 = arith.constant 0 : i32
    %c0_i32_0 = arith.constant 0 : i32
    %c0_i32_1 = arith.constant 0 : i32
    return %c0_i32, %c0_i32_0 : i32, i32
  }
  func.func @transform_24(%arg0: i32) -> (i32, i32) {
    %c0_i32 = arith.constant 0 : i32
    %c0_i32_0 = arith.constant 0 : i32
    %c0_i32_1 = arith.constant 0 : i32
    return %c0_i32, %c0_i32_0 : i32, i32
  }
  func.func @transform_25(%arg0: i32) -> (i32, i32) {
    %c0_i32 = arith.constant 0 : i32
    %c0_i32_0 = arith.constant 0 : i32
    %c0_i32_1 = arith.constant 0 : i32
    return %c0_i32, %c0_i32_0 : i32, i32
  }
  func.func @transform_26(%arg0: i32) -> (i32, i32, i32) {
    %c0_i32 = arith.constant 0 : i32
    %c0_i32_0 = arith.constant 0 : i32
    %c0_i32_1 = arith.constant 0 : i32
    return %arg0, %c0_i32, %c0_i32_0 : i32, i32, i32
  }
}

</mosaic_0001>

<llo_original>
// kernel: supcon_vit_forward.1
$region0: #{supcon_vit_forward.1}
  #allocation0 [shape = 'u32[]', space=smem, size = 0x4, offset = 0x4, fixed_abs, tag = 'smem constant byte address 0x4 - core index']
  #allocation1 [shape = 'u32[144,128]{1,0:T(1,128)}', space=vmem, size = 0x12000, scoped, tag = 'internal scratch']
  %s0 = inlined_call_operand.vmem [shape: f32[2,16,48], index: 0, kind: input, shape index: {}]
  %s1 = inlined_call_operand.vmem [shape: f32[24,32], index: 1, kind: input, shape index: {}]
  %s2 = inlined_call_operand.vmem [shape: f32[48,32], index: 2, kind: input, shape index: {}]
  %s3 = inlined_call_operand.vmem [shape: f32[1,32], index: 3, kind: input, shape index: {}]
  %s4 = inlined_call_operand.vmem [shape: f32[2,1,32], index: 4, kind: input, shape index: {}]
  %s5 = inlined_call_operand.vmem [shape: f32[2,1,32], index: 5, kind: input, shape index: {}]
  %s6 = inlined_call_operand.vmem [shape: f32[2,4,32,8], index: 6, kind: input, shape index: {}]
  %s7 = inlined_call_operand.vmem [shape: f32[2,4,32,8], index: 7, kind: input, shape index: {}]
  %s8 = inlined_call_operand.vmem [shape: f32[2,4,32,8], index: 8, kind: input, shape index: {}]
  %s9 = inlined_call_operand.vmem [shape: f32[2,4,1,8], index: 9, kind: input, shape index: {}]
  %s10 = inlined_call_operand.vmem [shape: f32[2,4,1,8], index: 10, kind: input, shape index: {}]
  %s11 = inlined_call_operand.vmem [shape: f32[2,4,1,8], index: 11, kind: input, shape index: {}]
  %s12 = inlined_call_operand.vmem [shape: f32[2,4,8,32], index: 12, kind: input, shape index: {}]
  %s13 = inlined_call_operand.vmem [shape: f32[2,1,32], index: 13, kind: input, shape index: {}]
  %s14 = inlined_call_operand.vmem [shape: f32[2,1,32], index: 14, kind: input, shape index: {}]
  %s15 = inlined_call_operand.vmem [shape: f32[2,1,32], index: 15, kind: input, shape index: {}]
  %s16 = inlined_call_operand.vmem [shape: f32[2,32,128], index: 16, kind: input, shape index: {}]
  %s17 = inlined_call_operand.vmem [shape: f32[2,1,128], index: 17, kind: input, shape index: {}]
  %s18 = inlined_call_operand.vmem [shape: f32[2,128,32], index: 18, kind: input, shape index: {}]
  %s19 = inlined_call_operand.vmem [shape: f32[2,1,32], index: 19, kind: input, shape index: {}]
  %s20 = inlined_call_operand.vmem [shape: f32[1,32], index: 20, kind: input, shape index: {}]
  %s21 = inlined_call_operand.vmem [shape: f32[1,32], index: 21, kind: input, shape index: {}]
  %s22 = inlined_call_operand.vmem [shape: f32[32,32], index: 22, kind: input, shape index: {}]
  %s23 = inlined_call_operand.vmem [shape: f32[1,32], index: 23, kind: input, shape index: {}]
  %s24 = inlined_call_operand.vmem [shape: f32[32,128], index: 24, kind: input, shape index: {}]
  %s25 = inlined_call_operand.vmem [shape: f32[1,128], index: 25, kind: input, shape index: {}]
  %s26 = inlined_call_operand.vmem [shape: f32[2,8,128], index: 26, kind: output, shape index: {}]
  %s27 = sld [smem:[#allocation0]]
  $region137: #{supcon_vit_forward.1} parent=0
    _
  %s29 = ssub.s32 1, %s27
  %s30 = scalar_select 0, %s29, %s27
  loop: start=0, step=1, limit=4
  $region2: #{supcon_vit_forward.1} parent=0 // loop_pre_header
    _
  $region3: #{supcon_vit_forward.1} parent=0 // loop_header
    %s32 = sphi 0, %s36
    %p33 = scmp.ge.s32.totalorder %s32, 4
    %s42 = sphi 0, %s44
    %s45 = sphi 0, %s42
    %s46 = sphi 0, %s45
    %s62 = sphi 0, %s46
    %s66 = sphi 0, %s66
    %s68 = sphi 0, %s66
    %s69 = sphi 0, %s68
    %s83 = sphi 0, %s69
    %s87 = sphi 0, %s87
    %s89 = sphi 0, %s87
    %s90 = sphi 0, %s89
    %s104 = sphi 0, %s90
    %s108 = sphi 0, %s108
    %s110 = sphi 0, %s108
    %s111 = sphi 0, %s110
    %s125 = sphi 0, %s111
    %s129 = sphi 0, %s129
    %s131 = sphi 0, %s129
    %s132 = sphi 0, %s131
    %s146 = sphi 0, %s132
    %s150 = sphi 0, %s150
    %s152 = sphi 0, %s150
    %s153 = sphi 0, %s152
    %s167 = sphi 0, %s153
    %s171 = sphi 0, %s171
    %s173 = sphi 0, %s171
    %s174 = sphi 0, %s173
    %s188 = sphi 0, %s174
    %s192 = sphi 0, %s192
    %s194 = sphi 0, %s192
    %s195 = sphi 0, %s194
    %s209 = sphi 0, %s195
    %s213 = sphi 0, %s213
    %s215 = sphi 0, %s213
    %s216 = sphi 0, %s215
    %s230 = sphi 0, %s216
    %s234 = sphi 0, %s234
    %s236 = sphi 0, %s234
    %s237 = sphi 0, %s236
    %s251 = sphi 0, %s237
    %s255 = sphi 0, %s255
    %s257 = sphi 0, %s255
    %s258 = sphi 0, %s257
    %s272 = sphi 0, %s258
    %s276 = sphi 0, %s276
    %s278 = sphi 0, %s276
    %s279 = sphi 0, %s278
    %s293 = sphi 0, %s279
    %s297 = sphi 0, %s297
    %s299 = sphi 0, %s297
    %s300 = sphi 0, %s299
    %s314 = sphi 0, %s300
    %s318 = sphi 0, %s318
    %s320 = sphi 0, %s318
    %s321 = sphi 0, %s320
    %s335 = sphi 0, %s321
    %s339 = sphi 0, %s339
    %s341 = sphi 0, %s339
    %s342 = sphi 0, %s341
    %s356 = sphi 0, %s342
    %s360 = sphi 0, %s360
    %s362 = sphi 0, %s360
    %s363 = sphi 0, %s362
    %s377 = sphi 0, %s363
    %s381 = sphi 0, %s381
    %s383 = sphi 0, %s381
    %s384 = sphi 0, %s383
    %s398 = sphi 0, %s384
    %s402 = sphi 0, %s402
    %s404 = sphi 0, %s402
    %s405 = sphi 0, %s404
    %s419 = sphi 0, %s405
    %s423 = sphi 0, %s423
    %s425 = sphi 0, %s423
    %s426 = sphi 0, %s425
    %s440 = sphi 0, %s426
    %s444 = sphi 0, %s444
    %s446 = sphi 0, %s444
    %s447 = sphi 0, %s446
    %s461 = sphi 0, %s447
    %s465 = sphi 0, %s465
    %s467 = sphi 0, %s465
    %s468 = sphi 0, %s467
    %s482 = sphi 0, %s468
    %s486 = sphi 0, %s486
    %s488 = sphi 0, %s486
    %s489 = sphi 0, %s488
    %s503 = sphi 0, %s489
    %s507 = sphi 0, %s507
    %s509 = sphi 0, %s507
    %s510 = sphi 0, %s509
    %s524 = sphi 0, %s510
    %s528 = sphi 0, %s528
    %s530 = sphi 0, %s528
    %s531 = sphi 0, %s530
    %s545 = sphi 0, %s531
    %s549 = sphi 0, %s549
    %s551 = sphi 0, %s549
    %s552 = sphi 0, %s551
    %s566 = sphi 0, %s552
    %s570 = sphi 0, %s570
    %s572 = sphi 0, %s570
    %s573 = sphi 0, %s572
    %s587 = sphi 0, %s573
    %s593 = sphi 0, %s595
    %s596 = sphi 0, %s593
    %s597 = sphi 0, %s596
    %s613 = sphi 0, %s597
  $region4: #{supcon_vit_forward.1} parent=0 // loop_header_branch
    %35 = sbr.rel (%p33) target = $region8
  $region5: #{supcon_vit_forward.1} parent=0 // loop_body
    %s37 = ssub.s32 %s32, 1
    %s38 = ssub.s32 %s32, 2
    %s39 = sadd.s32 %s32, 1
    %s40 = ssub.s32 %s32, %s39
    %p41 = scmp.eq.s32.totalorder %s40, 0
    %s43 = sadd.s32 %s42, 1
    %s44 = scalar_select %p41, %s42, %s43
    %p47 = pneg %p41
    %p48 = scmp.eq.s32.totalorder %s32, 1
    %p49 = por %p47, %p48
    %p50 = scmp.ne.s32.totalorder %s42, %s45
    %p51 = scmp.eq.s32.totalorder %s32, 0
    %p52 = por %p50, %p51
    %p53 = scmp.ne.s32.totalorder %s42, %s45
    %p54 = scmp.eq.s32.totalorder %s37, 1
    %p55 = por %p53, %p54
    %p56 = scmp.ne.s32.totalorder %s45, %s46
    %p57 = scmp.eq.s32.totalorder %s37, 0
    %p58 = por %p56, %p57
    %p59 = scmp.ne.s32.totalorder %s45, %s46
    %p60 = scmp.eq.s32.totalorder %s38, 1
    %p61 = por %p59, %p60
    %p63 = scmp.ne.s32.totalorder %s46, %s62
    %p64 = scmp.eq.s32.totalorder %s38, 0
    %p65 = por %p63, %p64
    %s67 = sadd.s32 %s66, 1
    %p70 = scmp.eq.s32.totalorder %s32, 1
    %p71 = scmp.ne.s32.totalorder %s66, %s68
    %p72 = scmp.eq.s32.totalorder %s32, 0
    %p73 = por %p71, %p72
    %p74 = scmp.ne.s32.totalorder %s66, %s68
    %p75 = scmp.eq.s32.totalorder %s37, 1
    %p76 = por %p74, %p75
    %p77 = scmp.ne.s32.totalorder %s68, %s69
    %p78 = scmp.eq.s32.totalorder %s37, 0
    %p79 = por %p77, %p78
    %p80 = scmp.ne.s32.totalorder %s68, %s69
    %p81 = scmp.eq.s32.totalorder %s38, 1
    %p82 = por %p80, %p81
    %p84 = scmp.ne.s32.totalorder %s69, %s83
    %p85 = scmp.eq.s32.totalorder %s38, 0
    %p86 = por %p84, %p85
    %s88 = sadd.s32 %s87, 1
    %p91 = scmp.eq.s32.totalorder %s32, 1
    %p92 = scmp.ne.s32.totalorder %s87, %s89
    %p93 = scmp.eq.s32.totalorder %s32, 0
    %p94 = por %p92, %p93
    %p95 = scmp.ne.s32.totalorder %s87, %s89
    %p96 = scmp.eq.s32.totalorder %s37, 1
    %p97 = por %p95, %p96
    %p98 = scmp.ne.s32.totalorder %s89, %s90
    %p99 = scmp.eq.s32.totalorder %s37, 0
    %p100 = por %p98, %p99
    %p101 = scmp.ne.s32.totalorder %s89, %s90
    %p102 = scmp.eq.s32.totalorder %s38, 1
    %p103 = por %p101, %p102
    %p105 = scmp.ne.s32.totalorder %s90, %s104
    %p106 = scmp.eq.s32.totalorder %s38, 0
    %p107 = por %p105, %p106
    %s109 = sadd.s32 %s108, 1
    %p112 = scmp.eq.s32.totalorder %s32, 1
    %p113 = scmp.ne.s32.totalorder %s108, %s110
    %p114 = scmp.eq.s32.totalorder %s32, 0
    %p115 = por %p113, %p114
    %p116 = scmp.ne.s32.totalorder %s108, %s110
    %p117 = scmp.eq.s32.totalorder %s37, 1
    %p118 = por %p116, %p117
    %p119 = scmp.ne.s32.totalorder %s110, %s111
    %p120 = scmp.eq.s32.totalorder %s37, 0
    %p121 = por %p119, %p120
    %p122 = scmp.ne.s32.totalorder %s110, %s111
    %p123 = scmp.eq.s32.totalorder %s38, 1
    %p124 = por %p122, %p123
    %p126 = scmp.ne.s32.totalorder %s111, %s125
    %p127 = scmp.eq.s32.totalorder %s38, 0
    %p128 = por %p126, %p127
    %s130 = sadd.s32 %s129, 1
    %p133 = scmp.eq.s32.totalorder %s32, 1
    %p134 = scmp.ne.s32.totalorder %s129, %s131
    %p135 = scmp.eq.s32.totalorder %s32, 0
    %p136 = por %p134, %p135
    %p137 = scmp.ne.s32.totalorder %s129, %s131
    %p138 = scmp.eq.s32.totalorder %s37, 1
    %p139 = por %p137, %p138
    %p140 = scmp.ne.s32.totalorder %s131, %s132
    %p141 = scmp.eq.s32.totalorder %s37, 0
    %p142 = por %p140, %p141
    %p143 = scmp.ne.s32.totalorder %s131, %s132
    %p144 = scmp.eq.s32.totalorder %s38, 1
    %p145 = por %p143, %p144
    %p147 = scmp.ne.s32.totalorder %s132, %s146
    %p148 = scmp.eq.s32.totalorder %s38, 0
    %p149 = por %p147, %p148
    %s151 = sadd.s32 %s150, 1
    %p154 = scmp.eq.s32.totalorder %s32, 1
    %p155 = scmp.ne.s32.totalorder %s150, %s152
    %p156 = scmp.eq.s32.totalorder %s32, 0
    %p157 = por %p155, %p156
    %p158 = scmp.ne.s32.totalorder %s150, %s152
    %p159 = scmp.eq.s32.totalorder %s37, 1
    %p160 = por %p158, %p159
    %p161 = scmp.ne.s32.totalorder %s152, %s153
    %p162 = scmp.eq.s32.totalorder %s37, 0
    %p163 = por %p161, %p162
    %p164 = scmp.ne.s32.totalorder %s152, %s153
    %p165 = scmp.eq.s32.totalorder %s38, 1
    %p166 = por %p164, %p165
    %p168 = scmp.ne.s32.totalorder %s153, %s167
    %p169 = scmp.eq.s32.totalorder %s38, 0
    %p170 = por %p168, %p169
    %s172 = sadd.s32 %s171, 1
    %p175 = scmp.eq.s32.totalorder %s32, 1
    %p176 = scmp.ne.s32.totalorder %s171, %s173
    %p177 = scmp.eq.s32.totalorder %s32, 0
    %p178 = por %p176, %p177
    %p179 = scmp.ne.s32.totalorder %s171, %s173
    %p180 = scmp.eq.s32.totalorder %s37, 1
    %p181 = por %p179, %p180
    %p182 = scmp.ne.s32.totalorder %s173, %s174
    %p183 = scmp.eq.s32.totalorder %s37, 0
    %p184 = por %p182, %p183
    %p185 = scmp.ne.s32.totalorder %s173, %s174
    %p186 = scmp.eq.s32.totalorder %s38, 1
    %p187 = por %p185, %p186
    %p189 = scmp.ne.s32.totalorder %s174, %s188
    %p190 = scmp.eq.s32.totalorder %s38, 0
    %p191 = por %p189, %p190
    %s193 = sadd.s32 %s192, 1
    %p196 = scmp.eq.s32.totalorder %s32, 1
    %p197 = scmp.ne.s32.totalorder %s192, %s194
    %p198 = scmp.eq.s32.totalorder %s32, 0
    %p199 = por %p197, %p198
    %p200 = scmp.ne.s32.totalorder %s192, %s194
    %p201 = scmp.eq.s32.totalorder %s37, 1
    %p202 = por %p200, %p201
    %p203 = scmp.ne.s32.totalorder %s194, %s195
    %p204 = scmp.eq.s32.totalorder %s37, 0
    %p205 = por %p203, %p204
    %p206 = scmp.ne.s32.totalorder %s194, %s195
    %p207 = scmp.eq.s32.totalorder %s38, 1
    %p208 = por %p206, %p207
    %p210 = scmp.ne.s32.totalorder %s195, %s209
    %p211 = scmp.eq.s32.totalorder %s38, 0
    %p212 = por %p210, %p211
    %s214 = sadd.s32 %s213, 1
    %p217 = scmp.eq.s32.totalorder %s32, 1
    %p218 = scmp.ne.s32.totalorder %s213, %s215
    %p219 = scmp.eq.s32.totalorder %s32, 0
    %p220 = por %p218, %p219
    %p221 = scmp.ne.s32.totalorder %s213, %s215
    %p222 = scmp.eq.s32.totalorder %s37, 1
    %p223 = por %p221, %p222
    %p224 = scmp.ne.s32.totalorder %s215, %s216
    %p225 = scmp.eq.s32.totalorder %s37, 0
    %p226 = por %p224, %p225
    %p227 = scmp.ne.s32.totalorder %s215, %s216
    %p228 = scmp.eq.s32.totalorder %s38, 1
    %p229 = por %p227, %p228
    %p231 = scmp.ne.s32.totalorder %s216, %s230
    %p232 = scmp.eq.s32.totalorder %s38, 0
    %p233 = por %p231, %p232
    %s235 = sadd.s32 %s234, 1
    %p238 = scmp.eq.s32.totalorder %s32, 1
    %p239 = scmp.ne.s32.totalorder %s234, %s236
    %p240 = scmp.eq.s32.totalorder %s32, 0
    %p241 = por %p239, %p240
    %p242 = scmp.ne.s32.totalorder %s234, %s236
    %p243 = scmp.eq.s32.totalorder %s37, 1
    %p244 = por %p242, %p243
    %p245 = scmp.ne.s32.totalorder %s236, %s237
    %p246 = scmp.eq.s32.totalorder %s37, 0
    %p247 = por %p245, %p246
    %p248 = scmp.ne.s32.totalorder %s236, %s237
    %p249 = scmp.eq.s32.totalorder %s38, 1
    %p250 = por %p248, %p249
    %p252 = scmp.ne.s32.totalorder %s237, %s251
    %p253 = scmp.eq.s32.totalorder %s38, 0
    %p254 = por %p252, %p253
    %s256 = sadd.s32 %s255, 1
    %p259 = scmp.eq.s32.totalorder %s32, 1
    %p260 = scmp.ne.s32.totalorder %s255, %s257
    %p261 = scmp.eq.s32.totalorder %s32, 0
    %p262 = por %p260, %p261
    %p263 = scmp.ne.s32.totalorder %s255, %s257
    %p264 = scmp.eq.s32.totalorder %s37, 1
    %p265 = por %p263, %p264
    %p266 = scmp.ne.s32.totalorder %s257, %s258
    %p267 = scmp.eq.s32.totalorder %s37, 0
    %p268 = por %p266, %p267
    %p269 = scmp.ne.s32.totalorder %s257, %s258
    %p270 = scmp.eq.s32.totalorder %s38, 1
    %p271 = por %p269, %p270
    %p273 = scmp.ne.s32.totalorder %s258, %s272
    %p274 = scmp.eq.s32.totalorder %s38, 0
    %p275 = por %p273, %p274
    %s277 = sadd.s32 %s276, 1
    %p280 = scmp.eq.s32.totalorder %s32, 1
    %p281 = scmp.ne.s32.totalorder %s276, %s278
    %p282 = scmp.eq.s32.totalorder %s32, 0
    %p283 = por %p281, %p282
    %p284 = scmp.ne.s32.totalorder %s276, %s278
    %p285 = scmp.eq.s32.totalorder %s37, 1
    %p286 = por %p284, %p285
    %p287 = scmp.ne.s32.totalorder %s278, %s279
    %p288 = scmp.eq.s32.totalorder %s37, 0
    %p289 = por %p287, %p288
    %p290 = scmp.ne.s32.totalorder %s278, %s279
    %p291 = scmp.eq.s32.totalorder %s38, 1
    %p292 = por %p290, %p291
    %p294 = scmp.ne.s32.totalorder %s279, %s293
    %p295 = scmp.eq.s32.totalorder %s38, 0
    %p296 = por %p294, %p295
    %s298 = sadd.s32 %s297, 1
    %p301 = scmp.eq.s32.totalorder %s32, 1
    %p302 = scmp.ne.s32.totalorder %s297, %s299
    %p303 = scmp.eq.s32.totalorder %s32, 0
    %p304 = por %p302, %p303
    %p305 = scmp.ne.s32.totalorder %s297, %s299
    %p306 = scmp.eq.s32.totalorder %s37, 1
    %p307 = por %p305, %p306
    %p308 = scmp.ne.s32.totalorder %s299, %s300
    %p309 = scmp.eq.s32.totalorder %s37, 0
    %p310 = por %p308, %p309
    %p311 = scmp.ne.s32.totalorder %s299, %s300
    %p312 = scmp.eq.s32.totalorder %s38, 1
    %p313 = por %p311, %p312
    %p315 = scmp.ne.s32.totalorder %s300, %s314
    %p316 = scmp.eq.s32.totalorder %s38, 0
    %p317 = por %p315, %p316
    %s319 = sadd.s32 %s318, 1
    %p322 = scmp.eq.s32.totalorder %s32, 1
    %p323 = scmp.ne.s32.totalorder %s318, %s320
    %p324 = scmp.eq.s32.totalorder %s32, 0
    %p325 = por %p323, %p324
    %p326 = scmp.ne.s32.totalorder %s318, %s320
    %p327 = scmp.eq.s32.totalorder %s37, 1
    %p328 = por %p326, %p327
    %p329 = scmp.ne.s32.totalorder %s320, %s321
    %p330 = scmp.eq.s32.totalorder %s37, 0
    %p331 = por %p329, %p330
    %p332 = scmp.ne.s32.totalorder %s320, %s321
    %p333 = scmp.eq.s32.totalorder %s38, 1
    %p334 = por %p332, %p333
    %p336 = scmp.ne.s32.totalorder %s321, %s335
    %p337 = scmp.eq.s32.totalorder %s38, 0
    %p338 = por %p336, %p337
    %s340 = sadd.s32 %s339, 1
    %p343 = scmp.eq.s32.totalorder %s32, 1
    %p344 = scmp.ne.s32.totalorder %s339, %s341
    %p345 = scmp.eq.s32.totalorder %s32, 0
    %p346 = por %p344, %p345
    %p347 = scmp.ne.s32.totalorder %s339, %s341
    %p348 = scmp.eq.s32.totalorder %s37, 1
    %p349 = por %p347, %p348
    %p350 = scmp.ne.s32.totalorder %s341, %s342
    %p351 = scmp.eq.s32.totalorder %s37, 0
    %p352 = por %p350, %p351
    %p353 = scmp.ne.s32.totalorder %s341, %s342
    %p354 = scmp.eq.s32.totalorder %s38, 1
    %p355 = por %p353, %p354
    %p357 = scmp.ne.s32.totalorder %s342, %s356
    %p358 = scmp.eq.s32.totalorder %s38, 0
    %p359 = por %p357, %p358
    %s361 = sadd.s32 %s360, 1
    %p364 = scmp.eq.s32.totalorder %s32, 1
    %p365 = scmp.ne.s32.totalorder %s360, %s362
    %p366 = scmp.eq.s32.totalorder %s32, 0
    %p367 = por %p365, %p366
    %p368 = scmp.ne.s32.totalorder %s360, %s362
    %p369 = scmp.eq.s32.totalorder %s37, 1
    %p370 = por %p368, %p369
    %p371 = scmp.ne.s32.totalorder %s362, %s363
    %p372 = scmp.eq.s32.totalorder %s37, 0
    %p373 = por %p371, %p372
    %p374 = scmp.ne.s32.totalorder %s362, %s363
    %p375 = scmp.eq.s32.totalorder %s38, 1
    %p376 = por %p374, %p375
    %p378 = scmp.ne.s32.totalorder %s363, %s377
    %p379 = scmp.eq.s32.totalorder %s38, 0
    %p380 = por %p378, %p379
    %s382 = sadd.s32 %s381, 1
    %p385 = scmp.eq.s32.totalorder %s32, 1
    %p386 = scmp.ne.s32.totalorder %s381, %s383
    %p387 = scmp.eq.s32.totalorder %s32, 0
    %p388 = por %p386, %p387
    %p389 = scmp.ne.s32.totalorder %s381, %s383
    %p390 = scmp.eq.s32.totalorder %s37, 1
    %p391 = por %p389, %p390
    %p392 = scmp.ne.s32.totalorder %s383, %s384
    %p393 = scmp.eq.s32.totalorder %s37, 0
    %p394 = por %p392, %p393
    %p395 = scmp.ne.s32.totalorder %s383, %s384
    %p396 = scmp.eq.s32.totalorder %s38, 1
    %p397 = por %p395, %p396
    %p399 = scmp.ne.s32.totalorder %s384, %s398
    %p400 = scmp.eq.s32.totalorder %s38, 0
    %p401 = por %p399, %p400
    %s403 = sadd.s32 %s402, 1
    %p406 = scmp.eq.s32.totalorder %s32, 1
    %p407 = scmp.ne.s32.totalorder %s402, %s404
    %p408 = scmp.eq.s32.totalorder %s32, 0
    %p409 = por %p407, %p408
    %p410 = scmp.ne.s32.totalorder %s402, %s404
    %p411 = scmp.eq.s32.totalorder %s37, 1
    %p412 = por %p410, %p411
    %p413 = scmp.ne.s32.totalorder %s404, %s405
    %p414 = scmp.eq.s32.totalorder %s37, 0
    %p415 = por %p413, %p414
    %p416 = scmp.ne.s32.totalorder %s404, %s405
    %p417 = scmp.eq.s32.totalorder %s38, 1
    %p418 = por %p416, %p417
    %p420 = scmp.ne.s32.totalorder %s405, %s419
    %p421 = scmp.eq.s32.totalorder %s38, 0
    %p422 = por %p420, %p421
    %s424 = sadd.s32 %s423, 1
    %p427 = scmp.eq.s32.totalorder %s32, 1
    %p428 = scmp.ne.s32.totalorder %s423, %s425
    %p429 = scmp.eq.s32.totalorder %s32, 0
    %p430 = por %p428, %p429
    %p431 = scmp.ne.s32.totalorder %s423, %s425
    %p432 = scmp.eq.s32.totalorder %s37, 1
    %p433 = por %p431, %p432
    %p434 = scmp.ne.s32.totalorder %s425, %s426
    %p435 = scmp.eq.s32.totalorder %s37, 0
    %p436 = por %p434, %p435
    %p437 = scmp.ne.s32.totalorder %s425, %s426
    %p438 = scmp.eq.s32.totalorder %s38, 1
    %p439 = por %p437, %p438
    %p441 = scmp.ne.s32.totalorder %s426, %s440
    %p442 = scmp.eq.s32.totalorder %s38, 0
    %p443 = por %p441, %p442
    %s445 = sadd.s32 %s444, 1
    %p448 = scmp.eq.s32.totalorder %s32, 1
    %p449 = scmp.ne.s32.totalorder %s444, %s446
    %p450 = scmp.eq.s32.totalorder %s32, 0
    %p451 = por %p449, %p450
    %p452 = scmp.ne.s32.totalorder %s444, %s446
    %p453 = scmp.eq.s32.totalorder %s37, 1
    %p454 = por %p452, %p453
    %p455 = scmp.ne.s32.totalorder %s446, %s447
    %p456 = scmp.eq.s32.totalorder %s37, 0
    %p457 = por %p455, %p456
    %p458 = scmp.ne.s32.totalorder %s446, %s447
    %p459 = scmp.eq.s32.totalorder %s38, 1
    %p460 = por %p458, %p459
    %p462 = scmp.ne.s32.totalorder %s447, %s461
    %p463 = scmp.eq.s32.totalorder %s38, 0
    %p464 = por %p462, %p463
    %s466 = sadd.s32 %s465, 1
    %p469 = scmp.eq.s32.totalorder %s32, 1
    %p470 = scmp.ne.s32.totalorder %s465, %s467
    %p471 = scmp.eq.s32.totalorder %s32, 0
    %p472 = por %p470, %p471
    %p473 = scmp.ne.s32.totalorder %s465, %s467
    %p474 = scmp.eq.s32.totalorder %s37, 1
    %p475 = por %p473, %p474
    %p476 = scmp.ne.s32.totalorder %s467, %s468
    %p477 = scmp.eq.s32.totalorder %s37, 0
    %p478 = por %p476, %p477
    %p479 = scmp.ne.s32.totalorder %s467, %s468
    %p480 = scmp.eq.s32.totalorder %s38, 1
    %p481 = por %p479, %p480
    %p483 = scmp.ne.s32.totalorder %s468, %s482
    %p484 = scmp.eq.s32.totalorder %s38, 0
    %p485 = por %p483, %p484
    %s487 = sadd.s32 %s486, 1
    %p490 = scmp.eq.s32.totalorder %s32, 1
    %p491 = scmp.ne.s32.totalorder %s486, %s488
    %p492 = scmp.eq.s32.totalorder %s32, 0
    %p493 = por %p491, %p492
    %p494 = scmp.ne.s32.totalorder %s486, %s488
    %p495 = scmp.eq.s32.totalorder %s37, 1
    %p496 = por %p494, %p495
    %p497 = scmp.ne.s32.totalorder %s488, %s489
    %p498 = scmp.eq.s32.totalorder %s37, 0
    %p499 = por %p497, %p498
    %p500 = scmp.ne.s32.totalorder %s488, %s489
    %p501 = scmp.eq.s32.totalorder %s38, 1
    %p502 = por %p500, %p501
    %p504 = scmp.ne.s32.totalorder %s489, %s503
    %p505 = scmp.eq.s32.totalorder %s38, 0
    %p506 = por %p504, %p505
    %s508 = sadd.s32 %s507, 1
    %p511 = scmp.eq.s32.totalorder %s32, 1
    %p512 = scmp.ne.s32.totalorder %s507, %s509
    %p513 = scmp.eq.s32.totalorder %s32, 0
    %p514 = por %p512, %p513
    %p515 = scmp.ne.s32.totalorder %s507, %s509
    %p516 = scmp.eq.s32.totalorder %s37, 1
    %p517 = por %p515, %p516
    %p518 = scmp.ne.s32.totalorder %s509, %s510
    %p519 = scmp.eq.s32.totalorder %s37, 0
    %p520 = por %p518, %p519
    %p521 = scmp.ne.s32.totalorder %s509, %s510
    %p522 = scmp.eq.s32.totalorder %s38, 1
    %p523 = por %p521, %p522
    %p525 = scmp.ne.s32.totalorder %s510, %s524
    %p526 = scmp.eq.s32.totalorder %s38, 0
    %p527 = por %p525, %p526
    %s529 = sadd.s32 %s528, 1
    %p532 = scmp.eq.s32.totalorder %s32, 1
    %p533 = scmp.ne.s32.totalorder %s528, %s530
    %p534 = scmp.eq.s32.totalorder %s32, 0
    %p535 = por %p533, %p534
    %p536 = scmp.ne.s32.totalorder %s528, %s530
    %p537 = scmp.eq.s32.totalorder %s37, 1
    %p538 = por %p536, %p537
    %p539 = scmp.ne.s32.totalorder %s530, %s531
    %p540 = scmp.eq.s32.totalorder %s37, 0
    %p541 = por %p539, %p540
    %p542 = scmp.ne.s32.totalorder %s530, %s531
    %p543 = scmp.eq.s32.totalorder %s38, 1
    %p544 = por %p542, %p543
    %p546 = scmp.ne.s32.totalorder %s531, %s545
    %p547 = scmp.eq.s32.totalorder %s38, 0
    %p548 = por %p546, %p547
    %s550 = sadd.s32 %s549, 1
    %p553 = scmp.eq.s32.totalorder %s32, 1
    %p554 = scmp.ne.s32.totalorder %s549, %s551
    %p555 = scmp.eq.s32.totalorder %s32, 0
    %p556 = por %p554, %p555
    %p557 = scmp.ne.s32.totalorder %s549, %s551
    %p558 = scmp.eq.s32.totalorder %s37, 1
    %p559 = por %p557, %p558
    %p560 = scmp.ne.s32.totalorder %s551, %s552
    %p561 = scmp.eq.s32.totalorder %s37, 0
    %p562 = por %p560, %p561
    %p563 = scmp.ne.s32.totalorder %s551, %s552
    %p564 = scmp.eq.s32.totalorder %s38, 1
    %p565 = por %p563, %p564
    %p567 = scmp.ne.s32.totalorder %s552, %s566
    %p568 = scmp.eq.s32.totalorder %s38, 0
    %p569 = por %p567, %p568
    %s571 = sadd.s32 %s570, 1
    %p574 = scmp.eq.s32.totalorder %s32, 1
    %p575 = scmp.ne.s32.totalorder %s570, %s572
    %p576 = scmp.eq.s32.totalorder %s32, 0
    %p577 = por %p575, %p576
    %p578 = scmp.ne.s32.totalorder %s570, %s572
    %p579 = scmp.eq.s32.totalorder %s37, 1
    %p580 = por %p578, %p579
    %p581 = scmp.ne.s32.totalorder %s572, %s573
    %p582 = scmp.eq.s32.totalorder %s37, 0
    %p583 = por %p581, %p582
    %p584 = scmp.ne.s32.totalorder %s572, %s573
    %p585 = scmp.eq.s32.totalorder %s38, 1
    %p586 = por %p584, %p585
    %p588 = scmp.ne.s32.totalorder %s573, %s587
    %p589 = scmp.eq.s32.totalorder %s38, 0
    %p590 = por %p588, %p589
    %s591 = ssub.s32 %s32, %s39
    %p592 = scmp.eq.s32.totalorder %s591, 0
    %s594 = sadd.s32 %s593, 1
    %s595 = scalar_select %p592, %s593, %s594
    %p598 = pneg %p592
    %p599 = scmp.eq.s32.totalorder %s32, 1
    %p600 = por %p598, %p599
    %p601 = scmp.ne.s32.totalorder %s593, %s596
    %p602 = scmp.eq.s32.totalorder %s32, 0
    %p603 = por %p601, %p602
    %p604 = scmp.ne.s32.totalorder %s593, %s596
    %p605 = scmp.eq.s32.totalorder %s37, 1
    %p606 = por %p604, %p605
    %p607 = scmp.ne.s32.totalorder %s596, %s597
    %p608 = scmp.eq.s32.totalorder %s37, 0
    %p609 = por %p607, %p608
    %p610 = scmp.ne.s32.totalorder %s596, %s597
    %p611 = scmp.eq.s32.totalorder %s38, 1
    %p612 = por %p610, %p611
    %p614 = scmp.ne.s32.totalorder %s597, %s613
    %p615 = scmp.eq.s32.totalorder %s38, 0
    %p616 = por %p614, %p615
    %p617 = scmp.le.s32.totalorder 1, %s32
    %p618 = scmp.lt.s32.totalorder %s32, 3
    %p619 = pnand %p617, %p618
    %p620 = pneg %p619
    // Predicated region
    $region9: #{supcon_vit_forward.1} parent=5 // pred_check
      _
    $region10: #{supcon_vit_forward.1} parent=5 // pred_check_branch
      %622 = sbr.rel (%p619) target = $region12
    $region11: #{supcon_vit_forward.1} parent=5 // pred_region
      %s623 = ssub.s32 %s32, 1
      // Predicated region
      $region13: #{supcon_vit_forward.1} parent=11 // pred_check
        %p624 = pneg %p79
      $region14: #{supcon_vit_forward.1} parent=11 // pred_check_branch
        %626 = sbr.rel (%p624) target = $region16
      $region15: #{supcon_vit_forward.1} parent=11 // pred_region
        _
      $region16: #{supcon_vit_forward.1} parent=11 // pred_fallthru
        _
      // Predicated region
      $region17: #{supcon_vit_forward.1} parent=11 // pred_check
        %p627 = pneg %p100
      $region18: #{supcon_vit_forward.1} parent=11 // pred_check_branch
        %629 = sbr.rel (%p627) target = $region20
      $region19: #{supcon_vit_forward.1} parent=11 // pred_region
        _
      $region20: #{supcon_vit_forward.1} parent=11 // pred_fallthru
        _
      // Predicated region
      $region21: #{supcon_vit_forward.1} parent=11 // pred_check
        %p630 = pneg %p121
      $region22: #{supcon_vit_forward.1} parent=11 // pred_check_branch
        %632 = sbr.rel (%p630) target = $region24
      $region23: #{supcon_vit_forward.1} parent=11 // pred_region
        _
      $region24: #{supcon_vit_forward.1} parent=11 // pred_fallthru
        _
      // Predicated region
      $region25: #{supcon_vit_forward.1} parent=11 // pred_check
        %p633 = pneg %p142
      $region26: #{supcon_vit_forward.1} parent=11 // pred_check_branch
        %635 = sbr.rel (%p633) target = $region28
      $region27: #{supcon_vit_forward.1} parent=11 // pred_region
        _
      $region28: #{supcon_vit_forward.1} parent=11 // pred_fallthru
        _
      // Predicated region
      $region29: #{supcon_vit_forward.1} parent=11 // pred_check
        %p636 = pneg %p163
      $region30: #{supcon_vit_forward.1} parent=11 // pred_check_branch
        %638 = sbr.rel (%p636) target = $region32
      $region31: #{supcon_vit_forward.1} parent=11 // pred_region
        _
      $region32: #{supcon_vit_forward.1} parent=11 // pred_fallthru
        _
      // Predicated region
      $region33: #{supcon_vit_forward.1} parent=11 // pred_check
        %p639 = pneg %p184
      $region34: #{supcon_vit_forward.1} parent=11 // pred_check_branch
        %641 = sbr.rel (%p639) target = $region36
      $region35: #{supcon_vit_forward.1} parent=11 // pred_region
        _
      $region36: #{supcon_vit_forward.1} parent=11 // pred_fallthru
        _
      // Predicated region
      $region37: #{supcon_vit_forward.1} parent=11 // pred_check
        %p642 = pneg %p205
      $region38: #{supcon_vit_forward.1} parent=11 // pred_check_branch
        %644 = sbr.rel (%p642) target = $region40
      $region39: #{supcon_vit_forward.1} parent=11 // pred_region
        _
      $region40: #{supcon_vit_forward.1} parent=11 // pred_fallthru
        _
      // Predicated region
      $region41: #{supcon_vit_forward.1} parent=11 // pred_check
        %p645 = pneg %p226
      $region42: #{supcon_vit_forward.1} parent=11 // pred_check_branch
        %647 = sbr.rel (%p645) target = $region44
      $region43: #{supcon_vit_forward.1} parent=11 // pred_region
        _
      $region44: #{supcon_vit_forward.1} parent=11 // pred_fallthru
        _
      // Predicated region
      $region45: #{supcon_vit_forward.1} parent=11 // pred_check
        %p648 = pneg %p247
      $region46: #{supcon_vit_forward.1} parent=11 // pred_check_branch
        %650 = sbr.rel (%p648) target = $region48
      $region47: #{supcon_vit_forward.1} parent=11 // pred_region
        _
      $region48: #{supcon_vit_forward.1} parent=11 // pred_fallthru
        _
      // Predicated region
      $region49: #{supcon_vit_forward.1} parent=11 // pred_check
        %p651 = pneg %p268
      $region50: #{supcon_vit_forward.1} parent=11 // pred_check_branch
        %653 = sbr.rel (%p651) target = $region52
      $region51: #{supcon_vit_forward.1} parent=11 // pred_region
        _
      $region52: #{supcon_vit_forward.1} parent=11 // pred_fallthru
        _
      // Predicated region
      $region53: #{supcon_vit_forward.1} parent=11 // pred_check
        %p654 = pneg %p289
      $region54: #{supcon_vit_forward.1} parent=11 // pred_check_branch
        %656 = sbr.rel (%p654) target = $region56
      $region55: #{supcon_vit_forward.1} parent=11 // pred_region
        _
      $region56: #{supcon_vit_forward.1} parent=11 // pred_fallthru
        _
      // Predicated region
      $region57: #{supcon_vit_forward.1} parent=11 // pred_check
        %p657 = pneg %p310
      $region58: #{supcon_vit_forward.1} parent=11 // pred_check_branch
        %659 = sbr.rel (%p657) target = $region60
      $region59: #{supcon_vit_forward.1} parent=11 // pred_region
        _
      $region60: #{supcon_vit_forward.1} parent=11 // pred_fallthru
        _
      // Predicated region
      $region61: #{supcon_vit_forward.1} parent=11 // pred_check
        %p660 = pneg %p331
      $region62: #{supcon_vit_forward.1} parent=11 // pred_check_branch
        %662 = sbr.rel (%p660) target = $region64
      $region63: #{supcon_vit_forward.1} parent=11 // pred_region
        _
      $region64: #{supcon_vit_forward.1} parent=11 // pred_fallthru
        _
      // Predicated region
      $region65: #{supcon_vit_forward.1} parent=11 // pred_check
        %p663 = pneg %p352
      $region66: #{supcon_vit_forward.1} parent=11 // pred_check_branch
        %665 = sbr.rel (%p663) target = $region68
      $region67: #{supcon_vit_forward.1} parent=11 // pred_region
        _
      $region68: #{supcon_vit_forward.1} parent=11 // pred_fallthru
        _
      // Predicated region
      $region69: #{supcon_vit_forward.1} parent=11 // pred_check
        %p666 = pneg %p373
      $region70: #{supcon_vit_forward.1} parent=11 // pred_check_branch
        %668 = sbr.rel (%p666) target = $region72
      $region71: #{supcon_vit_forward.1} parent=11 // pred_region
        _
      $region72: #{supcon_vit_forward.1} parent=11 // pred_fallthru
        _
      // Predicated region
      $region73: #{supcon_vit_forward.1} parent=11 // pred_check
        %p669 = pneg %p394
      $region74: #{supcon_vit_forward.1} parent=11 // pred_check_branch
        %671 = sbr.rel (%p669) target = $region76
      $region75: #{supcon_vit_forward.1} parent=11 // pred_region
        _
      $region76: #{supcon_vit_forward.1} parent=11 // pred_fallthru
        _
      // Predicated region
      $region77: #{supcon_vit_forward.1} parent=11 // pred_check
        %p672 = pneg %p415
      $region78: #{supcon_vit_forward.1} parent=11 // pred_check_branch
        %674 = sbr.rel (%p672) target = $region80
      $region79: #{supcon_vit_forward.1} parent=11 // pred_region
        _
      $region80: #{supcon_vit_forward.1} parent=11 // pred_fallthru
        _
      // Predicated region
      $region81: #{supcon_vit_forward.1} parent=11 // pred_check
        %p675 = pneg %p436
      $region82: #{supcon_vit_forward.1} parent=11 // pred_check_branch
        %677 = sbr.rel (%p675) target = $region84
      $region83: #{supcon_vit_forward.1} parent=11 // pred_region
        _
      $region84: #{supcon_vit_forward.1} parent=11 // pred_fallthru
        _
      // Predicated region
      $region85: #{supcon_vit_forward.1} parent=11 // pred_check
        %p678 = pneg %p457
      $region86: #{supcon_vit_forward.1} parent=11 // pred_check_branch
        %680 = sbr.rel (%p678) target = $region88
      $region87: #{supcon_vit_forward.1} parent=11 // pred_region
        _
      $region88: #{supcon_vit_forward.1} parent=11 // pred_fallthru
        _
      // Predicated region
      $region89: #{supcon_vit_forward.1} parent=11 // pred_check
        %p681 = pneg %p478
      $region90: #{supcon_vit_forward.1} parent=11 // pred_check_branch
        %683 = sbr.rel (%p681) target = $region92
      $region91: #{supcon_vit_forward.1} parent=11 // pred_region
        _
      $region92: #{supcon_vit_forward.1} parent=11 // pred_fallthru
        _
      // Predicated region
      $region93: #{supcon_vit_forward.1} parent=11 // pred_check
        %p684 = pneg %p499
      $region94: #{supcon_vit_forward.1} parent=11 // pred_check_branch
        %686 = sbr.rel (%p684) target = $region96
      $region95: #{supcon_vit_forward.1} parent=11 // pred_region
        _
      $region96: #{supcon_vit_forward.1} parent=11 // pred_fallthru
        _
      // Predicated region
      $region97: #{supcon_vit_forward.1} parent=11 // pred_check
        %p687 = pneg %p520
      $region98: #{supcon_vit_forward.1} parent=11 // pred_check_branch
        %689 = sbr.rel (%p687) target = $region100
      $region99: #{supcon_vit_forward.1} parent=11 // pred_region
        _
      $region100: #{supcon_vit_forward.1} parent=11 // pred_fallthru
        _
      // Predicated region
      $region101: #{supcon_vit_forward.1} parent=11 // pred_check
        %p690 = pneg %p541
      $region102: #{supcon_vit_forward.1} parent=11 // pred_check_branch
        %692 = sbr.rel (%p690) target = $region104
      $region103: #{supcon_vit_forward.1} parent=11 // pred_region
        _
      $region104: #{supcon_vit_forward.1} parent=11 // pred_fallthru
        _
      // Predicated region
      $region105: #{supcon_vit_forward.1} parent=11 // pred_check
        %p693 = pneg %p562
      $region106: #{supcon_vit_forward.1} parent=11 // pred_check_branch
        %695 = sbr.rel (%p693) target = $region108
      $region107: #{supcon_vit_forward.1} parent=11 // pred_region
        _
      $region108: #{supcon_vit_forward.1} parent=11 // pred_fallthru
        _
      // Predicated region
      $region109: #{supcon_vit_forward.1} parent=11 // pred_check
        %p696 = pneg %p583
      $region110: #{supcon_vit_forward.1} parent=11 // pred_check_branch
        %698 = sbr.rel (%p696) target = $region112
      $region111: #{supcon_vit_forward.1} parent=11 // pred_region
        _
      $region112: #{supcon_vit_forward.1} parent=11 // pred_fallthru
        _
    $region12: #{supcon_vit_forward.1} parent=5 // pred_fallthru
      _
    %p699 = scmp.lt.s32.totalorder %s32, 2
    // Predicated region
    $region113: #{supcon_vit_forward.1} parent=5 // pred_check
      %p700 = pneg %p699
    $region114: #{supcon_vit_forward.1} parent=5 // pred_check_branch
      %702 = sbr.rel (%p700) target = $region116
    $region115: #{supcon_vit_forward.1} parent=5 // pred_region
      // Predicated region
      $region117: #{supcon_vit_forward.1} parent=115 // pred_check
        %p703 = pneg %p52
      $region118: #{supcon_vit_forward.1} parent=115 // pred_check_branch
        %705 = sbr.rel (%p703) target = $region120
      $region119: #{supcon_vit_forward.1} parent=115 // pred_region
        %p706 = scmp.lt.s32.totalorder %s32, 1
        %s707 = scalar_select %p706, %s32, 1
        %s708 = smul.addr %s707, 2
        %s709 = smul.addr %s708, 8
        %s710 = scalar_lea.vmem %s0, %s709
      $region120: #{supcon_vit_forward.1} parent=115 // pred_fallthru
        _
    $region116: #{supcon_vit_forward.1} parent=5 // pred_fallthru
      _
    %p711 = scmp.le.s32.totalorder 1, %s32
    %p712 = scmp.lt.s32.totalorder %s32, 3
    %p713 = pnand %p711, %p712
    %p714 = pneg %p713
    // Predicated region
    $region121: #{supcon_vit_forward.1} parent=5 // pred_check
      _
    $region122: #{supcon_vit_forward.1} parent=5 // pred_check_branch
      %716 = sbr.rel (%p713) target = $region124
    $region123: #{supcon_vit_forward.1} parent=5 // pred_region
      %s717 = ssub.s32 %s32, 1
      %p718 = scmp.lt.s32.totalorder %s37, 1
      %s719 = scalar_select %p718, %s37, 1
      %s720 = smul.addr %s719, 2
      %s721 = smul.addr %s720, 8
      %s722 = scalar_lea.vmem %s0, %s721
      %p723 = pneg %p58
      %p724 = pneg %p55
      %p725 = pneg %p79
      %p726 = pneg %p76
      %p727 = pneg %p100
      %p728 = pneg %p97
      %p729 = pneg %p121
      %p730 = pneg %p118
      %p731 = pneg %p142
      %p732 = pneg %p139
      %p733 = pneg %p163
      %p734 = pneg %p160
      %p735 = pneg %p184
      %p736 = pneg %p181
      %p737 = pneg %p205
      %p738 = pneg %p202
      %p739 = pneg %p226
      %p740 = pneg %p223
      %p741 = pneg %p247
      %p742 = pneg %p244
      %p743 = pneg %p268
      %p744 = pneg %p265
      %p745 = pneg %p289
      %p746 = pneg %p286
      %p747 = pneg %p310
      %p748 = pneg %p307
      %p749 = pneg %p331
      %p750 = pneg %p328
      %p751 = pneg %p352
      %p752 = pneg %p349
      %p753 = pneg %p373
      %p754 = pneg %p370
      %p755 = pneg %p394
      %p756 = pneg %p391
      %p757 = pneg %p415
      %p758 = pneg %p412
      %p759 = pneg %p436
      %p760 = pneg %p433
      %p761 = pneg %p457
      %p762 = pneg %p454
      %p763 = pneg %p478
      %p764 = pneg %p475
      %p765 = pneg %p499
      %p766 = pneg %p496
      %p767 = pneg %p520
      %p768 = pneg %p517
      %p769 = pneg %p541
      %p770 = pneg %p538
      %p771 = pneg %p562
      %p772 = pneg %p559
      %p773 = pneg %p583
      %p774 = pneg %p580
      %p775 = pneg %p609
      %p776 = pneg %p606
      %p777 = scmp.lt.s32.totalorder %s37, 1
      %s778 = scalar_select %p777, %s37, 1
      %s779 = smul.addr %s778, 8
      %s780 = scalar_lea.vmem %s26, %s779
      %p781 = scmp.lt.s32.totalorder %s37, 1
      %s782 = scalar_select %p781, %s37, 1
      %s783 = smul.addr %s782, 2
      %s784 = smul.addr %s783, 8
      %s785 = scalar_lea.vmem %s0, %s784
      %p786 = scmp.lt.s32.totalorder %s37, 1
      %s787 = scalar_select %p786, %s37, 1
      %s788 = smul.addr %s787, 8
      %s789 = scalar_lea.vmem %s26, %s788
      %v790 = vld [vmem:[%s785] sm:$0xff]
      %v791 = vld [vmem:[%s785 + $0x8] sm:$0xff]
      %v792 = vld [vmem:[%s2] sm:$0xff]
      %v793 = vld [vmem:[%s2 + $0x8] sm:$0xff]
      %v794 = vld [vmem:[%s2 + $0x10] sm:$0xff]
      %v795 = vld [vmem:[%s2 + $0x18] sm:$0xff]
      %v796 = vld [vmem:[%s2 + $0x20] sm:$0xff]
      %v797 = vld [vmem:[%s2 + $0x28] sm:$0xff]
      %v798 = vld [vmem:[%s3] sm:$0x1]
      %v800 = vlaneseq
      %v801 = vshrl.u32 %v800, 7
      %v802 = vsub.s32 0, %v801
      %v803 = vrot.slane %v798, %v802
      %vm805 = vcmask 392192
      %v807 = vsel %vm805, %v790, 0
      %v810 = vsel %vm805, %v791, 0
      %812 = vmatprep.subr.mxu0 0.0
      %813 = vmatpush1.msra.mxu0 %v792
      %814 = vmatprep.subr.mxu0 0.0
      %815 = vmatpush1.msra.mxu0 %v793
      %816 = vmatprep.subr.mxu0 0.0
      %817 = vmatpush1.msra.mxu0 %v794
      %818 = vmatprep.subr.mxu0 0.0
      %819 = vmatpush1.msra.mxu0 %v795
      %820 = vmatprep.subr.mxu0 0.0
      %821 = vmatpush1.msra.mxu0 %v796
      %822 = vmatprep.subr.mxu0 0.0
      %823 = vmatpush1.msra.mxu0 %v797
      %824 = vmatprep.subr.mxu0 0.0
      %825 = vmatpush1.msra.mxu0 0.0
      %826 = vmatprep.subr.mxu0 0.0
      %827 = vmatpush1.msra.mxu0 0.0
      %828 = vmatprep.subr.mxu0 0.0
      %829 = vmatpush1.msra.mxu0 0.0
      %830 = vmatprep.subr.mxu0 0.0
      %831 = vmatpush1.msra.mxu0 0.0
      %832 = vmatprep.subr.mxu0 0.0
      %833 = vmatpush1.msra.mxu0 0.0
      %834 = vmatprep.subr.mxu0 0.0
      %835 = vmatpush1.msra.mxu0 0.0
      %836 = vmatprep.subr.mxu0 0.0
      %837 = vmatpush1.msra.mxu0 0.0
      %838 = vmatprep.subr.mxu0 0.0
      %839 = vmatpush1.msra.mxu0 0.0
      %840 = vmatprep.subr.mxu0 0.0
      %841 = vmatpush1.msra.mxu0 0.0
      %842 = vmatprep.subr.mxu0 0.0
      %843 = vmatpush1.msra.mxu0 0.0
      %844 = vmatprep.subr.mxu0 0.0
      %845 = vmatpush1.msra.mxu0 0.0
      %846 = vmatprep.subr.mxu0 0.0
      %847 = vmatpush1.msra.mxu0 0.0
      %848 = vmatprep.subr.mxu0 0.0
      %849 = vmatpush1.msra.mxu0 0.0
      %850 = vmatprep.subr.mxu0 0.0
      %851 = vmatpush1.msra.mxu0 0.0
      %852 = vmatprep.subr.mxu0 0.0
      %853 = vmatpush1.msra.mxu0 0.0
      %854 = vmatprep.subr.mxu0 0.0
      %855 = vmatpush1.msra.mxu0 0.0
      %856 = vmatprep.subr.mxu0 0.0
      %857 = vmatpush1.msra.mxu0 0.0
      %858 = vmatprep.subr.mxu0 0.0
      %859 = vmatpush1.msra.mxu0 0.0
      %860 = vmatprep.subr.mxu0 0.0
      %861 = vmatpush1.msra.mxu0 0.0
      %862 = vmatprep.subr.mxu0 0.0
      %863 = vmatpush1.msra.mxu0 0.0
      %864 = vmatprep.subr.mxu0 0.0
      %865 = vmatpush1.msra.mxu0 0.0
      %866 = vmatprep.subr.mxu0 0.0
      %867 = vmatpush1.msra.mxu0 0.0
      %868 = vmatprep.subr.mxu0 0.0
      %869 = vmatpush1.msra.mxu0 0.0
      %870 = vmatprep.subr.mxu0 0.0
      %871 = vmatpush1.msra.mxu0 0.0
      %872 = vmatprep.subr.mxu0 0.0
      %873 = vmatpush1.msra.mxu0 0.0
      %874 = vmatprep.subr.mxu0 0.0
      %875 = vmatpush1.msra.mxu0 0.0
      %876 = vmatprep.mubr.f32.mxu0 0.0
      %877 = vmatmul.mubr.f32.gmra.mrb[0].mxu0 %v807
      %v878 = vpop.f32.mrb[0].mxu0
      %v879 = vadd.f32 %v803, %v878
      %v880 = vpop.f32.mrb[0].mxu0
      %881 = vmatprep.mubr.f32.mxu0 0.0
      %882 = vmatmul.mubr.f32.gmra.mrb[0].mxu0 %v810
      %v883 = vpop.f32.mrb[0].mxu0
      %v884 = vadd.f32 %v803, %v883
      %v885 = vpop.f32.mrb[0].mxu0
      %886 = vdwg.mxu0
      %v887 = vld [vmem:[%s1] sm:$0xff]
      %v888 = vld [vmem:[%s1 + $0x8] sm:$0xff]
      %v889 = vld [vmem:[%s1 + $0x10] sm:$0xff]
      %v890 = vadd.f32 %v887, %v879
      %v891 = vadd.f32 %v888, %v884
      %v892 = vadd.f32 %v889, 0.0
      %v893 = vlaneseq
      %v894 = vand.u32 %v893, 127
      %vm895 = vcmp.lt.s32.totalorder %v894, 17
      %v896 = vsel %vm895, 0.0, -1e+30
      %v897 = vld [vmem:[%s4] sm:$0x1]
      %v898 = vld [vmem:[%s5] sm:$0x1]
      %vm899 = vcmask 261120
      %v900 = vsel %vm899, %v890, 0.0
      %901 = vadd.xlane.f32.xlu0 %v900
      %v902 = vpop.xlane.xlu0 %901
      %v903 = vsel %vm899, %v891, 0.0
      %904 = vadd.xlane.f32.xlu0 %v903
      %v905 = vpop.xlane.xlu0 %904
      %v906 = vsel %vm899, %v892, 0.0
      %907 = vadd.xlane.f32.xlu0 %v906
      %v908 = vpop.xlane.xlu0 %907
      %v909 = vrcp.pop 32.0
      %v910 = vmul.f32 %v902, %v909
      %v911 = vmul.f32 %v905, %v909
      %v912 = vmul.f32 %v908, %v909
      %v913 = vsub.f32 %v890, %v910
      %v914 = vsub.f32 %v891, %v911
      %v915 = vsub.f32 %v892, %v912
      %v916 = vmul.f32 %v913, %v913
      %v917 = vmul.f32 %v914, %v914
      %v918 = vmul.f32 %v915, %v915
      %v919 = vsel %vm899, %v916, 0.0
      %920 = vadd.xlane.f32.xlu0 %v919
      %v921 = vpop.xlane.xlu0 %920
      %v922 = vsel %vm899, %v917, 0.0
      %923 = vadd.xlane.f32.xlu0 %v922
      %v924 = vpop.xlane.xlu0 %923
      %v925 = vsel %vm899, %v918, 0.0
      %926 = vadd.xlane.f32.xlu0 %v925
      %v927 = vpop.xlane.xlu0 %926
      %v928 = vmul.f32 %v921, %v909
      %v929 = vmul.f32 %v924, %v909
      %v930 = vmul.f32 %v927, %v909
      %v931 = vadd.f32 %v928, 1e-06
      %v932 = vadd.f32 %v929, 1e-06
      %v933 = vadd.f32 %v930, 1e-06
      %v934 = vrsqrt.pop %v931
      %v935 = vrsqrt.pop %v932
      %v936 = vrsqrt.pop %v933
      %v937 = vmul.f32 %v913, %v934
      %v938 = vmul.f32 %v914, %v935
      %v939 = vmul.f32 %v915, %v936
      %v941 = vlaneseq
      %v942 = vshrl.u32 %v941, 7
      %v943 = vsub.s32 0, %v942
      %v944 = vrot.slane %v897, %v943
      %v946 = vmul.f32 %v937, %v944
      %v947 = vmul.f32 %v938, %v944
      %v948 = vmul.f32 %v939, %v944
      %v950 = vlaneseq
      %v951 = vshrl.u32 %v950, 7
      %v952 = vsub.s32 0, %v951
      %v953 = vrot.slane %v898, %v952
      %v955 = vadd.f32 %v946, %v953
      %v956 = vadd.f32 %v947, %v953
      %v957 = vadd.f32 %v948, %v953
      %v958 = vld [vmem:[%s6] sm:$0xff]
      %v959 = vld [vmem:[%s6 + $0x8] sm:$0xff]
      %v960 = vld [vmem:[%s6 + $0x10] sm:$0xff]
      %v961 = vld [vmem:[%s6 + $0x18] sm:$0xff]
      %v962 = vld [vmem:[%s9] sm:$0x1]
      %v964 = vlaneseq
      %v965 = vshrl.u32 %v964, 7
      %v966 = vsub.s32 0, %v965
      %v967 = vrot.slane %v962, %v966
      %v970 = vsel %vm899, %v955, 0
      %v973 = vsel %vm899, %v956, 0
      %v976 = vsel %vm899, %v957, 0
      %978 = vmatprep.subr.mxu0 0.0
      %979 = vmatpush1.msra.mxu0 %v958
      %980 = vmatprep.subr.mxu0 0.0
      %981 = vmatpush1.msra.mxu0 %v959
      %982 = vmatprep.subr.mxu0 0.0
      %983 = vmatpush1.msra.mxu0 %v960
      %984 = vmatprep.subr.mxu0 0.0
      %985 = vmatpush1.msra.mxu0 %v961
      %986 = vmatprep.subr.mxu0 0.0
      %987 = vmatpush1.msra.mxu0 0.0
      %988 = vmatprep.subr.mxu0 0.0
      %989 = vmatpush1.msra.mxu0 0.0
      %990 = vmatprep.subr.mxu0 0.0
      %991 = vmatpush1.msra.mxu0 0.0
      %992 = vmatprep.subr.mxu0 0.0
      %993 = vmatpush1.msra.mxu0 0.0
      %994 = vmatprep.subr.mxu0 0.0
      %995 = vmatpush1.msra.mxu0 0.0
      %996 = vmatprep.subr.mxu0 0.0
      %997 = vmatpush1.msra.mxu0 0.0
      %998 = vmatprep.subr.mxu0 0.0
      %999 = vmatpush1.msra.mxu0 0.0
      %1000 = vmatprep.subr.mxu0 0.0
      %1001 = vmatpush1.msra.mxu0 0.0
      %1002 = vmatprep.subr.mxu0 0.0
      %1003 = vmatpush1.msra.mxu0 0.0
      %1004 = vmatprep.subr.mxu0 0.0
      %1005 = vmatpush1.msra.mxu0 0.0
      %1006 = vmatprep.subr.mxu0 0.0
      %1007 = vmatpush1.msra.mxu0 0.0
      %1008 = vmatprep.subr.mxu0 0.0
      %1009 = vmatpush1.msra.mxu0 0.0
      %1010 = vmatprep.subr.mxu0 0.0
      %1011 = vmatpush1.msra.mxu0 0.0
      %1012 = vmatprep.subr.mxu0 0.0
      %1013 = vmatpush1.msra.mxu0 0.0
      %1014 = vmatprep.subr.mxu0 0.0
      %1015 = vmatpush1.msra.mxu0 0.0
      %1016 = vmatprep.subr.mxu0 0.0
      %1017 = vmatpush1.msra.mxu0 0.0
      %1018 = vmatprep.subr.mxu0 0.0
      %1019 = vmatpush1.msra.mxu0 0.0
      %1020 = vmatprep.subr.mxu0 0.0
      %1021 = vmatpush1.msra.mxu0 0.0
      %1022 = vmatprep.subr.mxu0 0.0
      %1023 = vmatpush1.msra.mxu0 0.0
      %1024 = vmatprep.subr.mxu0 0.0
      %1025 = vmatpush1.msra.mxu0 0.0
      %1026 = vmatprep.subr.mxu0 0.0
      %1027 = vmatpush1.msra.mxu0 0.0
      %1028 = vmatprep.subr.mxu0 0.0
      %1029 = vmatpush1.msra.mxu0 0.0
      %1030 = vmatprep.subr.mxu0 0.0
      %1031 = vmatpush1.msra.mxu0 0.0
      %1032 = vmatprep.subr.mxu0 0.0
      %1033 = vmatpush1.msra.mxu0 0.0
      %1034 = vmatprep.subr.mxu0 0.0
      %1035 = vmatpush1.msra.mxu0 0.0
      %1036 = vmatprep.subr.mxu0 0.0
      %1037 = vmatpush1.msra.mxu0 0.0
      %1038 = vmatprep.subr.mxu0 0.0
      %1039 = vmatpush1.msra.mxu0 0.0
      %1040 = vmatprep.subr.mxu0 0.0
      %1041 = vmatpush1.msra.mxu0 0.0
      %1042 = vmatprep.mubr.f32.mxu0 0.0
      %1043 = vmatmul.mubr.f32.gmra.mrb[0].mxu0 %v970
      %v1044 = vpop.f32.mrb[0].mxu0
      %v1045 = vadd.f32 %v967, %v1044
      %v1046 = vpop.f32.mrb[0].mxu0
      %1047 = vmatprep.mubr.f32.mxu0 0.0
      %1048 = vmatmul.mubr.f32.gmra.mrb[0].mxu0 %v973
      %v1049 = vpop.f32.mrb[0].mxu0
      %v1050 = vadd.f32 %v967, %v1049
      %v1051 = vpop.f32.mrb[0].mxu0
      %1052 = vmatprep.mubr.f32.mxu0 0.0
      %1053 = vmatmul.mubr.f32.gmra.mrb[0].mxu0 %v976
      %v1054 = vpop.f32.mrb[0].mxu0
      %v1055 = vadd.f32 %v967, %v1054
      %v1056 = vpop.f32.mrb[0].mxu0
      %1057 = vdwg.mxu0
      %v1058 = vld [vmem:[%s7] sm:$0xff]
      %v1059 = vld [vmem:[%s7 + $0x8] sm:$0xff]
      %v1060 = vld [vmem:[%s7 + $0x10] sm:$0xff]
      %v1061 = vld [vmem:[%s7 + $0x18] sm:$0xff]
      %v1062 = vld [vmem:[%s10] sm:$0x1]
      %v1064 = vlaneseq
      %v1065 = vshrl.u32 %v1064, 7
      %v1066 = vsub.s32 0, %v1065
      %v1067 = vrot.slane %v1062, %v1066
      %1069 = vmatprep.subr.mxu0 0.0
      %1070 = vmatpush1.msra.mxu0 %v1058
      %1071 = vmatprep.subr.mxu0 0.0
      %1072 = vmatpush1.msra.mxu0 %v1059
      %1073 = vmatprep.subr.mxu0 0.0
      %1074 = vmatpush1.msra.mxu0 %v1060
      %1075 = vmatprep.subr.mxu0 0.0
      %1076 = vmatpush1.msra.mxu0 %v1061
      %1077 = vmatprep.subr.mxu0 0.0
      %1078 = vmatpush1.msra.mxu0 0.0
      %1079 = vmatprep.subr.mxu0 0.0
      %1080 = vmatpush1.msra.mxu0 0.0
      %1081 = vmatprep.subr.mxu0 0.0
      %1082 = vmatpush1.msra.mxu0 0.0
      %1083 = vmatprep.subr.mxu0 0.0
      %1084 = vmatpush1.msra.mxu0 0.0
      %1085 = vmatprep.subr.mxu0 0.0
      %1086 = vmatpush1.msra.mxu0 0.0
      %1087 = vmatprep.subr.mxu0 0.0
      %1088 = vmatpush1.msra.mxu0 0.0
      %1089 = vmatprep.subr.mxu0 0.0
      %1090 = vmatpush1.msra.mxu0 0.0
      %1091 = vmatprep.subr.mxu0 0.0
      %1092 = vmatpush1.msra.mxu0 0.0
      %1093 = vmatprep.subr.mxu0 0.0
      %1094 = vmatpush1.msra.mxu0 0.0
      %1095 = vmatprep.subr.mxu0 0.0
      %1096 = vmatpush1.msra.mxu0 0.0
      %1097 = vmatprep.subr.mxu0 0.0
      %1098 = vmatpush1.msra.mxu0 0.0
      %1099 = vmatprep.subr.mxu0 0.0
      %1100 = vmatpush1.msra.mxu0 0.0
      %1101 = vmatprep.subr.mxu0 0.0
      %1102 = vmatpush1.msra.mxu0 0.0
      %1103 = vmatprep.subr.mxu0 0.0
      %1104 = vmatpush1.msra.mxu0 0.0
      %1105 = vmatprep.subr.mxu0 0.0
      %1106 = vmatpush1.msra.mxu0 0.0
      %1107 = vmatprep.subr.mxu0 0.0
      %1108 = vmatpush1.msra.mxu0 0.0
      %1109 = vmatprep.subr.mxu0 0.0
      %1110 = vmatpush1.msra.mxu0 0.0
      %1111 = vmatprep.subr.mxu0 0.0
      %1112 = vmatpush1.msra.mxu0 0.0
      %1113 = vmatprep.subr.mxu0 0.0
      %1114 = vmatpush1.msra.mxu0 0.0
      %1115 = vmatprep.subr.mxu0 0.0
      %1116 = vmatpush1.msra.mxu0 0.0
      %1117 = vmatprep.subr.mxu0 0.0
      %1118 = vmatpush1.msra.mxu0 0.0
      %1119 = vmatprep.subr.mxu0 0.0
      %1120 = vmatpush1.msra.mxu0 0.0
      %1121 = vmatprep.subr.mxu0 0.0
      %1122 = vmatpush1.msra.mxu0 0.0
      %1123 = vmatprep.subr.mxu0 0.0
      %1124 = vmatpush1.msra.mxu0 0.0
      %1125 = vmatprep.subr.mxu0 0.0
      %1126 = vmatpush1.msra.mxu0 0.0
      %1127 = vmatprep.subr.mxu0 0.0
      %1128 = vmatpush1.msra.mxu0 0.0
      %1129 = vmatprep.subr.mxu0 0.0
      %1130 = vmatpush1.msra.mxu0 0.0
      %1131 = vmatprep.subr.mxu0 0.0
      %1132 = vmatpush1.msra.mxu0 0.0
      %1133 = vmatprep.mubr.f32.mxu0 0.0
      %1134 = vmatmul.mubr.f32.gmra.mrb[0].mxu0 %v970
      %v1135 = vpop.f32.mrb[0].mxu0
      %v1136 = vadd.f32 %v1067, %v1135
      %v1137 = vpop.f32.mrb[0].mxu0
      %1138 = vmatprep.mubr.f32.mxu0 0.0
      %1139 = vmatmul.mubr.f32.gmra.mrb[0].mxu0 %v973
      %v1140 = vpop.f32.mrb[0].mxu0
      %v1141 = vadd.f32 %v1067, %v1140
      %v1142 = vpop.f32.mrb[0].mxu0
      %1143 = vmatprep.mubr.f32.mxu0 0.0
      %1144 = vmatmul.mubr.f32.gmra.mrb[0].mxu0 %v976
      %v1145 = vpop.f32.mrb[0].mxu0
      %v1146 = vadd.f32 %v1067, %v1145
      %v1147 = vpop.f32.mrb[0].mxu0
      %1148 = vdwg.mxu0
      %v1149 = vld [vmem:[%s8] sm:$0xff]
      %v1150 = vld [vmem:[%s8 + $0x8] sm:$0xff]
      %v1151 = vld [vmem:[%s8 + $0x10] sm:$0xff]
      %v1152 = vld [vmem:[%s8 + $0x18] sm:$0xff]
      %v1153 = vld [vmem:[%s11] sm:$0x1]
      %v1155 = vlaneseq
      %v1156 = vshrl.u32 %v1155, 7
      %v1157 = vsub.s32 0, %v1156
      %v1158 = vrot.slane %v1153, %v1157
      %1160 = vmatprep.subr.mxu0 0.0
      %1161 = vmatpush1.msra.mxu0 %v1149
      %1162 = vmatprep.subr.mxu0 0.0
      %1163 = vmatpush1.msra.mxu0 %v1150
      %1164 = vmatprep.subr.mxu0 0.0
      %1165 = vmatpush1.msra.mxu0 %v1151
      %1166 = vmatprep.subr.mxu0 0.0
      %1167 = vmatpush1.msra.mxu0 %v1152
      %1168 = vmatprep.subr.mxu0 0.0
      %1169 = vmatpush1.msra.mxu0 0.0
      %1170 = vmatprep.subr.mxu0 0.0
      %1171 = vmatpush1.msra.mxu0 0.0
      %1172 = vmatprep.subr.mxu0 0.0
      %1173 = vmatpush1.msra.mxu0 0.0
      %1174 = vmatprep.subr.mxu0 0.0
      %1175 = vmatpush1.msra.mxu0 0.0
      %1176 = vmatprep.subr.mxu0 0.0
      %1177 = vmatpush1.msra.mxu0 0.0
      %1178 = vmatprep.subr.mxu0 0.0
      %1179 = vmatpush1.msra.mxu0 0.0
      %1180 = vmatprep.subr.mxu0 0.0
      %1181 = vmatpush1.msra.mxu0 0.0
      %1182 = vmatprep.subr.mxu0 0.0
      %1183 = vmatpush1.msra.mxu0 0.0
      %1184 = vmatprep.subr.mxu0 0.0
      %1185 = vmatpush1.msra.mxu0 0.0
      %1186 = vmatprep.subr.mxu0 0.0
      %1187 = vmatpush1.msra.mxu0 0.0
      %1188 = vmatprep.subr.mxu0 0.0
      %1189 = vmatpush1.msra.mxu0 0.0
      %1190 = vmatprep.subr.mxu0 0.0
      %1191 = vmatpush1.msra.mxu0 0.0
      %1192 = vmatprep.subr.mxu0 0.0
      %1193 = vmatpush1.msra.mxu0 0.0
      %1194 = vmatprep.subr.mxu0 0.0
      %1195 = vmatpush1.msra.mxu0 0.0
      %1196 = vmatprep.subr.mxu0 0.0
      %1197 = vmatpush1.msra.mxu0 0.0
      %1198 = vmatprep.subr.mxu0 0.0
      %1199 = vmatpush1.msra.mxu0 0.0
      %1200 = vmatprep.subr.mxu0 0.0
      %1201 = vmatpush1.msra.mxu0 0.0
      %1202 = vmatprep.subr.mxu0 0.0
      %1203 = vmatpush1.msra.mxu0 0.0
      %1204 = vmatprep.subr.mxu0 0.0
      %1205 = vmatpush1.msra.mxu0 0.0
      %1206 = vmatprep.subr.mxu0 0.0
      %1207 = vmatpush1.msra.mxu0 0.0
      %1208 = vmatprep.subr.mxu0 0.0
      %1209 = vmatpush1.msra.mxu0 0.0
      %1210 = vmatprep.subr.mxu0 0.0
      %1211 = vmatpush1.msra.mxu0 0.0
      %1212 = vmatprep.subr.mxu0 0.0
      %1213 = vmatpush1.msra.mxu0 0.0
      %1214 = vmatprep.subr.mxu0 0.0
      %1215 = vmatpush1.msra.mxu0 0.0
      %1216 = vmatprep.subr.mxu0 0.0
      %1217 = vmatpush1.msra.mxu0 0.0
      %1218 = vmatprep.subr.mxu0 0.0
      %1219 = vmatpush1.msra.mxu0 0.0
      %1220 = vmatprep.subr.mxu0 0.0
      %1221 = vmatpush1.msra.mxu0 0.0
      %1222 = vmatprep.subr.mxu0 0.0
      %1223 = vmatpush1.msra.mxu0 0.0
      %1224 = vmatprep.mubr.f32.mxu0 0.0
      %1225 = vmatmul.mubr.f32.gmra.mrb[0].mxu0 %v970
      %v1226 = vpop.f32.mrb[0].mxu0
      %v1227 = vadd.f32 %v1158, %v1226
      %v1228 = vpop.f32.mrb[0].mxu0
      %1229 = vmatprep.mubr.f32.mxu0 0.0
      %1230 = vmatmul.mubr.f32.gmra.mrb[0].mxu0 %v973
      %v1231 = vpop.f32.mrb[0].mxu0
      %v1232 = vadd.f32 %v1158, %v1231
      %v1233 = vpop.f32.mrb[0].mxu0
      %1234 = vmatprep.mubr.f32.mxu0 0.0
      %1235 = vmatmul.mubr.f32.gmra.mrb[0].mxu0 %v976
      %v1236 = vpop.f32.mrb[0].mxu0
      %v1237 = vadd.f32 %v1158, %v1236
      %v1238 = vpop.f32.mrb[0].mxu0
      %1239 = vdwg.mxu0
      %vm1240 = vcmask 64512
      %v1242 = vsel %vm1240, %v1045, 0
      %v1245 = vsel %vm1240, %v1050, 0
      %v1248 = vsel %vm1240, %v1055, 0
      %v1251 = vsel %vm1240, %v1136, 0
      %v1254 = vsel %vm1240, %v1141, 0
      %v1257 = vsel %vm1240, %v1146, 0
      %1259 = vmatprep.subr.mxu0 0.0
      %1260 = vmatpush1.xpose.msra.mxu0 %v1251
      %1261 = vmatprep.subr.mxu0 0.0
      %1262 = vmatpush1.xpose.msra.mxu0 %v1254
      %1263 = vmatprep.subr.mxu0 0.0
      %1264 = vmatpush1.xpose.msra.mxu0 %v1257
      %1265 = vmatprep.subr.mxu0 0.0
      %1266 = vmatpush1.xpose.msra.mxu0 0.0
      %1267 = vmatprep.subr.mxu0 0.0
      %1268 = vmatpush1.xpose.msra.mxu0 0.0
      %1269 = vmatprep.subr.mxu0 0.0
      %1270 = vmatpush1.xpose.msra.mxu0 0.0
      %1271 = vmatprep.subr.mxu0 0.0
      %1272 = vmatpush1.xpose.msra.mxu0 0.0
      %1273 = vmatprep.subr.mxu0 0.0
      %1274 = vmatpush1.xpose.msra.mxu0 0.0
      %1275 = vmatprep.subr.mxu0 0.0
      %1276 = vmatpush1.xpose.msra.mxu0 0.0
      %1277 = vmatprep.subr.mxu0 0.0
      %1278 = vmatpush1.xpose.msra.mxu0 0.0
      %1279 = vmatprep.subr.mxu0 0.0
      %1280 = vmatpush1.xpose.msra.mxu0 0.0
      %1281 = vmatprep.subr.mxu0 0.0
      %1282 = vmatpush1.xpose.msra.mxu0 0.0
      %1283 = vmatprep.subr.mxu0 0.0
      %1284 = vmatpush1.xpose.msra.mxu0 0.0
      %1285 = vmatprep.subr.mxu0 0.0
      %1286 = vmatpush1.xpose.msra.mxu0 0.0
      %1287 = vmatprep.subr.mxu0 0.0
      %1288 = vmatpush1.xpose.msra.mxu0 0.0
      %1289 = vmatprep.subr.mxu0 0.0
      %1290 = vmatpush1.xpose.msra.mxu0 0.0
      %1291 = vmatprep.subr.mxu0 0.0
      %1292 = vmatpush1.xpose.msra.mxu0 0.0
      %1293 = vmatprep.subr.mxu0 0.0
      %1294 = vmatpush1.xpose.msra.mxu0 0.0
      %1295 = vmatprep.subr.mxu0 0.0
      %1296 = vmatpush1.xpose.msra.mxu0 0.0
      %1297 = vmatprep.subr.mxu0 0.0
      %1298 = vmatpush1.xpose.msra.mxu0 0.0
      %1299 = vmatprep.subr.mxu0 0.0
      %1300 = vmatpush1.xpose.msra.mxu0 0.0
      %1301 = vmatprep.subr.mxu0 0.0
      %1302 = vmatpush1.xpose.msra.mxu0 0.0
      %1303 = vmatprep.subr.mxu0 0.0
      %1304 = vmatpush1.xpose.msra.mxu0 0.0
      %1305 = vmatprep.subr.mxu0 0.0
      %1306 = vmatpush1.xpose.msra.mxu0 0.0
      %1307 = vmatprep.subr.mxu0 0.0
      %1308 = vmatpush1.xpose.msra.mxu0 0.0
      %1309 = vmatprep.subr.mxu0 0.0
      %1310 = vmatpush1.xpose.msra.mxu0 0.0
      %1311 = vmatprep.subr.mxu0 0.0
      %1312 = vmatpush1.xpose.msra.mxu0 0.0
      %1313 = vmatprep.subr.mxu0 0.0
      %1314 = vmatpush1.xpose.msra.mxu0 0.0
      %1315 = vmatprep.subr.mxu0 0.0
      %1316 = vmatpush1.xpose.msra.mxu0 0.0
      %1317 = vmatprep.subr.mxu0 0.0
      %1318 = vmatpush1.xpose.msra.mxu0 0.0
      %1319 = vmatprep.subr.mxu0 0.0
      %1320 = vmatpush1.xpose.msra.mxu0 0.0
      %1321 = vmatprep.subr.mxu0 0.0
      %1322 = vmatpush1.xpose.msra.mxu0 0.0
      %1323 = vmatprep.mubr.f32.mxu0 0.0
      %1324 = vmatmul.mubr.f32.gmra.mrb[0].mxu0 %v1242
      %v1325 = vpop.f32.mrb[0].mxu0
      %v1326 = vadd.f32 %v896, %v1325
      %v1327 = vpop.f32.mrb[0].mxu0
      %1328 = vmatprep.mubr.f32.mxu0 0.0
      %1329 = vmatmul.mubr.f32.gmra.mrb[0].mxu0 %v1245
      %v1330 = vpop.f32.mrb[0].mxu0
      %v1331 = vadd.f32 %v896, %v1330
      %v1332 = vpop.f32.mrb[0].mxu0
      %1333 = vmatprep.mubr.f32.mxu0 0.0
      %1334 = vmatmul.mubr.f32.gmra.mrb[0].mxu0 %v1248
      %v1335 = vpop.f32.mrb[0].mxu0
      %v1336 = vadd.f32 %v896, %v1335
      %v1337 = vpop.f32.mrb[0].mxu0
      %1338 = vdwg.mxu0
      %vm1339 = vcmask 195584
      %v1340 = vsel %vm1339, %v1326, -inf
      %1341 = vmax.xlane.f32.xlu0 %v1340
      %v1342 = vpop.xlane.xlu0 %1341
      %v1343 = vsel %vm1339, %v1331, -inf
      %1344 = vmax.xlane.f32.xlu0 %v1343
      %v1345 = vpop.xlane.xlu0 %1344
      %v1346 = vsel %vm1339, %v1336, -inf
      %1347 = vmax.xlane.f32.xlu0 %v1346
      %v1348 = vpop.xlane.xlu0 %1347
      %v1349 = vsub.f32 %v1326, %v1342
      %v1350 = vsub.f32 %v1331, %v1345
      %v1351 = vsub.f32 %v1336, %v1348
      %v1352 = vmul.f32 %v1349, 1.442695
      %v1353 = vpow.pop %v1352
      %v1354 = vmul.f32 %v1350, 1.442695
      %v1355 = vpow.pop %v1354
      %v1356 = vmul.f32 %v1351, 1.442695
      %v1357 = vpow.pop %v1356
      %v1359 = vsel %vm1339, %v1353, 0
      %v1362 = vsel %vm1339, %v1355, 0
      %v1365 = vsel %vm1339, %v1357, 0
      %1367 = vmatprep.subr.mxu0 0.0
      %1368 = vmatpush1.msra.mxu0 %v1227
      %1369 = vmatprep.subr.mxu0 0.0
      %1370 = vmatpush1.msra.mxu0 %v1232
      %1371 = vmatprep.subr.mxu0 0.0
      %1372 = vmatpush1.msra.mxu0 %v1237
      %1373 = vmatprep.subr.mxu0 0.0
      %1374 = vmatpush1.msra.mxu0 0.0
      %1375 = vmatprep.subr.mxu0 0.0
      %1376 = vmatpush1.msra.mxu0 0.0
      %1377 = vmatprep.subr.mxu0 0.0
      %1378 = vmatpush1.msra.mxu0 0.0
      %1379 = vmatprep.subr.mxu0 0.0
      %1380 = vmatpush1.msra.mxu0 0.0
      %1381 = vmatprep.subr.mxu0 0.0
      %1382 = vmatpush1.msra.mxu0 0.0
      %1383 = vmatprep.subr.mxu0 0.0
      %1384 = vmatpush1.msra.mxu0 0.0
      %1385 = vmatprep.subr.mxu0 0.0
      %1386 = vmatpush1.msra.mxu0 0.0
      %1387 = vmatprep.subr.mxu0 0.0
      %1388 = vmatpush1.msra.mxu0 0.0
      %1389 = vmatprep.subr.mxu0 0.0
      %1390 = vmatpush1.msra.mxu0 0.0
      %1391 = vmatprep.subr.mxu0 0.0
      %1392 = vmatpush1.msra.mxu0 0.0
      %1393 = vmatprep.subr.mxu0 0.0
      %1394 = vmatpush1.msra.mxu0 0.0
      %1395 = vmatprep.subr.mxu0 0.0
      %1396 = vmatpush1.msra.mxu0 0.0
      %1397 = vmatprep.subr.mxu0 0.0
      %1398 = vmatpush1.msra.mxu0 0.0
      %1399 = vmatprep.subr.mxu0 0.0
      %1400 = vmatpush1.msra.mxu0 0.0
      %1401 = vmatprep.subr.mxu0 0.0
      %1402 = vmatpush1.msra.mxu0 0.0
      %1403 = vmatprep.subr.mxu0 0.0
      %1404 = vmatpush1.msra.mxu0 0.0
      %1405 = vmatprep.subr.mxu0 0.0
      %1406 = vmatpush1.msra.mxu0 0.0
      %1407 = vmatprep.subr.mxu0 0.0
      %1408 = vmatpush1.msra.mxu0 0.0
      %1409 = vmatprep.subr.mxu0 0.0
      %1410 = vmatpush1.msra.mxu0 0.0
      %1411 = vmatprep.subr.mxu0 0.0
      %1412 = vmatpush1.msra.mxu0 0.0
      %1413 = vmatprep.subr.mxu0 0.0
      %1414 = vmatpush1.msra.mxu0 0.0
      %1415 = vmatprep.subr.mxu0 0.0
      %1416 = vmatpush1.msra.mxu0 0.0
      %1417 = vmatprep.subr.mxu0 0.0
      %1418 = vmatpush1.msra.mxu0 0.0
      %1419 = vmatprep.subr.mxu0 0.0
      %1420 = vmatpush1.msra.mxu0 0.0
      %1421 = vmatprep.subr.mxu0 0.0
      %1422 = vmatpush1.msra.mxu0 0.0
      %1423 = vmatprep.subr.mxu0 0.0
      %1424 = vmatpush1.msra.mxu0 0.0
      %1425 = vmatprep.subr.mxu0 0.0
      %1426 = vmatpush1.msra.mxu0 0.0
      %1427 = vmatprep.subr.mxu0 0.0
      %1428 = vmatpush1.msra.mxu0 0.0
      %1429 = vmatprep.subr.mxu0 0.0
      %1430 = vmatpush1.msra.mxu0 0.0
      %1431 = vmatprep.mubr.f32.mxu0 0.0
      %1432 = vmatmul.mubr.f32.gmra.mrb[0].mxu0 %v1359
      %v1433 = vpop.f32.mrb[0].mxu0
      %v1434 = vadd.f32 0.0, %v1433
      %v1435 = vpop.f32.mrb[0].mxu0
      %1436 = vmatprep.mubr.f32.mxu0 0.0
      %1437 = vmatmul.mubr.f32.gmra.mrb[0].mxu0 %v1362
      %v1438 = vpop.f32.mrb[0].mxu0
      %v1439 = vadd.f32 0.0, %v1438
      %v1440 = vpop.f32.mrb[0].mxu0
      %1441 = vmatprep.mubr.f32.mxu0 0.0
      %1442 = vmatmul.mubr.f32.gmra.mrb[0].mxu0 %v1365
      %v1443 = vpop.f32.mrb[0].mxu0
      %v1444 = vadd.f32 0.0, %v1443
      %v1445 = vpop.f32.mrb[0].mxu0
      %1446 = vdwg.mxu0
      %v1447 = vsel %vm1339, %v1353, 0.0
      %1448 = vadd.xlane.f32.xlu0 %v1447
      %v1449 = vpop.xlane.xlu0 %1448
      %v1450 = vsel %vm1339, %v1355, 0.0
      %1451 = vadd.xlane.f32.xlu0 %v1450
      %v1452 = vpop.xlane.xlu0 %1451
      %v1453 = vsel %vm1339, %v1357, 0.0
      %1454 = vadd.xlane.f32.xlu0 %v1453
      %v1455 = vpop.xlane.xlu0 %1454
      %v1456 = vrcp.pop %v1449
      %v1457 = vrcp.pop %v1452
      %v1458 = vrcp.pop %v1455
      %v1459 = vmul.f32 %v1434, %v1456
      %v1460 = vmul.f32 %v1439, %v1457
      %v1461 = vmul.f32 %v1444, %v1458
      %v1462 = vld [vmem:[%s12] sm:$0xff]
      %s1463 = scalar_lea.vmem %s6, 32
      %v1464 = vld [vmem:[%s1463] sm:$0xff]
      %v1465 = vld [vmem:[%s1463 + $0x8] sm:$0xff]
      %v1466 = vld [vmem:[%s1463 + $0x10] sm:$0xff]
      %v1467 = vld [vmem:[%s1463 + $0x18] sm:$0xff]
      %s1468 = scalar_lea.vmem %s9, 1
      %v1469 = vld [vmem:[%s1468] sm:$0x1]
      %v1471 = vlaneseq
      %v1472 = vshrl.u32 %v1471, 7
      %v1473 = vsub.s32 0, %v1472
      %v1474 = vrot.slane %v1469, %v1473
      %1476 = vmatprep.subr.mxu0 0.0
      %1477 = vmatpush1.msra.mxu0 %v1464
      %1478 = vmatprep.subr.mxu0 0.0
      %1479 = vmatpush1.msra.mxu0 %v1465
      %1480 = vmatprep.subr.mxu0 0.0
      %1481 = vmatpush1.msra.mxu0 %v1466
      %1482 = vmatprep.subr.mxu0 0.0
      %1483 = vmatpush1.msra.mxu0 %v1467
      %1484 = vmatprep.subr.mxu0 0.0
      %1485 = vmatpush1.msra.mxu0 0.0
      %1486 = vmatprep.subr.mxu0 0.0
      %1487 = vmatpush1.msra.mxu0 0.0
      %1488 = vmatprep.subr.mxu0 0.0
      %1489 = vmatpush1.msra.mxu0 0.0
      %1490 = vmatprep.subr.mxu0 0.0
      %1491 = vmatpush1.msra.mxu0 0.0
      %1492 = vmatprep.subr.mxu0 0.0
      %1493 = vmatpush1.msra.mxu0 0.0
      %1494 = vmatprep.subr.mxu0 0.0
      %1495 = vmatpush1.msra.mxu0 0.0
      %1496 = vmatprep.subr.mxu0 0.0
      %1497 = vmatpush1.msra.mxu0 0.0
      %1498 = vmatprep.subr.mxu0 0.0
      %1499 = vmatpush1.msra.mxu0 0.0
      %1500 = vmatprep.subr.mxu0 0.0
      %1501 = vmatpush1.msra.mxu0 0.0
      %1502 = vmatprep.subr.mxu0 0.0
      %1503 = vmatpush1.msra.mxu0 0.0
      %1504 = vmatprep.subr.mxu0 0.0
      %1505 = vmatpush1.msra.mxu0 0.0
      %1506 = vmatprep.subr.mxu0 0.0
      %1507 = vmatpush1.msra.mxu0 0.0
      %1508 = vmatprep.subr.mxu0 0.0
      %1509 = vmatpush1.msra.mxu0 0.0
      %1510 = vmatprep.subr.mxu0 0.0
      %1511 = vmatpush1.msra.mxu0 0.0
      %1512 = vmatprep.subr.mxu0 0.0
      %1513 = vmatpush1.msra.mxu0 0.0
      %1514 = vmatprep.subr.mxu0 0.0
      %1515 = vmatpush1.msra.mxu0 0.0
      %1516 = vmatprep.subr.mxu0 0.0
      %1517 = vmatpush1.msra.mxu0 0.0
      %1518 = vmatprep.subr.mxu0 0.0
      %1519 = vmatpush1.msra.mxu0 0.0
      %1520 = vmatprep.subr.mxu0 0.0
      %1521 = vmatpush1.msra.mxu0 0.0
      %1522 = vmatprep.subr.mxu0 0.0
      %1523 = vmatpush1.msra.mxu0 0.0
      %1524 = vmatprep.subr.mxu0 0.0
      %1525 = vmatpush1.msra.mxu0 0.0
      %1526 = vmatprep.subr.mxu0 0.0
      %1527 = vmatpush1.msra.mxu0 0.0
      %1528 = vmatprep.subr.mxu0 0.0
      %1529 = vmatpush1.msra.mxu0 0.0
      %1530 = vmatprep.subr.mxu0 0.0
      %1531 = vmatpush1.msra.mxu0 0.0
      %1532 = vmatprep.subr.mxu0 0.0
      %1533 = vmatpush1.msra.mxu0 0.0
      %1534 = vmatprep.subr.mxu0 0.0
      %1535 = vmatpush1.msra.mxu0 0.0
      %1536 = vmatprep.subr.mxu0 0.0
      %1537 = vmatpush1.msra.mxu0 0.0
      %1538 = vmatprep.subr.mxu0 0.0
      %1539 = vmatpush1.msra.mxu0 0.0
      %1540 = vmatprep.mubr.f32.mxu0 0.0
      %1541 = vmatmul.mubr.f32.gmra.mrb[0].mxu0 %v970
      %v1542 = vpop.f32.mrb[0].mxu0
      %v1543 = vadd.f32 %v1474, %v1542
      %v1544 = vpop.f32.mrb[0].mxu0
      %1545 = vmatprep.mubr.f32.mxu0 0.0
      %1546 = vmatmul.mubr.f32.gmra.mrb[0].mxu0 %v973
      %v1547 = vpop.f32.mrb[0].mxu0
      %v1548 = vadd.f32 %v1474, %v1547
      %v1549 = vpop.f32.mrb[0].mxu0
      %1550 = vmatprep.mubr.f32.mxu0 0.0
      %1551 = vmatmul.mubr.f32.gmra.mrb[0].mxu0 %v976
      %v1552 = vpop.f32.mrb[0].mxu0
      %v1553 = vadd.f32 %v1474, %v1552
      %v1554 = vpop.f32.mrb[0].mxu0
      %1555 = vdwg.mxu0
      %s1556 = scalar_lea.vmem %s7, 32
      %v1557 = vld [vmem:[%s1556] sm:$0xff]
      %v1558 = vld [vmem:[%s1556 + $0x8] sm:$0xff]
      %v1559 = vld [vmem:[%s1556 + $0x10] sm:$0xff]
      %v1560 = vld [vmem:[%s1556 + $0x18] sm:$0xff]
      %s1561 = scalar_lea.vmem %s10, 1
      %v1562 = vld [vmem:[%s1561] sm:$0x1]
      %v1564 = vlaneseq
      %v1565 = vshrl.u32 %v1564, 7
      %v1566 = vsub.s32 0, %v1565
      %v1567 = vrot.slane %v1562, %v1566
      %1569 = vmatprep.subr.mxu0 0.0
      %1570 = vmatpush1.msra.mxu0 %v1557
      %1571 = vmatprep.subr.mxu0 0.0
      %1572 = vmatpush1.msra.mxu0 %v1558
      %1573 = vmatprep.subr.mxu0 0.0
      %1574 = vmatpush1.msra.mxu0 %v1559
      %1575 = vmatprep.subr.mxu0 0.0
      %1576 = vmatpush1.msra.mxu0 %v1560
      %1577 = vmatprep.subr.mxu0 0.0
      %1578 = vmatpush1.msra.mxu0 0.0
      %1579 = vmatprep.subr.mxu0 0.0
      %1580 = vmatpush1.msra.mxu0 0.0
      %1581 = vmatprep.subr.mxu0 0.0
      %1582 = vmatpush1.msra.mxu0 0.0
      %1583 = vmatprep.subr.mxu0 0.0
      %1584 = vmatpush1.msra.mxu0 0.0
      %1585 = vmatprep.subr.mxu0 0.0
      %1586 = vmatpush1.msra.mxu0 0.0
      %1587 = vmatprep.subr.mxu0 0.0
      %1588 = vmatpush1.msra.mxu0 0.0
      %1589 = vmatprep.subr.mxu0 0.0
      %1590 = vmatpush1.msra.mxu0 0.0
      %1591 = vmatprep.subr.mxu0 0.0
      %1592 = vmatpush1.msra.mxu0 0.0
      %1593 = vmatprep.subr.mxu0 0.0
      %1594 = vmatpush1.msra.mxu0 0.0
      %1595 = vmatprep.subr.mxu0 0.0
      %1596 = vmatpush1.msra.mxu0 0.0
      %1597 = vmatprep.subr.mxu0 0.0
      %1598 = vmatpush1.msra.mxu0 0.0
      %1599 = vmatprep.subr.mxu0 0.0
      %1600 = vmatpush1.msra.mxu0 0.0
      %1601 = vmatprep.subr.mxu0 0.0
      %1602 = vmatpush1.msra.mxu0 0.0
      %1603 = vmatprep.subr.mxu0 0.0
      %1604 = vmatpush1.msra.mxu0 0.0
      %1605 = vmatprep.subr.mxu0 0.0
      %1606 = vmatpush1.msra.mxu0 0.0
      %1607 = vmatprep.subr.mxu0 0.0
      %1608 = vmatpush1.msra.mxu0 0.0
      %1609 = vmatprep.subr.mxu0 0.0
      %1610 = vmatpush1.msra.mxu0 0.0
      %1611 = vmatprep.subr.mxu0 0.0
      %1612 = vmatpush1.msra.mxu0 0.0
      %1613 = vmatprep.subr.mxu0 0.0
      %1614 = vmatpush1.msra.mxu0 0.0
      %1615 = vmatprep.subr.mxu0 0.0
      %1616 = vmatpush1.msra.mxu0 0.0
      %1617 = vmatprep.subr.mxu0 0.0
      %1618 = vmatpush1.msra.mxu0 0.0
      %1619 = vmatprep.subr.mxu0 0.0
      %1620 = vmatpush1.msra.mxu0 0.0
      %1621 = vmatprep.subr.mxu0 0.0
      %1622 = vmatpush1.msra.mxu0 0.0
      %1623 = vmatprep.subr.mxu0 0.0
      %1624 = vmatpush1.msra.mxu0 0.0
      %1625 = vmatprep.subr.mxu0 0.0
      %1626 = vmatpush1.msra.mxu0 0.0
      %1627 = vmatprep.subr.mxu0 0.0
      %1628 = vmatpush1.msra.mxu0 0.0
      %1629 = vmatprep.subr.mxu0 0.0
      %1630 = vmatpush1.msra.mxu0 0.0
      %1631 = vmatprep.subr.mxu0 0.0
      %1632 = vmatpush1.msra.mxu0 0.0
      %1633 = vmatprep.mubr.f32.mxu0 0.0
      %1634 = vmatmul.mubr.f32.gmra.mrb[0].mxu0 %v970
      %v1635 = vpop.f32.mrb[0].mxu0
      %v1636 = vadd.f32 %v1567, %v1635
      %v1637 = vpop.f32.mrb[0].mxu0
      %1638 = vmatprep.mubr.f32.mxu0 0.0
      %1639 = vmatmul.mubr.f32.gmra.mrb[0].mxu0 %v973
      %v1640 = vpop.f32.mrb[0].mxu0
      %v1641 = vadd.f32 %v1567, %v1640
      %v1642 = vpop.f32.mrb[0].mxu0
      %1643 = vmatprep.mubr.f32.mxu0 0.0
      %1644 = vmatmul.mubr.f32.gmra.mrb[0].mxu0 %v976
      %v1645 = vpop.f32.mrb[0].mxu0
      %v1646 = vadd.f32 %v1567, %v1645
      %v1647 = vpop.f32.mrb[0].mxu0
      %1648 = vdwg.mxu0
      %s1649 = scalar_lea.vmem %s8, 32
      %v1650 = vld [vmem:[%s1649] sm:$0xff]
      %v1651 = vld [vmem:[%s1649 + $0x8] sm:$0xff]
      %v1652 = vld [vmem:[%s1649 + $0x10] sm:$0xff]
      %v1653 = vld [vmem:[%s1649 + $0x18] sm:$0xff]
      %s1654 = scalar_lea.vmem %s11, 1
      %v1655 = vld [vmem:[%s1654] sm:$0x1]
      %v1657 = vlaneseq
      %v1658 = vshrl.u32 %v1657, 7
      %v1659 = vsub.s32 0, %v1658
      %v1660 = vrot.slane %v1655, %v1659
      %1662 = vmatprep.subr.mxu0 0.0
      %1663 = vmatpush1.msra.mxu0 %v1650
      %1664 = vmatprep.subr.mxu0 0.0
      %1665 = vmatpush1.msra.mxu0 %v1651
      %1666 = vmatprep.subr.mxu0 0.0
      %1667 = vmatpush1.msra.mxu0 %v1652
      %1668 = vmatprep.subr.mxu0 0.0
      %1669 = vmatpush1.msra.mxu0 %v1653
      %1670 = vmatprep.subr.mxu0 0.0
      %1671 = vmatpush1.msra.mxu0 0.0
      %1672 = vmatprep.subr.mxu0 0.0
      %1673 = vmatpush1.msra.mxu0 0.0
      %1674 = vmatprep.subr.mxu0 0.0
      %1675 = vmatpush1.msra.mxu0 0.0
      %1676 = vmatprep.subr.mxu0 0.0
      %1677 = vmatpush1.msra.mxu0 0.0
      %1678 = vmatprep.subr.mxu0 0.0
      %1679 = vmatpush1.msra.mxu0 0.0
      %1680 = vmatprep.subr.mxu0 0.0
      %1681 = vmatpush1.msra.mxu0 0.0
      %1682 = vmatprep.subr.mxu0 0.0
      %1683 = vmatpush1.msra.mxu0 0.0
      %1684 = vmatprep.subr.mxu0 0.0
      %1685 = vmatpush1.msra.mxu0 0.0
      %1686 = vmatprep.subr.mxu0 0.0
      %1687 = vmatpush1.msra.mxu0 0.0
      %1688 = vmatprep.subr.mxu0 0.0
      %1689 = vmatpush1.msra.mxu0 0.0
      %1690 = vmatprep.subr.mxu0 0.0
      %1691 = vmatpush1.msra.mxu0 0.0
      %1692 = vmatprep.subr.mxu0 0.0
      %1693 = vmatpush1.msra.mxu0 0.0
      %1694 = vmatprep.subr.mxu0 0.0
      %1695 = vmatpush1.msra.mxu0 0.0
      %1696 = vmatprep.subr.mxu0 0.0
      %1697 = vmatpush1.msra.mxu0 0.0
      %1698 = vmatprep.subr.mxu0 0.0
      %1699 = vmatpush1.msra.mxu0 0.0
      %1700 = vmatprep.subr.mxu0 0.0
      %1701 = vmatpush1.msra.mxu0 0.0
      %1702 = vmatprep.subr.mxu0 0.0
      %1703 = vmatpush1.msra.mxu0 0.0
      %1704 = vmatprep.subr.mxu0 0.0
      %1705 = vmatpush1.msra.mxu0 0.0
      %1706 = vmatprep.subr.mxu0 0.0
      %1707 = vmatpush1.msra.mxu0 0.0
      %1708 = vmatprep.subr.mxu0 0.0
      %1709 = vmatpush1.msra.mxu0 0.0
      %1710 = vmatprep.subr.mxu0 0.0
      %1711 = vmatpush1.msra.mxu0 0.0
      %1712 = vmatprep.subr.mxu0 0.0
      %1713 = vmatpush1.msra.mxu0 0.0
      %1714 = vmatprep.subr.mxu0 0.0
      %1715 = vmatpush1.msra.mxu0 0.0
      %1716 = vmatprep.subr.mxu0 0.0
      %1717 = vmatpush1.msra.mxu0 0.0
      %1718 = vmatprep.subr.mxu0 0.0
      %1719 = vmatpush1.msra.mxu0 0.0
      %1720 = vmatprep.subr.mxu0 0.0
      %1721 = vmatpush1.msra.mxu0 0.0
      %1722 = vmatprep.subr.mxu0 0.0
      %1723 = vmatpush1.msra.mxu0 0.0
      %1724 = vmatprep.subr.mxu0 0.0
      %1725 = vmatpush1.msra.mxu0 0.0
      %1726 = vmatprep.mubr.f32.mxu0 0.0
      %1727 = vmatmul.mubr.f32.gmra.mrb[0].mxu0 %v970
      %v1728 = vpop.f32.mrb[0].mxu0
      %v1729 = vadd.f32 %v1660, %v1728
      %v1730 = vpop.f32.mrb[0].mxu0
      %1731 = vmatprep.mubr.f32.mxu0 0.0
      %1732 = vmatmul.mubr.f32.gmra.mrb[0].mxu0 %v973
      %v1733 = vpop.f32.mrb[0].mxu0
      %v1734 = vadd.f32 %v1660, %v1733
      %v1735 = vpop.f32.mrb[0].mxu0
      %1736 = vmatprep.mubr.f32.mxu0 0.0
      %1737 = vmatmul.mubr.f32.gmra.mrb[0].mxu0 %v976
      %v1738 = vpop.f32.mrb[0].mxu0
      %v1739 = vadd.f32 %v1660, %v1738
      %v1740 = vpop.f32.mrb[0].mxu0
      %1741 = vdwg.mxu0
      %v1743 = vsel %vm1240, %v1543, 0
      %v1746 = vsel %vm1240, %v1548, 0
      %v1749 = vsel %vm1240, %v1553, 0
      %v1752 = vsel %vm1240, %v1636, 0
      %v1755 = vsel %vm1240, %v1641, 0
      %v1758 = vsel %vm1240, %v1646, 0
      %1760 = vmatprep.subr.mxu0 0.0
      %1761 = vmatpush1.xpose.msra.mxu0 %v1752
      %1762 = vmatprep.subr.mxu0 0.0
      %1763 = vmatpush1.xpose.msra.mxu0 %v1755
      %1764 = vmatprep.subr.mxu0 0.0
      %1765 = vmatpush1.xpose.msra.mxu0 %v1758
      %1766 = vmatprep.subr.mxu0 0.0
      %1767 = vmatpush1.xpose.msra.mxu0 0.0
      %1768 = vmatprep.subr.mxu0 0.0
      %1769 = vmatpush1.xpose.msra.mxu0 0.0
      %1770 = vmatprep.subr.mxu0 0.0
      %1771 = vmatpush1.xpose.msra.mxu0 0.0
      %1772 = vmatprep.subr.mxu0 0.0
      %1773 = vmatpush1.xpose.msra.mxu0 0.0
      %1774 = vmatprep.subr.mxu0 0.0
      %1775 = vmatpush1.xpose.msra.mxu0 0.0
      %1776 = vmatprep.subr.mxu0 0.0
      %1777 = vmatpush1.xpose.msra.mxu0 0.0
      %1778 = vmatprep.subr.mxu0 0.0
      %1779 = vmatpush1.xpose.msra.mxu0 0.0
      %1780 = vmatprep.subr.mxu0 0.0
      %1781 = vmatpush1.xpose.msra.mxu0 0.0
      %1782 = vmatprep.subr.mxu0 0.0
      %1783 = vmatpush1.xpose.msra.mxu0 0.0
      %1784 = vmatprep.subr.mxu0 0.0
      %1785 = vmatpush1.xpose.msra.mxu0 0.0
      %1786 = vmatprep.subr.mxu0 0.0
      %1787 = vmatpush1.xpose.msra.mxu0 0.0
      %1788 = vmatprep.subr.mxu0 0.0
      %1789 = vmatpush1.xpose.msra.mxu0 0.0
      %1790 = vmatprep.subr.mxu0 0.0
      %1791 = vmatpush1.xpose.msra.mxu0 0.0
      %1792 = vmatprep.subr.mxu0 0.0
      %1793 = vmatpush1.xpose.msra.mxu0 0.0
      %1794 = vmatprep.subr.mxu0 0.0
      %1795 = vmatpush1.xpose.msra.mxu0 0.0
      %1796 = vmatprep.subr.mxu0 0.0
      %1797 = vmatpush1.xpose.msra.mxu0 0.0
      %1798 = vmatprep.subr.mxu0 0.0
      %1799 = vmatpush1.xpose.msra.mxu0 0.0
      %1800 = vmatprep.subr.mxu0 0.0
      %1801 = vmatpush1.xpose.msra.mxu0 0.0
      %1802 = vmatprep.subr.mxu0 0.0
      %1803 = vmatpush1.xpose.msra.mxu0 0.0
      %1804 = vmatprep.subr.mxu0 0.0
      %1805 = vmatpush1.xpose.msra.mxu0 0.0
      %1806 = vmatprep.subr.mxu0 0.0
      %1807 = vmatpush1.xpose.msra.mxu0 0.0
      %1808 = vmatprep.subr.mxu0 0.0
      %1809 = vmatpush1.xpose.msra.mxu0 0.0
      %1810 = vmatprep.subr.mxu0 0.0
      %1811 = vmatpush1.xpose.msra.mxu0 0.0
      %1812 = vmatprep.subr.mxu0 0.0
      %1813 = vmatpush1.xpose.msra.mxu0 0.0
      %1814 = vmatprep.subr.mxu0 0.0
      %1815 = vmatpush1.xpose.msra.mxu0 0.0
      %1816 = vmatprep.subr.mxu0 0.0
      %1817 = vmatpush1.xpose.msra.mxu0 0.0
      %1818 = vmatprep.subr.mxu0 0.0
      %1819 = vmatpush1.xpose.msra.mxu0 0.0
      %1820 = vmatprep.subr.mxu0 0.0
      %1821 = vmatpush1.xpose.msra.mxu0 0.0
      %1822 = vmatprep.subr.mxu0 0.0
      %1823 = vmatpush1.xpose.msra.mxu0 0.0
      %1824 = vmatprep.mubr.f32.mxu0 0.0
      %1825 = vmatmul.mubr.f32.gmra.mrb[0].mxu0 %v1743
      %v1826 = vpop.f32.mrb[0].mxu0
      %v1827 = vadd.f32 %v896, %v1826
      %v1828 = vpop.f32.mrb[0].mxu0
      %1829 = vmatprep.mubr.f32.mxu0 0.0
      %1830 = vmatmul.mubr.f32.gmra.mrb[0].mxu0 %v1746
      %v1831 = vpop.f32.mrb[0].mxu0
      %v1832 = vadd.f32 %v896, %v1831
      %v1833 = vpop.f32.mrb[0].mxu0
      %1834 = vmatprep.mubr.f32.mxu0 0.0
      %1835 = vmatmul.mubr.f32.gmra.mrb[0].mxu0 %v1749
      %v1836 = vpop.f32.mrb[0].mxu0
      %v1837 = vadd.f32 %v896, %v1836
      %v1838 = vpop.f32.mrb[0].mxu0
      %1839 = vdwg.mxu0
      %v1840 = vsel %vm1339, %v1827, -inf
      %1841 = vmax.xlane.f32.xlu0 %v1840
      %v1842 = vpop.xlane.xlu0 %1841
      %v1843 = vsel %vm1339, %v1832, -inf
      %1844 = vmax.xlane.f32.xlu0 %v1843
      %v1845 = vpop.xlane.xlu0 %1844
      %v1846 = vsel %vm1339, %v1837, -inf
      %1847 = vmax.xlane.f32.xlu0 %v1846
      %v1848 = vpop.xlane.xlu0 %1847
      %v1849 = vsub.f32 %v1827, %v1842
      %v1850 = vsub.f32 %v1832, %v1845
      %v1851 = vsub.f32 %v1837, %v1848
      %v1852 = vmul.f32 %v1849, 1.442695
      %v1853 = vpow.pop %v1852
      %v1854 = vmul.f32 %v1850, 1.442695
      %v1855 = vpow.pop %v1854
      %v1856 = vmul.f32 %v1851, 1.442695
      %v1857 = vpow.pop %v1856
      %v1859 = vsel %vm1339, %v1853, 0
      %v1862 = vsel %vm1339, %v1855, 0
      %v1865 = vsel %vm1339, %v1857, 0
      %1867 = vmatprep.subr.mxu0 0.0
      %1868 = vmatpush1.msra.mxu0 %v1729
      %1869 = vmatprep.subr.mxu0 0.0
      %1870 = vmatpush1.msra.mxu0 %v1734
      %1871 = vmatprep.subr.mxu0 0.0
      %1872 = vmatpush1.msra.mxu0 %v1739
      %1873 = vmatprep.subr.mxu0 0.0
      %1874 = vmatpush1.msra.mxu0 0.0
      %1875 = vmatprep.subr.mxu0 0.0
      %1876 = vmatpush1.msra.mxu0 0.0
      %1877 = vmatprep.subr.mxu0 0.0
      %1878 = vmatpush1.msra.mxu0 0.0
      %1879 = vmatprep.subr.mxu0 0.0
      %1880 = vmatpush1.msra.mxu0 0.0
      %1881 = vmatprep.subr.mxu0 0.0
      %1882 = vmatpush1.msra.mxu0 0.0
      %1883 = vmatprep.subr.mxu0 0.0
      %1884 = vmatpush1.msra.mxu0 0.0
      %1885 = vmatprep.subr.mxu0 0.0
      %1886 = vmatpush1.msra.mxu0 0.0
      %1887 = vmatprep.subr.mxu0 0.0
      %1888 = vmatpush1.msra.mxu0 0.0
      %1889 = vmatprep.subr.mxu0 0.0
      %1890 = vmatpush1.msra.mxu0 0.0
      %1891 = vmatprep.subr.mxu0 0.0
      %1892 = vmatpush1.msra.mxu0 0.0
      %1893 = vmatprep.subr.mxu0 0.0
      %1894 = vmatpush1.msra.mxu0 0.0
      %1895 = vmatprep.subr.mxu0 0.0
      %1896 = vmatpush1.msra.mxu0 0.0
      %1897 = vmatprep.subr.mxu0 0.0
      %1898 = vmatpush1.msra.mxu0 0.0
      %1899 = vmatprep.subr.mxu0 0.0
      %1900 = vmatpush1.msra.mxu0 0.0
      %1901 = vmatprep.subr.mxu0 0.0
      %1902 = vmatpush1.msra.mxu0 0.0
      %1903 = vmatprep.subr.mxu0 0.0
      %1904 = vmatpush1.msra.mxu0 0.0
      %1905 = vmatprep.subr.mxu0 0.0
      %1906 = vmatpush1.msra.mxu0 0.0
      %1907 = vmatprep.subr.mxu0 0.0
      %1908 = vmatpush1.msra.mxu0 0.0
      %1909 = vmatprep.subr.mxu0 0.0
      %1910 = vmatpush1.msra.mxu0 0.0
      %1911 = vmatprep.subr.mxu0 0.0
      %1912 = vmatpush1.msra.mxu0 0.0
      %1913 = vmatprep.subr.mxu0 0.0
      %1914 = vmatpush1.msra.mxu0 0.0
      %1915 = vmatprep.subr.mxu0 0.0
      %1916 = vmatpush1.msra.mxu0 0.0
      %1917 = vmatprep.subr.mxu0 0.0
      %1918 = vmatpush1.msra.mxu0 0.0
      %1919 = vmatprep.subr.mxu0 0.0
      %1920 = vmatpush1.msra.mxu0 0.0
      %1921 = vmatprep.subr.mxu0 0.0
      %1922 = vmatpush1.msra.mxu0 0.0
      %1923 = vmatprep.subr.mxu0 0.0
      %1924 = vmatpush1.msra.mxu0 0.0
      %1925 = vmatprep.subr.mxu0 0.0
      %1926 = vmatpush1.msra.mxu0 0.0
      %1927 = vmatprep.subr.mxu0 0.0
      %1928 = vmatpush1.msra.mxu0 0.0
      %1929 = vmatprep.subr.mxu0 0.0
      %1930 = vmatpush1.msra.mxu0 0.0
      %1931 = vmatprep.mubr.f32.mxu0 0.0
      %1932 = vmatmul.mubr.f32.gmra.mrb[0].mxu0 %v1859
      %v1933 = vpop.f32.mrb[0].mxu0
      %v1934 = vadd.f32 0.0, %v1933
      %v1935 = vpop.f32.mrb[0].mxu0
      %1936 = vmatprep.mubr.f32.mxu0 0.0
      %1937 = vmatmul.mubr.f32.gmra.mrb[0].mxu0 %v1862
      %v1938 = vpop.f32.mrb[0].mxu0
      %v1939 = vadd.f32 0.0, %v1938
      %v1940 = vpop.f32.mrb[0].mxu0
      %1941 = vmatprep.mubr.f32.mxu0 0.0
      %1942 = vmatmul.mubr.f32.gmra.mrb[0].mxu0 %v1865
      %v1943 = vpop.f32.mrb[0].mxu0
      %v1944 = vadd.f32 0.0, %v1943
      %v1945 = vpop.f32.mrb[0].mxu0
      %1946 = vdwg.mxu0
      %v1947 = vsel %vm1339, %v1853, 0.0
      %1948 = vadd.xlane.f32.xlu0 %v1947
      %v1949 = vpop.xlane.xlu0 %1948
      %v1950 = vsel %vm1339, %v1855, 0.0
      %1951 = vadd.xlane.f32.xlu0 %v1950
      %v1952 = vpop.xlane.xlu0 %1951
      %v1953 = vsel %vm1339, %v1857, 0.0
      %1954 = vadd.xlane.f32.xlu0 %v1953
      %v1955 = vpop.xlane.xlu0 %1954
      %v1956 = vrcp.pop %v1949
      %v1957 = vrcp.pop %v1952
      %v1958 = vrcp.pop %v1955
      %v1959 = vmul.f32 %v1934, %v1956
      %v1960 = vmul.f32 %v1939, %v1957
      %v1961 = vmul.f32 %v1944, %v1958
      %s1962 = scalar_lea.vmem %s12, 8
      %v1963 = vld [vmem:[%s1962] sm:$0xff]
      %v1965 = vsel %vm1240, %v1959, 0
      %v1968 = vsel %vm1240, %v1960, 0
      %v1971 = vsel %vm1240, %v1961, 0
      %1973 = vmatprep.subr.mxu0 0.0
      %1974 = vmatpush1.msra.mxu0 %v1963
      %1975 = vmatprep.subr.mxu0 0.0
      %1976 = vmatpush1.msra.mxu0 0.0
      %1977 = vmatprep.subr.mxu0 0.0
      %1978 = vmatpush1.msra.mxu0 0.0
      %1979 = vmatprep.subr.mxu0 0.0
      %1980 = vmatpush1.msra.mxu0 0.0
      %1981 = vmatprep.subr.mxu0 0.0
      %1982 = vmatpush1.msra.mxu0 0.0
      %1983 = vmatprep.subr.mxu0 0.0
      %1984 = vmatpush1.msra.mxu0 0.0
      %1985 = vmatprep.subr.mxu0 0.0
      %1986 = vmatpush1.msra.mxu0 0.0
      %1987 = vmatprep.subr.mxu0 0.0
      %1988 = vmatpush1.msra.mxu0 0.0
      %1989 = vmatprep.subr.mxu0 0.0
      %1990 = vmatpush1.msra.mxu0 0.0
      %1991 = vmatprep.subr.mxu0 0.0
      %1992 = vmatpush1.msra.mxu0 0.0
      %1993 = vmatprep.subr.mxu0 0.0
      %1994 = vmatpush1.msra.mxu0 0.0
      %1995 = vmatprep.subr.mxu0 0.0
      %1996 = vmatpush1.msra.mxu0 0.0
      %1997 = vmatprep.subr.mxu0 0.0
      %1998 = vmatpush1.msra.mxu0 0.0
      %1999 = vmatprep.subr.mxu0 0.0
      %2000 = vmatpush1.msra.mxu0 0.0
      %2001 = vmatprep.subr.mxu0 0.0
      %2002 = vmatpush1.msra.mxu0 0.0
      %2003 = vmatprep.subr.mxu0 0.0
      %2004 = vmatpush1.msra.mxu0 0.0
      %2005 = vmatprep.subr.mxu0 0.0
      %2006 = vmatpush1.msra.mxu0 0.0
      %2007 = vmatprep.subr.mxu0 0.0
      %2008 = vmatpush1.msra.mxu0 0.0
      %2009 = vmatprep.subr.mxu0 0.0
      %2010 = vmatpush1.msra.mxu0 0.0
      %2011 = vmatprep.subr.mxu0 0.0
      %2012 = vmatpush1.msra.mxu0 0.0
      %2013 = vmatprep.subr.mxu0 0.0
      %2014 = vmatpush1.msra.mxu0 0.0
      %2015 = vmatprep.subr.mxu0 0.0
      %2016 = vmatpush1.msra.mxu0 0.0
      %2017 = vmatprep.subr.mxu0 0.0
      %2018 = vmatpush1.msra.mxu0 0.0
      %2019 = vmatprep.subr.mxu0 0.0
      %2020 = vmatpush1.msra.mxu0 0.0
      %2021 = vmatprep.subr.mxu0 0.0
      %2022 = vmatpush1.msra.mxu0 0.0
      %2023 = vmatprep.subr.mxu0 0.0
      %2024 = vmatpush1.msra.mxu0 0.0
      %2025 = vmatprep.subr.mxu0 0.0
      %2026 = vmatpush1.msra.mxu0 0.0
      %2027 = vmatprep.subr.mxu0 0.0
      %2028 = vmatpush1.msra.mxu0 0.0
      %2029 = vmatprep.subr.mxu0 0.0
      %2030 = vmatpush1.msra.mxu0 0.0
      %2031 = vmatprep.subr.mxu0 0.0
      %2032 = vmatpush1.msra.mxu0 0.0
      %2033 = vmatprep.subr.mxu0 0.0
      %2034 = vmatpush1.msra.mxu0 0.0
      %2035 = vmatprep.subr.mxu0 0.0
      %2036 = vmatpush1.msra.mxu0 0.0
      %2037 = vmatprep.mubr.f32.mxu0 0.0
      %2038 = vmatmul.mubr.f32.gmra.mrb[0].mxu0 %v1965
      %v2039 = vpop.f32.mrb[0].mxu0
      %v2040 = vadd.f32 0.0, %v2039
      %v2041 = vpop.f32.mrb[0].mxu0
      %2042 = vmatprep.mubr.f32.mxu0 0.0
      %2043 = vmatmul.mubr.f32.gmra.mrb[0].mxu0 %v1968
      %v2044 = vpop.f32.mrb[0].mxu0
      %v2045 = vadd.f32 0.0, %v2044
      %v2046 = vpop.f32.mrb[0].mxu0
      %2047 = vmatprep.mubr.f32.mxu0 0.0
      %2048 = vmatmul.mubr.f32.gmra.mrb[0].mxu0 %v1971
      %v2049 = vpop.f32.mrb[0].mxu0
      %v2050 = vadd.f32 0.0, %v2049
      %v2051 = vpop.f32.mrb[0].mxu0
      %2052 = vdwg.mxu0
      %v2054 = vsel %vm1240, %v1459, 0
      %v2057 = vsel %vm1240, %v1460, 0
      %v2060 = vsel %vm1240, %v1461, 0
      %2062 = vmatprep.subr.mxu0 0.0
      %2063 = vmatpush1.msra.mxu0 %v1462
      %2064 = vmatprep.subr.mxu0 0.0
      %2065 = vmatpush1.msra.mxu0 0.0
      %2066 = vmatprep.subr.mxu0 0.0
      %2067 = vmatpush1.msra.mxu0 0.0
      %2068 = vmatprep.subr.mxu0 0.0
      %2069 = vmatpush1.msra.mxu0 0.0
      %2070 = vmatprep.subr.mxu0 0.0
      %2071 = vmatpush1.msra.mxu0 0.0
      %2072 = vmatprep.subr.mxu0 0.0
      %2073 = vmatpush1.msra.mxu0 0.0
      %2074 = vmatprep.subr.mxu0 0.0
      %2075 = vmatpush1.msra.mxu0 0.0
      %2076 = vmatprep.subr.mxu0 0.0
      %2077 = vmatpush1.msra.mxu0 0.0
      %2078 = vmatprep.subr.mxu0 0.0
      %2079 = vmatpush1.msra.mxu0 0.0
      %2080 = vmatprep.subr.mxu0 0.0
      %2081 = vmatpush1.msra.mxu0 0.0
      %2082 = vmatprep.subr.mxu0 0.0
      %2083 = vmatpush1.msra.mxu0 0.0
      %2084 = vmatprep.subr.mxu0 0.0
      %2085 = vmatpush1.msra.mxu0 0.0
      %2086 = vmatprep.subr.mxu0 0.0
      %2087 = vmatpush1.msra.mxu0 0.0
      %2088 = vmatprep.subr.mxu0 0.0
      %2089 = vmatpush1.msra.mxu0 0.0
      %2090 = vmatprep.subr.mxu0 0.0
      %2091 = vmatpush1.msra.mxu0 0.0
      %2092 = vmatprep.subr.mxu0 0.0
      %2093 = vmatpush1.msra.mxu0 0.0
      %2094 = vmatprep.subr.mxu0 0.0
      %2095 = vmatpush1.msra.mxu0 0.0
      %2096 = vmatprep.subr.mxu0 0.0
      %2097 = vmatpush1.msra.mxu0 0.0
      %2098 = vmatprep.subr.mxu0 0.0
      %2099 = vmatpush1.msra.mxu0 0.0
      %2100 = vmatprep.subr.mxu0 0.0
      %2101 = vmatpush1.msra.mxu0 0.0
      %2102 = vmatprep.subr.mxu0 0.0
      %2103 = vmatpush1.msra.mxu0 0.0
      %2104 = vmatprep.subr.mxu0 0.0
      %2105 = vmatpush1.msra.mxu0 0.0
      %2106 = vmatprep.subr.mxu0 0.0
      %2107 = vmatpush1.msra.mxu0 0.0
      %2108 = vmatprep.subr.mxu0 0.0
      %2109 = vmatpush1.msra.mxu0 0.0
      %2110 = vmatprep.subr.mxu0 0.0
      %2111 = vmatpush1.msra.mxu0 0.0
      %2112 = vmatprep.subr.mxu0 0.0
      %2113 = vmatpush1.msra.mxu0 0.0
      %2114 = vmatprep.subr.mxu0 0.0
      %2115 = vmatpush1.msra.mxu0 0.0
      %2116 = vmatprep.subr.mxu0 0.0
      %2117 = vmatpush1.msra.mxu0 0.0
      %2118 = vmatprep.subr.mxu0 0.0
      %2119 = vmatpush1.msra.mxu0 0.0
      %2120 = vmatprep.subr.mxu0 0.0
      %2121 = vmatpush1.msra.mxu0 0.0
      %2122 = vmatprep.subr.mxu0 0.0
      %2123 = vmatpush1.msra.mxu0 0.0
      %2124 = vmatprep.subr.mxu0 0.0
      %2125 = vmatpush1.msra.mxu0 0.0
      %2126 = vmatprep.mubr.f32.mxu0 0.0
      %2127 = vmatmul.mubr.f32.gmra.mrb[0].mxu0 %v2054
      %v2128 = vpop.f32.mrb[0].mxu0
      %v2129 = vadd.f32 %v2040, %v2128
      %v2130 = vpop.f32.mrb[0].mxu0
      %2131 = vmatprep.mubr.f32.mxu0 0.0
      %2132 = vmatmul.mubr.f32.gmra.mrb[0].mxu0 %v2057
      %v2133 = vpop.f32.mrb[0].mxu0
      %v2134 = vadd.f32 %v2045, %v2133
      %v2135 = vpop.f32.mrb[0].mxu0
      %2136 = vmatprep.mubr.f32.mxu0 0.0
      %2137 = vmatmul.mubr.f32.gmra.mrb[0].mxu0 %v2060
      %v2138 = vpop.f32.mrb[0].mxu0
      %v2139 = vadd.f32 %v2050, %v2138
      %v2140 = vpop.f32.mrb[0].mxu0
      %2141 = vdwg.mxu0
      %s2142 = scalar_lea.vmem %s6, 64
      %v2143 = vld [vmem:[%s2142] sm:$0xff]
      %v2144 = vld [vmem:[%s2142 + $0x8] sm:$0xff]
      %v2145 = vld [vmem:[%s2142 + $0x10] sm:$0xff]
      %v2146 = vld [vmem:[%s2142 + $0x18] sm:$0xff]
      %s2147 = scalar_lea.vmem %s9, 2
      %v2148 = vld [vmem:[%s2147] sm:$0x1]
      %v2150 = vlaneseq
      %v2151 = vshrl.u32 %v2150, 7
      %v2152 = vsub.s32 0, %v2151
      %v2153 = vrot.slane %v2148, %v2152
      %2155 = vmatprep.subr.mxu0 0.0
      %2156 = vmatpush1.msra.mxu0 %v2143
      %2157 = vmatprep.subr.mxu0 0.0
      %2158 = vmatpush1.msra.mxu0 %v2144
      %2159 = vmatprep.subr.mxu0 0.0
      %2160 = vmatpush1.msra.mxu0 %v2145
      %2161 = vmatprep.subr.mxu0 0.0
      %2162 = vmatpush1.msra.mxu0 %v2146
      %2163 = vmatprep.subr.mxu0 0.0
      %2164 = vmatpush1.msra.mxu0 0.0
      %2165 = vmatprep.subr.mxu0 0.0
      %2166 = vmatpush1.msra.mxu0 0.0
      %2167 = vmatprep.subr.mxu0 0.0
      %2168 = vmatpush1.msra.mxu0 0.0
      %2169 = vmatprep.subr.mxu0 0.0
      %2170 = vmatpush1.msra.mxu0 0.0
      %2171 = vmatprep.subr.mxu0 0.0
      %2172 = vmatpush1.msra.mxu0 0.0
      %2173 = vmatprep.subr.mxu0 0.0
      %2174 = vmatpush1.msra.mxu0 0.0
      %2175 = vmatprep.subr.mxu0 0.0
      %2176 = vmatpush1.msra.mxu0 0.0
      %2177 = vmatprep.subr.mxu0 0.0
      %2178 = vmatpush1.msra.mxu0 0.0
      %2179 = vmatprep.subr.mxu0 0.0
      %2180 = vmatpush1.msra.mxu0 0.0
      %2181 = vmatprep.subr.mxu0 0.0
      %2182 = vmatpush1.msra.mxu0 0.0
      %2183 = vmatprep.subr.mxu0 0.0
      %2184 = vmatpush1.msra.mxu0 0.0
      %2185 = vmatprep.subr.mxu0 0.0
      %2186 = vmatpush1.msra.mxu0 0.0
      %2187 = vmatprep.subr.mxu0 0.0
      %2188 = vmatpush1.msra.mxu0 0.0
      %2189 = vmatprep.subr.mxu0 0.0
      %2190 = vmatpush1.msra.mxu0 0.0
      %2191 = vmatprep.subr.mxu0 0.0
      %2192 = vmatpush1.msra.mxu0 0.0
      %2193 = vmatprep.subr.mxu0 0.0
      %2194 = vmatpush1.msra.mxu0 0.0
      %2195 = vmatprep.subr.mxu0 0.0
      %2196 = vmatpush1.msra.mxu0 0.0
      %2197 = vmatprep.subr.mxu0 0.0
      %2198 = vmatpush1.msra.mxu0 0.0
      %2199 = vmatprep.subr.mxu0 0.0
      %2200 = vmatpush1.msra.mxu0 0.0
      %2201 = vmatprep.subr.mxu0 0.0
      %2202 = vmatpush1.msra.mxu0 0.0
      %2203 = vmatprep.subr.mxu0 0.0
      %2204 = vmatpush1.msra.mxu0 0.0
      %2205 = vmatprep.subr.mxu0 0.0
      %2206 = vmatpush1.msra.mxu0 0.0
      %2207 = vmatprep.subr.mxu0 0.0
      %2208 = vmatpush1.msra.mxu0 0.0
      %2209 = vmatprep.subr.mxu0 0.0
      %2210 = vmatpush1.msra.mxu0 0.0
      %2211 = vmatprep.subr.mxu0 0.0
      %2212 = vmatpush1.msra.mxu0 0.0
      %2213 = vmatprep.subr.mxu0 0.0
      %2214 = vmatpush1.msra.mxu0 0.0
      %2215 = vmatprep.subr.mxu0 0.0
      %2216 = vmatpush1.msra.mxu0 0.0
      %2217 = vmatprep.subr.mxu0 0.0
      %2218 = vmatpush1.msra.mxu0 0.0
      %2219 = vmatprep.mubr.f32.mxu0 0.0
      %2220 = vmatmul.mubr.f32.gmra.mrb[0].mxu0 %v970
      %v2221 = vpop.f32.mrb[0].mxu0
      %v2222 = vadd.f32 %v2153, %v2221
      %v2223 = vpop.f32.mrb[0].mxu0
      %2224 = vmatprep.mubr.f32.mxu0 0.0
      %2225 = vmatmul.mubr.f32.gmra.mrb[0].mxu0 %v973
      %v2226 = vpop.f32.mrb[0].mxu0
      %v2227 = vadd.f32 %v2153, %v2226
      %v2228 = vpop.f32.mrb[0].mxu0
      %2229 = vmatprep.mubr.f32.mxu0 0.0
      %2230 = vmatmul.mubr.f32.gmra.mrb[0].mxu0 %v976
      %v2231 = vpop.f32.mrb[0].mxu0
      %v2232 = vadd.f32 %v2153, %v2231
      %v2233 = vpop.f32.mrb[0].mxu0
      %2234 = vdwg.mxu0
      %s2235 = scalar_lea.vmem %s7, 64
      %v2236 = vld [vmem:[%s2235] sm:$0xff]
      %v2237 = vld [vmem:[%s2235 + $0x8] sm:$0xff]
      %v2238 = vld [vmem:[%s2235 + $0x10] sm:$0xff]
      %v2239 = vld [vmem:[%s2235 + $0x18] sm:$0xff]
      %s2240 = scalar_lea.vmem %s10, 2
      %v2241 = vld [vmem:[%s2240] sm:$0x1]
      %v2243 = vlaneseq
      %v2244 = vshrl.u32 %v2243, 7
      %v2245 = vsub.s32 0, %v2244
      %v2246 = vrot.slane %v2241, %v2245
      %2248 = vmatprep.subr.mxu0 0.0
      %2249 = vmatpush1.msra.mxu0 %v2236
      %2250 = vmatprep.subr.mxu0 0.0
      %2251 = vmatpush1.msra.mxu0 %v2237
      %2252 = vmatprep.subr.mxu0 0.0
      %2253 = vmatpush1.msra.mxu0 %v2238
      %2254 = vmatprep.subr.mxu0 0.0
      %2255 = vmatpush1.msra.mxu0 %v2239
      %2256 = vmatprep.subr.mxu0 0.0
      %2257 = vmatpush1.msra.mxu0 0.0
      %2258 = vmatprep.subr.mxu0 0.0
      %2259 = vmatpush1.msra.mxu0 0.0
      %2260 = vmatprep.subr.mxu0 0.0
      %2261 = vmatpush1.msra.mxu0 0.0
      %2262 = vmatprep.subr.mxu0 0.0
      %2263 = vmatpush1.msra.mxu0 0.0
      %2264 = vmatprep.subr.mxu0 0.0
      %2265 = vmatpush1.msra.mxu0 0.0
      %2266 = vmatprep.subr.mxu0 0.0
      %2267 = vmatpush1.msra.mxu0 0.0
      %2268 = vmatprep.subr.mxu0 0.0
      %2269 = vmatpush1.msra.mxu0 0.0
      %2270 = vmatprep.subr.mxu0 0.0
      %2271 = vmatpush1.msra.mxu0 0.0
      %2272 = vmatprep.subr.mxu0 0.0
      %2273 = vmatpush1.msra.mxu0 0.0
      %2274 = vmatprep.subr.mxu0 0.0
      %2275 = vmatpush1.msra.mxu0 0.0
      %2276 = vmatprep.subr.mxu0 0.0
      %2277 = vmatpush1.msra.mxu0 0.0
      %2278 = vmatprep.subr.mxu0 0.0
      %2279 = vmatpush1.msra.mxu0 0.0
      %2280 = vmatprep.subr.mxu0 0.0
      %2281 = vmatpush1.msra.mxu0 0.0
      %2282 = vmatprep.subr.mxu0 0.0
      %2283 = vmatpush1.msra.mxu0 0.0
      %2284 = vmatprep.subr.mxu0 0.0
      %2285 = vmatpush1.msra.mxu0 0.0
      %2286 = vmatprep.subr.mxu0 0.0
      %2287 = vmatpush1.msra.mxu0 0.0
      %2288 = vmatprep.subr.mxu0 0.0
      %2289 = vmatpush1.msra.mxu0 0.0
      %2290 = vmatprep.subr.mxu0 0.0
      %2291 = vmatpush1.msra.mxu0 0.0
      %2292 = vmatprep.subr.mxu0 0.0
      %2293 = vmatpush1.msra.mxu0 0.0
      %2294 = vmatprep.subr.mxu0 0.0
      %2295 = vmatpush1.msra.mxu0 0.0
      %2296 = vmatprep.subr.mxu0 0.0
      %2297 = vmatpush1.msra.mxu0 0.0
      %2298 = vmatprep.subr.mxu0 0.0
      %2299 = vmatpush1.msra.mxu0 0.0
      %2300 = vmatprep.subr.mxu0 0.0
      %2301 = vmatpush1.msra.mxu0 0.0
      %2302 = vmatprep.subr.mxu0 0.0
      %2303 = vmatpush1.msra.mxu0 0.0
      %2304 = vmatprep.subr.mxu0 0.0
      %2305 = vmatpush1.msra.mxu0 0.0
      %2306 = vmatprep.subr.mxu0 0.0
      %2307 = vmatpush1.msra.mxu0 0.0
      %2308 = vmatprep.subr.mxu0 0.0
      %2309 = vmatpush1.msra.mxu0 0.0
      %2310 = vmatprep.subr.mxu0 0.0
      %2311 = vmatpush1.msra.mxu0 0.0
      %2312 = vmatprep.mubr.f32.mxu0 0.0
      %2313 = vmatmul.mubr.f32.gmra.mrb[0].mxu0 %v970
      %v2314 = vpop.f32.mrb[0].mxu0
      %v2315 = vadd.f32 %v2246, %v2314
      %v2316 = vpop.f32.mrb[0].mxu0
      %2317 = vmatprep.mubr.f32.mxu0 0.0
      %2318 = vmatmul.mubr.f32.gmra.mrb[0].mxu0 %v973
      %v2319 = vpop.f32.mrb[0].mxu0
      %v2320 = vadd.f32 %v2246, %v2319
      %v2321 = vpop.f32.mrb[0].mxu0
      %2322 = vmatprep.mubr.f32.mxu0 0.0
      %2323 = vmatmul.mubr.f32.gmra.mrb[0].mxu0 %v976
      %v2324 = vpop.f32.mrb[0].mxu0
      %v2325 = vadd.f32 %v2246, %v2324
      %v2326 = vpop.f32.mrb[0].mxu0
      %2327 = vdwg.mxu0
      %s2328 = scalar_lea.vmem %s8, 64
      %v2329 = vld [vmem:[%s2328] sm:$0xff]
      %v2330 = vld [vmem:[%s2328 + $0x8] sm:$0xff]
      %v2331 = vld [vmem:[%s2328 + $0x10] sm:$0xff]
      %v2332 = vld [vmem:[%s2328 + $0x18] sm:$0xff]
      %s2333 = scalar_lea.vmem %s11, 2
      %v2334 = vld [vmem:[%s2333] sm:$0x1]
      %v2336 = vlaneseq
      %v2337 = vshrl.u32 %v2336, 7
      %v2338 = vsub.s32 0, %v2337
      %v2339 = vrot.slane %v2334, %v2338
      %2341 = vmatprep.subr.mxu0 0.0
      %2342 = vmatpush1.msra.mxu0 %v2329
      %2343 = vmatprep.subr.mxu0 0.0
      %2344 = vmatpush1.msra.mxu0 %v2330
      %2345 = vmatprep.subr.mxu0 0.0
      %2346 = vmatpush1.msra.mxu0 %v2331
      %2347 = vmatprep.subr.mxu0 0.0
      %2348 = vmatpush1.msra.mxu0 %v2332
      %2349 = vmatprep.subr.mxu0 0.0
      %2350 = vmatpush1.msra.mxu0 0.0
      %2351 = vmatprep.subr.mxu0 0.0
      %2352 = vmatpush1.msra.mxu0 0.0
      %2353 = vmatprep.subr.mxu0 0.0
      %2354 = vmatpush1.msra.mxu0 0.0
      %2355 = vmatprep.subr.mxu0 0.0
      %2356 = vmatpush1.msra.mxu0 0.0
      %2357 = vmatprep.subr.mxu0 0.0
      %2358 = vmatpush1.msra.mxu0 0.0
      %2359 = vmatprep.subr.mxu0 0.0
      %2360 = vmatpush1.msra.mxu0 0.0
      %2361 = vmatprep.subr.mxu0 0.0
      %2362 = vmatpush1.msra.mxu0 0.0
      %2363 = vmatprep.subr.mxu0 0.0
      %2364 = vmatpush1.msra.mxu0 0.0
      %2365 = vmatprep.subr.mxu0 0.0
      %2366 = vmatpush1.msra.mxu0 0.0
      %2367 = vmatprep.subr.mxu0 0.0
      %2368 = vmatpush1.msra.mxu0 0.0
      %2369 = vmatprep.subr.mxu0 0.0
      %2370 = vmatpush1.msra.mxu0 0.0
      %2371 = vmatprep.subr.mxu0 0.0
      %2372 = vmatpush1.msra.mxu0 0.0
      %2373 = vmatprep.subr.mxu0 0.0
      %2374 = vmatpush1.msra.mxu0 0.0
      %2375 = vmatprep.subr.mxu0 0.0
      %2376 = vmatpush1.msra.mxu0 0.0
      %2377 = vmatprep.subr.mxu0 0.0
      %2378 = vmatpush1.msra.mxu0 0.0
      %2379 = vmatprep.subr.mxu0 0.0
      %2380 = vmatpush1.msra.mxu0 0.0
      %2381 = vmatprep.subr.mxu0 0.0
      %2382 = vmatpush1.msra.mxu0 0.0
      %2383 = vmatprep.subr.mxu0 0.0
      %2384 = vmatpush1.msra.mxu0 0.0
      %2385 = vmatprep.subr.mxu0 0.0
      %2386 = vmatpush1.msra.mxu0 0.0
      %2387 = vmatprep.subr.mxu0 0.0
      %2388 = vmatpush1.msra.mxu0 0.0
      %2389 = vmatprep.subr.mxu0 0.0
      %2390 = vmatpush1.msra.mxu0 0.0
      %2391 = vmatprep.subr.mxu0 0.0
      %2392 = vmatpush1.msra.mxu0 0.0
      %2393 = vmatprep.subr.mxu0 0.0
      %2394 = vmatpush1.msra.mxu0 0.0
      %2395 = vmatprep.subr.mxu0 0.0
      %2396 = vmatpush1.msra.mxu0 0.0
      %2397 = vmatprep.subr.mxu0 0.0
      %2398 = vmatpush1.msra.mxu0 0.0
      %2399 = vmatprep.subr.mxu0 0.0
      %2400 = vmatpush1.msra.mxu0 0.0
      %2401 = vmatprep.subr.mxu0 0.0
      %2402 = vmatpush1.msra.mxu0 0.0
      %2403 = vmatprep.subr.mxu0 0.0
      %2404 = vmatpush1.msra.mxu0 0.0
      %2405 = vmatprep.mubr.f32.mxu0 0.0
      %2406 = vmatmul.mubr.f32.gmra.mrb[0].mxu0 %v970
      %v2407 = vpop.f32.mrb[0].mxu0
      %v2408 = vadd.f32 %v2339, %v2407
      %v2409 = vpop.f32.mrb[0].mxu0
      %2410 = vmatprep.mubr.f32.mxu0 0.0
      %2411 = vmatmul.mubr.f32.gmra.mrb[0].mxu0 %v973
      %v2412 = vpop.f32.mrb[0].mxu0
      %v2413 = vadd.f32 %v2339, %v2412
      %v2414 = vpop.f32.mrb[0].mxu0
      %2415 = vmatprep.mubr.f32.mxu0 0.0
      %2416 = vmatmul.mubr.f32.gmra.mrb[0].mxu0 %v976
      %v2417 = vpop.f32.mrb[0].mxu0
      %v2418 = vadd.f32 %v2339, %v2417
      %v2419 = vpop.f32.mrb[0].mxu0
      %2420 = vdwg.mxu0
      %v2422 = vsel %vm1240, %v2222, 0
      %v2425 = vsel %vm1240, %v2227, 0
      %v2428 = vsel %vm1240, %v2232, 0
      %v2431 = vsel %vm1240, %v2315, 0
      %v2434 = vsel %vm1240, %v2320, 0
      %v2437 = vsel %vm1240, %v2325, 0
      %2439 = vmatprep.subr.mxu0 0.0
      %2440 = vmatpush1.xpose.msra.mxu0 %v2431
      %2441 = vmatprep.subr.mxu0 0.0
      %2442 = vmatpush1.xpose.msra.mxu0 %v2434
      %2443 = vmatprep.subr.mxu0 0.0
      %2444 = vmatpush1.xpose.msra.mxu0 %v2437
      %2445 = vmatprep.subr.mxu0 0.0
      %2446 = vmatpush1.xpose.msra.mxu0 0.0
      %2447 = vmatprep.subr.mxu0 0.0
      %2448 = vmatpush1.xpose.msra.mxu0 0.0
      %2449 = vmatprep.subr.mxu0 0.0
      %2450 = vmatpush1.xpose.msra.mxu0 0.0
      %2451 = vmatprep.subr.mxu0 0.0
      %2452 = vmatpush1.xpose.msra.mxu0 0.0
      %2453 = vmatprep.subr.mxu0 0.0
      %2454 = vmatpush1.xpose.msra.mxu0 0.0
      %2455 = vmatprep.subr.mxu0 0.0
      %2456 = vmatpush1.xpose.msra.mxu0 0.0
      %2457 = vmatprep.subr.mxu0 0.0
      %2458 = vmatpush1.xpose.msra.mxu0 0.0
      %2459 = vmatprep.subr.mxu0 0.0
      %2460 = vmatpush1.xpose.msra.mxu0 0.0
      %2461 = vmatprep.subr.mxu0 0.0
      %2462 = vmatpush1.xpose.msra.mxu0 0.0
      %2463 = vmatprep.subr.mxu0 0.0
      %2464 = vmatpush1.xpose.msra.mxu0 0.0
      %2465 = vmatprep.subr.mxu0 0.0
      %2466 = vmatpush1.xpose.msra.mxu0 0.0
      %2467 = vmatprep.subr.mxu0 0.0
      %2468 = vmatpush1.xpose.msra.mxu0 0.0
      %2469 = vmatprep.subr.mxu0 0.0
      %2470 = vmatpush1.xpose.msra.mxu0 0.0
      %2471 = vmatprep.subr.mxu0 0.0
      %2472 = vmatpush1.xpose.msra.mxu0 0.0
      %2473 = vmatprep.subr.mxu0 0.0
      %2474 = vmatpush1.xpose.msra.mxu0 0.0
      %2475 = vmatprep.subr.mxu0 0.0
      %2476 = vmatpush1.xpose.msra.mxu0 0.0
      %2477 = vmatprep.subr.mxu0 0.0
      %2478 = vmatpush1.xpose.msra.mxu0 0.0
      %2479 = vmatprep.subr.mxu0 0.0
      %2480 = vmatpush1.xpose.msra.mxu0 0.0
      %2481 = vmatprep.subr.mxu0 0.0
      %2482 = vmatpush1.xpose.msra.mxu0 0.0
      %2483 = vmatprep.subr.mxu0 0.0
      %2484 = vmatpush1.xpose.msra.mxu0 0.0
      %2485 = vmatprep.subr.mxu0 0.0
      %2486 = vmatpush1.xpose.msra.mxu0 0.0
      %2487 = vmatprep.subr.mxu0 0.0
      %2488 = vmatpush1.xpose.msra.mxu0 0.0
      %2489 = vmatprep.subr.mxu0 0.0
      %2490 = vmatpush1.xpose.msra.mxu0 0.0
      %2491 = vmatprep.subr.mxu0 0.0
      %2492 = vmatpush1.xpose.msra.mxu0 0.0
      %2493 = vmatprep.subr.mxu0 0.0
      %2494 = vmatpush1.xpose.msra.mxu0 0.0
      %2495 = vmatprep.subr.mxu0 0.0
      %2496 = vmatpush1.xpose.msra.mxu0 0.0
      %2497 = vmatprep.subr.mxu0 0.0
      %2498 = vmatpush1.xpose.msra.mxu0 0.0
      %2499 = vmatprep.subr.mxu0 0.0
      %2500 = vmatpush1.xpose.msra.mxu0 0.0
      %2501 = vmatprep.subr.mxu0 0.0
      %2502 = vmatpush1.xpose.msra.mxu0 0.0
      %2503 = vmatprep.mubr.f32.mxu0 0.0
      %2504 = vmatmul.mubr.f32.gmra.mrb[0].mxu0 %v2422
      %v2505 = vpop.f32.mrb[0].mxu0
      %v2506 = vadd.f32 %v896, %v2505
      %v2507 = vpop.f32.mrb[0].mxu0
      %2508 = vmatprep.mubr.f32.mxu0 0.0
      %2509 = vmatmul.mubr.f32.gmra.mrb[0].mxu0 %v2425
      %v2510 = vpop.f32.mrb[0].mxu0
      %v2511 = vadd.f32 %v896, %v2510
      %v2512 = vpop.f32.mrb[0].mxu0
      %2513 = vmatprep.mubr.f32.mxu0 0.0
      %2514 = vmatmul.mubr.f32.gmra.mrb[0].mxu0 %v2428
      %v2515 = vpop.f32.mrb[0].mxu0
      %v2516 = vadd.f32 %v896, %v2515
      %v2517 = vpop.f32.mrb[0].mxu0
      %2518 = vdwg.mxu0
      %v2519 = vsel %vm1339, %v2506, -inf
      %2520 = vmax.xlane.f32.xlu0 %v2519
      %v2521 = vpop.xlane.xlu0 %2520
      %v2522 = vsel %vm1339, %v2511, -inf
      %2523 = vmax.xlane.f32.xlu0 %v2522
      %v2524 = vpop.xlane.xlu0 %2523
      %v2525 = vsel %vm1339, %v2516, -inf
      %2526 = vmax.xlane.f32.xlu0 %v2525
      %v2527 = vpop.xlane.xlu0 %2526
      %v2528 = vsub.f32 %v2506, %v2521
      %v2529 = vsub.f32 %v2511, %v2524
      %v2530 = vsub.f32 %v2516, %v2527
      %v2531 = vmul.f32 %v2528, 1.442695
      %v2532 = vpow.pop %v2531
      %v2533 = vmul.f32 %v2529, 1.442695
      %v2534 = vpow.pop %v2533
      %v2535 = vmul.f32 %v2530, 1.442695
      %v2536 = vpow.pop %v2535
      %v2538 = vsel %vm1339, %v2532, 0
      %v2541 = vsel %vm1339, %v2534, 0
      %v2544 = vsel %vm1339, %v2536, 0
      %2546 = vmatprep.subr.mxu0 0.0
      %2547 = vmatpush1.msra.mxu0 %v2408
      %2548 = vmatprep.subr.mxu0 0.0
      %2549 = vmatpush1.msra.mxu0 %v2413
      %2550 = vmatprep.subr.mxu0 0.0
      %2551 = vmatpush1.msra.mxu0 %v2418
      %2552 = vmatprep.subr.mxu0 0.0
      %2553 = vmatpush1.msra.mxu0 0.0
      %2554 = vmatprep.subr.mxu0 0.0
      %2555 = vmatpush1.msra.mxu0 0.0
      %2556 = vmatprep.subr.mxu0 0.0
      %2557 = vmatpush1.msra.mxu0 0.0
      %2558 = vmatprep.subr.mxu0 0.0
      %2559 = vmatpush1.msra.mxu0 0.0
      %2560 = vmatprep.subr.mxu0 0.0
      %2561 = vmatpush1.msra.mxu0 0.0
      %2562 = vmatprep.subr.mxu0 0.0
      %2563 = vmatpush1.msra.mxu0 0.0
      %2564 = vmatprep.subr.mxu0 0.0
      %2565 = vmatpush1.msra.mxu0 0.0
      %2566 = vmatprep.subr.mxu0 0.0
      %2567 = vmatpush1.msra.mxu0 0.0
      %2568 = vmatprep.subr.mxu0 0.0
      %2569 = vmatpush1.msra.mxu0 0.0
      %2570 = vmatprep.subr.mxu0 0.0
      %2571 = vmatpush1.msra.mxu0 0.0
      %2572 = vmatprep.subr.mxu0 0.0
      %2573 = vmatpush1.msra.mxu0 0.0
      %2574 = vmatprep.subr.mxu0 0.0
      %2575 = vmatpush1.msra.mxu0 0.0
      %2576 = vmatprep.subr.mxu0 0.0
      %2577 = vmatpush1.msra.mxu0 0.0
      %2578 = vmatprep.subr.mxu0 0.0
      %2579 = vmatpush1.msra.mxu0 0.0
      %2580 = vmatprep.subr.mxu0 0.0
      %2581 = vmatpush1.msra.mxu0 0.0
      %2582 = vmatprep.subr.mxu0 0.0
      %2583 = vmatpush1.msra.mxu0 0.0
      %2584 = vmatprep.subr.mxu0 0.0
      %2585 = vmatpush1.msra.mxu0 0.0
      %2586 = vmatprep.subr.mxu0 0.0
      %2587 = vmatpush1.msra.mxu0 0.0
      %2588 = vmatprep.subr.mxu0 0.0
      %2589 = vmatpush1.msra.mxu0 0.0
      %2590 = vmatprep.subr.mxu0 0.0
      %2591 = vmatpush1.msra.mxu0 0.0
      %2592 = vmatprep.subr.mxu0 0.0
      %2593 = vmatpush1.msra.mxu0 0.0
      %2594 = vmatprep.subr.mxu0 0.0
      %2595 = vmatpush1.msra.mxu0 0.0
      %2596 = vmatprep.subr.mxu0 0.0
      %2597 = vmatpush1.msra.mxu0 0.0
      %2598 = vmatprep.subr.mxu0 0.0
      %2599 = vmatpush1.msra.mxu0 0.0
      %2600 = vmatprep.subr.mxu0 0.0
      %2601 = vmatpush1.msra.mxu0 0.0
      %2602 = vmatprep.subr.mxu0 0.0
      %2603 = vmatpush1.msra.mxu0 0.0
      %2604 = vmatprep.subr.mxu0 0.0
      %2605 = vmatpush1.msra.mxu0 0.0
      %2606 = vmatprep.subr.mxu0 0.0
      %2607 = vmatpush1.msra.mxu0 0.0
      %2608 = vmatprep.subr.mxu0 0.0
      %2609 = vmatpush1.msra.mxu0 0.0
      %2610 = vmatprep.mubr.f32.mxu0 0.0
      %2611 = vmatmul.mubr.f32.gmra.mrb[0].mxu0 %v2538
      %v2612 = vpop.f32.mrb[0].mxu0
      %v2613 = vadd.f32 0.0, %v2612
      %v2614 = vpop.f32.mrb[0].mxu0
      %2615 = vmatprep.mubr.f32.mxu0 0.0
      %2616 = vmatmul.mubr.f32.gmra.mrb[0].mxu0 %v2541
      %v2617 = vpop.f32.mrb[0].mxu0
      %v2618 = vadd.f32 0.0, %v2617
      %v2619 = vpop.f32.mrb[0].mxu0
      %2620 = vmatprep.mubr.f32.mxu0 0.0
      %2621 = vmatmul.mubr.f32.gmra.mrb[0].mxu0 %v2544
      %v2622 = vpop.f32.mrb[0].mxu0
      %v2623 = vadd.f32 0.0, %v2622
      %v2624 = vpop.f32.mrb[0].mxu0
      %2625 = vdwg.mxu0
      %v2626 = vsel %vm1339, %v2532, 0.0
      %2627 = vadd.xlane.f32.xlu0 %v2626
      %v2628 = vpop.xlane.xlu0 %2627
      %v2629 = vsel %vm1339, %v2534, 0.0
      %2630 = vadd.xlane.f32.xlu0 %v2629
      %v2631 = vpop.xlane.xlu0 %2630
      %v2632 = vsel %vm1339, %v2536, 0.0
      %2633 = vadd.xlane.f32.xlu0 %v2632
      %v2634 = vpop.xlane.xlu0 %2633
      %v2635 = vrcp.pop %v2628
      %v2636 = vrcp.pop %v2631
      %v2637 = vrcp.pop %v2634
      %v2638 = vmul.f32 %v2613, %v2635
      %v2639 = vmul.f32 %v2618, %v2636
      %v2640 = vmul.f32 %v2623, %v2637
      %s2641 = scalar_lea.vmem %s12, 16
      %v2642 = vld [vmem:[%s2641] sm:$0xff]
      %v2644 = vsel %vm1240, %v2638, 0
      %v2647 = vsel %vm1240, %v2639, 0
      %v2650 = vsel %vm1240, %v2640, 0
      %2652 = vmatprep.subr.mxu0 0.0
      %2653 = vmatpush1.msra.mxu0 %v2642
      %2654 = vmatprep.subr.mxu0 0.0
      %2655 = vmatpush1.msra.mxu0 0.0
      %2656 = vmatprep.subr.mxu0 0.0
      %2657 = vmatpush1.msra.mxu0 0.0
      %2658 = vmatprep.subr.mxu0 0.0
      %2659 = vmatpush1.msra.mxu0 0.0
      %2660 = vmatprep.subr.mxu0 0.0
      %2661 = vmatpush1.msra.mxu0 0.0
      %2662 = vmatprep.subr.mxu0 0.0
      %2663 = vmatpush1.msra.mxu0 0.0
      %2664 = vmatprep.subr.mxu0 0.0
      %2665 = vmatpush1.msra.mxu0 0.0
      %2666 = vmatprep.subr.mxu0 0.0
      %2667 = vmatpush1.msra.mxu0 0.0
      %2668 = vmatprep.subr.mxu0 0.0
      %2669 = vmatpush1.msra.mxu0 0.0
      %2670 = vmatprep.subr.mxu0 0.0
      %2671 = vmatpush1.msra.mxu0 0.0
      %2672 = vmatprep.subr.mxu0 0.0
      %2673 = vmatpush1.msra.mxu0 0.0
      %2674 = vmatprep.subr.mxu0 0.0
      %2675 = vmatpush1.msra.mxu0 0.0
      %2676 = vmatprep.subr.mxu0 0.0
      %2677 = vmatpush1.msra.mxu0 0.0
      %2678 = vmatprep.subr.mxu0 0.0
      %2679 = vmatpush1.msra.mxu0 0.0
      %2680 = vmatprep.subr.mxu0 0.0
      %2681 = vmatpush1.msra.mxu0 0.0
      %2682 = vmatprep.subr.mxu0 0.0
      %2683 = vmatpush1.msra.mxu0 0.0
      %2684 = vmatprep.subr.mxu0 0.0
      %2685 = vmatpush1.msra.mxu0 0.0
      %2686 = vmatprep.subr.mxu0 0.0
      %2687 = vmatpush1.msra.mxu0 0.0
      %2688 = vmatprep.subr.mxu0 0.0
      %2689 = vmatpush1.msra.mxu0 0.0
      %2690 = vmatprep.subr.mxu0 0.0
      %2691 = vmatpush1.msra.mxu0 0.0
      %2692 = vmatprep.subr.mxu0 0.0
      %2693 = vmatpush1.msra.mxu0 0.0
      %2694 = vmatprep.subr.mxu0 0.0
      %2695 = vmatpush1.msra.mxu0 0.0
      %2696 = vmatprep.subr.mxu0 0.0
      %2697 = vmatpush1.msra.mxu0 0.0
      %2698 = vmatprep.subr.mxu0 0.0
      %2699 = vmatpush1.msra.mxu0 0.0
      %2700 = vmatprep.subr.mxu0 0.0
      %2701 = vmatpush1.msra.mxu0 0.0
      %2702 = vmatprep.subr.mxu0 0.0
      %2703 = vmatpush1.msra.mxu0 0.0
      %2704 = vmatprep.subr.mxu0 0.0
      %2705 = vmatpush1.msra.mxu0 0.0
      %2706 = vmatprep.subr.mxu0 0.0
      %2707 = vmatpush1.msra.mxu0 0.0
      %2708 = vmatprep.subr.mxu0 0.0
      %2709 = vmatpush1.msra.mxu0 0.0
      %2710 = vmatprep.subr.mxu0 0.0
      %2711 = vmatpush1.msra.mxu0 0.0
      %2712 = vmatprep.subr.mxu0 0.0
      %2713 = vmatpush1.msra.mxu0 0.0
      %2714 = vmatprep.subr.mxu0 0.0
      %2715 = vmatpush1.msra.mxu0 0.0
      %2716 = vmatprep.mubr.f32.mxu0 0.0
      %2717 = vmatmul.mubr.f32.gmra.mrb[0].mxu0 %v2644
      %v2718 = vpop.f32.mrb[0].mxu0
      %v2719 = vadd.f32 0.0, %v2718
      %v2720 = vpop.f32.mrb[0].mxu0
      %2721 = vmatprep.mubr.f32.mxu0 0.0
      %2722 = vmatmul.mubr.f32.gmra.mrb[0].mxu0 %v2647
      %v2723 = vpop.f32.mrb[0].mxu0
      %v2724 = vadd.f32 0.0, %v2723
      %v2725 = vpop.f32.mrb[0].mxu0
      %2726 = vmatprep.mubr.f32.mxu0 0.0
      %2727 = vmatmul.mubr.f32.gmra.mrb[0].mxu0 %v2650
      %v2728 = vpop.f32.mrb[0].mxu0
      %v2729 = vadd.f32 0.0, %v2728
      %v2730 = vpop.f32.mrb[0].mxu0
      %2731 = vdwg.mxu0
      %v2732 = vadd.f32 %v2129, %v2719
      %v2733 = vadd.f32 %v2134, %v2724
      %v2734 = vadd.f32 %v2139, %v2729
      %s2735 = scalar_lea.vmem %s6, 96
      %v2736 = vld [vmem:[%s2735] sm:$0xff]
      %v2737 = vld [vmem:[%s2735 + $0x8] sm:$0xff]
      %v2738 = vld [vmem:[%s2735 + $0x10] sm:$0xff]
      %v2739 = vld [vmem:[%s2735 + $0x18] sm:$0xff]
      %s2740 = scalar_lea.vmem %s9, 3
      %v2741 = vld [vmem:[%s2740] sm:$0x1]
      %v2743 = vlaneseq
      %v2744 = vshrl.u32 %v2743, 7
      %v2745 = vsub.s32 0, %v2744
      %v2746 = vrot.slane %v2741, %v2745
      %2748 = vmatprep.subr.mxu0 0.0
      %2749 = vmatpush1.msra.mxu0 %v2736
      %2750 = vmatprep.subr.mxu0 0.0
      %2751 = vmatpush1.msra.mxu0 %v2737
      %2752 = vmatprep.subr.mxu0 0.0
      %2753 = vmatpush1.msra.mxu0 %v2738
      %2754 = vmatprep.subr.mxu0 0.0
      %2755 = vmatpush1.msra.mxu0 %v2739
      %2756 = vmatprep.subr.mxu0 0.0
      %2757 = vmatpush1.msra.mxu0 0.0
      %2758 = vmatprep.subr.mxu0 0.0
      %2759 = vmatpush1.msra.mxu0 0.0
      %2760 = vmatprep.subr.mxu0 0.0
      %2761 = vmatpush1.msra.mxu0 0.0
      %2762 = vmatprep.subr.mxu0 0.0
      %2763 = vmatpush1.msra.mxu0 0.0
      %2764 = vmatprep.subr.mxu0 0.0
      %2765 = vmatpush1.msra.mxu0 0.0
      %2766 = vmatprep.subr.mxu0 0.0
      %2767 = vmatpush1.msra.mxu0 0.0
      %2768 = vmatprep.subr.mxu0 0.0
      %2769 = vmatpush1.msra.mxu0 0.0
      %2770 = vmatprep.subr.mxu0 0.0
      %2771 = vmatpush1.msra.mxu0 0.0
      %2772 = vmatprep.subr.mxu0 0.0
      %2773 = vmatpush1.msra.mxu0 0.0
      %2774 = vmatprep.subr.mxu0 0.0
      %2775 = vmatpush1.msra.mxu0 0.0
      %2776 = vmatprep.subr.mxu0 0.0
      %2777 = vmatpush1.msra.mxu0 0.0
      %2778 = vmatprep.subr.mxu0 0.0
      %2779 = vmatpush1.msra.mxu0 0.0
      %2780 = vmatprep.subr.mxu0 0.0
      %2781 = vmatpush1.msra.mxu0 0.0
      %2782 = vmatprep.subr.mxu0 0.0
      %2783 = vmatpush1.msra.mxu0 0.0
      %2784 = vmatprep.subr.mxu0 0.0
      %2785 = vmatpush1.msra.mxu0 0.0
      %2786 = vmatprep.subr.mxu0 0.0
      %2787 = vmatpush1.msra.mxu0 0.0
      %2788 = vmatprep.subr.mxu0 0.0
      %2789 = vmatpush1.msra.mxu0 0.0
      %2790 = vmatprep.subr.mxu0 0.0
      %2791 = vmatpush1.msra.mxu0 0.0
      %2792 = vmatprep.subr.mxu0 0.0
      %2793 = vmatpush1.msra.mxu0 0.0
      %2794 = vmatprep.subr.mxu0 0.0
      %2795 = vmatpush1.msra.mxu0 0.0
      %2796 = vmatprep.subr.mxu0 0.0
      %2797 = vmatpush1.msra.mxu0 0.0
      %2798 = vmatprep.subr.mxu0 0.0
      %2799 = vmatpush1.msra.mxu0 0.0
      %2800 = vmatprep.subr.mxu0 0.0
      %2801 = vmatpush1.msra.mxu0 0.0
      %2802 = vmatprep.subr.mxu0 0.0
      %2803 = vmatpush1.msra.mxu0 0.0
      %2804 = vmatprep.subr.mxu0 0.0
      %2805 = vmatpush1.msra.mxu0 0.0
      %2806 = vmatprep.subr.mxu0 0.0
      %2807 = vmatpush1.msra.mxu0 0.0
      %2808 = vmatprep.subr.mxu0 0.0
      %2809 = vmatpush1.msra.mxu0 0.0
      %2810 = vmatprep.subr.mxu0 0.0
      %2811 = vmatpush1.msra.mxu0 0.0
      %2812 = vmatprep.mubr.f32.mxu0 0.0
      %2813 = vmatmul.mubr.f32.gmra.mrb[0].mxu0 %v970
      %v2814 = vpop.f32.mrb[0].mxu0
      %v2815 = vadd.f32 %v2746, %v2814
      %v2816 = vpop.f32.mrb[0].mxu0
      %2817 = vmatprep.mubr.f32.mxu0 0.0
      %2818 = vmatmul.mubr.f32.gmra.mrb[0].mxu0 %v973
      %v2819 = vpop.f32.mrb[0].mxu0
      %v2820 = vadd.f32 %v2746, %v2819
      %v2821 = vpop.f32.mrb[0].mxu0
      %2822 = vmatprep.mubr.f32.mxu0 0.0
      %2823 = vmatmul.mubr.f32.gmra.mrb[0].mxu0 %v976
      %v2824 = vpop.f32.mrb[0].mxu0
      %v2825 = vadd.f32 %v2746, %v2824
      %v2826 = vpop.f32.mrb[0].mxu0
      %2827 = vdwg.mxu0
      %s2828 = scalar_lea.vmem %s7, 96
      %v2829 = vld [vmem:[%s2828] sm:$0xff]
      %v2830 = vld [vmem:[%s2828 + $0x8] sm:$0xff]
      %v2831 = vld [vmem:[%s2828 + $0x10] sm:$0xff]
      %v2832 = vld [vmem:[%s2828 + $0x18] sm:$0xff]
      %s2833 = scalar_lea.vmem %s10, 3
      %v2834 = vld [vmem:[%s2833] sm:$0x1]
      %v2836 = vlaneseq
      %v2837 = vshrl.u32 %v2836, 7
      %v2838 = vsub.s32 0, %v2837
      %v2839 = vrot.slane %v2834, %v2838
      %2841 = vmatprep.subr.mxu0 0.0
      %2842 = vmatpush1.msra.mxu0 %v2829
      %2843 = vmatprep.subr.mxu0 0.0
      %2844 = vmatpush1.msra.mxu0 %v2830
      %2845 = vmatprep.subr.mxu0 0.0
      %2846 = vmatpush1.msra.mxu0 %v2831
      %2847 = vmatprep.subr.mxu0 0.0
      %2848 = vmatpush1.msra.mxu0 %v2832
      %2849 = vmatprep.subr.mxu0 0.0
      %2850 = vmatpush1.msra.mxu0 0.0
      %2851 = vmatprep.subr.mxu0 0.0
      %2852 = vmatpush1.msra.mxu0 0.0
      %2853 = vmatprep.subr.mxu0 0.0
      %2854 = vmatpush1.msra.mxu0 0.0
      %2855 = vmatprep.subr.mxu0 0.0
      %2856 = vmatpush1.msra.mxu0 0.0
      %2857 = vmatprep.subr.mxu0 0.0
      %2858 = vmatpush1.msra.mxu0 0.0
      %2859 = vmatprep.subr.mxu0 0.0
      %2860 = vmatpush1.msra.mxu0 0.0
      %2861 = vmatprep.subr.mxu0 0.0
      %2862 = vmatpush1.msra.mxu0 0.0
      %2863 = vmatprep.subr.mxu0 0.0
      %2864 = vmatpush1.msra.mxu0 0.0
      %2865 = vmatprep.subr.mxu0 0.0
      %2866 = vmatpush1.msra.mxu0 0.0
      %2867 = vmatprep.subr.mxu0 0.0
      %2868 = vmatpush1.msra.mxu0 0.0
      %2869 = vmatprep.subr.mxu0 0.0
      %2870 = vmatpush1.msra.mxu0 0.0
      %2871 = vmatprep.subr.mxu0 0.0
      %2872 = vmatpush1.msra.mxu0 0.0
      %2873 = vmatprep.subr.mxu0 0.0
      %2874 = vmatpush1.msra.mxu0 0.0
      %2875 = vmatprep.subr.mxu0 0.0
      %2876 = vmatpush1.msra.mxu0 0.0
      %2877 = vmatprep.subr.mxu0 0.0
      %2878 = vmatpush1.msra.mxu0 0.0
      %2879 = vmatprep.subr.mxu0 0.0
      %2880 = vmatpush1.msra.mxu0 0.0
      %2881 = vmatprep.subr.mxu0 0.0
      %2882 = vmatpush1.msra.mxu0 0.0
      %2883 = vmatprep.subr.mxu0 0.0
      %2884 = vmatpush1.msra.mxu0 0.0
      %2885 = vmatprep.subr.mxu0 0.0
      %2886 = vmatpush1.msra.mxu0 0.0
      %2887 = vmatprep.subr.mxu0 0.0
      %2888 = vmatpush1.msra.mxu0 0.0
      %2889 = vmatprep.subr.mxu0 0.0
      %2890 = vmatpush1.msra.mxu0 0.0
      %2891 = vmatprep.subr.mxu0 0.0
      %2892 = vmatpush1.msra.mxu0 0.0
      %2893 = vmatprep.subr.mxu0 0.0
      %2894 = vmatpush1.msra.mxu0 0.0
      %2895 = vmatprep.subr.mxu0 0.0
      %2896 = vmatpush1.msra.mxu0 0.0
      %2897 = vmatprep.subr.mxu0 0.0
      %2898 = vmatpush1.msra.mxu0 0.0
      %2899 = vmatprep.subr.mxu0 0.0
      %2900 = vmatpush1.msra.mxu0 0.0
      %2901 = vmatprep.subr.mxu0 0.0
      %2902 = vmatpush1.msra.mxu0 0.0
      %2903 = vmatprep.subr.mxu0 0.0
      %2904 = vmatpush1.msra.mxu0 0.0
      %2905 = vmatprep.mubr.f32.mxu0 0.0
      %2906 = vmatmul.mubr.f32.gmra.mrb[0].mxu0 %v970
      %v2907 = vpop.f32.mrb[0].mxu0
      %v2908 = vadd.f32 %v2839, %v2907
      %v2909 = vpop.f32.mrb[0].mxu0
      %2910 = vmatprep.mubr.f32.mxu0 0.0
      %2911 = vmatmul.mubr.f32.gmra.mrb[0].mxu0 %v973
      %v2912 = vpop.f32.mrb[0].mxu0
      %v2913 = vadd.f32 %v2839, %v2912
      %v2914 = vpop.f32.mrb[0].mxu0
      %2915 = vmatprep.mubr.f32.mxu0 0.0
      %2916 = vmatmul.mubr.f32.gmra.mrb[0].mxu0 %v976
      %v2917 = vpop.f32.mrb[0].mxu0
      %v2918 = vadd.f32 %v2839, %v2917
      %v2919 = vpop.f32.mrb[0].mxu0
      %2920 = vdwg.mxu0
      %s2921 = scalar_lea.vmem %s8, 96
      %v2922 = vld [vmem:[%s2921] sm:$0xff]
      %v2923 = vld [vmem:[%s2921 + $0x8] sm:$0xff]
      %v2924 = vld [vmem:[%s2921 + $0x10] sm:$0xff]
      %v2925 = vld [vmem:[%s2921 + $0x18] sm:$0xff]
      %s2926 = scalar_lea.vmem %s11, 3
      %v2927 = vld [vmem:[%s2926] sm:$0x1]
      %v2929 = vlaneseq
      %v2930 = vshrl.u32 %v2929, 7
      %v2931 = vsub.s32 0, %v2930
      %v2932 = vrot.slane %v2927, %v2931
      %2934 = vmatprep.subr.mxu0 0.0
      %2935 = vmatpush1.msra.mxu0 %v2922
      %2936 = vmatprep.subr.mxu0 0.0
      %2937 = vmatpush1.msra.mxu0 %v2923
      %2938 = vmatprep.subr.mxu0 0.0
      %2939 = vmatpush1.msra.mxu0 %v2924
      %2940 = vmatprep.subr.mxu0 0.0
      %2941 = vmatpush1.msra.mxu0 %v2925
      %2942 = vmatprep.subr.mxu0 0.0
      %2943 = vmatpush1.msra.mxu0 0.0
      %2944 = vmatprep.subr.mxu0 0.0
      %2945 = vmatpush1.msra.mxu0 0.0
      %2946 = vmatprep.subr.mxu0 0.0
      %2947 = vmatpush1.msra.mxu0 0.0
      %2948 = vmatprep.subr.mxu0 0.0
      %2949 = vmatpush1.msra.mxu0 0.0
      %2950 = vmatprep.subr.mxu0 0.0
      %2951 = vmatpush1.msra.mxu0 0.0
      %2952 = vmatprep.subr.mxu0 0.0
      %2953 = vmatpush1.msra.mxu0 0.0
      %2954 = vmatprep.subr.mxu0 0.0
      %2955 = vmatpush1.msra.mxu0 0.0
      %2956 = vmatprep.subr.mxu0 0.0
      %2957 = vmatpush1.msra.mxu0 0.0
      %2958 = vmatprep.subr.mxu0 0.0
      %2959 = vmatpush1.msra.mxu0 0.0
      %2960 = vmatprep.subr.mxu0 0.0
      %2961 = vmatpush1.msra.mxu0 0.0
      %2962 = vmatprep.subr.mxu0 0.0
      %2963 = vmatpush1.msra.mxu0 0.0
      %2964 = vmatprep.subr.mxu0 0.0
      %2965 = vmatpush1.msra.mxu0 0.0
      %2966 = vmatprep.subr.mxu0 0.0
      %2967 = vmatpush1.msra.mxu0 0.0
      %2968 = vmatprep.subr.mxu0 0.0
      %2969 = vmatpush1.msra.mxu0 0.0
      %2970 = vmatprep.subr.mxu0 0.0
      %2971 = vmatpush1.msra.mxu0 0.0
      %2972 = vmatprep.subr.mxu0 0.0
      %2973 = vmatpush1.msra.mxu0 0.0
      %2974 = vmatprep.subr.mxu0 0.0
      %2975 = vmatpush1.msra.mxu0 0.0
      %2976 = vmatprep.subr.mxu0 0.0
      %2977 = vmatpush1.msra.mxu0 0.0
      %2978 = vmatprep.subr.mxu0 0.0
      %2979 = vmatpush1.msra.mxu0 0.0
      %2980 = vmatprep.subr.mxu0 0.0
      %2981 = vmatpush1.msra.mxu0 0.0
      %2982 = vmatprep.subr.mxu0 0.0
      %2983 = vmatpush1.msra.mxu0 0.0
      %2984 = vmatprep.subr.mxu0 0.0
      %2985 = vmatpush1.msra.mxu0 0.0
      %2986 = vmatprep.subr.mxu0 0.0
      %2987 = vmatpush1.msra.mxu0 0.0
      %2988 = vmatprep.subr.mxu0 0.0
      %2989 = vmatpush1.msra.mxu0 0.0
      %2990 = vmatprep.subr.mxu0 0.0
      %2991 = vmatpush1.msra.mxu0 0.0
      %2992 = vmatprep.subr.mxu0 0.0
      %2993 = vmatpush1.msra.mxu0 0.0
      %2994 = vmatprep.subr.mxu0 0.0
      %2995 = vmatpush1.msra.mxu0 0.0
      %2996 = vmatprep.subr.mxu0 0.0
      %2997 = vmatpush1.msra.mxu0 0.0
      %2998 = vmatprep.mubr.f32.mxu0 0.0
      %2999 = vmatmul.mubr.f32.gmra.mrb[0].mxu0 %v970
      %v3000 = vpop.f32.mrb[0].mxu0
      %v3001 = vadd.f32 %v2932, %v3000
      %v3002 = vpop.f32.mrb[0].mxu0
      %3003 = vmatprep.mubr.f32.mxu0 0.0
      %3004 = vmatmul.mubr.f32.gmra.mrb[0].mxu0 %v973
      %v3005 = vpop.f32.mrb[0].mxu0
      %v3006 = vadd.f32 %v2932, %v3005
      %v3007 = vpop.f32.mrb[0].mxu0
      %3008 = vmatprep.mubr.f32.mxu0 0.0
      %3009 = vmatmul.mubr.f32.gmra.mrb[0].mxu0 %v976
      %v3010 = vpop.f32.mrb[0].mxu0
      %v3011 = vadd.f32 %v2932, %v3010
      %v3012 = vpop.f32.mrb[0].mxu0
      %3013 = vdwg.mxu0
      %v3015 = vsel %vm1240, %v2815, 0
      %v3018 = vsel %vm1240, %v2820, 0
      %v3021 = vsel %vm1240, %v2825, 0
      %v3024 = vsel %vm1240, %v2908, 0
      %v3027 = vsel %vm1240, %v2913, 0
      %v3030 = vsel %vm1240, %v2918, 0
      %3032 = vmatprep.subr.mxu0 0.0
      %3033 = vmatpush1.xpose.msra.mxu0 %v3024
      %3034 = vmatprep.subr.mxu0 0.0
      %3035 = vmatpush1.xpose.msra.mxu0 %v3027
      %3036 = vmatprep.subr.mxu0 0.0
      %3037 = vmatpush1.xpose.msra.mxu0 %v3030
      %3038 = vmatprep.subr.mxu0 0.0
      %3039 = vmatpush1.xpose.msra.mxu0 0.0
      %3040 = vmatprep.subr.mxu0 0.0
      %3041 = vmatpush1.xpose.msra.mxu0 0.0
      %3042 = vmatprep.subr.mxu0 0.0
      %3043 = vmatpush1.xpose.msra.mxu0 0.0
      %3044 = vmatprep.subr.mxu0 0.0
      %3045 = vmatpush1.xpose.msra.mxu0 0.0
      %3046 = vmatprep.subr.mxu0 0.0
      %3047 = vmatpush1.xpose.msra.mxu0 0.0
      %3048 = vmatprep.subr.mxu0 0.0
      %3049 = vmatpush1.xpose.msra.mxu0 0.0
      %3050 = vmatprep.subr.mxu0 0.0
      %3051 = vmatpush1.xpose.msra.mxu0 0.0
      %3052 = vmatprep.subr.mxu0 0.0
      %3053 = vmatpush1.xpose.msra.mxu0 0.0
      %3054 = vmatprep.subr.mxu0 0.0
      %3055 = vmatpush1.xpose.msra.mxu0 0.0
      %3056 = vmatprep.subr.mxu0 0.0
      %3057 = vmatpush1.xpose.msra.mxu0 0.0
      %3058 = vmatprep.subr.mxu0 0.0
      %3059 = vmatpush1.xpose.msra.mxu0 0.0
      %3060 = vmatprep.subr.mxu0 0.0
      %3061 = vmatpush1.xpose.msra.mxu0 0.0
      %3062 = vmatprep.subr.mxu0 0.0
      %3063 = vmatpush1.xpose.msra.mxu0 0.0
      %3064 = vmatprep.subr.mxu0 0.0
      %3065 = vmatpush1.xpose.msra.mxu0 0.0
      %3066 = vmatprep.subr.mxu0 0.0
      %3067 = vmatpush1.xpose.msra.mxu0 0.0
      %3068 = vmatprep.subr.mxu0 0.0
      %3069 = vmatpush1.xpose.msra.mxu0 0.0
      %3070 = vmatprep.subr.mxu0 0.0
      %3071 = vmatpush1.xpose.msra.mxu0 0.0
      %3072 = vmatprep.subr.mxu0 0.0
      %3073 = vmatpush1.xpose.msra.mxu0 0.0
      %3074 = vmatprep.subr.mxu0 0.0
      %3075 = vmatpush1.xpose.msra.mxu0 0.0
      %3076 = vmatprep.subr.mxu0 0.0
      %3077 = vmatpush1.xpose.msra.mxu0 0.0
      %3078 = vmatprep.subr.mxu0 0.0
      %3079 = vmatpush1.xpose.msra.mxu0 0.0
      %3080 = vmatprep.subr.mxu0 0.0
      %3081 = vmatpush1.xpose.msra.mxu0 0.0
      %3082 = vmatprep.subr.mxu0 0.0
      %3083 = vmatpush1.xpose.msra.mxu0 0.0
      %3084 = vmatprep.subr.mxu0 0.0
      %3085 = vmatpush1.xpose.msra.mxu0 0.0
      %3086 = vmatprep.subr.mxu0 0.0
      %3087 = vmatpush1.xpose.msra.mxu0 0.0
      %3088 = vmatprep.subr.mxu0 0.0
      %3089 = vmatpush1.xpose.msra.mxu0 0.0
      %3090 = vmatprep.subr.mxu0 0.0
      %3091 = vmatpush1.xpose.msra.mxu0 0.0
      %3092 = vmatprep.subr.mxu0 0.0
      %3093 = vmatpush1.xpose.msra.mxu0 0.0
      %3094 = vmatprep.subr.mxu0 0.0
      %3095 = vmatpush1.xpose.msra.mxu0 0.0
      %3096 = vmatprep.mubr.f32.mxu0 0.0
      %3097 = vmatmul.mubr.f32.gmra.mrb[0].mxu0 %v3015
      %v3098 = vpop.f32.mrb[0].mxu0
      %v3099 = vadd.f32 %v896, %v3098
      %v3100 = vpop.f32.mrb[0].mxu0
      %3101 = vmatprep.mubr.f32.mxu0 0.0
      %3102 = vmatmul.mubr.f32.gmra.mrb[0].mxu0 %v3018
      %v3103 = vpop.f32.mrb[0].mxu0
      %v3104 = vadd.f32 %v896, %v3103
      %v3105 = vpop.f32.mrb[0].mxu0
      %3106 = vmatprep.mubr.f32.mxu0 0.0
      %3107 = vmatmul.mubr.f32.gmra.mrb[0].mxu0 %v3021
      %v3108 = vpop.f32.mrb[0].mxu0
      %v3109 = vadd.f32 %v896, %v3108
      %v3110 = vpop.f32.mrb[0].mxu0
      %3111 = vdwg.mxu0
      %v3112 = vsel %vm1339, %v3099, -inf
      %3113 = vmax.xlane.f32.xlu0 %v3112
      %v3114 = vpop.xlane.xlu0 %3113
      %v3115 = vsel %vm1339, %v3104, -inf
      %3116 = vmax.xlane.f32.xlu0 %v3115
      %v3117 = vpop.xlane.xlu0 %3116
      %v3118 = vsel %vm1339, %v3109, -inf
      %3119 = vmax.xlane.f32.xlu0 %v3118
      %v3120 = vpop.xlane.xlu0 %3119
      %v3121 = vsub.f32 %v3099, %v3114
      %v3122 = vsub.f32 %v3104, %v3117
      %v3123 = vsub.f32 %v3109, %v3120
      %v3124 = vmul.f32 %v3121, 1.442695
      %v3125 = vpow.pop %v3124
      %v3126 = vmul.f32 %v3122, 1.442695
      %v3127 = vpow.pop %v3126
      %v3128 = vmul.f32 %v3123, 1.442695
      %v3129 = vpow.pop %v3128
      %v3131 = vsel %vm1339, %v3125, 0
      %v3134 = vsel %vm1339, %v3127, 0
      %v3137 = vsel %vm1339, %v3129, 0
      %3139 = vmatprep.subr.mxu0 0.0
      %3140 = vmatpush1.msra.mxu0 %v3001
      %3141 = vmatprep.subr.mxu0 0.0
      %3142 = vmatpush1.msra.mxu0 %v3006
      %3143 = vmatprep.subr.mxu0 0.0
      %3144 = vmatpush1.msra.mxu0 %v3011
      %3145 = vmatprep.subr.mxu0 0.0
      %3146 = vmatpush1.msra.mxu0 0.0
      %3147 = vmatprep.subr.mxu0 0.0
      %3148 = vmatpush1.msra.mxu0 0.0
      %3149 = vmatprep.subr.mxu0 0.0
      %3150 = vmatpush1.msra.mxu0 0.0
      %3151 = vmatprep.subr.mxu0 0.0
      %3152 = vmatpush1.msra.mxu0 0.0
      %3153 = vmatprep.subr.mxu0 0.0
      %3154 = vmatpush1.msra.mxu0 0.0
      %3155 = vmatprep.subr.mxu0 0.0
      %3156 = vmatpush1.msra.mxu0 0.0
      %3157 = vmatprep.subr.mxu0 0.0
      %3158 = vmatpush1.msra.mxu0 0.0
      %3159 = vmatprep.subr.mxu0 0.0
      %3160 = vmatpush1.msra.mxu0 0.0
      %3161 = vmatprep.subr.mxu0 0.0
      %3162 = vmatpush1.msra.mxu0 0.0
      %3163 = vmatprep.subr.mxu0 0.0
      %3164 = vmatpush1.msra.mxu0 0.0
      %3165 = vmatprep.subr.mxu0 0.0
      %3166 = vmatpush1.msra.mxu0 0.0
      %3167 = vmatprep.subr.mxu0 0.0
      %3168 = vmatpush1.msra.mxu0 0.0
      %3169 = vmatprep.subr.mxu0 0.0
      %3170 = vmatpush1.msra.mxu0 0.0
      %3171 = vmatprep.subr.mxu0 0.0
      %3172 = vmatpush1.msra.mxu0 0.0
      %3173 = vmatprep.subr.mxu0 0.0
      %3174 = vmatpush1.msra.mxu0 0.0
      %3175 = vmatprep.subr.mxu0 0.0
      %3176 = vmatpush1.msra.mxu0 0.0
      %3177 = vmatprep.subr.mxu0 0.0
      %3178 = vmatpush1.msra.mxu0 0.0
      %3179 = vmatprep.subr.mxu0 0.0
      %3180 = vmatpush1.msra.mxu0 0.0
      %3181 = vmatprep.subr.mxu0 0.0
      %3182 = vmatpush1.msra.mxu0 0.0
      %3183 = vmatprep.subr.mxu0 0.0
      %3184 = vmatpush1.msra.mxu0 0.0
      %3185 = vmatprep.subr.mxu0 0.0
      %3186 = vmatpush1.msra.mxu0 0.0
      %3187 = vmatprep.subr.mxu0 0.0
      %3188 = vmatpush1.msra.mxu0 0.0
      %3189 = vmatprep.subr.mxu0 0.0
      %3190 = vmatpush1.msra.mxu0 0.0
      %3191 = vmatprep.subr.mxu0 0.0
      %3192 = vmatpush1.msra.mxu0 0.0
      %3193 = vmatprep.subr.mxu0 0.0
      %3194 = vmatpush1.msra.mxu0 0.0
      %3195 = vmatprep.subr.mxu0 0.0
      %3196 = vmatpush1.msra.mxu0 0.0
      %3197 = vmatprep.subr.mxu0 0.0
      %3198 = vmatpush1.msra.mxu0 0.0
      %3199 = vmatprep.subr.mxu0 0.0
      %3200 = vmatpush1.msra.mxu0 0.0
      %3201 = vmatprep.subr.mxu0 0.0
      %3202 = vmatpush1.msra.mxu0 0.0
      %3203 = vmatprep.mubr.f32.mxu0 0.0
      %3204 = vmatmul.mubr.f32.gmra.mrb[0].mxu0 %v3131
      %v3205 = vpop.f32.mrb[0].mxu0
      %v3206 = vadd.f32 0.0, %v3205
      %v3207 = vpop.f32.mrb[0].mxu0
      %3208 = vmatprep.mubr.f32.mxu0 0.0
      %3209 = vmatmul.mubr.f32.gmra.mrb[0].mxu0 %v3134
      %v3210 = vpop.f32.mrb[0].mxu0
      %v3211 = vadd.f32 0.0, %v3210
      %v3212 = vpop.f32.mrb[0].mxu0
      %3213 = vmatprep.mubr.f32.mxu0 0.0
      %3214 = vmatmul.mubr.f32.gmra.mrb[0].mxu0 %v3137
      %v3215 = vpop.f32.mrb[0].mxu0
      %v3216 = vadd.f32 0.0, %v3215
      %v3217 = vpop.f32.mrb[0].mxu0
      %3218 = vdwg.mxu0
      %v3219 = vsel %vm1339, %v3125, 0.0
      %3220 = vadd.xlane.f32.xlu0 %v3219
      %v3221 = vpop.xlane.xlu0 %3220
      %v3222 = vsel %vm1339, %v3127, 0.0
      %3223 = vadd.xlane.f32.xlu0 %v3222
      %v3224 = vpop.xlane.xlu0 %3223
      %v3225 = vsel %vm1339, %v3129, 0.0
      %3226 = vadd.xlane.f32.xlu0 %v3225
      %v3227 = vpop.xlane.xlu0 %3226
      %v3228 = vrcp.pop %v3221
      %v3229 = vrcp.pop %v3224
      %v3230 = vrcp.pop %v3227
      %v3231 = vmul.f32 %v3206, %v3228
      %v3232 = vmul.f32 %v3211, %v3229
      %v3233 = vmul.f32 %v3216, %v3230
      %s3234 = scalar_lea.vmem %s12, 24
      %v3235 = vld [vmem:[%s3234] sm:$0xff]
      %v3237 = vsel %vm1240, %v3231, 0
      %v3240 = vsel %vm1240, %v3232, 0
      %v3243 = vsel %vm1240, %v3233, 0
      %3245 = vmatprep.subr.mxu0 0.0
      %3246 = vmatpush1.msra.mxu0 %v3235
      %3247 = vmatprep.subr.mxu0 0.0
      %3248 = vmatpush1.msra.mxu0 0.0
      %3249 = vmatprep.subr.mxu0 0.0
      %3250 = vmatpush1.msra.mxu0 0.0
      %3251 = vmatprep.subr.mxu0 0.0
      %3252 = vmatpush1.msra.mxu0 0.0
      %3253 = vmatprep.subr.mxu0 0.0
      %3254 = vmatpush1.msra.mxu0 0.0
      %3255 = vmatprep.subr.mxu0 0.0
      %3256 = vmatpush1.msra.mxu0 0.0
      %3257 = vmatprep.subr.mxu0 0.0
      %3258 = vmatpush1.msra.mxu0 0.0
      %3259 = vmatprep.subr.mxu0 0.0
      %3260 = vmatpush1.msra.mxu0 0.0
      %3261 = vmatprep.subr.mxu0 0.0
      %3262 = vmatpush1.msra.mxu0 0.0
      %3263 = vmatprep.subr.mxu0 0.0
      %3264 = vmatpush1.msra.mxu0 0.0
      %3265 = vmatprep.subr.mxu0 0.0
      %3266 = vmatpush1.msra.mxu0 0.0
      %3267 = vmatprep.subr.mxu0 0.0
      %3268 = vmatpush1.msra.mxu0 0.0
      %3269 = vmatprep.subr.mxu0 0.0
      %3270 = vmatpush1.msra.mxu0 0.0
      %3271 = vmatprep.subr.mxu0 0.0
      %3272 = vmatpush1.msra.mxu0 0.0
      %3273 = vmatprep.subr.mxu0 0.0
      %3274 = vmatpush1.msra.mxu0 0.0
      %3275 = vmatprep.subr.mxu0 0.0
      %3276 = vmatpush1.msra.mxu0 0.0
      %3277 = vmatprep.subr.mxu0 0.0
      %3278 = vmatpush1.msra.mxu0 0.0
      %3279 = vmatprep.subr.mxu0 0.0
      %3280 = vmatpush1.msra.mxu0 0.0
      %3281 = vmatprep.subr.mxu0 0.0
      %3282 = vmatpush1.msra.mxu0 0.0
      %3283 = vmatprep.subr.mxu0 0.0
      %3284 = vmatpush1.msra.mxu0 0.0
      %3285 = vmatprep.subr.mxu0 0.0
      %3286 = vmatpush1.msra.mxu0 0.0
      %3287 = vmatprep.subr.mxu0 0.0
      %3288 = vmatpush1.msra.mxu0 0.0
      %3289 = vmatprep.subr.mxu0 0.0
      %3290 = vmatpush1.msra.mxu0 0.0
      %3291 = vmatprep.subr.mxu0 0.0
      %3292 = vmatpush1.msra.mxu0 0.0
      %3293 = vmatprep.subr.mxu0 0.0
      %3294 = vmatpush1.msra.mxu0 0.0
      %3295 = vmatprep.subr.mxu0 0.0
      %3296 = vmatpush1.msra.mxu0 0.0
      %3297 = vmatprep.subr.mxu0 0.0
      %3298 = vmatpush1.msra.mxu0 0.0
      %3299 = vmatprep.subr.mxu0 0.0
      %3300 = vmatpush1.msra.mxu0 0.0
      %3301 = vmatprep.subr.mxu0 0.0
      %3302 = vmatpush1.msra.mxu0 0.0
      %3303 = vmatprep.subr.mxu0 0.0
      %3304 = vmatpush1.msra.mxu0 0.0
      %3305 = vmatprep.subr.mxu0 0.0
      %3306 = vmatpush1.msra.mxu0 0.0
      %3307 = vmatprep.subr.mxu0 0.0
      %3308 = vmatpush1.msra.mxu0 0.0
      %3309 = vmatprep.mubr.f32.mxu0 0.0
      %3310 = vmatmul.mubr.f32.gmra.mrb[0].mxu0 %v3237
      %v3311 = vpop.f32.mrb[0].mxu0
      %v3312 = vadd.f32 0.0, %v3311
      %v3313 = vpop.f32.mrb[0].mxu0
      %3314 = vmatprep.mubr.f32.mxu0 0.0
      %3315 = vmatmul.mubr.f32.gmra.mrb[0].mxu0 %v3240
      %v3316 = vpop.f32.mrb[0].mxu0
      %v3317 = vadd.f32 0.0, %v3316
      %v3318 = vpop.f32.mrb[0].mxu0
      %3319 = vmatprep.mubr.f32.mxu0 0.0
      %3320 = vmatmul.mubr.f32.gmra.mrb[0].mxu0 %v3243
      %v3321 = vpop.f32.mrb[0].mxu0
      %v3322 = vadd.f32 0.0, %v3321
      %v3323 = vpop.f32.mrb[0].mxu0
      %3324 = vdwg.mxu0
      %v3325 = vadd.f32 %v2732, %v3312
      %v3326 = vadd.f32 %v2733, %v3317
      %v3327 = vadd.f32 %v2734, %v3322
      %v3328 = vadd.f32 %v890, %v3325
      %v3329 = vadd.f32 %v891, %v3326
      %v3330 = vadd.f32 %v892, %v3327
      %v3331 = vld [vmem:[%s13] sm:$0x1]
      %v3333 = vlaneseq
      %v3334 = vshrl.u32 %v3333, 7
      %v3335 = vsub.s32 0, %v3334
      %v3336 = vrot.slane %v3331, %v3335
      %v3338 = vadd.f32 %v3328, %v3336
      %v3339 = vadd.f32 %v3329, %v3336
      %v3340 = vadd.f32 %v3330, %v3336
      %v3341 = vld [vmem:[%s14] sm:$0x1]
      %v3342 = vld [vmem:[%s15] sm:$0x1]
      %v3343 = vsel %vm899, %v3338, 0.0
      %3344 = vadd.xlane.f32.xlu0 %v3343
      %v3345 = vpop.xlane.xlu0 %3344
      %v3346 = vsel %vm899, %v3339, 0.0
      %3347 = vadd.xlane.f32.xlu0 %v3346
      %v3348 = vpop.xlane.xlu0 %3347
      %v3349 = vsel %vm899, %v3340, 0.0
      %3350 = vadd.xlane.f32.xlu0 %v3349
      %v3351 = vpop.xlane.xlu0 %3350
      %v3352 = vmul.f32 %v3345, %v909
      %v3353 = vmul.f32 %v3348, %v909
      %v3354 = vmul.f32 %v3351, %v909
      %v3355 = vsub.f32 %v3338, %v3352
      %v3356 = vsub.f32 %v3339, %v3353
      %v3357 = vsub.f32 %v3340, %v3354
      %v3358 = vmul.f32 %v3355, %v3355
      %v3359 = vmul.f32 %v3356, %v3356
      %v3360 = vmul.f32 %v3357, %v3357
      %v3361 = vsel %vm899, %v3358, 0.0
      %3362 = vadd.xlane.f32.xlu0 %v3361
      %v3363 = vpop.xlane.xlu0 %3362
      %v3364 = vsel %vm899, %v3359, 0.0
      %3365 = vadd.xlane.f32.xlu0 %v3364
      %v3366 = vpop.xlane.xlu0 %3365
      %v3367 = vsel %vm899, %v3360, 0.0
      %3368 = vadd.xlane.f32.xlu0 %v3367
      %v3369 = vpop.xlane.xlu0 %3368
      %v3370 = vmul.f32 %v3363, %v909
      %v3371 = vmul.f32 %v3366, %v909
      %v3372 = vmul.f32 %v3369, %v909
      %v3373 = vadd.f32 %v3370, 1e-06
      %v3374 = vadd.f32 %v3371, 1e-06
      %v3375 = vadd.f32 %v3372, 1e-06
      %v3376 = vrsqrt.pop %v3373
      %v3377 = vrsqrt.pop %v3374
      %v3378 = vrsqrt.pop %v3375
      %v3379 = vmul.f32 %v3355, %v3376
      %v3380 = vmul.f32 %v3356, %v3377
      %v3381 = vmul.f32 %v3357, %v3378
      %v3383 = vlaneseq
      %v3384 = vshrl.u32 %v3383, 7
      %v3385 = vsub.s32 0, %v3384
      %v3386 = vrot.slane %v3341, %v3385
      %v3388 = vmul.f32 %v3379, %v3386
      %v3389 = vmul.f32 %v3380, %v3386
      %v3390 = vmul.f32 %v3381, %v3386
      %v3392 = vlaneseq
      %v3393 = vshrl.u32 %v3392, 7
      %v3394 = vsub.s32 0, %v3393
      %v3395 = vrot.slane %v3342, %v3394
      %v3397 = vadd.f32 %v3388, %v3395
      %v3398 = vadd.f32 %v3389, %v3395
      %v3399 = vadd.f32 %v3390, %v3395
      %v3400 = vld [vmem:[%s16] sm:$0xff]
      %v3401 = vld [vmem:[%s16 + $0x8] sm:$0xff]
      %v3402 = vld [vmem:[%s16 + $0x10] sm:$0xff]
      %v3403 = vld [vmem:[%s16 + $0x18] sm:$0xff]
      %v3404 = vld [vmem:[%s17] sm:$0x1]
      %v3406 = vlaneseq
      %v3407 = vshrl.u32 %v3406, 7
      %v3408 = vsub.s32 0, %v3407
      %v3409 = vrot.slane %v3404, %v3408
      %v3412 = vsel %vm899, %v3397, 0
      %v3415 = vsel %vm899, %v3398, 0
      %v3418 = vsel %vm899, %v3399, 0
      %3420 = vmatprep.subr.mxu0 0.0
      %3421 = vmatpush1.msra.mxu0 %v3400
      %3422 = vmatprep.subr.mxu0 0.0
      %3423 = vmatpush1.msra.mxu0 %v3401
      %3424 = vmatprep.subr.mxu0 0.0
      %3425 = vmatpush1.msra.mxu0 %v3402
      %3426 = vmatprep.subr.mxu0 0.0
      %3427 = vmatpush1.msra.mxu0 %v3403
      %3428 = vmatprep.subr.mxu0 0.0
      %3429 = vmatpush1.msra.mxu0 0.0
      %3430 = vmatprep.subr.mxu0 0.0
      %3431 = vmatpush1.msra.mxu0 0.0
      %3432 = vmatprep.subr.mxu0 0.0
      %3433 = vmatpush1.msra.mxu0 0.0
      %3434 = vmatprep.subr.mxu0 0.0
      %3435 = vmatpush1.msra.mxu0 0.0
      %3436 = vmatprep.subr.mxu0 0.0
      %3437 = vmatpush1.msra.mxu0 0.0
      %3438 = vmatprep.subr.mxu0 0.0
      %3439 = vmatpush1.msra.mxu0 0.0
      %3440 = vmatprep.subr.mxu0 0.0
      %3441 = vmatpush1.msra.mxu0 0.0
      %3442 = vmatprep.subr.mxu0 0.0
      %3443 = vmatpush1.msra.mxu0 0.0
      %3444 = vmatprep.subr.mxu0 0.0
      %3445 = vmatpush1.msra.mxu0 0.0
      %3446 = vmatprep.subr.mxu0 0.0
      %3447 = vmatpush1.msra.mxu0 0.0
      %3448 = vmatprep.subr.mxu0 0.0
      %3449 = vmatpush1.msra.mxu0 0.0
      %3450 = vmatprep.subr.mxu0 0.0
      %3451 = vmatpush1.msra.mxu0 0.0
      %3452 = vmatprep.subr.mxu0 0.0
      %3453 = vmatpush1.msra.mxu0 0.0
      %3454 = vmatprep.subr.mxu0 0.0
      %3455 = vmatpush1.msra.mxu0 0.0
      %3456 = vmatprep.subr.mxu0 0.0
      %3457 = vmatpush1.msra.mxu0 0.0
      %3458 = vmatprep.subr.mxu0 0.0
      %3459 = vmatpush1.msra.mxu0 0.0
      %3460 = vmatprep.subr.mxu0 0.0
      %3461 = vmatpush1.msra.mxu0 0.0
      %3462 = vmatprep.subr.mxu0 0.0
      %3463 = vmatpush1.msra.mxu0 0.0
      %3464 = vmatprep.subr.mxu0 0.0
      %3465 = vmatpush1.msra.mxu0 0.0
      %3466 = vmatprep.subr.mxu0 0.0
      %3467 = vmatpush1.msra.mxu0 0.0
      %3468 = vmatprep.subr.mxu0 0.0
      %3469 = vmatpush1.msra.mxu0 0.0
      %3470 = vmatprep.subr.mxu0 0.0
      %3471 = vmatpush1.msra.mxu0 0.0
      %3472 = vmatprep.subr.mxu0 0.0
      %3473 = vmatpush1.msra.mxu0 0.0
      %3474 = vmatprep.subr.mxu0 0.0
      %3475 = vmatpush1.msra.mxu0 0.0
      %3476 = vmatprep.subr.mxu0 0.0
      %3477 = vmatpush1.msra.mxu0 0.0
      %3478 = vmatprep.subr.mxu0 0.0
      %3479 = vmatpush1.msra.mxu0 0.0
      %3480 = vmatprep.subr.mxu0 0.0
      %3481 = vmatpush1.msra.mxu0 0.0
      %3482 = vmatprep.subr.mxu0 0.0
      %3483 = vmatpush1.msra.mxu0 0.0
      %3484 = vmatprep.mubr.f32.mxu0 0.0
      %3485 = vmatmul.mubr.f32.gmra.mrb[0].mxu0 %v3412
      %v3486 = vpop.f32.mrb[0].mxu0
      %v3487 = vadd.f32 %v3409, %v3486
      %v3488 = vpop.f32.mrb[0].mxu0
      %3489 = vmatprep.mubr.f32.mxu0 0.0
      %3490 = vmatmul.mubr.f32.gmra.mrb[0].mxu0 %v3415
      %v3491 = vpop.f32.mrb[0].mxu0
      %v3492 = vadd.f32 %v3409, %v3491
      %v3493 = vpop.f32.mrb[0].mxu0
      %3494 = vmatprep.mubr.f32.mxu0 0.0
      %3495 = vmatmul.mubr.f32.gmra.mrb[0].mxu0 %v3418
      %v3496 = vpop.f32.mrb[0].mxu0
      %v3497 = vadd.f32 %v3409, %v3496
      %v3498 = vpop.f32.mrb[0].mxu0
      %3499 = vdwg.mxu0
      %v3500 = vmul.f32 %v3487, 0.5
      %v3501 = vmul.f32 %v3492, 0.5
      %v3502 = vmul.f32 %v3497, 0.5
      %v3503 = vmul.f32 %v3487, 0.70710677
      %v3504 = vmul.f32 %v3492, 0.70710677
      %v3505 = vmul.f32 %v3497, 0.70710677
      %v3506 = verf.f32.pop %v3503
      %v3507 = verf.f32.pop %v3504
      %v3508 = verf.f32.pop %v3505
      %v3509 = vadd.f32 %v3506, 1.0
      %v3510 = vadd.f32 %v3507, 1.0
      %v3511 = vadd.f32 %v3508, 1.0
      %v3512 = vmul.f32 %v3500, %v3509
      %v3513 = vmul.f32 %v3501, %v3510
      %v3514 = vmul.f32 %v3502, %v3511
      %v3515 = vld [vmem:[%s18] sm:$0xff]
      %v3516 = vld [vmem:[%s18 + $0x8] sm:$0xff]
      %v3517 = vld [vmem:[%s18 + $0x10] sm:$0xff]
      %v3518 = vld [vmem:[%s18 + $0x18] sm:$0xff]
      %v3519 = vld [vmem:[%s18 + $0x20] sm:$0xff]
      %v3520 = vld [vmem:[%s18 + $0x28] sm:$0xff]
      %v3521 = vld [vmem:[%s18 + $0x30] sm:$0xff]
      %v3522 = vld [vmem:[%s18 + $0x38] sm:$0xff]
      %v3523 = vld [vmem:[%s18 + $0x40] sm:$0xff]
      %v3524 = vld [vmem:[%s18 + $0x48] sm:$0xff]
      %v3525 = vld [vmem:[%s18 + $0x50] sm:$0xff]
      %v3526 = vld [vmem:[%s18 + $0x58] sm:$0xff]
      %v3527 = vld [vmem:[%s18 + $0x60] sm:$0xff]
      %v3528 = vld [vmem:[%s18 + $0x68] sm:$0xff]
      %v3529 = vld [vmem:[%s18 + $0x70] sm:$0xff]
      %v3530 = vld [vmem:[%s18 + $0x78] sm:$0xff]
      %3531 = vmatprep.subr.mxu0 0.0
      %3532 = vmatpush1.msra.mxu0 %v3515
      %3533 = vmatprep.subr.mxu0 0.0
      %3534 = vmatpush1.msra.mxu0 %v3516
      %3535 = vmatprep.subr.mxu0 0.0
      %3536 = vmatpush1.msra.mxu0 %v3517
      %3537 = vmatprep.subr.mxu0 0.0
      %3538 = vmatpush1.msra.mxu0 %v3518
      %3539 = vmatprep.subr.mxu0 0.0
      %3540 = vmatpush1.msra.mxu0 %v3519
      %3541 = vmatprep.subr.mxu0 0.0
      %3542 = vmatpush1.msra.mxu0 %v3520
      %3543 = vmatprep.subr.mxu0 0.0
      %3544 = vmatpush1.msra.mxu0 %v3521
      %3545 = vmatprep.subr.mxu0 0.0
      %3546 = vmatpush1.msra.mxu0 %v3522
      %3547 = vmatprep.subr.mxu0 0.0
      %3548 = vmatpush1.msra.mxu0 %v3523
      %3549 = vmatprep.subr.mxu0 0.0
      %3550 = vmatpush1.msra.mxu0 %v3524
      %3551 = vmatprep.subr.mxu0 0.0
      %3552 = vmatpush1.msra.mxu0 %v3525
      %3553 = vmatprep.subr.mxu0 0.0
      %3554 = vmatpush1.msra.mxu0 %v3526
      %3555 = vmatprep.subr.mxu0 0.0
      %3556 = vmatpush1.msra.mxu0 %v3527
      %3557 = vmatprep.subr.mxu0 0.0
      %3558 = vmatpush1.msra.mxu0 %v3528
      %3559 = vmatprep.subr.mxu0 0.0
      %3560 = vmatpush1.msra.mxu0 %v3529
      %3561 = vmatprep.subr.mxu0 0.0
      %3562 = vmatpush1.msra.mxu0 %v3530
      %3563 = vmatprep.subr.mxu0 0.0
      %3564 = vmatpush1.msra.mxu0 0.0
      %3565 = vmatprep.subr.mxu0 0.0
      %3566 = vmatpush1.msra.mxu0 0.0
      %3567 = vmatprep.subr.mxu0 0.0
      %3568 = vmatpush1.msra.mxu0 0.0
      %3569 = vmatprep.subr.mxu0 0.0
      %3570 = vmatpush1.msra.mxu0 0.0
      %3571 = vmatprep.subr.mxu0 0.0
      %3572 = vmatpush1.msra.mxu0 0.0
      %3573 = vmatprep.subr.mxu0 0.0
      %3574 = vmatpush1.msra.mxu0 0.0
      %3575 = vmatprep.subr.mxu0 0.0
      %3576 = vmatpush1.msra.mxu0 0.0
      %3577 = vmatprep.subr.mxu0 0.0
      %3578 = vmatpush1.msra.mxu0 0.0
      %3579 = vmatprep.subr.mxu0 0.0
      %3580 = vmatpush1.msra.mxu0 0.0
      %3581 = vmatprep.subr.mxu0 0.0
      %3582 = vmatpush1.msra.mxu0 0.0
      %3583 = vmatprep.subr.mxu0 0.0
      %3584 = vmatpush1.msra.mxu0 0.0
      %3585 = vmatprep.subr.mxu0 0.0
      %3586 = vmatpush1.msra.mxu0 0.0
      %3587 = vmatprep.subr.mxu0 0.0
      %3588 = vmatpush1.msra.mxu0 0.0
      %3589 = vmatprep.subr.mxu0 0.0
      %3590 = vmatpush1.msra.mxu0 0.0
      %3591 = vmatprep.subr.mxu0 0.0
      %3592 = vmatpush1.msra.mxu0 0.0
      %3593 = vmatprep.subr.mxu0 0.0
      %3594 = vmatpush1.msra.mxu0 0.0
      %3595 = vmatprep.mubr.f32.mxu0 0.0
      %3596 = vmatmul.mubr.f32.gmra.mrb[0].mxu0 %v3512
      %v3597 = vpop.f32.mrb[0].mxu0
      %v3598 = vadd.f32 0.0, %v3597
      %v3599 = vpop.f32.mrb[0].mxu0
      %3600 = vmatprep.mubr.f32.mxu0 0.0
      %3601 = vmatmul.mubr.f32.gmra.mrb[0].mxu0 %v3513
      %v3602 = vpop.f32.mrb[0].mxu0
      %v3603 = vadd.f32 0.0, %v3602
      %v3604 = vpop.f32.mrb[0].mxu0
      %3605 = vmatprep.mubr.f32.mxu0 0.0
      %3606 = vmatmul.mubr.f32.gmra.mrb[0].mxu0 %v3514
      %v3607 = vpop.f32.mrb[0].mxu0
      %v3608 = vadd.f32 0.0, %v3607
      %v3609 = vpop.f32.mrb[0].mxu0
      %3610 = vdwg.mxu0
      %v3611 = vadd.f32 %v3338, %v3598
      %v3612 = vadd.f32 %v3339, %v3603
      %v3613 = vadd.f32 %v3340, %v3608
      %v3614 = vld [vmem:[%s19] sm:$0x1]
      %v3616 = vlaneseq
      %v3617 = vshrl.u32 %v3616, 7
      %v3618 = vsub.s32 0, %v3617
      %v3619 = vrot.slane %v3614, %v3618
      %v3621 = vadd.f32 %v3611, %v3619
      %v3622 = vadd.f32 %v3612, %v3619
      %v3623 = vadd.f32 %v3613, %v3619
      %s3624 = scalar_lea.vmem %s4, 1
      %v3625 = vld [vmem:[%s3624] sm:$0x1]
      %s3626 = scalar_lea.vmem %s5, 1
      %v3627 = vld [vmem:[%s3626] sm:$0x1]
      %v3628 = vsel %vm899, %v3621, 0.0
      %3629 = vadd.xlane.f32.xlu0 %v3628
      %v3630 = vpop.xlane.xlu0 %3629
      %v3631 = vsel %vm899, %v3622, 0.0
      %3632 = vadd.xlane.f32.xlu0 %v3631
      %v3633 = vpop.xlane.xlu0 %3632
      %v3634 = vsel %vm899, %v3623, 0.0
      %3635 = vadd.xlane.f32.xlu0 %v3634
      %v3636 = vpop.xlane.xlu0 %3635
      %v3637 = vmul.f32 %v3630, %v909
      %v3638 = vmul.f32 %v3633, %v909
      %v3639 = vmul.f32 %v3636, %v909
      %v3640 = vsub.f32 %v3621, %v3637
      %v3641 = vsub.f32 %v3622, %v3638
      %v3642 = vsub.f32 %v3623, %v3639
      %v3643 = vmul.f32 %v3640, %v3640
      %v3644 = vmul.f32 %v3641, %v3641
      %v3645 = vmul.f32 %v3642, %v3642
      %v3646 = vsel %vm899, %v3643, 0.0
      %3647 = vadd.xlane.f32.xlu0 %v3646
      %v3648 = vpop.xlane.xlu0 %3647
      %v3649 = vsel %vm899, %v3644, 0.0
      %3650 = vadd.xlane.f32.xlu0 %v3649
      %v3651 = vpop.xlane.xlu0 %3650
      %v3652 = vsel %vm899, %v3645, 0.0
      %3653 = vadd.xlane.f32.xlu0 %v3652
      %v3654 = vpop.xlane.xlu0 %3653
      %v3655 = vmul.f32 %v3648, %v909
      %v3656 = vmul.f32 %v3651, %v909
      %v3657 = vmul.f32 %v3654, %v909
      %v3658 = vadd.f32 %v3655, 1e-06
      %v3659 = vadd.f32 %v3656, 1e-06
      %v3660 = vadd.f32 %v3657, 1e-06
      %v3661 = vrsqrt.pop %v3658
      %v3662 = vrsqrt.pop %v3659
      %v3663 = vrsqrt.pop %v3660
      %v3664 = vmul.f32 %v3640, %v3661
      %v3665 = vmul.f32 %v3641, %v3662
      %v3666 = vmul.f32 %v3642, %v3663
      %v3668 = vlaneseq
      %v3669 = vshrl.u32 %v3668, 7
      %v3670 = vsub.s32 0, %v3669
      %v3671 = vrot.slane %v3625, %v3670
      %v3673 = vmul.f32 %v3664, %v3671
      %v3674 = vmul.f32 %v3665, %v3671
      %v3675 = vmul.f32 %v3666, %v3671
      %v3677 = vlaneseq
      %v3678 = vshrl.u32 %v3677, 7
      %v3679 = vsub.s32 0, %v3678
      %v3680 = vrot.slane %v3627, %v3679
      %v3682 = vadd.f32 %v3673, %v3680
      %v3683 = vadd.f32 %v3674, %v3680
      %v3684 = vadd.f32 %v3675, %v3680
      %s3685 = scalar_lea.vmem %s6, 128
      %v3686 = vld [vmem:[%s3685] sm:$0xff]
      %v3687 = vld [vmem:[%s3685 + $0x8] sm:$0xff]
      %v3688 = vld [vmem:[%s3685 + $0x10] sm:$0xff]
      %v3689 = vld [vmem:[%s3685 + $0x18] sm:$0xff]
      %s3690 = scalar_lea.vmem %s9, 4
      %v3691 = vld [vmem:[%s3690] sm:$0x1]
      %v3693 = vlaneseq
      %v3694 = vshrl.u32 %v3693, 7
      %v3695 = vsub.s32 0, %v3694
      %v3696 = vrot.slane %v3691, %v3695
      %v3699 = vsel %vm899, %v3682, 0
      %v3702 = vsel %vm899, %v3683, 0
      %v3705 = vsel %vm899, %v3684, 0
      %3707 = vmatprep.subr.mxu0 0.0
      %3708 = vmatpush1.msra.mxu0 %v3686
      %3709 = vmatprep.subr.mxu0 0.0
      %3710 = vmatpush1.msra.mxu0 %v3687
      %3711 = vmatprep.subr.mxu0 0.0
      %3712 = vmatpush1.msra.mxu0 %v3688
      %3713 = vmatprep.subr.mxu0 0.0
      %3714 = vmatpush1.msra.mxu0 %v3689
      %3715 = vmatprep.subr.mxu0 0.0
      %3716 = vmatpush1.msra.mxu0 0.0
      %3717 = vmatprep.subr.mxu0 0.0
      %3718 = vmatpush1.msra.mxu0 0.0
      %3719 = vmatprep.subr.mxu0 0.0
      %3720 = vmatpush1.msra.mxu0 0.0
      %3721 = vmatprep.subr.mxu0 0.0
      %3722 = vmatpush1.msra.mxu0 0.0
      %3723 = vmatprep.subr.mxu0 0.0
      %3724 = vmatpush1.msra.mxu0 0.0
      %3725 = vmatprep.subr.mxu0 0.0
      %3726 = vmatpush1.msra.mxu0 0.0
      %3727 = vmatprep.subr.mxu0 0.0
      %3728 = vmatpush1.msra.mxu0 0.0
      %3729 = vmatprep.subr.mxu0 0.0
      %3730 = vmatpush1.msra.mxu0 0.0
      %3731 = vmatprep.subr.mxu0 0.0
      %3732 = vmatpush1.msra.mxu0 0.0
      %3733 = vmatprep.subr.mxu0 0.0
      %3734 = vmatpush1.msra.mxu0 0.0
      %3735 = vmatprep.subr.mxu0 0.0
      %3736 = vmatpush1.msra.mxu0 0.0
      %3737 = vmatprep.subr.mxu0 0.0
      %3738 = vmatpush1.msra.mxu0 0.0
      %3739 = vmatprep.subr.mxu0 0.0
      %3740 = vmatpush1.msra.mxu0 0.0
      %3741 = vmatprep.subr.mxu0 0.0
      %3742 = vmatpush1.msra.mxu0 0.0
      %3743 = vmatprep.subr.mxu0 0.0
      %3744 = vmatpush1.msra.mxu0 0.0
      %3745 = vmatprep.subr.mxu0 0.0
      %3746 = vmatpush1.msra.mxu0 0.0
      %3747 = vmatprep.subr.mxu0 0.0
      %3748 = vmatpush1.msra.mxu0 0.0
      %3749 = vmatprep.subr.mxu0 0.0
      %3750 = vmatpush1.msra.mxu0 0.0
      %3751 = vmatprep.subr.mxu0 0.0
      %3752 = vmatpush1.msra.mxu0 0.0
      %3753 = vmatprep.subr.mxu0 0.0
      %3754 = vmatpush1.msra.mxu0 0.0
      %3755 = vmatprep.subr.mxu0 0.0
      %3756 = vmatpush1.msra.mxu0 0.0
      %3757 = vmatprep.subr.mxu0 0.0
      %3758 = vmatpush1.msra.mxu0 0.0
      %3759 = vmatprep.subr.mxu0 0.0
      %3760 = vmatpush1.msra.mxu0 0.0
      %3761 = vmatprep.subr.mxu0 0.0
      %3762 = vmatpush1.msra.mxu0 0.0
      %3763 = vmatprep.subr.mxu0 0.0
      %3764 = vmatpush1.msra.mxu0 0.0
      %3765 = vmatprep.subr.mxu0 0.0
      %3766 = vmatpush1.msra.mxu0 0.0
      %3767 = vmatprep.subr.mxu0 0.0
      %3768 = vmatpush1.msra.mxu0 0.0
      %3769 = vmatprep.subr.mxu0 0.0
      %3770 = vmatpush1.msra.mxu0 0.0
      %3771 = vmatprep.mubr.f32.mxu0 0.0
      %3772 = vmatmul.mubr.f32.gmra.mrb[0].mxu0 %v3699
      %v3773 = vpop.f32.mrb[0].mxu0
      %v3774 = vadd.f32 %v3696, %v3773
      %v3775 = vpop.f32.mrb[0].mxu0
      %3776 = vmatprep.mubr.f32.mxu0 0.0
      %3777 = vmatmul.mubr.f32.gmra.mrb[0].mxu0 %v3702
      %v3778 = vpop.f32.mrb[0].mxu0
      %v3779 = vadd.f32 %v3696, %v3778
      %v3780 = vpop.f32.mrb[0].mxu0
      %3781 = vmatprep.mubr.f32.mxu0 0.0
      %3782 = vmatmul.mubr.f32.gmra.mrb[0].mxu0 %v3705
      %v3783 = vpop.f32.mrb[0].mxu0
      %v3784 = vadd.f32 %v3696, %v3783
      %v3785 = vpop.f32.mrb[0].mxu0
      %3786 = vdwg.mxu0
      %s3787 = scalar_lea.vmem %s7, 128
      %v3788 = vld [vmem:[%s3787] sm:$0xff]
      %v3789 = vld [vmem:[%s3787 + $0x8] sm:$0xff]
      %v3790 = vld [vmem:[%s3787 + $0x10] sm:$0xff]
      %v3791 = vld [vmem:[%s3787 + $0x18] sm:$0xff]
      %s3792 = scalar_lea.vmem %s10, 4
      %v3793 = vld [vmem:[%s3792] sm:$0x1]
      %v3795 = vlaneseq
      %v3796 = vshrl.u32 %v3795, 7
      %v3797 = vsub.s32 0, %v3796
      %v3798 = vrot.slane %v3793, %v3797
      %3800 = vmatprep.subr.mxu0 0.0
      %3801 = vmatpush1.msra.mxu0 %v3788
      %3802 = vmatprep.subr.mxu0 0.0
      %3803 = vmatpush1.msra.mxu0 %v3789
      %3804 = vmatprep.subr.mxu0 0.0
      %3805 = vmatpush1.msra.mxu0 %v3790
      %3806 = vmatprep.subr.mxu0 0.0
      %3807 = vmatpush1.msra.mxu0 %v3791
      %3808 = vmatprep.subr.mxu0 0.0
      %3809 = vmatpush1.msra.mxu0 0.0
      %3810 = vmatprep.subr.mxu0 0.0
      %3811 = vmatpush1.msra.mxu0 0.0
      %3812 = vmatprep.subr.mxu0 0.0
      %3813 = vmatpush1.msra.mxu0 0.0
      %3814 = vmatprep.subr.mxu0 0.0
      %3815 = vmatpush1.msra.mxu0 0.0
      %3816 = vmatprep.subr.mxu0 0.0
      %3817 = vmatpush1.msra.mxu0 0.0
      %3818 = vmatprep.subr.mxu0 0.0
      %3819 = vmatpush1.msra.mxu0 0.0
      %3820 = vmatprep.subr.mxu0 0.0
      %3821 = vmatpush1.msra.mxu0 0.0
      %3822 = vmatprep.subr.mxu0 0.0
      %3823 = vmatpush1.msra.mxu0 0.0
      %3824 = vmatprep.subr.mxu0 0.0
      %3825 = vmatpush1.msra.mxu0 0.0
      %3826 = vmatprep.subr.mxu0 0.0
      %3827 = vmatpush1.msra.mxu0 0.0
      %3828 = vmatprep.subr.mxu0 0.0
      %3829 = vmatpush1.msra.mxu0 0.0
      %3830 = vmatprep.subr.mxu0 0.0
      %3831 = vmatpush1.msra.mxu0 0.0
      %3832 = vmatprep.subr.mxu0 0.0
      %3833 = vmatpush1.msra.mxu0 0.0
      %3834 = vmatprep.subr.mxu0 0.0
      %3835 = vmatpush1.msra.mxu0 0.0
      %3836 = vmatprep.subr.mxu0 0.0
      %3837 = vmatpush1.msra.mxu0 0.0
      %3838 = vmatprep.subr.mxu0 0.0
      %3839 = vmatpush1.msra.mxu0 0.0
      %3840 = vmatprep.subr.mxu0 0.0
      %3841 = vmatpush1.msra.mxu0 0.0
      %3842 = vmatprep.subr.mxu0 0.0
      %3843 = vmatpush1.msra.mxu0 0.0
      %3844 = vmatprep.subr.mxu0 0.0
      %3845 = vmatpush1.msra.mxu0 0.0
      %3846 = vmatprep.subr.mxu0 0.0
      %3847 = vmatpush1.msra.mxu0 0.0
      %3848 = vmatprep.subr.mxu0 0.0
      %3849 = vmatpush1.msra.mxu0 0.0
      %3850 = vmatprep.subr.mxu0 0.0
      %3851 = vmatpush1.msra.mxu0 0.0
      %3852 = vmatprep.subr.mxu0 0.0
      %3853 = vmatpush1.msra.mxu0 0.0
      %3854 = vmatprep.subr.mxu0 0.0
      %3855 = vmatpush1.msra.mxu0 0.0
      %3856 = vmatprep.subr.mxu0 0.0
      %3857 = vmatpush1.msra.mxu0 0.0
      %3858 = vmatprep.subr.mxu0 0.0
      %3859 = vmatpush1.msra.mxu0 0.0
      %3860 = vmatprep.subr.mxu0 0.0
      %3861 = vmatpush1.msra.mxu0 0.0
      %3862 = vmatprep.subr.mxu0 0.0
      %3863 = vmatpush1.msra.mxu0 0.0
      %3864 = vmatprep.mubr.f32.mxu0 0.0
      %3865 = vmatmul.mubr.f32.gmra.mrb[0].mxu0 %v3699
      %v3866 = vpop.f32.mrb[0].mxu0
      %v3867 = vadd.f32 %v3798, %v3866
      %v3868 = vpop.f32.mrb[0].mxu0
      %3869 = vmatprep.mubr.f32.mxu0 0.0
      %3870 = vmatmul.mubr.f32.gmra.mrb[0].mxu0 %v3702
      %v3871 = vpop.f32.mrb[0].mxu0
      %v3872 = vadd.f32 %v3798, %v3871
      %v3873 = vpop.f32.mrb[0].mxu0
      %3874 = vmatprep.mubr.f32.mxu0 0.0
      %3875 = vmatmul.mubr.f32.gmra.mrb[0].mxu0 %v3705
      %v3876 = vpop.f32.mrb[0].mxu0
      %v3877 = vadd.f32 %v3798, %v3876
      %v3878 = vpop.f32.mrb[0].mxu0
      %3879 = vdwg.mxu0
      %s3880 = scalar_lea.vmem %s8, 128
      %v3881 = vld [vmem:[%s3880] sm:$0xff]
      %v3882 = vld [vmem:[%s3880 + $0x8] sm:$0xff]
      %v3883 = vld [vmem:[%s3880 + $0x10] sm:$0xff]
      %v3884 = vld [vmem:[%s3880 + $0x18] sm:$0xff]
      %s3885 = scalar_lea.vmem %s11, 4
      %v3886 = vld [vmem:[%s3885] sm:$0x1]
      %v3888 = vlaneseq
      %v3889 = vshrl.u32 %v3888, 7
      %v3890 = vsub.s32 0, %v3889
      %v3891 = vrot.slane %v3886, %v3890
      %3893 = vmatprep.subr.mxu0 0.0
      %3894 = vmatpush1.msra.mxu0 %v3881
      %3895 = vmatprep.subr.mxu0 0.0
      %3896 = vmatpush1.msra.mxu0 %v3882
      %3897 = vmatprep.subr.mxu0 0.0
      %3898 = vmatpush1.msra.mxu0 %v3883
      %3899 = vmatprep.subr.mxu0 0.0
      %3900 = vmatpush1.msra.mxu0 %v3884
      %3901 = vmatprep.subr.mxu0 0.0
      %3902 = vmatpush1.msra.mxu0 0.0
      %3903 = vmatprep.subr.mxu0 0.0
      %3904 = vmatpush1.msra.mxu0 0.0
      %3905 = vmatprep.subr.mxu0 0.0
      %3906 = vmatpush1.msra.mxu0 0.0
      %3907 = vmatprep.subr.mxu0 0.0
      %3908 = vmatpush1.msra.mxu0 0.0
      %3909 = vmatprep.subr.mxu0 0.0
      %3910 = vmatpush1.msra.mxu0 0.0
      %3911 = vmatprep.subr.mxu0 0.0
      %3912 = vmatpush1.msra.mxu0 0.0
      %3913 = vmatprep.subr.mxu0 0.0
      %3914 = vmatpush1.msra.mxu0 0.0
      %3915 = vmatprep.subr.mxu0 0.0
      %3916 = vmatpush1.msra.mxu0 0.0
      %3917 = vmatprep.subr.mxu0 0.0
      %3918 = vmatpush1.msra.mxu0 0.0
      %3919 = vmatprep.subr.mxu0 0.0
      %3920 = vmatpush1.msra.mxu0 0.0
      %3921 = vmatprep.subr.mxu0 0.0
      %3922 = vmatpush1.msra.mxu0 0.0
      %3923 = vmatprep.subr.mxu0 0.0
      %3924 = vmatpush1.msra.mxu0 0.0
      %3925 = vmatprep.subr.mxu0 0.0
      %3926 = vmatpush1.msra.mxu0 0.0
      %3927 = vmatprep.subr.mxu0 0.0
      %3928 = vmatpush1.msra.mxu0 0.0
      %3929 = vmatprep.subr.mxu0 0.0
      %3930 = vmatpush1.msra.mxu0 0.0
      %3931 = vmatprep.subr.mxu0 0.0
      %3932 = vmatpush1.msra.mxu0 0.0
      %3933 = vmatprep.subr.mxu0 0.0
      %3934 = vmatpush1.msra.mxu0 0.0
      %3935 = vmatprep.subr.mxu0 0.0
      %3936 = vmatpush1.msra.mxu0 0.0
      %3937 = vmatprep.subr.mxu0 0.0
      %3938 = vmatpush1.msra.mxu0 0.0
      %3939 = vmatprep.subr.mxu0 0.0
      %3940 = vmatpush1.msra.mxu0 0.0
      %3941 = vmatprep.subr.mxu0 0.0
      %3942 = vmatpush1.msra.mxu0 0.0
      %3943 = vmatprep.subr.mxu0 0.0
      %3944 = vmatpush1.msra.mxu0 0.0
      %3945 = vmatprep.subr.mxu0 0.0
      %3946 = vmatpush1.msra.mxu0 0.0
      %3947 = vmatprep.subr.mxu0 0.0
      %3948 = vmatpush1.msra.mxu0 0.0
      %3949 = vmatprep.subr.mxu0 0.0
      %3950 = vmatpush1.msra.mxu0 0.0
      %3951 = vmatprep.subr.mxu0 0.0
      %3952 = vmatpush1.msra.mxu0 0.0
      %3953 = vmatprep.subr.mxu0 0.0
      %3954 = vmatpush1.msra.mxu0 0.0
      %3955 = vmatprep.subr.mxu0 0.0
      %3956 = vmatpush1.msra.mxu0 0.0
      %3957 = vmatprep.mubr.f32.mxu0 0.0
      %3958 = vmatmul.mubr.f32.gmra.mrb[0].mxu0 %v3699
      %v3959 = vpop.f32.mrb[0].mxu0
      %v3960 = vadd.f32 %v3891, %v3959
      %v3961 = vpop.f32.mrb[0].mxu0
      %3962 = vmatprep.mubr.f32.mxu0 0.0
      %3963 = vmatmul.mubr.f32.gmra.mrb[0].mxu0 %v3702
      %v3964 = vpop.f32.mrb[0].mxu0
      %v3965 = vadd.f32 %v3891, %v3964
      %v3966 = vpop.f32.mrb[0].mxu0
      %3967 = vmatprep.mubr.f32.mxu0 0.0
      %3968 = vmatmul.mubr.f32.gmra.mrb[0].mxu0 %v3705
      %v3969 = vpop.f32.mrb[0].mxu0
      %v3970 = vadd.f32 %v3891, %v3969
      %v3971 = vpop.f32.mrb[0].mxu0
      %3972 = vdwg.mxu0
      %v3974 = vsel %vm1240, %v3774, 0
      %v3977 = vsel %vm1240, %v3779, 0
      %v3980 = vsel %vm1240, %v3784, 0
      %v3983 = vsel %vm1240, %v3867, 0
      %v3986 = vsel %vm1240, %v3872, 0
      %v3989 = vsel %vm1240, %v3877, 0
      %3991 = vmatprep.subr.mxu0 0.0
      %3992 = vmatpush1.xpose.msra.mxu0 %v3983
      %3993 = vmatprep.subr.mxu0 0.0
      %3994 = vmatpush1.xpose.msra.mxu0 %v3986
      %3995 = vmatprep.subr.mxu0 0.0
      %3996 = vmatpush1.xpose.msra.mxu0 %v3989
      %3997 = vmatprep.subr.mxu0 0.0
      %3998 = vmatpush1.xpose.msra.mxu0 0.0
      %3999 = vmatprep.subr.mxu0 0.0
      %4000 = vmatpush1.xpose.msra.mxu0 0.0
      %4001 = vmatprep.subr.mxu0 0.0
      %4002 = vmatpush1.xpose.msra.mxu0 0.0
      %4003 = vmatprep.subr.mxu0 0.0
      %4004 = vmatpush1.xpose.msra.mxu0 0.0
      %4005 = vmatprep.subr.mxu0 0.0
      %4006 = vmatpush1.xpose.msra.mxu0 0.0
      %4007 = vmatprep.subr.mxu0 0.0
      %4008 = vmatpush1.xpose.msra.mxu0 0.0
      %4009 = vmatprep.subr.mxu0 0.0
      %4010 = vmatpush1.xpose.msra.mxu0 0.0
      %4011 = vmatprep.subr.mxu0 0.0
      %4012 = vmatpush1.xpose.msra.mxu0 0.0
      %4013 = vmatprep.subr.mxu0 0.0
      %4014 = vmatpush1.xpose.msra.mxu0 0.0
      %4015 = vmatprep.subr.mxu0 0.0
      %4016 = vmatpush1.xpose.msra.mxu0 0.0
      %4017 = vmatprep.subr.mxu0 0.0
      %4018 = vmatpush1.xpose.msra.mxu0 0.0
      %4019 = vmatprep.subr.mxu0 0.0
      %4020 = vmatpush1.xpose.msra.mxu0 0.0
      %4021 = vmatprep.subr.mxu0 0.0
      %4022 = vmatpush1.xpose.msra.mxu0 0.0
      %4023 = vmatprep.subr.mxu0 0.0
      %4024 = vmatpush1.xpose.msra.mxu0 0.0
      %4025 = vmatprep.subr.mxu0 0.0
      %4026 = vmatpush1.xpose.msra.mxu0 0.0
      %4027 = vmatprep.subr.mxu0 0.0
      %4028 = vmatpush1.xpose.msra.mxu0 0.0
      %4029 = vmatprep.subr.mxu0 0.0
      %4030 = vmatpush1.xpose.msra.mxu0 0.0
      %4031 = vmatprep.subr.mxu0 0.0
      %4032 = vmatpush1.xpose.msra.mxu0 0.0
      %4033 = vmatprep.subr.mxu0 0.0
      %4034 = vmatpush1.xpose.msra.mxu0 0.0
      %4035 = vmatprep.subr.mxu0 0.0
      %4036 = vmatpush1.xpose.msra.mxu0 0.0
      %4037 = vmatprep.subr.mxu0 0.0
      %4038 = vmatpush1.xpose.msra.mxu0 0.0
      %4039 = vmatprep.subr.mxu0 0.0
      %4040 = vmatpush1.xpose.msra.mxu0 0.0
      %4041 = vmatprep.subr.mxu0 0.0
      %4042 = vmatpush1.xpose.msra.mxu0 0.0
      %4043 = vmatprep.subr.mxu0 0.0
      %4044 = vmatpush1.xpose.msra.mxu0 0.0
      %4045 = vmatprep.subr.mxu0 0.0
      %4046 = vmatpush1.xpose.msra.mxu0 0.0
      %4047 = vmatprep.subr.mxu0 0.0
      %4048 = vmatpush1.xpose.msra.mxu0 0.0
      %4049 = vmatprep.subr.mxu0 0.0
      %4050 = vmatpush1.xpose.msra.mxu0 0.0
      %4051 = vmatprep.subr.mxu0 0.0
      %4052 = vmatpush1.xpose.msra.mxu0 0.0
      %4053 = vmatprep.subr.mxu0 0.0
      %4054 = vmatpush1.xpose.msra.mxu0 0.0
      %4055 = vmatprep.mubr.f32.mxu0 0.0
      %4056 = vmatmul.mubr.f32.gmra.mrb[0].mxu0 %v3974
      %v4057 = vpop.f32.mrb[0].mxu0
      %v4058 = vadd.f32 %v896, %v4057
      %v4059 = vpop.f32.mrb[0].mxu0
      %4060 = vmatprep.mubr.f32.mxu0 0.0
      %4061 = vmatmul.mubr.f32.gmra.mrb[0].mxu0 %v3977
      %v4062 = vpop.f32.mrb[0].mxu0
      %v4063 = vadd.f32 %v896, %v4062
      %v4064 = vpop.f32.mrb[0].mxu0
      %4065 = vmatprep.mubr.f32.mxu0 0.0
      %4066 = vmatmul.mubr.f32.gmra.mrb[0].mxu0 %v3980
      %v4067 = vpop.f32.mrb[0].mxu0
      %v4068 = vadd.f32 %v896, %v4067
      %v4069 = vpop.f32.mrb[0].mxu0
      %4070 = vdwg.mxu0
      %v4071 = vsel %vm1339, %v4058, -inf
      %4072 = vmax.xlane.f32.xlu0 %v4071
      %v4073 = vpop.xlane.xlu0 %4072
      %v4074 = vsel %vm1339, %v4063, -inf
      %4075 = vmax.xlane.f32.xlu0 %v4074
      %v4076 = vpop.xlane.xlu0 %4075
      %v4077 = vsel %vm1339, %v4068, -inf
      %4078 = vmax.xlane.f32.xlu0 %v4077
      %v4079 = vpop.xlane.xlu0 %4078
      %v4080 = vsub.f32 %v4058, %v4073
      %v4081 = vsub.f32 %v4063, %v4076
      %v4082 = vsub.f32 %v4068, %v4079
      %v4083 = vmul.f32 %v4080, 1.442695
      %v4084 = vpow.pop %v4083
      %v4085 = vmul.f32 %v4081, 1.442695
      %v4086 = vpow.pop %v4085
      %v4087 = vmul.f32 %v4082, 1.442695
      %v4088 = vpow.pop %v4087
      %v4090 = vsel %vm1339, %v4084, 0
      %v4093 = vsel %vm1339, %v4086, 0
      %v4096 = vsel %vm1339, %v4088, 0
      %4098 = vmatprep.subr.mxu0 0.0
      %4099 = vmatpush1.msra.mxu0 %v3960
      %4100 = vmatprep.subr.mxu0 0.0
      %4101 = vmatpush1.msra.mxu0 %v3965
      %4102 = vmatprep.subr.mxu0 0.0
      %4103 = vmatpush1.msra.mxu0 %v3970
      %4104 = vmatprep.subr.mxu0 0.0
      %4105 = vmatpush1.msra.mxu0 0.0
      %4106 = vmatprep.subr.mxu0 0.0
      %4107 = vmatpush1.msra.mxu0 0.0
      %4108 = vmatprep.subr.mxu0 0.0
      %4109 = vmatpush1.msra.mxu0 0.0
      %4110 = vmatprep.subr.mxu0 0.0
      %4111 = vmatpush1.msra.mxu0 0.0
      %4112 = vmatprep.subr.mxu0 0.0
      %4113 = vmatpush1.msra.mxu0 0.0
      %4114 = vmatprep.subr.mxu0 0.0
      %4115 = vmatpush1.msra.mxu0 0.0
      %4116 = vmatprep.subr.mxu0 0.0
      %4117 = vmatpush1.msra.mxu0 0.0
      %4118 = vmatprep.subr.mxu0 0.0
      %4119 = vmatpush1.msra.mxu0 0.0
      %4120 = vmatprep.subr.mxu0 0.0
      %4121 = vmatpush1.msra.mxu0 0.0
      %4122 = vmatprep.subr.mxu0 0.0
      %4123 = vmatpush1.msra.mxu0 0.0
      %4124 = vmatprep.subr.mxu0 0.0
      %4125 = vmatpush1.msra.mxu0 0.0
      %4126 = vmatprep.subr.mxu0 0.0
      %4127 = vmatpush1.msra.mxu0 0.0
      %4128 = vmatprep.subr.mxu0 0.0
      %4129 = vmatpush1.msra.mxu0 0.0
      %4130 = vmatprep.subr.mxu0 0.0
      %4131 = vmatpush1.msra.mxu0 0.0
      %4132 = vmatprep.subr.mxu0 0.0
      %4133 = vmatpush1.msra.mxu0 0.0
      %4134 = vmatprep.subr.mxu0 0.0
      %4135 = vmatpush1.msra.mxu0 0.0
      %4136 = vmatprep.subr.mxu0 0.0
      %4137 = vmatpush1.msra.mxu0 0.0
      %4138 = vmatprep.subr.mxu0 0.0
      %4139 = vmatpush1.msra.mxu0 0.0
      %4140 = vmatprep.subr.mxu0 0.0
      %4141 = vmatpush1.msra.mxu0 0.0
      %4142 = vmatprep.subr.mxu0 0.0
      %4143 = vmatpush1.msra.mxu0 0.0
      %4144 = vmatprep.subr.mxu0 0.0
      %4145 = vmatpush1.msra.mxu0 0.0
      %4146 = vmatprep.subr.mxu0 0.0
      %4147 = vmatpush1.msra.mxu0 0.0
      %4148 = vmatprep.subr.mxu0 0.0
      %4149 = vmatpush1.msra.mxu0 0.0
      %4150 = vmatprep.subr.mxu0 0.0
      %4151 = vmatpush1.msra.mxu0 0.0
      %4152 = vmatprep.subr.mxu0 0.0
      %4153 = vmatpush1.msra.mxu0 0.0
      %4154 = vmatprep.subr.mxu0 0.0
      %4155 = vmatpush1.msra.mxu0 0.0
      %4156 = vmatprep.subr.mxu0 0.0
      %4157 = vmatpush1.msra.mxu0 0.0
      %4158 = vmatprep.subr.mxu0 0.0
      %4159 = vmatpush1.msra.mxu0 0.0
      %4160 = vmatprep.subr.mxu0 0.0
      %4161 = vmatpush1.msra.mxu0 0.0
      %4162 = vmatprep.mubr.f32.mxu0 0.0
      %4163 = vmatmul.mubr.f32.gmra.mrb[0].mxu0 %v4090
      %v4164 = vpop.f32.mrb[0].mxu0
      %v4165 = vadd.f32 0.0, %v4164
      %v4166 = vpop.f32.mrb[0].mxu0
      %4167 = vmatprep.mubr.f32.mxu0 0.0
      %4168 = vmatmul.mubr.f32.gmra.mrb[0].mxu0 %v4093
      %v4169 = vpop.f32.mrb[0].mxu0
      %v4170 = vadd.f32 0.0, %v4169
      %v4171 = vpop.f32.mrb[0].mxu0
      %4172 = vmatprep.mubr.f32.mxu0 0.0
      %4173 = vmatmul.mubr.f32.gmra.mrb[0].mxu0 %v4096
      %v4174 = vpop.f32.mrb[0].mxu0
      %v4175 = vadd.f32 0.0, %v4174
      %v4176 = vpop.f32.mrb[0].mxu0
      %4177 = vdwg.mxu0
      %v4178 = vsel %vm1339, %v4084, 0.0
      %4179 = vadd.xlane.f32.xlu0 %v4178
      %v4180 = vpop.xlane.xlu0 %4179
      %v4181 = vsel %vm1339, %v4086, 0.0
      %4182 = vadd.xlane.f32.xlu0 %v4181
      %v4183 = vpop.xlane.xlu0 %4182
      %v4184 = vsel %vm1339, %v4088, 0.0
      %4185 = vadd.xlane.f32.xlu0 %v4184
      %v4186 = vpop.xlane.xlu0 %4185
      %v4187 = vrcp.pop %v4180
      %v4188 = vrcp.pop %v4183
      %v4189 = vrcp.pop %v4186
      %v4190 = vmul.f32 %v4165, %v4187
      %v4191 = vmul.f32 %v4170, %v4188
      %v4192 = vmul.f32 %v4175, %v4189
      %s4193 = scalar_lea.vmem %s12, 32
      %v4194 = vld [vmem:[%s4193] sm:$0xff]
      %s4195 = scalar_lea.vmem %s6, 160
      %v4196 = vld [vmem:[%s4195] sm:$0xff]
      %v4197 = vld [vmem:[%s4195 + $0x8] sm:$0xff]
      %v4198 = vld [vmem:[%s4195 + $0x10] sm:$0xff]
      %v4199 = vld [vmem:[%s4195 + $0x18] sm:$0xff]
      %s4200 = scalar_lea.vmem %s9, 5
      %v4201 = vld [vmem:[%s4200] sm:$0x1]
      %v4203 = vlaneseq
      %v4204 = vshrl.u32 %v4203, 7
      %v4205 = vsub.s32 0, %v4204
      %v4206 = vrot.slane %v4201, %v4205
      %4208 = vmatprep.subr.mxu0 0.0
      %4209 = vmatpush1.msra.mxu0 %v4196
      %4210 = vmatprep.subr.mxu0 0.0
      %4211 = vmatpush1.msra.mxu0 %v4197
      %4212 = vmatprep.subr.mxu0 0.0
      %4213 = vmatpush1.msra.mxu0 %v4198
      %4214 = vmatprep.subr.mxu0 0.0
      %4215 = vmatpush1.msra.mxu0 %v4199
      %4216 = vmatprep.subr.mxu0 0.0
      %4217 = vmatpush1.msra.mxu0 0.0
      %4218 = vmatprep.subr.mxu0 0.0
      %4219 = vmatpush1.msra.mxu0 0.0
      %4220 = vmatprep.subr.mxu0 0.0
      %4221 = vmatpush1.msra.mxu0 0.0
      %4222 = vmatprep.subr.mxu0 0.0
      %4223 = vmatpush1.msra.mxu0 0.0
      %4224 = vmatprep.subr.mxu0 0.0
      %4225 = vmatpush1.msra.mxu0 0.0
      %4226 = vmatprep.subr.mxu0 0.0
      %4227 = vmatpush1.msra.mxu0 0.0
      %4228 = vmatprep.subr.mxu0 0.0
      %4229 = vmatpush1.msra.mxu0 0.0
      %4230 = vmatprep.subr.mxu0 0.0
      %4231 = vmatpush1.msra.mxu0 0.0
      %4232 = vmatprep.subr.mxu0 0.0
      %4233 = vmatpush1.msra.mxu0 0.0
      %4234 = vmatprep.subr.mxu0 0.0
      %4235 = vmatpush1.msra.mxu0 0.0
      %4236 = vmatprep.subr.mxu0 0.0
      %4237 = vmatpush1.msra.mxu0 0.0
      %4238 = vmatprep.subr.mxu0 0.0
      %4239 = vmatpush1.msra.mxu0 0.0
      %4240 = vmatprep.subr.mxu0 0.0
      %4241 = vmatpush1.msra.mxu0 0.0
      %4242 = vmatprep.subr.mxu0 0.0
      %4243 = vmatpush1.msra.mxu0 0.0
      %4244 = vmatprep.subr.mxu0 0.0
      %4245 = vmatpush1.msra.mxu0 0.0
      %4246 = vmatprep.subr.mxu0 0.0
      %4247 = vmatpush1.msra.mxu0 0.0
      %4248 = vmatprep.subr.mxu0 0.0
      %4249 = vmatpush1.msra.mxu0 0.0
      %4250 = vmatprep.subr.mxu0 0.0
      %4251 = vmatpush1.msra.mxu0 0.0
      %4252 = vmatprep.subr.mxu0 0.0
      %4253 = vmatpush1.msra.mxu0 0.0
      %4254 = vmatprep.subr.mxu0 0.0
      %4255 = vmatpush1.msra.mxu0 0.0
      %4256 = vmatprep.subr.mxu0 0.0
      %4257 = vmatpush1.msra.mxu0 0.0
      %4258 = vmatprep.subr.mxu0 0.0
      %4259 = vmatpush1.msra.mxu0 0.0
      %4260 = vmatprep.subr.mxu0 0.0
      %4261 = vmatpush1.msra.mxu0 0.0
      %4262 = vmatprep.subr.mxu0 0.0
      %4263 = vmatpush1.msra.mxu0 0.0
      %4264 = vmatprep.subr.mxu0 0.0
      %4265 = vmatpush1.msra.mxu0 0.0
      %4266 = vmatprep.subr.mxu0 0.0
      %4267 = vmatpush1.msra.mxu0 0.0
      %4268 = vmatprep.subr.mxu0 0.0
      %4269 = vmatpush1.msra.mxu0 0.0
      %4270 = vmatprep.subr.mxu0 0.0
      %4271 = vmatpush1.msra.mxu0 0.0
      %4272 = vmatprep.mubr.f32.mxu0 0.0
      %4273 = vmatmul.mubr.f32.gmra.mrb[0].mxu0 %v3699
      %v4274 = vpop.f32.mrb[0].mxu0
      %v4275 = vadd.f32 %v4206, %v4274
      %v4276 = vpop.f32.mrb[0].mxu0
      %4277 = vmatprep.mubr.f32.mxu0 0.0
      %4278 = vmatmul.mubr.f32.gmra.mrb[0].mxu0 %v3702
      %v4279 = vpop.f32.mrb[0].mxu0
      %v4280 = vadd.f32 %v4206, %v4279
      %v4281 = vpop.f32.mrb[0].mxu0
      %4282 = vmatprep.mubr.f32.mxu0 0.0
      %4283 = vmatmul.mubr.f32.gmra.mrb[0].mxu0 %v3705
      %v4284 = vpop.f32.mrb[0].mxu0
      %v4285 = vadd.f32 %v4206, %v4284
      %v4286 = vpop.f32.mrb[0].mxu0
      %4287 = vdwg.mxu0
      %s4288 = scalar_lea.vmem %s7, 160
      %v4289 = vld [vmem:[%s4288] sm:$0xff]
      %v4290 = vld [vmem:[%s4288 + $0x8] sm:$0xff]
      %v4291 = vld [vmem:[%s4288 + $0x10] sm:$0xff]
      %v4292 = vld [vmem:[%s4288 + $0x18] sm:$0xff]
      %s4293 = scalar_lea.vmem %s10, 5
      %v4294 = vld [vmem:[%s4293] sm:$0x1]
      %v4296 = vlaneseq
      %v4297 = vshrl.u32 %v4296, 7
      %v4298 = vsub.s32 0, %v4297
      %v4299 = vrot.slane %v4294, %v4298
      %4301 = vmatprep.subr.mxu0 0.0
      %4302 = vmatpush1.msra.mxu0 %v4289
      %4303 = vmatprep.subr.mxu0 0.0
      %4304 = vmatpush1.msra.mxu0 %v4290
      %4305 = vmatprep.subr.mxu0 0.0
      %4306 = vmatpush1.msra.mxu0 %v4291
      %4307 = vmatprep.subr.mxu0 0.0
      %4308 = vmatpush1.msra.mxu0 %v4292
      %4309 = vmatprep.subr.mxu0 0.0
      %4310 = vmatpush1.msra.mxu0 0.0
      %4311 = vmatprep.subr.mxu0 0.0
      %4312 = vmatpush1.msra.mxu0 0.0
      %4313 = vmatprep.subr.mxu0 0.0
      %4314 = vmatpush1.msra.mxu0 0.0
      %4315 = vmatprep.subr.mxu0 0.0
      %4316 = vmatpush1.msra.mxu0 0.0
      %4317 = vmatprep.subr.mxu0 0.0
      %4318 = vmatpush1.msra.mxu0 0.0
      %4319 = vmatprep.subr.mxu0 0.0
      %4320 = vmatpush1.msra.mxu0 0.0
      %4321 = vmatprep.subr.mxu0 0.0
      %4322 = vmatpush1.msra.mxu0 0.0
      %4323 = vmatprep.subr.mxu0 0.0
      %4324 = vmatpush1.msra.mxu0 0.0
      %4325 = vmatprep.subr.mxu0 0.0
      %4326 = vmatpush1.msra.mxu0 0.0
      %4327 = vmatprep.subr.mxu0 0.0
      %4328 = vmatpush1.msra.mxu0 0.0
      %4329 = vmatprep.subr.mxu0 0.0
      %4330 = vmatpush1.msra.mxu0 0.0
      %4331 = vmatprep.subr.mxu0 0.0
      %4332 = vmatpush1.msra.mxu0 0.0
      %4333 = vmatprep.subr.mxu0 0.0
      %4334 = vmatpush1.msra.mxu0 0.0
      %4335 = vmatprep.subr.mxu0 0.0
      %4336 = vmatpush1.msra.mxu0 0.0
      %4337 = vmatprep.subr.mxu0 0.0
      %4338 = vmatpush1.msra.mxu0 0.0
      %4339 = vmatprep.subr.mxu0 0.0
      %4340 = vmatpush1.msra.mxu0 0.0
      %4341 = vmatprep.subr.mxu0 0.0
      %4342 = vmatpush1.msra.mxu0 0.0
      %4343 = vmatprep.subr.mxu0 0.0
      %4344 = vmatpush1.msra.mxu0 0.0
      %4345 = vmatprep.subr.mxu0 0.0
      %4346 = vmatpush1.msra.mxu0 0.0
      %4347 = vmatprep.subr.mxu0 0.0
      %4348 = vmatpush1.msra.mxu0 0.0
      %4349 = vmatprep.subr.mxu0 0.0
      %4350 = vmatpush1.msra.mxu0 0.0
      %4351 = vmatprep.subr.mxu0 0.0
      %4352 = vmatpush1.msra.mxu0 0.0
      %4353 = vmatprep.subr.mxu0 0.0
      %4354 = vmatpush1.msra.mxu0 0.0
      %4355 = vmatprep.subr.mxu0 0.0
      %4356 = vmatpush1.msra.mxu0 0.0
      %4357 = vmatprep.subr.mxu0 0.0
      %4358 = vmatpush1.msra.mxu0 0.0
      %4359 = vmatprep.subr.mxu0 0.0
      %4360 = vmatpush1.msra.mxu0 0.0
      %4361 = vmatprep.subr.mxu0 0.0
      %4362 = vmatpush1.msra.mxu0 0.0
      %4363 = vmatprep.subr.mxu0 0.0
      %4364 = vmatpush1.msra.mxu0 0.0
      %4365 = vmatprep.mubr.f32.mxu0 0.0
      %4366 = vmatmul.mubr.f32.gmra.mrb[0].mxu0 %v3699
      %v4367 = vpop.f32.mrb[0].mxu0
      %v4368 = vadd.f32 %v4299, %v4367
      %v4369 = vpop.f32.mrb[0].mxu0
      %4370 = vmatprep.mubr.f32.mxu0 0.0
      %4371 = vmatmul.mubr.f32.gmra.mrb[0].mxu0 %v3702
      %v4372 = vpop.f32.mrb[0].mxu0
      %v4373 = vadd.f32 %v4299, %v4372
      %v4374 = vpop.f32.mrb[0].mxu0
      %4375 = vmatprep.mubr.f32.mxu0 0.0
      %4376 = vmatmul.mubr.f32.gmra.mrb[0].mxu0 %v3705
      %v4377 = vpop.f32.mrb[0].mxu0
      %v4378 = vadd.f32 %v4299, %v4377
      %v4379 = vpop.f32.mrb[0].mxu0
      %4380 = vdwg.mxu0
      %s4381 = scalar_lea.vmem %s8, 160
      %v4382 = vld [vmem:[%s4381] sm:$0xff]
      %v4383 = vld [vmem:[%s4381 + $0x8] sm:$0xff]
      %v4384 = vld [vmem:[%s4381 + $0x10] sm:$0xff]
      %v4385 = vld [vmem:[%s4381 + $0x18] sm:$0xff]
      %s4386 = scalar_lea.vmem %s11, 5
      %v4387 = vld [vmem:[%s4386] sm:$0x1]
      %v4389 = vlaneseq
      %v4390 = vshrl.u32 %v4389, 7
      %v4391 = vsub.s32 0, %v4390
      %v4392 = vrot.slane %v4387, %v4391
      %4394 = vmatprep.subr.mxu0 0.0
      %4395 = vmatpush1.msra.mxu0 %v4382
      %4396 = vmatprep.subr.mxu0 0.0
      %4397 = vmatpush1.msra.mxu0 %v4383
      %4398 = vmatprep.subr.mxu0 0.0
      %4399 = vmatpush1.msra.mxu0 %v4384
      %4400 = vmatprep.subr.mxu0 0.0
      %4401 = vmatpush1.msra.mxu0 %v4385
      %4402 = vmatprep.subr.mxu0 0.0
      %4403 = vmatpush1.msra.mxu0 0.0
      %4404 = vmatprep.subr.mxu0 0.0
      %4405 = vmatpush1.msra.mxu0 0.0
      %4406 = vmatprep.subr.mxu0 0.0
      %4407 = vmatpush1.msra.mxu0 0.0
      %4408 = vmatprep.subr.mxu0 0.0
      %4409 = vmatpush1.msra.mxu0 0.0
      %4410 = vmatprep.subr.mxu0 0.0
      %4411 = vmatpush1.msra.mxu0 0.0
      %4412 = vmatprep.subr.mxu0 0.0
      %4413 = vmatpush1.msra.mxu0 0.0
      %4414 = vmatprep.subr.mxu0 0.0
      %4415 = vmatpush1.msra.mxu0 0.0
      %4416 = vmatprep.subr.mxu0 0.0
      %4417 = vmatpush1.msra.mxu0 0.0
      %4418 = vmatprep.subr.mxu0 0.0
      %4419 = vmatpush1.msra.mxu0 0.0
      %4420 = vmatprep.subr.mxu0 0.0
      %4421 = vmatpush1.msra.mxu0 0.0
      %4422 = vmatprep.subr.mxu0 0.0
      %4423 = vmatpush1.msra.mxu0 0.0
      %4424 = vmatprep.subr.mxu0 0.0
      %4425 = vmatpush1.msra.mxu0 0.0
      %4426 = vmatprep.subr.mxu0 0.0
      %4427 = vmatpush1.msra.mxu0 0.0
      %4428 = vmatprep.subr.mxu0 0.0
      %4429 = vmatpush1.msra.mxu0 0.0
      %4430 = vmatprep.subr.mxu0 0.0
      %4431 = vmatpush1.msra.mxu0 0.0
      %4432 = vmatprep.subr.mxu0 0.0
      %4433 = vmatpush1.msra.mxu0 0.0
      %4434 = vmatprep.subr.mxu0 0.0
      %4435 = vmatpush1.msra.mxu0 0.0
      %4436 = vmatprep.subr.mxu0 0.0
      %4437 = vmatpush1.msra.mxu0 0.0
      %4438 = vmatprep.subr.mxu0 0.0
      %4439 = vmatpush1.msra.mxu0 0.0
      %4440 = vmatprep.subr.mxu0 0.0
      %4441 = vmatpush1.msra.mxu0 0.0
      %4442 = vmatprep.subr.mxu0 0.0
      %4443 = vmatpush1.msra.mxu0 0.0
      %4444 = vmatprep.subr.mxu0 0.0
      %4445 = vmatpush1.msra.mxu0 0.0
      %4446 = vmatprep.subr.mxu0 0.0
      %4447 = vmatpush1.msra.mxu0 0.0
      %4448 = vmatprep.subr.mxu0 0.0
      %4449 = vmatpush1.msra.mxu0 0.0
      %4450 = vmatprep.subr.mxu0 0.0
      %4451 = vmatpush1.msra.mxu0 0.0
      %4452 = vmatprep.subr.mxu0 0.0
      %4453 = vmatpush1.msra.mxu0 0.0
      %4454 = vmatprep.subr.mxu0 0.0
      %4455 = vmatpush1.msra.mxu0 0.0
      %4456 = vmatprep.subr.mxu0 0.0
      %4457 = vmatpush1.msra.mxu0 0.0
      %4458 = vmatprep.mubr.f32.mxu0 0.0
      %4459 = vmatmul.mubr.f32.gmra.mrb[0].mxu0 %v3699
      %v4460 = vpop.f32.mrb[0].mxu0
      %v4461 = vadd.f32 %v4392, %v4460
      %v4462 = vpop.f32.mrb[0].mxu0
      %4463 = vmatprep.mubr.f32.mxu0 0.0
      %4464 = vmatmul.mubr.f32.gmra.mrb[0].mxu0 %v3702
      %v4465 = vpop.f32.mrb[0].mxu0
      %v4466 = vadd.f32 %v4392, %v4465
      %v4467 = vpop.f32.mrb[0].mxu0
      %4468 = vmatprep.mubr.f32.mxu0 0.0
      %4469 = vmatmul.mubr.f32.gmra.mrb[0].mxu0 %v3705
      %v4470 = vpop.f32.mrb[0].mxu0
      %v4471 = vadd.f32 %v4392, %v4470
      %v4472 = vpop.f32.mrb[0].mxu0
      %4473 = vdwg.mxu0
      %v4475 = vsel %vm1240, %v4275, 0
      %v4478 = vsel %vm1240, %v4280, 0
      %v4481 = vsel %vm1240, %v4285, 0
      %v4484 = vsel %vm1240, %v4368, 0
      %v4487 = vsel %vm1240, %v4373, 0
      %v4490 = vsel %vm1240, %v4378, 0
      %4492 = vmatprep.subr.mxu0 0.0
      %4493 = vmatpush1.xpose.msra.mxu0 %v4484
      %4494 = vmatprep.subr.mxu0 0.0
      %4495 = vmatpush1.xpose.msra.mxu0 %v4487
      %4496 = vmatprep.subr.mxu0 0.0
      %4497 = vmatpush1.xpose.msra.mxu0 %v4490
      %4498 = vmatprep.subr.mxu0 0.0
      %4499 = vmatpush1.xpose.msra.mxu0 0.0
      %4500 = vmatprep.subr.mxu0 0.0
      %4501 = vmatpush1.xpose.msra.mxu0 0.0
      %4502 = vmatprep.subr.mxu0 0.0
      %4503 = vmatpush1.xpose.msra.mxu0 0.0
      %4504 = vmatprep.subr.mxu0 0.0
      %4505 = vmatpush1.xpose.msra.mxu0 0.0
      %4506 = vmatprep.subr.mxu0 0.0
      %4507 = vmatpush1.xpose.msra.mxu0 0.0
      %4508 = vmatprep.subr.mxu0 0.0
      %4509 = vmatpush1.xpose.msra.mxu0 0.0
      %4510 = vmatprep.subr.mxu0 0.0
      %4511 = vmatpush1.xpose.msra.mxu0 0.0
      %4512 = vmatprep.subr.mxu0 0.0
      %4513 = vmatpush1.xpose.msra.mxu0 0.0
      %4514 = vmatprep.subr.mxu0 0.0
      %4515 = vmatpush1.xpose.msra.mxu0 0.0
      %4516 = vmatprep.subr.mxu0 0.0
      %4517 = vmatpush1.xpose.msra.mxu0 0.0
      %4518 = vmatprep.subr.mxu0 0.0
      %4519 = vmatpush1.xpose.msra.mxu0 0.0
      %4520 = vmatprep.subr.mxu0 0.0
      %4521 = vmatpush1.xpose.msra.mxu0 0.0
      %4522 = vmatprep.subr.mxu0 0.0
      %4523 = vmatpush1.xpose.msra.mxu0 0.0
      %4524 = vmatprep.subr.mxu0 0.0
      %4525 = vmatpush1.xpose.msra.mxu0 0.0
      %4526 = vmatprep.subr.mxu0 0.0
      %4527 = vmatpush1.xpose.msra.mxu0 0.0
      %4528 = vmatprep.subr.mxu0 0.0
      %4529 = vmatpush1.xpose.msra.mxu0 0.0
      %4530 = vmatprep.subr.mxu0 0.0
      %4531 = vmatpush1.xpose.msra.mxu0 0.0
      %4532 = vmatprep.subr.mxu0 0.0
      %4533 = vmatpush1.xpose.msra.mxu0 0.0
      %4534 = vmatprep.subr.mxu0 0.0
      %4535 = vmatpush1.xpose.msra.mxu0 0.0
      %4536 = vmatprep.subr.mxu0 0.0
      %4537 = vmatpush1.xpose.msra.mxu0 0.0
      %4538 = vmatprep.subr.mxu0 0.0
      %4539 = vmatpush1.xpose.msra.mxu0 0.0
      %4540 = vmatprep.subr.mxu0 0.0
      %4541 = vmatpush1.xpose.msra.mxu0 0.0
      %4542 = vmatprep.subr.mxu0 0.0
      %4543 = vmatpush1.xpose.msra.mxu0 0.0
      %4544 = vmatprep.subr.mxu0 0.0
      %4545 = vmatpush1.xpose.msra.mxu0 0.0
      %4546 = vmatprep.subr.mxu0 0.0
      %4547 = vmatpush1.xpose.msra.mxu0 0.0
      %4548 = vmatprep.subr.mxu0 0.0
      %4549 = vmatpush1.xpose.msra.mxu0 0.0
      %4550 = vmatprep.subr.mxu0 0.0
      %4551 = vmatpush1.xpose.msra.mxu0 0.0
      %4552 = vmatprep.subr.mxu0 0.0
      %4553 = vmatpush1.xpose.msra.mxu0 0.0
      %4554 = vmatprep.subr.mxu0 0.0
      %4555 = vmatpush1.xpose.msra.mxu0 0.0
      %4556 = vmatprep.mubr.f32.mxu0 0.0
      %4557 = vmatmul.mubr.f32.gmra.mrb[0].mxu0 %v4475
      %v4558 = vpop.f32.mrb[0].mxu0
      %v4559 = vadd.f32 %v896, %v4558
      %v4560 = vpop.f32.mrb[0].mxu0
      %4561 = vmatprep.mubr.f32.mxu0 0.0
      %4562 = vmatmul.mubr.f32.gmra.mrb[0].mxu0 %v4478
      %v4563 = vpop.f32.mrb[0].mxu0
      %v4564 = vadd.f32 %v896, %v4563
      %v4565 = vpop.f32.mrb[0].mxu0
      %4566 = vmatprep.mubr.f32.mxu0 0.0
      %4567 = vmatmul.mubr.f32.gmra.mrb[0].mxu0 %v4481
      %v4568 = vpop.f32.mrb[0].mxu0
      %v4569 = vadd.f32 %v896, %v4568
      %v4570 = vpop.f32.mrb[0].mxu0
      %4571 = vdwg.mxu0
      %v4572 = vsel %vm1339, %v4559, -inf
      %4573 = vmax.xlane.f32.xlu0 %v4572
      %v4574 = vpop.xlane.xlu0 %4573
      %v4575 = vsel %vm1339, %v4564, -inf
      %4576 = vmax.xlane.f32.xlu0 %v4575
      %v4577 = vpop.xlane.xlu0 %4576
      %v4578 = vsel %vm1339, %v4569, -inf
      %4579 = vmax.xlane.f32.xlu0 %v4578
      %v4580 = vpop.xlane.xlu0 %4579
      %v4581 = vsub.f32 %v4559, %v4574
      %v4582 = vsub.f32 %v4564, %v4577
      %v4583 = vsub.f32 %v4569, %v4580
      %v4584 = vmul.f32 %v4581, 1.442695
      %v4585 = vpow.pop %v4584
      %v4586 = vmul.f32 %v4582, 1.442695
      %v4587 = vpow.pop %v4586
      %v4588 = vmul.f32 %v4583, 1.442695
      %v4589 = vpow.pop %v4588
      %v4591 = vsel %vm1339, %v4585, 0
      %v4594 = vsel %vm1339, %v4587, 0
      %v4597 = vsel %vm1339, %v4589, 0
      %4599 = vmatprep.subr.mxu0 0.0
      %4600 = vmatpush1.msra.mxu0 %v4461
      %4601 = vmatprep.subr.mxu0 0.0
      %4602 = vmatpush1.msra.mxu0 %v4466
      %4603 = vmatprep.subr.mxu0 0.0
      %4604 = vmatpush1.msra.mxu0 %v4471
      %4605 = vmatprep.subr.mxu0 0.0
      %4606 = vmatpush1.msra.mxu0 0.0
      %4607 = vmatprep.subr.mxu0 0.0
      %4608 = vmatpush1.msra.mxu0 0.0
      %4609 = vmatprep.subr.mxu0 0.0
      %4610 = vmatpush1.msra.mxu0 0.0
      %4611 = vmatprep.subr.mxu0 0.0
      %4612 = vmatpush1.msra.mxu0 0.0
      %4613 = vmatprep.subr.mxu0 0.0
      %4614 = vmatpush1.msra.mxu0 0.0
      %4615 = vmatprep.subr.mxu0 0.0
      %4616 = vmatpush1.msra.mxu0 0.0
      %4617 = vmatprep.subr.mxu0 0.0
      %4618 = vmatpush1.msra.mxu0 0.0
      %4619 = vmatprep.subr.mxu0 0.0
      %4620 = vmatpush1.msra.mxu0 0.0
      %4621 = vmatprep.subr.mxu0 0.0
      %4622 = vmatpush1.msra.mxu0 0.0
      %4623 = vmatprep.subr.mxu0 0.0
      %4624 = vmatpush1.msra.mxu0 0.0
      %4625 = vmatprep.subr.mxu0 0.0
      %4626 = vmatpush1.msra.mxu0 0.0
      %4627 = vmatprep.subr.mxu0 0.0
      %4628 = vmatpush1.msra.mxu0 0.0
      %4629 = vmatprep.subr.mxu0 0.0
      %4630 = vmatpush1.msra.mxu0 0.0
      %4631 = vmatprep.subr.mxu0 0.0
      %4632 = vmatpush1.msra.mxu0 0.0
      %4633 = vmatprep.subr.mxu0 0.0
      %4634 = vmatpush1.msra.mxu0 0.0
      %4635 = vmatprep.subr.mxu0 0.0
      %4636 = vmatpush1.msra.mxu0 0.0
      %4637 = vmatprep.subr.mxu0 0.0
      %4638 = vmatpush1.msra.mxu0 0.0
      %4639 = vmatprep.subr.mxu0 0.0
      %4640 = vmatpush1.msra.mxu0 0.0
      %4641 = vmatprep.subr.mxu0 0.0
      %4642 = vmatpush1.msra.mxu0 0.0
      %4643 = vmatprep.subr.mxu0 0.0
      %4644 = vmatpush1.msra.mxu0 0.0
      %4645 = vmatprep.subr.mxu0 0.0
      %4646 = vmatpush1.msra.mxu0 0.0
      %4647 = vmatprep.subr.mxu0 0.0
      %4648 = vmatpush1.msra.mxu0 0.0
      %4649 = vmatprep.subr.mxu0 0.0
      %4650 = vmatpush1.msra.mxu0 0.0
      %4651 = vmatprep.subr.mxu0 0.0
      %4652 = vmatpush1.msra.mxu0 0.0
      %4653 = vmatprep.subr.mxu0 0.0
      %4654 = vmatpush1.msra.mxu0 0.0
      %4655 = vmatprep.subr.mxu0 0.0
      %4656 = vmatpush1.msra.mxu0 0.0
      %4657 = vmatprep.subr.mxu0 0.0
      %4658 = vmatpush1.msra.mxu0 0.0
      %4659 = vmatprep.subr.mxu0 0.0
      %4660 = vmatpush1.msra.mxu0 0.0
      %4661 = vmatprep.subr.mxu0 0.0
      %4662 = vmatpush1.msra.mxu0 0.0
      %4663 = vmatprep.mubr.f32.mxu0 0.0
      %4664 = vmatmul.mubr.f32.gmra.mrb[0].mxu0 %v4591
      %v4665 = vpop.f32.mrb[0].mxu0
      %v4666 = vadd.f32 0.0, %v4665
      %v4667 = vpop.f32.mrb[0].mxu0
      %4668 = vmatprep.mubr.f32.mxu0 0.0
      %4669 = vmatmul.mubr.f32.gmra.mrb[0].mxu0 %v4594
      %v4670 = vpop.f32.mrb[0].mxu0
      %v4671 = vadd.f32 0.0, %v4670
      %v4672 = vpop.f32.mrb[0].mxu0
      %4673 = vmatprep.mubr.f32.mxu0 0.0
      %4674 = vmatmul.mubr.f32.gmra.mrb[0].mxu0 %v4597
      %v4675 = vpop.f32.mrb[0].mxu0
      %v4676 = vadd.f32 0.0, %v4675
      %v4677 = vpop.f32.mrb[0].mxu0
      %4678 = vdwg.mxu0
      %v4679 = vsel %vm1339, %v4585, 0.0
      %4680 = vadd.xlane.f32.xlu0 %v4679
      %v4681 = vpop.xlane.xlu0 %4680
      %v4682 = vsel %vm1339, %v4587, 0.0
      %4683 = vadd.xlane.f32.xlu0 %v4682
      %v4684 = vpop.xlane.xlu0 %4683
      %v4685 = vsel %vm1339, %v4589, 0.0
      %4686 = vadd.xlane.f32.xlu0 %v4685
      %v4687 = vpop.xlane.xlu0 %4686
      %v4688 = vrcp.pop %v4681
      %v4689 = vrcp.pop %v4684
      %v4690 = vrcp.pop %v4687
      %v4691 = vmul.f32 %v4666, %v4688
      %v4692 = vmul.f32 %v4671, %v4689
      %v4693 = vmul.f32 %v4676, %v4690
      %s4694 = scalar_lea.vmem %s12, 40
      %v4695 = vld [vmem:[%s4694] sm:$0xff]
      %v4697 = vsel %vm1240, %v4691, 0
      %v4700 = vsel %vm1240, %v4692, 0
      %v4703 = vsel %vm1240, %v4693, 0
      %4705 = vmatprep.subr.mxu0 0.0
      %4706 = vmatpush1.msra.mxu0 %v4695
      %4707 = vmatprep.subr.mxu0 0.0
      %4708 = vmatpush1.msra.mxu0 0.0
      %4709 = vmatprep.subr.mxu0 0.0
      %4710 = vmatpush1.msra.mxu0 0.0
      %4711 = vmatprep.subr.mxu0 0.0
      %4712 = vmatpush1.msra.mxu0 0.0
      %4713 = vmatprep.subr.mxu0 0.0
      %4714 = vmatpush1.msra.mxu0 0.0
      %4715 = vmatprep.subr.mxu0 0.0
      %4716 = vmatpush1.msra.mxu0 0.0
      %4717 = vmatprep.subr.mxu0 0.0
      %4718 = vmatpush1.msra.mxu0 0.0
      %4719 = vmatprep.subr.mxu0 0.0
      %4720 = vmatpush1.msra.mxu0 0.0
      %4721 = vmatprep.subr.mxu0 0.0
      %4722 = vmatpush1.msra.mxu0 0.0
      %4723 = vmatprep.subr.mxu0 0.0
      %4724 = vmatpush1.msra.mxu0 0.0
      %4725 = vmatprep.subr.mxu0 0.0
      %4726 = vmatpush1.msra.mxu0 0.0
      %4727 = vmatprep.subr.mxu0 0.0
      %4728 = vmatpush1.msra.mxu0 0.0
      %4729 = vmatprep.subr.mxu0 0.0
      %4730 = vmatpush1.msra.mxu0 0.0
      %4731 = vmatprep.subr.mxu0 0.0
      %4732 = vmatpush1.msra.mxu0 0.0
      %4733 = vmatprep.subr.mxu0 0.0
      %4734 = vmatpush1.msra.mxu0 0.0
      %4735 = vmatprep.subr.mxu0 0.0
      %4736 = vmatpush1.msra.mxu0 0.0
      %4737 = vmatprep.subr.mxu0 0.0
      %4738 = vmatpush1.msra.mxu0 0.0
      %4739 = vmatprep.subr.mxu0 0.0
      %4740 = vmatpush1.msra.mxu0 0.0
      %4741 = vmatprep.subr.mxu0 0.0
      %4742 = vmatpush1.msra.mxu0 0.0
      %4743 = vmatprep.subr.mxu0 0.0
      %4744 = vmatpush1.msra.mxu0 0.0
      %4745 = vmatprep.subr.mxu0 0.0
      %4746 = vmatpush1.msra.mxu0 0.0
      %4747 = vmatprep.subr.mxu0 0.0
      %4748 = vmatpush1.msra.mxu0 0.0
      %4749 = vmatprep.subr.mxu0 0.0
      %4750 = vmatpush1.msra.mxu0 0.0
      %4751 = vmatprep.subr.mxu0 0.0
      %4752 = vmatpush1.msra.mxu0 0.0
      %4753 = vmatprep.subr.mxu0 0.0
      %4754 = vmatpush1.msra.mxu0 0.0
      %4755 = vmatprep.subr.mxu0 0.0
      %4756 = vmatpush1.msra.mxu0 0.0
      %4757 = vmatprep.subr.mxu0 0.0
      %4758 = vmatpush1.msra.mxu0 0.0
      %4759 = vmatprep.subr.mxu0 0.0
      %4760 = vmatpush1.msra.mxu0 0.0
      %4761 = vmatprep.subr.mxu0 0.0
      %4762 = vmatpush1.msra.mxu0 0.0
      %4763 = vmatprep.subr.mxu0 0.0
      %4764 = vmatpush1.msra.mxu0 0.0
      %4765 = vmatprep.subr.mxu0 0.0
      %4766 = vmatpush1.msra.mxu0 0.0
      %4767 = vmatprep.subr.mxu0 0.0
      %4768 = vmatpush1.msra.mxu0 0.0
      %4769 = vmatprep.mubr.f32.mxu0 0.0
      %4770 = vmatmul.mubr.f32.gmra.mrb[0].mxu0 %v4697
      %v4771 = vpop.f32.mrb[0].mxu0
      %v4772 = vadd.f32 0.0, %v4771
      %v4773 = vpop.f32.mrb[0].mxu0
      %4774 = vmatprep.mubr.f32.mxu0 0.0
      %4775 = vmatmul.mubr.f32.gmra.mrb[0].mxu0 %v4700
      %v4776 = vpop.f32.mrb[0].mxu0
      %v4777 = vadd.f32 0.0, %v4776
      %v4778 = vpop.f32.mrb[0].mxu0
      %4779 = vmatprep.mubr.f32.mxu0 0.0
      %4780 = vmatmul.mubr.f32.gmra.mrb[0].mxu0 %v4703
      %v4781 = vpop.f32.mrb[0].mxu0
      %v4782 = vadd.f32 0.0, %v4781
      %v4783 = vpop.f32.mrb[0].mxu0
      %4784 = vdwg.mxu0
      %v4786 = vsel %vm1240, %v4190, 0
      %v4789 = vsel %vm1240, %v4191, 0
      %v4792 = vsel %vm1240, %v4192, 0
      %4794 = vmatprep.subr.mxu0 0.0
      %4795 = vmatpush1.msra.mxu0 %v4194
      %4796 = vmatprep.subr.mxu0 0.0
      %4797 = vmatpush1.msra.mxu0 0.0
      %4798 = vmatprep.subr.mxu0 0.0
      %4799 = vmatpush1.msra.mxu0 0.0
      %4800 = vmatprep.subr.mxu0 0.0
      %4801 = vmatpush1.msra.mxu0 0.0
      %4802 = vmatprep.subr.mxu0 0.0
      %4803 = vmatpush1.msra.mxu0 0.0
      %4804 = vmatprep.subr.mxu0 0.0
      %4805 = vmatpush1.msra.mxu0 0.0
      %4806 = vmatprep.subr.mxu0 0.0
      %4807 = vmatpush1.msra.mxu0 0.0
      %4808 = vmatprep.subr.mxu0 0.0
      %4809 = vmatpush1.msra.mxu0 0.0
      %4810 = vmatprep.subr.mxu0 0.0
      %4811 = vmatpush1.msra.mxu0 0.0
      %4812 = vmatprep.subr.mxu0 0.0
      %4813 = vmatpush1.msra.mxu0 0.0
      %4814 = vmatprep.subr.mxu0 0.0
      %4815 = vmatpush1.msra.mxu0 0.0
      %4816 = vmatprep.subr.mxu0 0.0
      %4817 = vmatpush1.msra.mxu0 0.0
      %4818 = vmatprep.subr.mxu0 0.0
      %4819 = vmatpush1.msra.mxu0 0.0
      %4820 = vmatprep.subr.mxu0 0.0
      %4821 = vmatpush1.msra.mxu0 0.0
      %4822 = vmatprep.subr.mxu0 0.0
      %4823 = vmatpush1.msra.mxu0 0.0
      %4824 = vmatprep.subr.mxu0 0.0
      %4825 = vmatpush1.msra.mxu0 0.0
      %4826 = vmatprep.subr.mxu0 0.0
      %4827 = vmatpush1.msra.mxu0 0.0
      %4828 = vmatprep.subr.mxu0 0.0
      %4829 = vmatpush1.msra.mxu0 0.0
      %4830 = vmatprep.subr.mxu0 0.0
      %4831 = vmatpush1.msra.mxu0 0.0
      %4832 = vmatprep.subr.mxu0 0.0
      %4833 = vmatpush1.msra.mxu0 0.0
      %4834 = vmatprep.subr.mxu0 0.0
      %4835 = vmatpush1.msra.mxu0 0.0
      %4836 = vmatprep.subr.mxu0 0.0
      %4837 = vmatpush1.msra.mxu0 0.0
      %4838 = vmatprep.subr.mxu0 0.0
      %4839 = vmatpush1.msra.mxu0 0.0
      %4840 = vmatprep.subr.mxu0 0.0
      %4841 = vmatpush1.msra.mxu0 0.0
      %4842 = vmatprep.subr.mxu0 0.0
      %4843 = vmatpush1.msra.mxu0 0.0
      %4844 = vmatprep.subr.mxu0 0.0
      %4845 = vmatpush1.msra.mxu0 0.0
      %4846 = vmatprep.subr.mxu0 0.0
      %4847 = vmatpush1.msra.mxu0 0.0
      %4848 = vmatprep.subr.mxu0 0.0
      %4849 = vmatpush1.msra.mxu0 0.0
      %4850 = vmatprep.subr.mxu0 0.0
      %4851 = vmatpush1.msra.mxu0 0.0
      %4852 = vmatprep.subr.mxu0 0.0
      %4853 = vmatpush1.msra.mxu0 0.0
      %4854 = vmatprep.subr.mxu0 0.0
      %4855 = vmatpush1.msra.mxu0 0.0
      %4856 = vmatprep.subr.mxu0 0.0
      %4857 = vmatpush1.msra.mxu0 0.0
      %4858 = vmatprep.mubr.f32.mxu0 0.0
      %4859 = vmatmul.mubr.f32.gmra.mrb[0].mxu0 %v4786
      %v4860 = vpop.f32.mrb[0].mxu0
      %v4861 = vadd.f32 %v4772, %v4860
      %v4862 = vpop.f32.mrb[0].mxu0
      %4863 = vmatprep.mubr.f32.mxu0 0.0
      %4864 = vmatmul.mubr.f32.gmra.mrb[0].mxu0 %v4789
      %v4865 = vpop.f32.mrb[0].mxu0
      %v4866 = vadd.f32 %v4777, %v4865
      %v4867 = vpop.f32.mrb[0].mxu0
      %4868 = vmatprep.mubr.f32.mxu0 0.0
      %4869 = vmatmul.mubr.f32.gmra.mrb[0].mxu0 %v4792
      %v4870 = vpop.f32.mrb[0].mxu0
      %v4871 = vadd.f32 %v4782, %v4870
      %v4872 = vpop.f32.mrb[0].mxu0
      %4873 = vdwg.mxu0
      %s4874 = scalar_lea.vmem %s6, 192
      %v4875 = vld [vmem:[%s4874] sm:$0xff]
      %v4876 = vld [vmem:[%s4874 + $0x8] sm:$0xff]
      %v4877 = vld [vmem:[%s4874 + $0x10] sm:$0xff]
      %v4878 = vld [vmem:[%s4874 + $0x18] sm:$0xff]
      %s4879 = scalar_lea.vmem %s9, 6
      %v4880 = vld [vmem:[%s4879] sm:$0x1]
      %v4882 = vlaneseq
      %v4883 = vshrl.u32 %v4882, 7
      %v4884 = vsub.s32 0, %v4883
      %v4885 = vrot.slane %v4880, %v4884
      %4887 = vmatprep.subr.mxu0 0.0
      %4888 = vmatpush1.msra.mxu0 %v4875
      %4889 = vmatprep.subr.mxu0 0.0
      %4890 = vmatpush1.msra.mxu0 %v4876
      %4891 = vmatprep.subr.mxu0 0.0
      %4892 = vmatpush1.msra.mxu0 %v4877
      %4893 = vmatprep.subr.mxu0 0.0
      %4894 = vmatpush1.msra.mxu0 %v4878
      %4895 = vmatprep.subr.mxu0 0.0
      %4896 = vmatpush1.msra.mxu0 0.0
      %4897 = vmatprep.subr.mxu0 0.0
      %4898 = vmatpush1.msra.mxu0 0.0
      %4899 = vmatprep.subr.mxu0 0.0
      %4900 = vmatpush1.msra.mxu0 0.0
      %4901 = vmatprep.subr.mxu0 0.0
      %4902 = vmatpush1.msra.mxu0 0.0
      %4903 = vmatprep.subr.mxu0 0.0
      %4904 = vmatpush1.msra.mxu0 0.0
      %4905 = vmatprep.subr.mxu0 0.0
      %4906 = vmatpush1.msra.mxu0 0.0
      %4907 = vmatprep.subr.mxu0 0.0
      %4908 = vmatpush1.msra.mxu0 0.0
      %4909 = vmatprep.subr.mxu0 0.0
      %4910 = vmatpush1.msra.mxu0 0.0
      %4911 = vmatprep.subr.mxu0 0.0
      %4912 = vmatpush1.msra.mxu0 0.0
      %4913 = vmatprep.subr.mxu0 0.0
      %4914 = vmatpush1.msra.mxu0 0.0
      %4915 = vmatprep.subr.mxu0 0.0
      %4916 = vmatpush1.msra.mxu0 0.0
      %4917 = vmatprep.subr.mxu0 0.0
      %4918 = vmatpush1.msra.mxu0 0.0
      %4919 = vmatprep.subr.mxu0 0.0
      %4920 = vmatpush1.msra.mxu0 0.0
      %4921 = vmatprep.subr.mxu0 0.0
      %4922 = vmatpush1.msra.mxu0 0.0
      %4923 = vmatprep.subr.mxu0 0.0
      %4924 = vmatpush1.msra.mxu0 0.0
      %4925 = vmatprep.subr.mxu0 0.0
      %4926 = vmatpush1.msra.mxu0 0.0
      %4927 = vmatprep.subr.mxu0 0.0
      %4928 = vmatpush1.msra.mxu0 0.0
      %4929 = vmatprep.subr.mxu0 0.0
      %4930 = vmatpush1.msra.mxu0 0.0
      %4931 = vmatprep.subr.mxu0 0.0
      %4932 = vmatpush1.msra.mxu0 0.0
      %4933 = vmatprep.subr.mxu0 0.0
      %4934 = vmatpush1.msra.mxu0 0.0
      %4935 = vmatprep.subr.mxu0 0.0
      %4936 = vmatpush1.msra.mxu0 0.0
      %4937 = vmatprep.subr.mxu0 0.0
      %4938 = vmatpush1.msra.mxu0 0.0
      %4939 = vmatprep.subr.mxu0 0.0
      %4940 = vmatpush1.msra.mxu0 0.0
      %4941 = vmatprep.subr.mxu0 0.0
      %4942 = vmatpush1.msra.mxu0 0.0
      %4943 = vmatprep.subr.mxu0 0.0
      %4944 = vmatpush1.msra.mxu0 0.0
      %4945 = vmatprep.subr.mxu0 0.0
      %4946 = vmatpush1.msra.mxu0 0.0
      %4947 = vmatprep.subr.mxu0 0.0
      %4948 = vmatpush1.msra.mxu0 0.0
      %4949 = vmatprep.subr.mxu0 0.0
      %4950 = vmatpush1.msra.mxu0 0.0
      %4951 = vmatprep.mubr.f32.mxu0 0.0
      %4952 = vmatmul.mubr.f32.gmra.mrb[0].mxu0 %v3699
      %v4953 = vpop.f32.mrb[0].mxu0
      %v4954 = vadd.f32 %v4885, %v4953
      %v4955 = vpop.f32.mrb[0].mxu0
      %4956 = vmatprep.mubr.f32.mxu0 0.0
      %4957 = vmatmul.mubr.f32.gmra.mrb[0].mxu0 %v3702
      %v4958 = vpop.f32.mrb[0].mxu0
      %v4959 = vadd.f32 %v4885, %v4958
      %v4960 = vpop.f32.mrb[0].mxu0
      %4961 = vmatprep.mubr.f32.mxu0 0.0
      %4962 = vmatmul.mubr.f32.gmra.mrb[0].mxu0 %v3705
      %v4963 = vpop.f32.mrb[0].mxu0
      %v4964 = vadd.f32 %v4885, %v4963
      %v4965 = vpop.f32.mrb[0].mxu0
      %4966 = vdwg.mxu0
      %s4967 = scalar_lea.vmem %s7, 192
      %v4968 = vld [vmem:[%s4967] sm:$0xff]
      %v4969 = vld [vmem:[%s4967 + $0x8] sm:$0xff]
      %v4970 = vld [vmem:[%s4967 + $0x10] sm:$0xff]
      %v4971 = vld [vmem:[%s4967 + $0x18] sm:$0xff]
      %s4972 = scalar_lea.vmem %s10, 6
      %v4973 = vld [vmem:[%s4972] sm:$0x1]
      %v4975 = vlaneseq
      %v4976 = vshrl.u32 %v4975, 7
      %v4977 = vsub.s32 0, %v4976
      %v4978 = vrot.slane %v4973, %v4977
      %4980 = vmatprep.subr.mxu0 0.0
      %4981 = vmatpush1.msra.mxu0 %v4968
      %4982 = vmatprep.subr.mxu0 0.0
      %4983 = vmatpush1.msra.mxu0 %v4969
      %4984 = vmatprep.subr.mxu0 0.0
      %4985 = vmatpush1.msra.mxu0 %v4970
      %4986 = vmatprep.subr.mxu0 0.0
      %4987 = vmatpush1.msra.mxu0 %v4971
      %4988 = vmatprep.subr.mxu0 0.0
      %4989 = vmatpush1.msra.mxu0 0.0
      %4990 = vmatprep.subr.mxu0 0.0
      %4991 = vmatpush1.msra.mxu0 0.0
      %4992 = vmatprep.subr.mxu0 0.0
      %4993 = vmatpush1.msra.mxu0 0.0
      %4994 = vmatprep.subr.mxu0 0.0
      %4995 = vmatpush1.msra.mxu0 0.0
      %4996 = vmatprep.subr.mxu0 0.0
      %4997 = vmatpush1.msra.mxu0 0.0
      %4998 = vmatprep.subr.mxu0 0.0
      %4999 = vmatpush1.msra.mxu0 0.0
      %5000 = vmatprep.subr.mxu0 0.0
      %5001 = vmatpush1.msra.mxu0 0.0
      %5002 = vmatprep.subr.mxu0 0.0
      %5003 = vmatpush1.msra.mxu0 0.0
      %5004 = vmatprep.subr.mxu0 0.0
      %5005 = vmatpush1.msra.mxu0 0.0
      %5006 = vmatprep.subr.mxu0 0.0
      %5007 = vmatpush1.msra.mxu0 0.0
      %5008 = vmatprep.subr.mxu0 0.0
      %5009 = vmatpush1.msra.mxu0 0.0
      %5010 = vmatprep.subr.mxu0 0.0
      %5011 = vmatpush1.msra.mxu0 0.0
      %5012 = vmatprep.subr.mxu0 0.0
      %5013 = vmatpush1.msra.mxu0 0.0
      %5014 = vmatprep.subr.mxu0 0.0
      %5015 = vmatpush1.msra.mxu0 0.0
      %5016 = vmatprep.subr.mxu0 0.0
      %5017 = vmatpush1.msra.mxu0 0.0
      %5018 = vmatprep.subr.mxu0 0.0
      %5019 = vmatpush1.msra.mxu0 0.0
      %5020 = vmatprep.subr.mxu0 0.0
      %5021 = vmatpush1.msra.mxu0 0.0
      %5022 = vmatprep.subr.mxu0 0.0
      %5023 = vmatpush1.msra.mxu0 0.0
      %5024 = vmatprep.subr.mxu0 0.0
      %5025 = vmatpush1.msra.mxu0 0.0
      %5026 = vmatprep.subr.mxu0 0.0
      %5027 = vmatpush1.msra.mxu0 0.0
      %5028 = vmatprep.subr.mxu0 0.0
      %5029 = vmatpush1.msra.mxu0 0.0
      %5030 = vmatprep.subr.mxu0 0.0
      %5031 = vmatpush1.msra.mxu0 0.0
      %5032 = vmatprep.subr.mxu0 0.0
      %5033 = vmatpush1.msra.mxu0 0.0
      %5034 = vmatprep.subr.mxu0 0.0
      %5035 = vmatpush1.msra.mxu0 0.0
      %5036 = vmatprep.subr.mxu0 0.0
      %5037 = vmatpush1.msra.mxu0 0.0
      %5038 = vmatprep.subr.mxu0 0.0
      %5039 = vmatpush1.msra.mxu0 0.0
      %5040 = vmatprep.subr.mxu0 0.0
      %5041 = vmatpush1.msra.mxu0 0.0
      %5042 = vmatprep.subr.mxu0 0.0
      %5043 = vmatpush1.msra.mxu0 0.0
      %5044 = vmatprep.mubr.f32.mxu0 0.0
      %5045 = vmatmul.mubr.f32.gmra.mrb[0].mxu0 %v3699
      %v5046 = vpop.f32.mrb[0].mxu0
      %v5047 = vadd.f32 %v4978, %v5046
      %v5048 = vpop.f32.mrb[0].mxu0
      %5049 = vmatprep.mubr.f32.mxu0 0.0
      %5050 = vmatmul.mubr.f32.gmra.mrb[0].mxu0 %v3702
      %v5051 = vpop.f32.mrb[0].mxu0
      %v5052 = vadd.f32 %v4978, %v5051
      %v5053 = vpop.f32.mrb[0].mxu0
      %5054 = vmatprep.mubr.f32.mxu0 0.0
      %5055 = vmatmul.mubr.f32.gmra.mrb[0].mxu0 %v3705
      %v5056 = vpop.f32.mrb[0].mxu0
      %v5057 = vadd.f32 %v4978, %v5056
      %v5058 = vpop.f32.mrb[0].mxu0
      %5059 = vdwg.mxu0
      %s5060 = scalar_lea.vmem %s8, 192
      %v5061 = vld [vmem:[%s5060] sm:$0xff]
      %v5062 = vld [vmem:[%s5060 + $0x8] sm:$0xff]
      %v5063 = vld [vmem:[%s5060 + $0x10] sm:$0xff]
      %v5064 = vld [vmem:[%s5060 + $0x18] sm:$0xff]
      %s5065 = scalar_lea.vmem %s11, 6
      %v5066 = vld [vmem:[%s5065] sm:$0x1]
      %v5068 = vlaneseq
      %v5069 = vshrl.u32 %v5068, 7
      %v5070 = vsub.s32 0, %v5069
      %v5071 = vrot.slane %v5066, %v5070
      %5073 = vmatprep.subr.mxu0 0.0
      %5074 = vmatpush1.msra.mxu0 %v5061
      %5075 = vmatprep.subr.mxu0 0.0
      %5076 = vmatpush1.msra.mxu0 %v5062
      %5077 = vmatprep.subr.mxu0 0.0
      %5078 = vmatpush1.msra.mxu0 %v5063
      %5079 = vmatprep.subr.mxu0 0.0
      %5080 = vmatpush1.msra.mxu0 %v5064
      %5081 = vmatprep.subr.mxu0 0.0
      %5082 = vmatpush1.msra.mxu0 0.0
      %5083 = vmatprep.subr.mxu0 0.0
      %5084 = vmatpush1.msra.mxu0 0.0
      %5085 = vmatprep.subr.mxu0 0.0
      %5086 = vmatpush1.msra.mxu0 0.0
      %5087 = vmatprep.subr.mxu0 0.0
      %5088 = vmatpush1.msra.mxu0 0.0
      %5089 = vmatprep.subr.mxu0 0.0
      %5090 = vmatpush1.msra.mxu0 0.0
      %5091 = vmatprep.subr.mxu0 0.0
      %5092 = vmatpush1.msra.mxu0 0.0
      %5093 = vmatprep.subr.mxu0 0.0
      %5094 = vmatpush1.msra.mxu0 0.0
      %5095 = vmatprep.subr.mxu0 0.0
      %5096 = vmatpush1.msra.mxu0 0.0
      %5097 = vmatprep.subr.mxu0 0.0
      %5098 = vmatpush1.msra.mxu0 0.0
      %5099 = vmatprep.subr.mxu0 0.0
      %5100 = vmatpush1.msra.mxu0 0.0
      %5101 = vmatprep.subr.mxu0 0.0
      %5102 = vmatpush1.msra.mxu0 0.0
      %5103 = vmatprep.subr.mxu0 0.0
      %5104 = vmatpush1.msra.mxu0 0.0
      %5105 = vmatprep.subr.mxu0 0.0
      %5106 = vmatpush1.msra.mxu0 0.0
      %5107 = vmatprep.subr.mxu0 0.0
      %5108 = vmatpush1.msra.mxu0 0.0
      %5109 = vmatprep.subr.mxu0 0.0
      %5110 = vmatpush1.msra.mxu0 0.0
      %5111 = vmatprep.subr.mxu0 0.0
      %5112 = vmatpush1.msra.mxu0 0.0
      %5113 = vmatprep.subr.mxu0 0.0
      %5114 = vmatpush1.msra.mxu0 0.0
      %5115 = vmatprep.subr.mxu0 0.0
      %5116 = vmatpush1.msra.mxu0 0.0
      %5117 = vmatprep.subr.mxu0 0.0
      %5118 = vmatpush1.msra.mxu0 0.0
      %5119 = vmatprep.subr.mxu0 0.0
      %5120 = vmatpush1.msra.mxu0 0.0
      %5121 = vmatprep.subr.mxu0 0.0
      %5122 = vmatpush1.msra.mxu0 0.0
      %5123 = vmatprep.subr.mxu0 0.0
      %5124 = vmatpush1.msra.mxu0 0.0
      %5125 = vmatprep.subr.mxu0 0.0
      %5126 = vmatpush1.msra.mxu0 0.0
      %5127 = vmatprep.subr.mxu0 0.0
      %5128 = vmatpush1.msra.mxu0 0.0
      %5129 = vmatprep.subr.mxu0 0.0
      %5130 = vmatpush1.msra.mxu0 0.0
      %5131 = vmatprep.subr.mxu0 0.0
      %5132 = vmatpush1.msra.mxu0 0.0
      %5133 = vmatprep.subr.mxu0 0.0
      %5134 = vmatpush1.msra.mxu0 0.0
      %5135 = vmatprep.subr.mxu0 0.0
      %5136 = vmatpush1.msra.mxu0 0.0
      %5137 = vmatprep.mubr.f32.mxu0 0.0
      %5138 = vmatmul.mubr.f32.gmra.mrb[0].mxu0 %v3699
      %v5139 = vpop.f32.mrb[0].mxu0
      %v5140 = vadd.f32 %v5071, %v5139
      %v5141 = vpop.f32.mrb[0].mxu0
      %5142 = vmatprep.mubr.f32.mxu0 0.0
      %5143 = vmatmul.mubr.f32.gmra.mrb[0].mxu0 %v3702
      %v5144 = vpop.f32.mrb[0].mxu0
      %v5145 = vadd.f32 %v5071, %v5144
      %v5146 = vpop.f32.mrb[0].mxu0
      %5147 = vmatprep.mubr.f32.mxu0 0.0
      %5148 = vmatmul.mubr.f32.gmra.mrb[0].mxu0 %v3705
      %v5149 = vpop.f32.mrb[0].mxu0
      %v5150 = vadd.f32 %v5071, %v5149
      %v5151 = vpop.f32.mrb[0].mxu0
      %5152 = vdwg.mxu0
      %v5154 = vsel %vm1240, %v4954, 0
      %v5157 = vsel %vm1240, %v4959, 0
      %v5160 = vsel %vm1240, %v4964, 0
      %v5163 = vsel %vm1240, %v5047, 0
      %v5166 = vsel %vm1240, %v5052, 0
      %v5169 = vsel %vm1240, %v5057, 0
      %5171 = vmatprep.subr.mxu0 0.0
      %5172 = vmatpush1.xpose.msra.mxu0 %v5163
      %5173 = vmatprep.subr.mxu0 0.0
      %5174 = vmatpush1.xpose.msra.mxu0 %v5166
      %5175 = vmatprep.subr.mxu0 0.0
      %5176 = vmatpush1.xpose.msra.mxu0 %v5169
      %5177 = vmatprep.subr.mxu0 0.0
      %5178 = vmatpush1.xpose.msra.mxu0 0.0
      %5179 = vmatprep.subr.mxu0 0.0
      %5180 = vmatpush1.xpose.msra.mxu0 0.0
      %5181 = vmatprep.subr.mxu0 0.0
      %5182 = vmatpush1.xpose.msra.mxu0 0.0
      %5183 = vmatprep.subr.mxu0 0.0
      %5184 = vmatpush1.xpose.msra.mxu0 0.0
      %5185 = vmatprep.subr.mxu0 0.0
      %5186 = vmatpush1.xpose.msra.mxu0 0.0
      %5187 = vmatprep.subr.mxu0 0.0
      %5188 = vmatpush1.xpose.msra.mxu0 0.0
      %5189 = vmatprep.subr.mxu0 0.0
      %5190 = vmatpush1.xpose.msra.mxu0 0.0
      %5191 = vmatprep.subr.mxu0 0.0
      %5192 = vmatpush1.xpose.msra.mxu0 0.0
      %5193 = vmatprep.subr.mxu0 0.0
      %5194 = vmatpush1.xpose.msra.mxu0 0.0
      %5195 = vmatprep.subr.mxu0 0.0
      %5196 = vmatpush1.xpose.msra.mxu0 0.0
      %5197 = vmatprep.subr.mxu0 0.0
      %5198 = vmatpush1.xpose.msra.mxu0 0.0
      %5199 = vmatprep.subr.mxu0 0.0
      %5200 = vmatpush1.xpose.msra.mxu0 0.0
      %5201 = vmatprep.subr.mxu0 0.0
      %5202 = vmatpush1.xpose.msra.mxu0 0.0
      %5203 = vmatprep.subr.mxu0 0.0
      %5204 = vmatpush1.xpose.msra.mxu0 0.0
      %5205 = vmatprep.subr.mxu0 0.0
      %5206 = vmatpush1.xpose.msra.mxu0 0.0
      %5207 = vmatprep.subr.mxu0 0.0
      %5208 = vmatpush1.xpose.msra.mxu0 0.0
      %5209 = vmatprep.subr.mxu0 0.0
      %5210 = vmatpush1.xpose.msra.mxu0 0.0
      %5211 = vmatprep.subr.mxu0 0.0
      %5212 = vmatpush1.xpose.msra.mxu0 0.0
      %5213 = vmatprep.subr.mxu0 0.0
      %5214 = vmatpush1.xpose.msra.mxu0 0.0
      %5215 = vmatprep.subr.mxu0 0.0
      %5216 = vmatpush1.xpose.msra.mxu0 0.0
      %5217 = vmatprep.subr.mxu0 0.0
      %5218 = vmatpush1.xpose.msra.mxu0 0.0
      %5219 = vmatprep.subr.mxu0 0.0
      %5220 = vmatpush1.xpose.msra.mxu0 0.0
      %5221 = vmatprep.subr.mxu0 0.0
      %5222 = vmatpush1.xpose.msra.mxu0 0.0
      %5223 = vmatprep.subr.mxu0 0.0
      %5224 = vmatpush1.xpose.msra.mxu0 0.0
      %5225 = vmatprep.subr.mxu0 0.0
      %5226 = vmatpush1.xpose.msra.mxu0 0.0
      %5227 = vmatprep.subr.mxu0 0.0
      %5228 = vmatpush1.xpose.msra.mxu0 0.0
      %5229 = vmatprep.subr.mxu0 0.0
      %5230 = vmatpush1.xpose.msra.mxu0 0.0
      %5231 = vmatprep.subr.mxu0 0.0
      %5232 = vmatpush1.xpose.msra.mxu0 0.0
      %5233 = vmatprep.subr.mxu0 0.0
      %5234 = vmatpush1.xpose.msra.mxu0 0.0
      %5235 = vmatprep.mubr.f32.mxu0 0.0
      %5236 = vmatmul.mubr.f32.gmra.mrb[0].mxu0 %v5154
      %v5237 = vpop.f32.mrb[0].mxu0
      %v5238 = vadd.f32 %v896, %v5237
      %v5239 = vpop.f32.mrb[0].mxu0
      %5240 = vmatprep.mubr.f32.mxu0 0.0
      %5241 = vmatmul.mubr.f32.gmra.mrb[0].mxu0 %v5157
      %v5242 = vpop.f32.mrb[0].mxu0
      %v5243 = vadd.f32 %v896, %v5242
      %v5244 = vpop.f32.mrb[0].mxu0
      %5245 = vmatprep.mubr.f32.mxu0 0.0
      %5246 = vmatmul.mubr.f32.gmra.mrb[0].mxu0 %v5160
      %v5247 = vpop.f32.mrb[0].mxu0
      %v5248 = vadd.f32 %v896, %v5247
      %v5249 = vpop.f32.mrb[0].mxu0
      %5250 = vdwg.mxu0
      %v5251 = vsel %vm1339, %v5238, -inf
      %5252 = vmax.xlane.f32.xlu0 %v5251
      %v5253 = vpop.xlane.xlu0 %5252
      %v5254 = vsel %vm1339, %v5243, -inf
      %5255 = vmax.xlane.f32.xlu0 %v5254
      %v5256 = vpop.xlane.xlu0 %5255
      %v5257 = vsel %vm1339, %v5248, -inf
      %5258 = vmax.xlane.f32.xlu0 %v5257
      %v5259 = vpop.xlane.xlu0 %5258
      %v5260 = vsub.f32 %v5238, %v5253
      %v5261 = vsub.f32 %v5243, %v5256
      %v5262 = vsub.f32 %v5248, %v5259
      %v5263 = vmul.f32 %v5260, 1.442695
      %v5264 = vpow.pop %v5263
      %v5265 = vmul.f32 %v5261, 1.442695
      %v5266 = vpow.pop %v5265
      %v5267 = vmul.f32 %v5262, 1.442695
      %v5268 = vpow.pop %v5267
      %v5270 = vsel %vm1339, %v5264, 0
      %v5273 = vsel %vm1339, %v5266, 0
      %v5276 = vsel %vm1339, %v5268, 0
      %5278 = vmatprep.subr.mxu0 0.0
      %5279 = vmatpush1.msra.mxu0 %v5140
      %5280 = vmatprep.subr.mxu0 0.0
      %5281 = vmatpush1.msra.mxu0 %v5145
      %5282 = vmatprep.subr.mxu0 0.0
      %5283 = vmatpush1.msra.mxu0 %v5150
      %5284 = vmatprep.subr.mxu0 0.0
      %5285 = vmatpush1.msra.mxu0 0.0
      %5286 = vmatprep.subr.mxu0 0.0
      %5287 = vmatpush1.msra.mxu0 0.0
      %5288 = vmatprep.subr.mxu0 0.0
      %5289 = vmatpush1.msra.mxu0 0.0
      %5290 = vmatprep.subr.mxu0 0.0
      %5291 = vmatpush1.msra.mxu0 0.0
      %5292 = vmatprep.subr.mxu0 0.0
      %5293 = vmatpush1.msra.mxu0 0.0
      %5294 = vmatprep.subr.mxu0 0.0
      %5295 = vmatpush1.msra.mxu0 0.0
      %5296 = vmatprep.subr.mxu0 0.0
      %5297 = vmatpush1.msra.mxu0 0.0
      %5298 = vmatprep.subr.mxu0 0.0
      %5299 = vmatpush1.msra.mxu0 0.0
      %5300 = vmatprep.subr.mxu0 0.0
      %5301 = vmatpush1.msra.mxu0 0.0
      %5302 = vmatprep.subr.mxu0 0.0
      %5303 = vmatpush1.msra.mxu0 0.0
      %5304 = vmatprep.subr.mxu0 0.0
      %5305 = vmatpush1.msra.mxu0 0.0
      %5306 = vmatprep.subr.mxu0 0.0
      %5307 = vmatpush1.msra.mxu0 0.0
      %5308 = vmatprep.subr.mxu0 0.0
      %5309 = vmatpush1.msra.mxu0 0.0
      %5310 = vmatprep.subr.mxu0 0.0
      %5311 = vmatpush1.msra.mxu0 0.0
      %5312 = vmatprep.subr.mxu0 0.0
      %5313 = vmatpush1.msra.mxu0 0.0
      %5314 = vmatprep.subr.mxu0 0.0
      %5315 = vmatpush1.msra.mxu0 0.0
      %5316 = vmatprep.subr.mxu0 0.0
      %5317 = vmatpush1.msra.mxu0 0.0
      %5318 = vmatprep.subr.mxu0 0.0
      %5319 = vmatpush1.msra.mxu0 0.0
      %5320 = vmatprep.subr.mxu0 0.0
      %5321 = vmatpush1.msra.mxu0 0.0
      %5322 = vmatprep.subr.mxu0 0.0
      %5323 = vmatpush1.msra.mxu0 0.0
      %5324 = vmatprep.subr.mxu0 0.0
      %5325 = vmatpush1.msra.mxu0 0.0
      %5326 = vmatprep.subr.mxu0 0.0
      %5327 = vmatpush1.msra.mxu0 0.0
      %5328 = vmatprep.subr.mxu0 0.0
      %5329 = vmatpush1.msra.mxu0 0.0
      %5330 = vmatprep.subr.mxu0 0.0
      %5331 = vmatpush1.msra.mxu0 0.0
      %5332 = vmatprep.subr.mxu0 0.0
      %5333 = vmatpush1.msra.mxu0 0.0
      %5334 = vmatprep.subr.mxu0 0.0
      %5335 = vmatpush1.msra.mxu0 0.0
      %5336 = vmatprep.subr.mxu0 0.0
      %5337 = vmatpush1.msra.mxu0 0.0
      %5338 = vmatprep.subr.mxu0 0.0
      %5339 = vmatpush1.msra.mxu0 0.0
      %5340 = vmatprep.subr.mxu0 0.0
      %5341 = vmatpush1.msra.mxu0 0.0
      %5342 = vmatprep.mubr.f32.mxu0 0.0
      %5343 = vmatmul.mubr.f32.gmra.mrb[0].mxu0 %v5270
      %v5344 = vpop.f32.mrb[0].mxu0
      %v5345 = vadd.f32 0.0, %v5344
      %v5346 = vpop.f32.mrb[0].mxu0
      %5347 = vmatprep.mubr.f32.mxu0 0.0
      %5348 = vmatmul.mubr.f32.gmra.mrb[0].mxu0 %v5273
      %v5349 = vpop.f32.mrb[0].mxu0
      %v5350 = vadd.f32 0.0, %v5349
      %v5351 = vpop.f32.mrb[0].mxu0
      %5352 = vmatprep.mubr.f32.mxu0 0.0
      %5353 = vmatmul.mubr.f32.gmra.mrb[0].mxu0 %v5276
      %v5354 = vpop.f32.mrb[0].mxu0
      %v5355 = vadd.f32 0.0, %v5354
      %v5356 = vpop.f32.mrb[0].mxu0
      %5357 = vdwg.mxu0
      %v5358 = vsel %vm1339, %v5264, 0.0
      %5359 = vadd.xlane.f32.xlu0 %v5358
      %v5360 = vpop.xlane.xlu0 %5359
      %v5361 = vsel %vm1339, %v5266, 0.0
      %5362 = vadd.xlane.f32.xlu0 %v5361
      %v5363 = vpop.xlane.xlu0 %5362
      %v5364 = vsel %vm1339, %v5268, 0.0
      %5365 = vadd.xlane.f32.xlu0 %v5364
      %v5366 = vpop.xlane.xlu0 %5365
      %v5367 = vrcp.pop %v5360
      %v5368 = vrcp.pop %v5363
      %v5369 = vrcp.pop %v5366
      %v5370 = vmul.f32 %v5345, %v5367
      %v5371 = vmul.f32 %v5350, %v5368
      %v5372 = vmul.f32 %v5355, %v5369
      %s5373 = scalar_lea.vmem %s12, 48
      %v5374 = vld [vmem:[%s5373] sm:$0xff]
      %v5376 = vsel %vm1240, %v5370, 0
      %v5379 = vsel %vm1240, %v5371, 0
      %v5382 = vsel %vm1240, %v5372, 0
      %5384 = vmatprep.subr.mxu0 0.0
      %5385 = vmatpush1.msra.mxu0 %v5374
      %5386 = vmatprep.subr.mxu0 0.0
      %5387 = vmatpush1.msra.mxu0 0.0
      %5388 = vmatprep.subr.mxu0 0.0
      %5389 = vmatpush1.msra.mxu0 0.0
      %5390 = vmatprep.subr.mxu0 0.0
      %5391 = vmatpush1.msra.mxu0 0.0
      %5392 = vmatprep.subr.mxu0 0.0
      %5393 = vmatpush1.msra.mxu0 0.0
      %5394 = vmatprep.subr.mxu0 0.0
      %5395 = vmatpush1.msra.mxu0 0.0
      %5396 = vmatprep.subr.mxu0 0.0
      %5397 = vmatpush1.msra.mxu0 0.0
      %5398 = vmatprep.subr.mxu0 0.0
      %5399 = vmatpush1.msra.mxu0 0.0
      %5400 = vmatprep.subr.mxu0 0.0
      %5401 = vmatpush1.msra.mxu0 0.0
      %5402 = vmatprep.subr.mxu0 0.0
      %5403 = vmatpush1.msra.mxu0 0.0
      %5404 = vmatprep.subr.mxu0 0.0
      %5405 = vmatpush1.msra.mxu0 0.0
      %5406 = vmatprep.subr.mxu0 0.0
      %5407 = vmatpush1.msra.mxu0 0.0
      %5408 = vmatprep.subr.mxu0 0.0
      %5409 = vmatpush1.msra.mxu0 0.0
      %5410 = vmatprep.subr.mxu0 0.0
      %5411 = vmatpush1.msra.mxu0 0.0
      %5412 = vmatprep.subr.mxu0 0.0
      %5413 = vmatpush1.msra.mxu0 0.0
      %5414 = vmatprep.subr.mxu0 0.0
      %5415 = vmatpush1.msra.mxu0 0.0
      %5416 = vmatprep.subr.mxu0 0.0
      %5417 = vmatpush1.msra.mxu0 0.0
      %5418 = vmatprep.subr.mxu0 0.0
      %5419 = vmatpush1.msra.mxu0 0.0
      %5420 = vmatprep.subr.mxu0 0.0
      %5421 = vmatpush1.msra.mxu0 0.0
      %5422 = vmatprep.subr.mxu0 0.0
      %5423 = vmatpush1.msra.mxu0 0.0
      %5424 = vmatprep.subr.mxu0 0.0
      %5425 = vmatpush1.msra.mxu0 0.0
      %5426 = vmatprep.subr.mxu0 0.0
      %5427 = vmatpush1.msra.mxu0 0.0
      %5428 = vmatprep.subr.mxu0 0.0
      %5429 = vmatpush1.msra.mxu0 0.0
      %5430 = vmatprep.subr.mxu0 0.0
      %5431 = vmatpush1.msra.mxu0 0.0
      %5432 = vmatprep.subr.mxu0 0.0
      %5433 = vmatpush1.msra.mxu0 0.0
      %5434 = vmatprep.subr.mxu0 0.0
      %5435 = vmatpush1.msra.mxu0 0.0
      %5436 = vmatprep.subr.mxu0 0.0
      %5437 = vmatpush1.msra.mxu0 0.0
      %5438 = vmatprep.subr.mxu0 0.0
      %5439 = vmatpush1.msra.mxu0 0.0
      %5440 = vmatprep.subr.mxu0 0.0
      %5441 = vmatpush1.msra.mxu0 0.0
      %5442 = vmatprep.subr.mxu0 0.0
      %5443 = vmatpush1.msra.mxu0 0.0
      %5444 = vmatprep.subr.mxu0 0.0
      %5445 = vmatpush1.msra.mxu0 0.0
      %5446 = vmatprep.subr.mxu0 0.0
      %5447 = vmatpush1.msra.mxu0 0.0
      %5448 = vmatprep.mubr.f32.mxu0 0.0
      %5449 = vmatmul.mubr.f32.gmra.mrb[0].mxu0 %v5376
      %v5450 = vpop.f32.mrb[0].mxu0
      %v5451 = vadd.f32 0.0, %v5450
      %v5452 = vpop.f32.mrb[0].mxu0
      %5453 = vmatprep.mubr.f32.mxu0 0.0
      %5454 = vmatmul.mubr.f32.gmra.mrb[0].mxu0 %v5379
      %v5455 = vpop.f32.mrb[0].mxu0
      %v5456 = vadd.f32 0.0, %v5455
      %v5457 = vpop.f32.mrb[0].mxu0
      %5458 = vmatprep.mubr.f32.mxu0 0.0
      %5459 = vmatmul.mubr.f32.gmra.mrb[0].mxu0 %v5382
      %v5460 = vpop.f32.mrb[0].mxu0
      %v5461 = vadd.f32 0.0, %v5460
      %v5462 = vpop.f32.mrb[0].mxu0
      %5463 = vdwg.mxu0
      %v5464 = vadd.f32 %v4861, %v5451
      %v5465 = vadd.f32 %v4866, %v5456
      %v5466 = vadd.f32 %v4871, %v5461
      %s5467 = scalar_lea.vmem %s6, 224
      %v5468 = vld [vmem:[%s5467] sm:$0xff]
      %v5469 = vld [vmem:[%s5467 + $0x8] sm:$0xff]
      %v5470 = vld [vmem:[%s5467 + $0x10] sm:$0xff]
      %v5471 = vld [vmem:[%s5467 + $0x18] sm:$0xff]
      %s5472 = scalar_lea.vmem %s9, 7
      %v5473 = vld [vmem:[%s5472] sm:$0x1]
      %v5475 = vlaneseq
      %v5476 = vshrl.u32 %v5475, 7
      %v5477 = vsub.s32 0, %v5476
      %v5478 = vrot.slane %v5473, %v5477
      %5480 = vmatprep.subr.mxu0 0.0
      %5481 = vmatpush1.msra.mxu0 %v5468
      %5482 = vmatprep.subr.mxu0 0.0
      %5483 = vmatpush1.msra.mxu0 %v5469
      %5484 = vmatprep.subr.mxu0 0.0
      %5485 = vmatpush1.msra.mxu0 %v5470
      %5486 = vmatprep.subr.mxu0 0.0
      %5487 = vmatpush1.msra.mxu0 %v5471
      %5488 = vmatprep.subr.mxu0 0.0
      %5489 = vmatpush1.msra.mxu0 0.0
      %5490 = vmatprep.subr.mxu0 0.0
      %5491 = vmatpush1.msra.mxu0 0.0
      %5492 = vmatprep.subr.mxu0 0.0
      %5493 = vmatpush1.msra.mxu0 0.0
      %5494 = vmatprep.subr.mxu0 0.0
      %5495 = vmatpush1.msra.mxu0 0.0
      %5496 = vmatprep.subr.mxu0 0.0
      %5497 = vmatpush1.msra.mxu0 0.0
      %5498 = vmatprep.subr.mxu0 0.0
      %5499 = vmatpush1.msra.mxu0 0.0
      %5500 = vmatprep.subr.mxu0 0.0
      %5501 = vmatpush1.msra.mxu0 0.0
      %5502 = vmatprep.subr.mxu0 0.0
      %5503 = vmatpush1.msra.mxu0 0.0
      %5504 = vmatprep.subr.mxu0 0.0
      %5505 = vmatpush1.msra.mxu0 0.0
      %5506 = vmatprep.subr.mxu0 0.0
      %5507 = vmatpush1.msra.mxu0 0.0
      %5508 = vmatprep.subr.mxu0 0.0
      %5509 = vmatpush1.msra.mxu0 0.0
      %5510 = vmatprep.subr.mxu0 0.0
      %5511 = vmatpush1.msra.mxu0 0.0
      %5512 = vmatprep.subr.mxu0 0.0
      %5513 = vmatpush1.msra.mxu0 0.0
      %5514 = vmatprep.subr.mxu0 0.0
      %5515 = vmatpush1.msra.mxu0 0.0
      %5516 = vmatprep.subr.mxu0 0.0
      %5517 = vmatpush1.msra.mxu0 0.0
      %5518 = vmatprep.subr.mxu0 0.0
      %5519 = vmatpush1.msra.mxu0 0.0
      %5520 = vmatprep.subr.mxu0 0.0
      %5521 = vmatpush1.msra.mxu0 0.0
      %5522 = vmatprep.subr.mxu0 0.0
      %5523 = vmatpush1.msra.mxu0 0.0
      %5524 = vmatprep.subr.mxu0 0.0
      %5525 = vmatpush1.msra.mxu0 0.0
      %5526 = vmatprep.subr.mxu0 0.0
      %5527 = vmatpush1.msra.mxu0 0.0
      %5528 = vmatprep.subr.mxu0 0.0
      %5529 = vmatpush1.msra.mxu0 0.0
      %5530 = vmatprep.subr.mxu0 0.0
      %5531 = vmatpush1.msra.mxu0 0.0
      %5532 = vmatprep.subr.mxu0 0.0
      %5533 = vmatpush1.msra.mxu0 0.0
      %5534 = vmatprep.subr.mxu0 0.0
      %5535 = vmatpush1.msra.mxu0 0.0
      %5536 = vmatprep.subr.mxu0 0.0
      %5537 = vmatpush1.msra.mxu0 0.0
      %5538 = vmatprep.subr.mxu0 0.0
      %5539 = vmatpush1.msra.mxu0 0.0
      %5540 = vmatprep.subr.mxu0 0.0
      %5541 = vmatpush1.msra.mxu0 0.0
      %5542 = vmatprep.subr.mxu0 0.0
      %5543 = vmatpush1.msra.mxu0 0.0
      %5544 = vmatprep.mubr.f32.mxu0 0.0
      %5545 = vmatmul.mubr.f32.gmra.mrb[0].mxu0 %v3699
      %v5546 = vpop.f32.mrb[0].mxu0
      %v5547 = vadd.f32 %v5478, %v5546
      %v5548 = vpop.f32.mrb[0].mxu0
      %5549 = vmatprep.mubr.f32.mxu0 0.0
      %5550 = vmatmul.mubr.f32.gmra.mrb[0].mxu0 %v3702
      %v5551 = vpop.f32.mrb[0].mxu0
      %v5552 = vadd.f32 %v5478, %v5551
      %v5553 = vpop.f32.mrb[0].mxu0
      %5554 = vmatprep.mubr.f32.mxu0 0.0
      %5555 = vmatmul.mubr.f32.gmra.mrb[0].mxu0 %v3705
      %v5556 = vpop.f32.mrb[0].mxu0
      %v5557 = vadd.f32 %v5478, %v5556
      %v5558 = vpop.f32.mrb[0].mxu0
      %5559 = vdwg.mxu0
      %s5560 = scalar_lea.vmem %s7, 224
      %v5561 = vld [vmem:[%s5560] sm:$0xff]
      %v5562 = vld [vmem:[%s5560 + $0x8] sm:$0xff]
      %v5563 = vld [vmem:[%s5560 + $0x10] sm:$0xff]
      %v5564 = vld [vmem:[%s5560 + $0x18] sm:$0xff]
      %s5565 = scalar_lea.vmem %s10, 7
      %v5566 = vld [vmem:[%s5565] sm:$0x1]
      %v5568 = vlaneseq
      %v5569 = vshrl.u32 %v5568, 7
      %v5570 = vsub.s32 0, %v5569
      %v5571 = vrot.slane %v5566, %v5570
      %5573 = vmatprep.subr.mxu0 0.0
      %5574 = vmatpush1.msra.mxu0 %v5561
      %5575 = vmatprep.subr.mxu0 0.0
      %5576 = vmatpush1.msra.mxu0 %v5562
      %5577 = vmatprep.subr.mxu0 0.0
      %5578 = vmatpush1.msra.mxu0 %v5563
      %5579 = vmatprep.subr.mxu0 0.0
      %5580 = vmatpush1.msra.mxu0 %v5564
      %5581 = vmatprep.subr.mxu0 0.0
      %5582 = vmatpush1.msra.mxu0 0.0
      %5583 = vmatprep.subr.mxu0 0.0
      %5584 = vmatpush1.msra.mxu0 0.0
      %5585 = vmatprep.subr.mxu0 0.0
      %5586 = vmatpush1.msra.mxu0 0.0
      %5587 = vmatprep.subr.mxu0 0.0
      %5588 = vmatpush1.msra.mxu0 0.0
      %5589 = vmatprep.subr.mxu0 0.0
      %5590 = vmatpush1.msra.mxu0 0.0
      %5591 = vmatprep.subr.mxu0 0.0
      %5592 = vmatpush1.msra.mxu0 0.0
      %5593 = vmatprep.subr.mxu0 0.0
      %5594 = vmatpush1.msra.mxu0 0.0
      %5595 = vmatprep.subr.mxu0 0.0
      %5596 = vmatpush1.msra.mxu0 0.0
      %5597 = vmatprep.subr.mxu0 0.0
      %5598 = vmatpush1.msra.mxu0 0.0
      %5599 = vmatprep.subr.mxu0 0.0
      %5600 = vmatpush1.msra.mxu0 0.0
      %5601 = vmatprep.subr.mxu0 0.0
      %5602 = vmatpush1.msra.mxu0 0.0
      %5603 = vmatprep.subr.mxu0 0.0
      %5604 = vmatpush1.msra.mxu0 0.0
      %5605 = vmatprep.subr.mxu0 0.0
      %5606 = vmatpush1.msra.mxu0 0.0
      %5607 = vmatprep.subr.mxu0 0.0
      %5608 = vmatpush1.msra.mxu0 0.0
      %5609 = vmatprep.subr.mxu0 0.0
      %5610 = vmatpush1.msra.mxu0 0.0
      %5611 = vmatprep.subr.mxu0 0.0
      %5612 = vmatpush1.msra.mxu0 0.0
      %5613 = vmatprep.subr.mxu0 0.0
      %5614 = vmatpush1.msra.mxu0 0.0
      %5615 = vmatprep.subr.mxu0 0.0
      %5616 = vmatpush1.msra.mxu0 0.0
      %5617 = vmatprep.subr.mxu0 0.0
      %5618 = vmatpush1.msra.mxu0 0.0
      %5619 = vmatprep.subr.mxu0 0.0
      %5620 = vmatpush1.msra.mxu0 0.0
      %5621 = vmatprep.subr.mxu0 0.0
      %5622 = vmatpush1.msra.mxu0 0.0
      %5623 = vmatprep.subr.mxu0 0.0
      %5624 = vmatpush1.msra.mxu0 0.0
      %5625 = vmatprep.subr.mxu0 0.0
      %5626 = vmatpush1.msra.mxu0 0.0
      %5627 = vmatprep.subr.mxu0 0.0
      %5628 = vmatpush1.msra.mxu0 0.0
      %5629 = vmatprep.subr.mxu0 0.0
      %5630 = vmatpush1.msra.mxu0 0.0
      %5631 = vmatprep.subr.mxu0 0.0
      %5632 = vmatpush1.msra.mxu0 0.0
      %5633 = vmatprep.subr.mxu0 0.0
      %5634 = vmatpush1.msra.mxu0 0.0
      %5635 = vmatprep.subr.mxu0 0.0
      %5636 = vmatpush1.msra.mxu0 0.0
      %5637 = vmatprep.mubr.f32.mxu0 0.0
      %5638 = vmatmul.mubr.f32.gmra.mrb[0].mxu0 %v3699
      %v5639 = vpop.f32.mrb[0].mxu0
      %v5640 = vadd.f32 %v5571, %v5639
      %v5641 = vpop.f32.mrb[0].mxu0
      %5642 = vmatprep.mubr.f32.mxu0 0.0
      %5643 = vmatmul.mubr.f32.gmra.mrb[0].mxu0 %v3702
      %v5644 = vpop.f32.mrb[0].mxu0
      %v5645 = vadd.f32 %v5571, %v5644
      %v5646 = vpop.f32.mrb[0].mxu0
      %5647 = vmatprep.mubr.f32.mxu0 0.0
      %5648 = vmatmul.mubr.f32.gmra.mrb[0].mxu0 %v3705
      %v5649 = vpop.f32.mrb[0].mxu0
      %v5650 = vadd.f32 %v5571, %v5649
      %v5651 = vpop.f32.mrb[0].mxu0
      %5652 = vdwg.mxu0
      %s5653 = scalar_lea.vmem %s8, 224
      %v5654 = vld [vmem:[%s5653] sm:$0xff]
      %v5655 = vld [vmem:[%s5653 + $0x8] sm:$0xff]
      %v5656 = vld [vmem:[%s5653 + $0x10] sm:$0xff]
      %v5657 = vld [vmem:[%s5653 + $0x18] sm:$0xff]
      %s5658 = scalar_lea.vmem %s11, 7
      %v5659 = vld [vmem:[%s5658] sm:$0x1]
      %v5661 = vlaneseq
      %v5662 = vshrl.u32 %v5661, 7
      %v5663 = vsub.s32 0, %v5662
      %v5664 = vrot.slane %v5659, %v5663
      %5666 = vmatprep.subr.mxu0 0.0
      %5667 = vmatpush1.msra.mxu0 %v5654
      %5668 = vmatprep.subr.mxu0 0.0
      %5669 = vmatpush1.msra.mxu0 %v5655
      %5670 = vmatprep.subr.mxu0 0.0
      %5671 = vmatpush1.msra.mxu0 %v5656
      %5672 = vmatprep.subr.mxu0 0.0
      %5673 = vmatpush1.msra.mxu0 %v5657
      %5674 = vmatprep.subr.mxu0 0.0
      %5675 = vmatpush1.msra.mxu0 0.0
      %5676 = vmatprep.subr.mxu0 0.0
      %5677 = vmatpush1.msra.mxu0 0.0
      %5678 = vmatprep.subr.mxu0 0.0
      %5679 = vmatpush1.msra.mxu0 0.0
      %5680 = vmatprep.subr.mxu0 0.0
      %5681 = vmatpush1.msra.mxu0 0.0
      %5682 = vmatprep.subr.mxu0 0.0
      %5683 = vmatpush1.msra.mxu0 0.0
      %5684 = vmatprep.subr.mxu0 0.0
      %5685 = vmatpush1.msra.mxu0 0.0
      %5686 = vmatprep.subr.mxu0 0.0
      %5687 = vmatpush1.msra.mxu0 0.0
      %5688 = vmatprep.subr.mxu0 0.0
      %5689 = vmatpush1.msra.mxu0 0.0
      %5690 = vmatprep.subr.mxu0 0.0
      %5691 = vmatpush1.msra.mxu0 0.0
      %5692 = vmatprep.subr.mxu0 0.0
      %5693 = vmatpush1.msra.mxu0 0.0
      %5694 = vmatprep.subr.mxu0 0.0
      %5695 = vmatpush1.msra.mxu0 0.0
      %5696 = vmatprep.subr.mxu0 0.0
      %5697 = vmatpush1.msra.mxu0 0.0
      %5698 = vmatprep.subr.mxu0 0.0
      %5699 = vmatpush1.msra.mxu0 0.0
      %5700 = vmatprep.subr.mxu0 0.0
      %5701 = vmatpush1.msra.mxu0 0.0
      %5702 = vmatprep.subr.mxu0 0.0
      %5703 = vmatpush1.msra.mxu0 0.0
      %5704 = vmatprep.subr.mxu0 0.0
      %5705 = vmatpush1.msra.mxu0 0.0
      %5706 = vmatprep.subr.mxu0 0.0
      %5707 = vmatpush1.msra.mxu0 0.0
      %5708 = vmatprep.subr.mxu0 0.0
      %5709 = vmatpush1.msra.mxu0 0.0
      %5710 = vmatprep.subr.mxu0 0.0
      %5711 = vmatpush1.msra.mxu0 0.0
      %5712 = vmatprep.subr.mxu0 0.0
      %5713 = vmatpush1.msra.mxu0 0.0
      %5714 = vmatprep.subr.mxu0 0.0
      %5715 = vmatpush1.msra.mxu0 0.0
      %5716 = vmatprep.subr.mxu0 0.0
      %5717 = vmatpush1.msra.mxu0 0.0
      %5718 = vmatprep.subr.mxu0 0.0
      %5719 = vmatpush1.msra.mxu0 0.0
      %5720 = vmatprep.subr.mxu0 0.0
      %5721 = vmatpush1.msra.mxu0 0.0
      %5722 = vmatprep.subr.mxu0 0.0
      %5723 = vmatpush1.msra.mxu0 0.0
      %5724 = vmatprep.subr.mxu0 0.0
      %5725 = vmatpush1.msra.mxu0 0.0
      %5726 = vmatprep.subr.mxu0 0.0
      %5727 = vmatpush1.msra.mxu0 0.0
      %5728 = vmatprep.subr.mxu0 0.0
      %5729 = vmatpush1.msra.mxu0 0.0
      %5730 = vmatprep.mubr.f32.mxu0 0.0
      %5731 = vmatmul.mubr.f32.gmra.mrb[0].mxu0 %v3699
      %v5732 = vpop.f32.mrb[0].mxu0
      %v5733 = vadd.f32 %v5664, %v5732
      %v5734 = vpop.f32.mrb[0].mxu0
      %5735 = vmatprep.mubr.f32.mxu0 0.0
      %5736 = vmatmul.mubr.f32.gmra.mrb[0].mxu0 %v3702
      %v5737 = vpop.f32.mrb[0].mxu0
      %v5738 = vadd.f32 %v5664, %v5737
      %v5739 = vpop.f32.mrb[0].mxu0
      %5740 = vmatprep.mubr.f32.mxu0 0.0
      %5741 = vmatmul.mubr.f32.gmra.mrb[0].mxu0 %v3705
      %v5742 = vpop.f32.mrb[0].mxu0
      %v5743 = vadd.f32 %v5664, %v5742
      %v5744 = vpop.f32.mrb[0].mxu0
      %5745 = vdwg.mxu0
      %v5747 = vsel %vm1240, %v5547, 0
      %v5750 = vsel %vm1240, %v5552, 0
      %v5753 = vsel %vm1240, %v5557, 0
      %v5756 = vsel %vm1240, %v5640, 0
      %v5759 = vsel %vm1240, %v5645, 0
      %v5762 = vsel %vm1240, %v5650, 0
      %5764 = vmatprep.subr.mxu0 0.0
      %5765 = vmatpush1.xpose.msra.mxu0 %v5756
      %5766 = vmatprep.subr.mxu0 0.0
      %5767 = vmatpush1.xpose.msra.mxu0 %v5759
      %5768 = vmatprep.subr.mxu0 0.0
      %5769 = vmatpush1.xpose.msra.mxu0 %v5762
      %5770 = vmatprep.subr.mxu0 0.0
      %5771 = vmatpush1.xpose.msra.mxu0 0.0
      %5772 = vmatprep.subr.mxu0 0.0
      %5773 = vmatpush1.xpose.msra.mxu0 0.0
      %5774 = vmatprep.subr.mxu0 0.0
      %5775 = vmatpush1.xpose.msra.mxu0 0.0
      %5776 = vmatprep.subr.mxu0 0.0
      %5777 = vmatpush1.xpose.msra.mxu0 0.0
      %5778 = vmatprep.subr.mxu0 0.0
      %5779 = vmatpush1.xpose.msra.mxu0 0.0
      %5780 = vmatprep.subr.mxu0 0.0
      %5781 = vmatpush1.xpose.msra.mxu0 0.0
      %5782 = vmatprep.subr.mxu0 0.0
      %5783 = vmatpush1.xpose.msra.mxu0 0.0
      %5784 = vmatprep.subr.mxu0 0.0
      %5785 = vmatpush1.xpose.msra.mxu0 0.0
      %5786 = vmatprep.subr.mxu0 0.0
      %5787 = vmatpush1.xpose.msra.mxu0 0.0
      %5788 = vmatprep.subr.mxu0 0.0
      %5789 = vmatpush1.xpose.msra.mxu0 0.0
      %5790 = vmatprep.subr.mxu0 0.0
      %5791 = vmatpush1.xpose.msra.mxu0 0.0
      %5792 = vmatprep.subr.mxu0 0.0
      %5793 = vmatpush1.xpose.msra.mxu0 0.0
      %5794 = vmatprep.subr.mxu0 0.0
      %5795 = vmatpush1.xpose.msra.mxu0 0.0
      %5796 = vmatprep.subr.mxu0 0.0
      %5797 = vmatpush1.xpose.msra.mxu0 0.0
      %5798 = vmatprep.subr.mxu0 0.0
      %5799 = vmatpush1.xpose.msra.mxu0 0.0
      %5800 = vmatprep.subr.mxu0 0.0
      %5801 = vmatpush1.xpose.msra.mxu0 0.0
      %5802 = vmatprep.subr.mxu0 0.0
      %5803 = vmatpush1.xpose.msra.mxu0 0.0
      %5804 = vmatprep.subr.mxu0 0.0
      %5805 = vmatpush1.xpose.msra.mxu0 0.0
      %5806 = vmatprep.subr.mxu0 0.0
      %5807 = vmatpush1.xpose.msra.mxu0 0.0
      %5808 = vmatprep.subr.mxu0 0.0
      %5809 = vmatpush1.xpose.msra.mxu0 0.0
      %5810 = vmatprep.subr.mxu0 0.0
      %5811 = vmatpush1.xpose.msra.mxu0 0.0
      %5812 = vmatprep.subr.mxu0 0.0
      %5813 = vmatpush1.xpose.msra.mxu0 0.0
      %5814 = vmatprep.subr.mxu0 0.0
      %5815 = vmatpush1.xpose.msra.mxu0 0.0
      %5816 = vmatprep.subr.mxu0 0.0
      %5817 = vmatpush1.xpose.msra.mxu0 0.0
      %5818 = vmatprep.subr.mxu0 0.0
      %5819 = vmatpush1.xpose.msra.mxu0 0.0
      %5820 = vmatprep.subr.mxu0 0.0
      %5821 = vmatpush1.xpose.msra.mxu0 0.0
      %5822 = vmatprep.subr.mxu0 0.0
      %5823 = vmatpush1.xpose.msra.mxu0 0.0
      %5824 = vmatprep.subr.mxu0 0.0
      %5825 = vmatpush1.xpose.msra.mxu0 0.0
      %5826 = vmatprep.subr.mxu0 0.0
      %5827 = vmatpush1.xpose.msra.mxu0 0.0
      %5828 = vmatprep.mubr.f32.mxu0 0.0
      %5829 = vmatmul.mubr.f32.gmra.mrb[0].mxu0 %v5747
      %v5830 = vpop.f32.mrb[0].mxu0
      %v5831 = vadd.f32 %v896, %v5830
      %v5832 = vpop.f32.mrb[0].mxu0
      %5833 = vmatprep.mubr.f32.mxu0 0.0
      %5834 = vmatmul.mubr.f32.gmra.mrb[0].mxu0 %v5750
      %v5835 = vpop.f32.mrb[0].mxu0
      %v5836 = vadd.f32 %v896, %v5835
      %v5837 = vpop.f32.mrb[0].mxu0
      %5838 = vmatprep.mubr.f32.mxu0 0.0
      %5839 = vmatmul.mubr.f32.gmra.mrb[0].mxu0 %v5753
      %v5840 = vpop.f32.mrb[0].mxu0
      %v5841 = vadd.f32 %v896, %v5840
      %v5842 = vpop.f32.mrb[0].mxu0
      %5843 = vdwg.mxu0
      %v5844 = vsel %vm1339, %v5831, -inf
      %5845 = vmax.xlane.f32.xlu0 %v5844
      %v5846 = vpop.xlane.xlu0 %5845
      %v5847 = vsel %vm1339, %v5836, -inf
      %5848 = vmax.xlane.f32.xlu0 %v5847
      %v5849 = vpop.xlane.xlu0 %5848
      %v5850 = vsel %vm1339, %v5841, -inf
      %5851 = vmax.xlane.f32.xlu0 %v5850
      %v5852 = vpop.xlane.xlu0 %5851
      %v5853 = vsub.f32 %v5831, %v5846
      %v5854 = vsub.f32 %v5836, %v5849
      %v5855 = vsub.f32 %v5841, %v5852
      %v5856 = vmul.f32 %v5853, 1.442695
      %v5857 = vpow.pop %v5856
      %v5858 = vmul.f32 %v5854, 1.442695
      %v5859 = vpow.pop %v5858
      %v5860 = vmul.f32 %v5855, 1.442695
      %v5861 = vpow.pop %v5860
      %v5863 = vsel %vm1339, %v5857, 0
      %v5866 = vsel %vm1339, %v5859, 0
      %v5869 = vsel %vm1339, %v5861, 0
      %5871 = vmatprep.subr.mxu0 0.0
      %5872 = vmatpush1.msra.mxu0 %v5733
      %5873 = vmatprep.subr.mxu0 0.0
      %5874 = vmatpush1.msra.mxu0 %v5738
      %5875 = vmatprep.subr.mxu0 0.0
      %5876 = vmatpush1.msra.mxu0 %v5743
      %5877 = vmatprep.subr.mxu0 0.0
      %5878 = vmatpush1.msra.mxu0 0.0
      %5879 = vmatprep.subr.mxu0 0.0
      %5880 = vmatpush1.msra.mxu0 0.0
      %5881 = vmatprep.subr.mxu0 0.0
      %5882 = vmatpush1.msra.mxu0 0.0
      %5883 = vmatprep.subr.mxu0 0.0
      %5884 = vmatpush1.msra.mxu0 0.0
      %5885 = vmatprep.subr.mxu0 0.0
      %5886 = vmatpush1.msra.mxu0 0.0
      %5887 = vmatprep.subr.mxu0 0.0
      %5888 = vmatpush1.msra.mxu0 0.0
      %5889 = vmatprep.subr.mxu0 0.0
      %5890 = vmatpush1.msra.mxu0 0.0
      %5891 = vmatprep.subr.mxu0 0.0
      %5892 = vmatpush1.msra.mxu0 0.0
      %5893 = vmatprep.subr.mxu0 0.0
      %5894 = vmatpush1.msra.mxu0 0.0
      %5895 = vmatprep.subr.mxu0 0.0
      %5896 = vmatpush1.msra.mxu0 0.0
      %5897 = vmatprep.subr.mxu0 0.0
      %5898 = vmatpush1.msra.mxu0 0.0
      %5899 = vmatprep.subr.mxu0 0.0
      %5900 = vmatpush1.msra.mxu0 0.0
      %5901 = vmatprep.subr.mxu0 0.0
      %5902 = vmatpush1.msra.mxu0 0.0
      %5903 = vmatprep.subr.mxu0 0.0
      %5904 = vmatpush1.msra.mxu0 0.0
      %5905 = vmatprep.subr.mxu0 0.0
      %5906 = vmatpush1.msra.mxu0 0.0
      %5907 = vmatprep.subr.mxu0 0.0
      %5908 = vmatpush1.msra.mxu0 0.0
      %5909 = vmatprep.subr.mxu0 0.0
      %5910 = vmatpush1.msra.mxu0 0.0
      %5911 = vmatprep.subr.mxu0 0.0
      %5912 = vmatpush1.msra.mxu0 0.0
      %5913 = vmatprep.subr.mxu0 0.0
      %5914 = vmatpush1.msra.mxu0 0.0
      %5915 = vmatprep.subr.mxu0 0.0
      %5916 = vmatpush1.msra.mxu0 0.0
      %5917 = vmatprep.subr.mxu0 0.0
      %5918 = vmatpush1.msra.mxu0 0.0
      %5919 = vmatprep.subr.mxu0 0.0
      %5920 = vmatpush1.msra.mxu0 0.0
      %5921 = vmatprep.subr.mxu0 0.0
      %5922 = vmatpush1.msra.mxu0 0.0
      %5923 = vmatprep.subr.mxu0 0.0
      %5924 = vmatpush1.msra.mxu0 0.0
      %5925 = vmatprep.subr.mxu0 0.0
      %5926 = vmatpush1.msra.mxu0 0.0
      %5927 = vmatprep.subr.mxu0 0.0
      %5928 = vmatpush1.msra.mxu0 0.0
      %5929 = vmatprep.subr.mxu0 0.0
      %5930 = vmatpush1.msra.mxu0 0.0
      %5931 = vmatprep.subr.mxu0 0.0
      %5932 = vmatpush1.msra.mxu0 0.0
      %5933 = vmatprep.subr.mxu0 0.0
      %5934 = vmatpush1.msra.mxu0 0.0
      %5935 = vmatprep.mubr.f32.mxu0 0.0
      %5936 = vmatmul.mubr.f32.gmra.mrb[0].mxu0 %v5863
      %v5937 = vpop.f32.mrb[0].mxu0
      %v5938 = vadd.f32 0.0, %v5937
      %v5939 = vpop.f32.mrb[0].mxu0
      %5940 = vmatprep.mubr.f32.mxu0 0.0
      %5941 = vmatmul.mubr.f32.gmra.mrb[0].mxu0 %v5866
      %v5942 = vpop.f32.mrb[0].mxu0
      %v5943 = vadd.f32 0.0, %v5942
      %v5944 = vpop.f32.mrb[0].mxu0
      %5945 = vmatprep.mubr.f32.mxu0 0.0
      %5946 = vmatmul.mubr.f32.gmra.mrb[0].mxu0 %v5869
      %v5947 = vpop.f32.mrb[0].mxu0
      %v5948 = vadd.f32 0.0, %v5947
      %v5949 = vpop.f32.mrb[0].mxu0
      %5950 = vdwg.mxu0
      %v5951 = vsel %vm1339, %v5857, 0.0
      %5952 = vadd.xlane.f32.xlu0 %v5951
      %v5953 = vpop.xlane.xlu0 %5952
      %v5954 = vsel %vm1339, %v5859, 0.0
      %5955 = vadd.xlane.f32.xlu0 %v5954
      %v5956 = vpop.xlane.xlu0 %5955
      %v5957 = vsel %vm1339, %v5861, 0.0
      %5958 = vadd.xlane.f32.xlu0 %v5957
      %v5959 = vpop.xlane.xlu0 %5958
      %v5960 = vrcp.pop %v5953
      %v5961 = vrcp.pop %v5956
      %v5962 = vrcp.pop %v5959
      %v5963 = vmul.f32 %v5938, %v5960
      %v5964 = vmul.f32 %v5943, %v5961
      %v5965 = vmul.f32 %v5948, %v5962
      %s5966 = scalar_lea.vmem %s12, 56
      %v5967 = vld [vmem:[%s5966] sm:$0xff]
      %v5969 = vsel %vm1240, %v5963, 0
      %v5972 = vsel %vm1240, %v5964, 0
      %v5975 = vsel %vm1240, %v5965, 0
      %5977 = vmatprep.subr.mxu0 0.0
      %5978 = vmatpush1.msra.mxu0 %v5967
      %5979 = vmatprep.subr.mxu0 0.0
      %5980 = vmatpush1.msra.mxu0 0.0
      %5981 = vmatprep.subr.mxu0 0.0
      %5982 = vmatpush1.msra.mxu0 0.0
      %5983 = vmatprep.subr.mxu0 0.0
      %5984 = vmatpush1.msra.mxu0 0.0
      %5985 = vmatprep.subr.mxu0 0.0
      %5986 = vmatpush1.msra.mxu0 0.0
      %5987 = vmatprep.subr.mxu0 0.0
      %5988 = vmatpush1.msra.mxu0 0.0
      %5989 = vmatprep.subr.mxu0 0.0
      %5990 = vmatpush1.msra.mxu0 0.0
      %5991 = vmatprep.subr.mxu0 0.0
      %5992 = vmatpush1.msra.mxu0 0.0
      %5993 = vmatprep.subr.mxu0 0.0
      %5994 = vmatpush1.msra.mxu0 0.0
      %5995 = vmatprep.subr.mxu0 0.0
      %5996 = vmatpush1.msra.mxu0 0.0
      %5997 = vmatprep.subr.mxu0 0.0
      %5998 = vmatpush1.msra.mxu0 0.0
      %5999 = vmatprep.subr.mxu0 0.0
      %6000 = vmatpush1.msra.mxu0 0.0
      %6001 = vmatprep.subr.mxu0 0.0
      %6002 = vmatpush1.msra.mxu0 0.0
      %6003 = vmatprep.subr.mxu0 0.0
      %6004 = vmatpush1.msra.mxu0 0.0
      %6005 = vmatprep.subr.mxu0 0.0
      %6006 = vmatpush1.msra.mxu0 0.0
      %6007 = vmatprep.subr.mxu0 0.0
      %6008 = vmatpush1.msra.mxu0 0.0
      %6009 = vmatprep.subr.mxu0 0.0
      %6010 = vmatpush1.msra.mxu0 0.0
      %6011 = vmatprep.subr.mxu0 0.0
      %6012 = vmatpush1.msra.mxu0 0.0
      %6013 = vmatprep.subr.mxu0 0.0
      %6014 = vmatpush1.msra.mxu0 0.0
      %6015 = vmatprep.subr.mxu0 0.0
      %6016 = vmatpush1.msra.mxu0 0.0
      %6017 = vmatprep.subr.mxu0 0.0
      %6018 = vmatpush1.msra.mxu0 0.0
      %6019 = vmatprep.subr.mxu0 0.0
      %6020 = vmatpush1.msra.mxu0 0.0
      %6021 = vmatprep.subr.mxu0 0.0
      %6022 = vmatpush1.msra.mxu0 0.0
      %6023 = vmatprep.subr.mxu0 0.0
      %6024 = vmatpush1.msra.mxu0 0.0
      %6025 = vmatprep.subr.mxu0 0.0
      %6026 = vmatpush1.msra.mxu0 0.0
      %6027 = vmatprep.subr.mxu0 0.0
      %6028 = vmatpush1.msra.mxu0 0.0
      %6029 = vmatprep.subr.mxu0 0.0
      %6030 = vmatpush1.msra.mxu0 0.0
      %6031 = vmatprep.subr.mxu0 0.0
      %6032 = vmatpush1.msra.mxu0 0.0
      %6033 = vmatprep.subr.mxu0 0.0
      %6034 = vmatpush1.msra.mxu0 0.0
      %6035 = vmatprep.subr.mxu0 0.0
      %6036 = vmatpush1.msra.mxu0 0.0
      %6037 = vmatprep.subr.mxu0 0.0
      %6038 = vmatpush1.msra.mxu0 0.0
      %6039 = vmatprep.subr.mxu0 0.0
      %6040 = vmatpush1.msra.mxu0 0.0
      %6041 = vmatprep.mubr.f32.mxu0 0.0
      %6042 = vmatmul.mubr.f32.gmra.mrb[0].mxu0 %v5969
      %v6043 = vpop.f32.mrb[0].mxu0
      %v6044 = vadd.f32 0.0, %v6043
      %v6045 = vpop.f32.mrb[0].mxu0
      %6046 = vmatprep.mubr.f32.mxu0 0.0
      %6047 = vmatmul.mubr.f32.gmra.mrb[0].mxu0 %v5972
      %v6048 = vpop.f32.mrb[0].mxu0
      %v6049 = vadd.f32 0.0, %v6048
      %v6050 = vpop.f32.mrb[0].mxu0
      %6051 = vmatprep.mubr.f32.mxu0 0.0
      %6052 = vmatmul.mubr.f32.gmra.mrb[0].mxu0 %v5975
      %v6053 = vpop.f32.mrb[0].mxu0
      %v6054 = vadd.f32 0.0, %v6053
      %v6055 = vpop.f32.mrb[0].mxu0
      %6056 = vdwg.mxu0
      %v6057 = vadd.f32 %v5464, %v6044
      %v6058 = vadd.f32 %v5465, %v6049
      %v6059 = vadd.f32 %v5466, %v6054
      %v6060 = vadd.f32 %v3621, %v6057
      %v6061 = vadd.f32 %v3622, %v6058
      %v6062 = vadd.f32 %v3623, %v6059
      %s6063 = scalar_lea.vmem %s13, 1
      %v6064 = vld [vmem:[%s6063] sm:$0x1]
      %v6066 = vlaneseq
      %v6067 = vshrl.u32 %v6066, 7
      %v6068 = vsub.s32 0, %v6067
      %v6069 = vrot.slane %v6064, %v6068
      %v6071 = vadd.f32 %v6060, %v6069
      %v6072 = vadd.f32 %v6061, %v6069
      %v6073 = vadd.f32 %v6062, %v6069
      %s6074 = scalar_lea.vmem %s14, 1
      %v6075 = vld [vmem:[%s6074] sm:$0x1]
      %s6076 = scalar_lea.vmem %s15, 1
      %v6077 = vld [vmem:[%s6076] sm:$0x1]
      %v6078 = vsel %vm899, %v6071, 0.0
      %6079 = vadd.xlane.f32.xlu0 %v6078
      %v6080 = vpop.xlane.xlu0 %6079
      %v6081 = vsel %vm899, %v6072, 0.0
      %6082 = vadd.xlane.f32.xlu0 %v6081
      %v6083 = vpop.xlane.xlu0 %6082
      %v6084 = vsel %vm899, %v6073, 0.0
      %6085 = vadd.xlane.f32.xlu0 %v6084
      %v6086 = vpop.xlane.xlu0 %6085
      %v6087 = vmul.f32 %v6080, %v909
      %v6088 = vmul.f32 %v6083, %v909
      %v6089 = vmul.f32 %v6086, %v909
      %v6090 = vsub.f32 %v6071, %v6087
      %v6091 = vsub.f32 %v6072, %v6088
      %v6092 = vsub.f32 %v6073, %v6089
      %v6093 = vmul.f32 %v6090, %v6090
      %v6094 = vmul.f32 %v6091, %v6091
      %v6095 = vmul.f32 %v6092, %v6092
      %v6096 = vsel %vm899, %v6093, 0.0
      %6097 = vadd.xlane.f32.xlu0 %v6096
      %v6098 = vpop.xlane.xlu0 %6097
      %v6099 = vsel %vm899, %v6094, 0.0
      %6100 = vadd.xlane.f32.xlu0 %v6099
      %v6101 = vpop.xlane.xlu0 %6100
      %v6102 = vsel %vm899, %v6095, 0.0
      %6103 = vadd.xlane.f32.xlu0 %v6102
      %v6104 = vpop.xlane.xlu0 %6103
      %v6105 = vmul.f32 %v6098, %v909
      %v6106 = vmul.f32 %v6101, %v909
      %v6107 = vmul.f32 %v6104, %v909
      %v6108 = vadd.f32 %v6105, 1e-06
      %v6109 = vadd.f32 %v6106, 1e-06
      %v6110 = vadd.f32 %v6107, 1e-06
      %v6111 = vrsqrt.pop %v6108
      %v6112 = vrsqrt.pop %v6109
      %v6113 = vrsqrt.pop %v6110
      %v6114 = vmul.f32 %v6090, %v6111
      %v6115 = vmul.f32 %v6091, %v6112
      %v6116 = vmul.f32 %v6092, %v6113
      %v6118 = vlaneseq
      %v6119 = vshrl.u32 %v6118, 7
      %v6120 = vsub.s32 0, %v6119
      %v6121 = vrot.slane %v6075, %v6120
      %v6123 = vmul.f32 %v6114, %v6121
      %v6124 = vmul.f32 %v6115, %v6121
      %v6125 = vmul.f32 %v6116, %v6121
      %v6127 = vlaneseq
      %v6128 = vshrl.u32 %v6127, 7
      %v6129 = vsub.s32 0, %v6128
      %v6130 = vrot.slane %v6077, %v6129
      %v6132 = vadd.f32 %v6123, %v6130
      %v6133 = vadd.f32 %v6124, %v6130
      %v6134 = vadd.f32 %v6125, %v6130
      %s6135 = scalar_lea.vmem %s16, 32
      %v6136 = vld [vmem:[%s6135] sm:$0xff]
      %v6137 = vld [vmem:[%s6135 + $0x8] sm:$0xff]
      %v6138 = vld [vmem:[%s6135 + $0x10] sm:$0xff]
      %v6139 = vld [vmem:[%s6135 + $0x18] sm:$0xff]
      %s6140 = scalar_lea.vmem %s17, 1
      %v6141 = vld [vmem:[%s6140] sm:$0x1]
      %v6143 = vlaneseq
      %v6144 = vshrl.u32 %v6143, 7
      %v6145 = vsub.s32 0, %v6144
      %v6146 = vrot.slane %v6141, %v6145
      %v6149 = vsel %vm899, %v6132, 0
      %v6152 = vsel %vm899, %v6133, 0
      %v6155 = vsel %vm899, %v6134, 0
      %6157 = vmatprep.subr.mxu0 0.0
      %6158 = vmatpush1.msra.mxu0 %v6136
      %6159 = vmatprep.subr.mxu0 0.0
      %6160 = vmatpush1.msra.mxu0 %v6137
      %6161 = vmatprep.subr.mxu0 0.0
      %6162 = vmatpush1.msra.mxu0 %v6138
      %6163 = vmatprep.subr.mxu0 0.0
      %6164 = vmatpush1.msra.mxu0 %v6139
      %6165 = vmatprep.subr.mxu0 0.0
      %6166 = vmatpush1.msra.mxu0 0.0
      %6167 = vmatprep.subr.mxu0 0.0
      %6168 = vmatpush1.msra.mxu0 0.0
      %6169 = vmatprep.subr.mxu0 0.0
      %6170 = vmatpush1.msra.mxu0 0.0
      %6171 = vmatprep.subr.mxu0 0.0
      %6172 = vmatpush1.msra.mxu0 0.0
      %6173 = vmatprep.subr.mxu0 0.0
      %6174 = vmatpush1.msra.mxu0 0.0
      %6175 = vmatprep.subr.mxu0 0.0
      %6176 = vmatpush1.msra.mxu0 0.0
      %6177 = vmatprep.subr.mxu0 0.0
      %6178 = vmatpush1.msra.mxu0 0.0
      %6179 = vmatprep.subr.mxu0 0.0
      %6180 = vmatpush1.msra.mxu0 0.0
      %6181 = vmatprep.subr.mxu0 0.0
      %6182 = vmatpush1.msra.mxu0 0.0
      %6183 = vmatprep.subr.mxu0 0.0
      %6184 = vmatpush1.msra.mxu0 0.0
      %6185 = vmatprep.subr.mxu0 0.0
      %6186 = vmatpush1.msra.mxu0 0.0
      %6187 = vmatprep.subr.mxu0 0.0
      %6188 = vmatpush1.msra.mxu0 0.0
      %6189 = vmatprep.subr.mxu0 0.0
      %6190 = vmatpush1.msra.mxu0 0.0
      %6191 = vmatprep.subr.mxu0 0.0
      %6192 = vmatpush1.msra.mxu0 0.0
      %6193 = vmatprep.subr.mxu0 0.0
      %6194 = vmatpush1.msra.mxu0 0.0
      %6195 = vmatprep.subr.mxu0 0.0
      %6196 = vmatpush1.msra.mxu0 0.0
      %6197 = vmatprep.subr.mxu0 0.0
      %6198 = vmatpush1.msra.mxu0 0.0
      %6199 = vmatprep.subr.mxu0 0.0
      %6200 = vmatpush1.msra.mxu0 0.0
      %6201 = vmatprep.subr.mxu0 0.0
      %6202 = vmatpush1.msra.mxu0 0.0
      %6203 = vmatprep.subr.mxu0 0.0
      %6204 = vmatpush1.msra.mxu0 0.0
      %6205 = vmatprep.subr.mxu0 0.0
      %6206 = vmatpush1.msra.mxu0 0.0
      %6207 = vmatprep.subr.mxu0 0.0
      %6208 = vmatpush1.msra.mxu0 0.0
      %6209 = vmatprep.subr.mxu0 0.0
      %6210 = vmatpush1.msra.mxu0 0.0
      %6211 = vmatprep.subr.mxu0 0.0
      %6212 = vmatpush1.msra.mxu0 0.0
      %6213 = vmatprep.subr.mxu0 0.0
      %6214 = vmatpush1.msra.mxu0 0.0
      %6215 = vmatprep.subr.mxu0 0.0
      %6216 = vmatpush1.msra.mxu0 0.0
      %6217 = vmatprep.subr.mxu0 0.0
      %6218 = vmatpush1.msra.mxu0 0.0
      %6219 = vmatprep.subr.mxu0 0.0
      %6220 = vmatpush1.msra.mxu0 0.0
      %6221 = vmatprep.mubr.f32.mxu0 0.0
      %6222 = vmatmul.mubr.f32.gmra.mrb[0].mxu0 %v6149
      %v6223 = vpop.f32.mrb[0].mxu0
      %v6224 = vadd.f32 %v6146, %v6223
      %v6225 = vpop.f32.mrb[0].mxu0
      %6226 = vmatprep.mubr.f32.mxu0 0.0
      %6227 = vmatmul.mubr.f32.gmra.mrb[0].mxu0 %v6152
      %v6228 = vpop.f32.mrb[0].mxu0
      %v6229 = vadd.f32 %v6146, %v6228
      %v6230 = vpop.f32.mrb[0].mxu0
      %6231 = vmatprep.mubr.f32.mxu0 0.0
      %6232 = vmatmul.mubr.f32.gmra.mrb[0].mxu0 %v6155
      %v6233 = vpop.f32.mrb[0].mxu0
      %v6234 = vadd.f32 %v6146, %v6233
      %v6235 = vpop.f32.mrb[0].mxu0
      %6236 = vdwg.mxu0
      %v6237 = vmul.f32 %v6224, 0.5
      %v6238 = vmul.f32 %v6229, 0.5
      %v6239 = vmul.f32 %v6234, 0.5
      %v6240 = vmul.f32 %v6224, 0.70710677
      %v6241 = vmul.f32 %v6229, 0.70710677
      %v6242 = vmul.f32 %v6234, 0.70710677
      %v6243 = verf.f32.pop %v6240
      %v6244 = verf.f32.pop %v6241
      %v6245 = verf.f32.pop %v6242
      %v6246 = vadd.f32 %v6243, 1.0
      %v6247 = vadd.f32 %v6244, 1.0
      %v6248 = vadd.f32 %v6245, 1.0
      %v6249 = vmul.f32 %v6237, %v6246
      %v6250 = vmul.f32 %v6238, %v6247
      %v6251 = vmul.f32 %v6239, %v6248
      %s6252 = scalar_lea.vmem %s18, 128
      %v6253 = vld [vmem:[%s6252] sm:$0xff]
      %v6254 = vld [vmem:[%s6252 + $0x8] sm:$0xff]
      %v6255 = vld [vmem:[%s6252 + $0x10] sm:$0xff]
      %v6256 = vld [vmem:[%s6252 + $0x18] sm:$0xff]
      %v6257 = vld [vmem:[%s6252 + $0x20] sm:$0xff]
      %v6258 = vld [vmem:[%s6252 + $0x28] sm:$0xff]
      %v6259 = vld [vmem:[%s6252 + $0x30] sm:$0xff]
      %v6260 = vld [vmem:[%s6252 + $0x38] sm:$0xff]
      %v6261 = vld [vmem:[%s6252 + $0x40] sm:$0xff]
      %v6262 = vld [vmem:[%s6252 + $0x48] sm:$0xff]
      %v6263 = vld [vmem:[%s6252 + $0x50] sm:$0xff]
      %v6264 = vld [vmem:[%s6252 + $0x58] sm:$0xff]
      %v6265 = vld [vmem:[%s6252 + $0x60] sm:$0xff]
      %v6266 = vld [vmem:[%s6252 + $0x68] sm:$0xff]
      %v6267 = vld [vmem:[%s6252 + $0x70] sm:$0xff]
      %v6268 = vld [vmem:[%s6252 + $0x78] sm:$0xff]
      %6269 = vmatprep.subr.mxu0 0.0
      %6270 = vmatpush1.msra.mxu0 %v6253
      %6271 = vmatprep.subr.mxu0 0.0
      %6272 = vmatpush1.msra.mxu0 %v6254
      %6273 = vmatprep.subr.mxu0 0.0
      %6274 = vmatpush1.msra.mxu0 %v6255
      %6275 = vmatprep.subr.mxu0 0.0
      %6276 = vmatpush1.msra.mxu0 %v6256
      %6277 = vmatprep.subr.mxu0 0.0
      %6278 = vmatpush1.msra.mxu0 %v6257
      %6279 = vmatprep.subr.mxu0 0.0
      %6280 = vmatpush1.msra.mxu0 %v6258
      %6281 = vmatprep.subr.mxu0 0.0
      %6282 = vmatpush1.msra.mxu0 %v6259
      %6283 = vmatprep.subr.mxu0 0.0
      %6284 = vmatpush1.msra.mxu0 %v6260
      %6285 = vmatprep.subr.mxu0 0.0
      %6286 = vmatpush1.msra.mxu0 %v6261
      %6287 = vmatprep.subr.mxu0 0.0
      %6288 = vmatpush1.msra.mxu0 %v6262
      %6289 = vmatprep.subr.mxu0 0.0
      %6290 = vmatpush1.msra.mxu0 %v6263
      %6291 = vmatprep.subr.mxu0 0.0
      %6292 = vmatpush1.msra.mxu0 %v6264
      %6293 = vmatprep.subr.mxu0 0.0
      %6294 = vmatpush1.msra.mxu0 %v6265
      %6295 = vmatprep.subr.mxu0 0.0
      %6296 = vmatpush1.msra.mxu0 %v6266
      %6297 = vmatprep.subr.mxu0 0.0
      %6298 = vmatpush1.msra.mxu0 %v6267
      %6299 = vmatprep.subr.mxu0 0.0
      %6300 = vmatpush1.msra.mxu0 %v6268
      %6301 = vmatprep.subr.mxu0 0.0
      %6302 = vmatpush1.msra.mxu0 0.0
      %6303 = vmatprep.subr.mxu0 0.0
      %6304 = vmatpush1.msra.mxu0 0.0
      %6305 = vmatprep.subr.mxu0 0.0
      %6306 = vmatpush1.msra.mxu0 0.0
      %6307 = vmatprep.subr.mxu0 0.0
      %6308 = vmatpush1.msra.mxu0 0.0
      %6309 = vmatprep.subr.mxu0 0.0
      %6310 = vmatpush1.msra.mxu0 0.0
      %6311 = vmatprep.subr.mxu0 0.0
      %6312 = vmatpush1.msra.mxu0 0.0
      %6313 = vmatprep.subr.mxu0 0.0
      %6314 = vmatpush1.msra.mxu0 0.0
      %6315 = vmatprep.subr.mxu0 0.0
      %6316 = vmatpush1.msra.mxu0 0.0
      %6317 = vmatprep.subr.mxu0 0.0
      %6318 = vmatpush1.msra.mxu0 0.0
      %6319 = vmatprep.subr.mxu0 0.0
      %6320 = vmatpush1.msra.mxu0 0.0
      %6321 = vmatprep.subr.mxu0 0.0
      %6322 = vmatpush1.msra.mxu0 0.0
      %6323 = vmatprep.subr.mxu0 0.0
      %6324 = vmatpush1.msra.mxu0 0.0
      %6325 = vmatprep.subr.mxu0 0.0
      %6326 = vmatpush1.msra.mxu0 0.0
      %6327 = vmatprep.subr.mxu0 0.0
      %6328 = vmatpush1.msra.mxu0 0.0
      %6329 = vmatprep.subr.mxu0 0.0
      %6330 = vmatpush1.msra.mxu0 0.0
      %6331 = vmatprep.subr.mxu0 0.0
      %6332 = vmatpush1.msra.mxu0 0.0
      %6333 = vmatprep.mubr.f32.mxu0 0.0
      %6334 = vmatmul.mubr.f32.gmra.mrb[0].mxu0 %v6249
      %v6335 = vpop.f32.mrb[0].mxu0
      %v6336 = vpop.f32.mrb[0].mxu0
      %6337 = vmatprep.mubr.f32.mxu0 0.0
      %6338 = vmatmul.mubr.f32.gmra.mrb[0].mxu0 %v6250
      %v6339 = vpop.f32.mrb[0].mxu0
      %v6340 = vpop.f32.mrb[0].mxu0
      %6341 = vmatprep.mubr.f32.mxu0 0.0
      %6342 = vmatmul.mubr.f32.gmra.mrb[0].mxu0 %v6251
      %v6343 = vpop.f32.mrb[0].mxu0
      %v6344 = vadd.f32 0.0, %v6343
      %v6345 = vpop.f32.mrb[0].mxu0
      %6346 = vdwg.mxu0
      %v6347 = vadd.f32 %v6073, %v6344
      %s6348 = scalar_lea.vmem %s19, 1
      %v6349 = vld [vmem:[%s6348] sm:$0x1]
      %v6351 = vlaneseq
      %v6352 = vshrl.u32 %v6351, 7
      %v6353 = vsub.s32 0, %v6352
      %v6354 = vrot.slane %v6349, %v6353
      %v6356 = vadd.f32 %v6347, %v6354
      %v6357 = vld [vmem:[%s20] sm:$0x1]
      %v6358 = vld [vmem:[%s21] sm:$0x1]
      %v6359 = vsel %vm899, %v6356, 0.0
      %6360 = vadd.xlane.f32.xlu0 %v6359
      %v6361 = vpop.xlane.xlu0 %6360
      %v6362 = vmul.f32 %v6361, %v909
      %v6363 = vsub.f32 %v6356, %v6362
      %v6364 = vmul.f32 %v6363, %v6363
      %v6365 = vsel %vm899, %v6364, 0.0
      %6366 = vadd.xlane.f32.xlu0 %v6365
      %v6367 = vpop.xlane.xlu0 %6366
      %v6368 = vmul.f32 %v6367, %v909
      %v6369 = vadd.f32 %v6368, 1e-06
      %v6370 = vrsqrt.pop %v6369
      %v6371 = vmul.f32 %v6363, %v6370
      %v6373 = vlaneseq
      %v6374 = vshrl.u32 %v6373, 7
      %v6375 = vsub.s32 0, %v6374
      %v6376 = vrot.slane %v6357, %v6375
      %v6378 = vmul.f32 %v6371, %v6376
      %v6380 = vlaneseq
      %v6381 = vshrl.u32 %v6380, 7
      %v6382 = vsub.s32 0, %v6381
      %v6383 = vrot.slane %v6358, %v6382
      %v6385 = vadd.f32 %v6378, %v6383
      %v6386 = vld [vmem:[%s22] sm:$0xff]
      %v6387 = vld [vmem:[%s22 + $0x8] sm:$0xff]
      %v6388 = vld [vmem:[%s22 + $0x10] sm:$0xff]
      %v6389 = vld [vmem:[%s22 + $0x18] sm:$0xff]
      %v6390 = vld [vmem:[%s23] sm:$0x1]
      %v6392 = vlaneseq
      %v6393 = vshrl.u32 %v6392, 7
      %v6394 = vsub.s32 0, %v6393
      %v6395 = vrot.slane %v6390, %v6394
      %v6398 = vsel %vm899, %v6385, 0
      %6400 = vmatprep.subr.mxu0 0.0
      %6401 = vmatpush1.msra.mxu0 %v6386
      %6402 = vmatprep.subr.mxu0 0.0
      %6403 = vmatpush1.msra.mxu0 %v6387
      %6404 = vmatprep.subr.mxu0 0.0
      %6405 = vmatpush1.msra.mxu0 %v6388
      %6406 = vmatprep.subr.mxu0 0.0
      %6407 = vmatpush1.msra.mxu0 %v6389
      %6408 = vmatprep.subr.mxu0 0.0
      %6409 = vmatpush1.msra.mxu0 0.0
      %6410 = vmatprep.subr.mxu0 0.0
      %6411 = vmatpush1.msra.mxu0 0.0
      %6412 = vmatprep.subr.mxu0 0.0
      %6413 = vmatpush1.msra.mxu0 0.0
      %6414 = vmatprep.subr.mxu0 0.0
      %6415 = vmatpush1.msra.mxu0 0.0
      %6416 = vmatprep.subr.mxu0 0.0
      %6417 = vmatpush1.msra.mxu0 0.0
      %6418 = vmatprep.subr.mxu0 0.0
      %6419 = vmatpush1.msra.mxu0 0.0
      %6420 = vmatprep.subr.mxu0 0.0
      %6421 = vmatpush1.msra.mxu0 0.0
      %6422 = vmatprep.subr.mxu0 0.0
      %6423 = vmatpush1.msra.mxu0 0.0
      %6424 = vmatprep.subr.mxu0 0.0
      %6425 = vmatpush1.msra.mxu0 0.0
      %6426 = vmatprep.subr.mxu0 0.0
      %6427 = vmatpush1.msra.mxu0 0.0
      %6428 = vmatprep.subr.mxu0 0.0
      %6429 = vmatpush1.msra.mxu0 0.0
      %6430 = vmatprep.subr.mxu0 0.0
      %6431 = vmatpush1.msra.mxu0 0.0
      %6432 = vmatprep.subr.mxu0 0.0
      %6433 = vmatpush1.msra.mxu0 0.0
      %6434 = vmatprep.subr.mxu0 0.0
      %6435 = vmatpush1.msra.mxu0 0.0
      %6436 = vmatprep.subr.mxu0 0.0
      %6437 = vmatpush1.msra.mxu0 0.0
      %6438 = vmatprep.subr.mxu0 0.0
      %6439 = vmatpush1.msra.mxu0 0.0
      %6440 = vmatprep.subr.mxu0 0.0
      %6441 = vmatpush1.msra.mxu0 0.0
      %6442 = vmatprep.subr.mxu0 0.0
      %6443 = vmatpush1.msra.mxu0 0.0
      %6444 = vmatprep.subr.mxu0 0.0
      %6445 = vmatpush1.msra.mxu0 0.0
      %6446 = vmatprep.subr.mxu0 0.0
      %6447 = vmatpush1.msra.mxu0 0.0
      %6448 = vmatprep.subr.mxu0 0.0
      %6449 = vmatpush1.msra.mxu0 0.0
      %6450 = vmatprep.subr.mxu0 0.0
      %6451 = vmatpush1.msra.mxu0 0.0
      %6452 = vmatprep.subr.mxu0 0.0
      %6453 = vmatpush1.msra.mxu0 0.0
      %6454 = vmatprep.subr.mxu0 0.0
      %6455 = vmatpush1.msra.mxu0 0.0
      %6456 = vmatprep.subr.mxu0 0.0
      %6457 = vmatpush1.msra.mxu0 0.0
      %6458 = vmatprep.subr.mxu0 0.0
      %6459 = vmatpush1.msra.mxu0 0.0
      %6460 = vmatprep.subr.mxu0 0.0
      %6461 = vmatpush1.msra.mxu0 0.0
      %6462 = vmatprep.subr.mxu0 0.0
      %6463 = vmatpush1.msra.mxu0 0.0
      %6464 = vmatprep.mubr.f32.mxu0 0.0
      %6465 = vmatmul.mubr.f32.gmra.mrb[0].mxu0 %v6398
      %v6466 = vpop.f32.mrb[0].mxu0
      %v6467 = vadd.f32 %v6395, %v6466
      %v6468 = vpop.f32.mrb[0].mxu0
      %6469 = vdwg.mxu0
      %v6470 = vmax.f32 %v6467, 0.0
      %v6471 = vld [vmem:[%s24] sm:$0xff]
      %v6472 = vld [vmem:[%s24 + $0x8] sm:$0xff]
      %v6473 = vld [vmem:[%s24 + $0x10] sm:$0xff]
      %v6474 = vld [vmem:[%s24 + $0x18] sm:$0xff]
      %v6475 = vld [vmem:[%s25] sm:$0x1]
      %v6477 = vlaneseq
      %v6478 = vshrl.u32 %v6477, 7
      %v6479 = vsub.s32 0, %v6478
      %v6480 = vrot.slane %v6475, %v6479
      %v6483 = vsel %vm899, %v6470, 0
      %6485 = vmatprep.subr.mxu0 0.0
      %6486 = vmatpush1.msra.mxu0 %v6471
      %6487 = vmatprep.subr.mxu0 0.0
      %6488 = vmatpush1.msra.mxu0 %v6472
      %6489 = vmatprep.subr.mxu0 0.0
      %6490 = vmatpush1.msra.mxu0 %v6473
      %6491 = vmatprep.subr.mxu0 0.0
      %6492 = vmatpush1.msra.mxu0 %v6474
      %6493 = vmatprep.subr.mxu0 0.0
      %6494 = vmatpush1.msra.mxu0 0.0
      %6495 = vmatprep.subr.mxu0 0.0
      %6496 = vmatpush1.msra.mxu0 0.0
      %6497 = vmatprep.subr.mxu0 0.0
      %6498 = vmatpush1.msra.mxu0 0.0
      %6499 = vmatprep.subr.mxu0 0.0
      %6500 = vmatpush1.msra.mxu0 0.0
      %6501 = vmatprep.subr.mxu0 0.0
      %6502 = vmatpush1.msra.mxu0 0.0
      %6503 = vmatprep.subr.mxu0 0.0
      %6504 = vmatpush1.msra.mxu0 0.0
      %6505 = vmatprep.subr.mxu0 0.0
      %6506 = vmatpush1.msra.mxu0 0.0
      %6507 = vmatprep.subr.mxu0 0.0
      %6508 = vmatpush1.msra.mxu0 0.0
      %6509 = vmatprep.subr.mxu0 0.0
      %6510 = vmatpush1.msra.mxu0 0.0
      %6511 = vmatprep.subr.mxu0 0.0
      %6512 = vmatpush1.msra.mxu0 0.0
      %6513 = vmatprep.subr.mxu0 0.0
      %6514 = vmatpush1.msra.mxu0 0.0
      %6515 = vmatprep.subr.mxu0 0.0
      %6516 = vmatpush1.msra.mxu0 0.0
      %6517 = vmatprep.subr.mxu0 0.0
      %6518 = vmatpush1.msra.mxu0 0.0
      %6519 = vmatprep.subr.mxu0 0.0
      %6520 = vmatpush1.msra.mxu0 0.0
      %6521 = vmatprep.subr.mxu0 0.0
      %6522 = vmatpush1.msra.mxu0 0.0
      %6523 = vmatprep.subr.mxu0 0.0
      %6524 = vmatpush1.msra.mxu0 0.0
      %6525 = vmatprep.subr.mxu0 0.0
      %6526 = vmatpush1.msra.mxu0 0.0
      %6527 = vmatprep.subr.mxu0 0.0
      %6528 = vmatpush1.msra.mxu0 0.0
      %6529 = vmatprep.subr.mxu0 0.0
      %6530 = vmatpush1.msra.mxu0 0.0
      %6531 = vmatprep.subr.mxu0 0.0
      %6532 = vmatpush1.msra.mxu0 0.0
      %6533 = vmatprep.subr.mxu0 0.0
      %6534 = vmatpush1.msra.mxu0 0.0
      %6535 = vmatprep.subr.mxu0 0.0
      %6536 = vmatpush1.msra.mxu0 0.0
      %6537 = vmatprep.subr.mxu0 0.0
      %6538 = vmatpush1.msra.mxu0 0.0
      %6539 = vmatprep.subr.mxu0 0.0
      %6540 = vmatpush1.msra.mxu0 0.0
      %6541 = vmatprep.subr.mxu0 0.0
      %6542 = vmatpush1.msra.mxu0 0.0
      %6543 = vmatprep.subr.mxu0 0.0
      %6544 = vmatpush1.msra.mxu0 0.0
      %6545 = vmatprep.subr.mxu0 0.0
      %6546 = vmatpush1.msra.mxu0 0.0
      %6547 = vmatprep.subr.mxu0 0.0
      %6548 = vmatpush1.msra.mxu0 0.0
      %6549 = vmatprep.mubr.f32.mxu0 0.0
      %6550 = vmatmul.mubr.f32.gmra.mrb[0].mxu0 %v6483
      %v6551 = vpop.f32.mrb[0].mxu0
      %v6552 = vadd.f32 %v6480, %v6551
      %v6553 = vpop.f32.mrb[0].mxu0
      %6554 = vdwg.mxu0
      %6555 = vst [vmem:[%s789] sm:$0xff] %v6552
      %p6556 = scmp.lt.s32.totalorder %s37, 1
      %s6557 = scalar_select %p6556, %s37, 1
      %s6558 = smul.addr %s6557, 8
      %s6559 = scalar_lea.vmem %s26, %s6558
      // Predicated region
      $region125: #{supcon_vit_forward.1} parent=123 // pred_check
        %p6560 = pneg %p606
      $region126: #{supcon_vit_forward.1} parent=123 // pred_check_branch
        %6562 = sbr.rel (%p6560) target = $region128
      $region127: #{supcon_vit_forward.1} parent=123 // pred_region
        _
      $region128: #{supcon_vit_forward.1} parent=123 // pred_fallthru
        _
    $region124: #{supcon_vit_forward.1} parent=5 // pred_fallthru
      _
    %p6563 = scmp.le.s32.totalorder 2, %s32
    // Predicated region
    $region129: #{supcon_vit_forward.1} parent=5 // pred_check
      %p6564 = pneg %p6563
    $region130: #{supcon_vit_forward.1} parent=5 // pred_check_branch
      %6566 = sbr.rel (%p6564) target = $region132
    $region131: #{supcon_vit_forward.1} parent=5 // pred_region
      %s6567 = ssub.s32 %s32, 2
      // Predicated region
      $region133: #{supcon_vit_forward.1} parent=131 // pred_check
        %p6568 = pneg %p612
      $region134: #{supcon_vit_forward.1} parent=131 // pred_check_branch
        %6570 = sbr.rel (%p6568) target = $region136
      $region135: #{supcon_vit_forward.1} parent=131 // pred_region
        %p6571 = scmp.lt.s32.totalorder %s38, 1
        %s6572 = scalar_select %p6571, %s38, 1
        %s6573 = smul.addr %s6572, 8
        %s6574 = scalar_lea.vmem %s26, %s6573
      $region136: #{supcon_vit_forward.1} parent=131 // pred_fallthru
        _
    $region132: #{supcon_vit_forward.1} parent=5 // pred_fallthru
      _
  $region6: #{supcon_vit_forward.1} parent=0 // loop_footer
    %s36 = sadd.s32 1, %s32
  $region7: #{supcon_vit_forward.1} parent=0 // loop_footer_branch
    %31 = sbr.rel target = $region3
  $region8: #{supcon_vit_forward.1} parent=0 // loop_exit
    _

</llo_original>
